<compile_context>
chip_gen: v7x
topology: tpu7x:2x2x1
jax: 0.10.0
libtpu: 0.0.40
codegen_flags: <defaults>
</compile_context>

<pallas_src>
import math

import jax
import jax.numpy as jnp
from jax import lax
from jax.experimental import pallas as pl
from jax.experimental.pallas import tpu as pltpu

IN_DIM = 4096
HID = 256
NPAD = 128        # fc3 output padded to a full 128-lane register; trimmed by the consumer
BN_EPS = 1e-5


def mlp_kernel(x_ref, w1_ref, b1_ref, w2_ref, b2_ref, w3_ref, b3_ref, o_ref):
    # fc1 (+ folded bn1) + (dropout=identity) + relu ; x already bf16 in VMEM
    h = jnp.dot(x_ref[...], w1_ref[...],
                preferred_element_type=jnp.float32) + b1_ref[...]
    h = jnp.maximum(h, 0.0)

    # fc2 (+ folded bn2) + (dropout=identity) + relu
    h = jnp.dot(h.astype(jnp.bfloat16), w2_ref[...],
                preferred_element_type=jnp.float32) + b2_ref[...]
    h = jnp.maximum(h, 0.0)

    # fc3 (padded to NPAD output lanes -> unmasked lane-dense stores)
    o_ref[...] = jnp.dot(h.astype(jnp.bfloat16), w3_ref[...],
                         preferred_element_type=jnp.float32) + b3_ref[...]


def _fold_bn(w, b, gamma, beta, mean, var):
    """Fold eval-mode BatchNorm1d into the preceding Linear (w is (in,out))."""
    scale = gamma * lax.rsqrt(var + BN_EPS)          # (out,)
    w_f = w * scale[None, :]
    b_f = (b - mean) * scale + beta
    return w_f, b_f


def init_params(key, num_classes):
    """Deterministic re-implementation of weights_init, with BN folded and
    weights cast to bf16 (biases kept f32, added post-accumulation)."""
    k1, k2, k3 = jax.random.split(key, 3)

    def linear(k, fan_in, fan_out):
        bound = math.sqrt(6.0 / (fan_in + fan_out))
        # stored as (in, out) == PyTorch weight (out, in) transposed
        w = jax.random.uniform(k, (fan_in, fan_out), jnp.float32, -bound, bound)
        b = jnp.zeros((fan_out,), jnp.float32)
        return w, b

    w1, b1 = linear(k1, IN_DIM, HID)
    w2, b2 = linear(k2, HID, HID)
    w3, b3 = linear(k3, HID, num_classes)

    def bn():
        gamma = jnp.ones((HID,), jnp.float32)
        beta = jnp.zeros((HID,), jnp.float32)
        rmean = jnp.zeros((HID,), jnp.float32)
        rvar = jnp.ones((HID,), jnp.float32)
        return gamma, beta, rmean, rvar

    # Fold eval-mode BN into fc1 / fc2 (one-time constant fold, pure win).
    w1, b1 = _fold_bn(w1, b1, *bn())
    w2, b2 = _fold_bn(w2, b2, *bn())

    # Pad fc3 to NPAD output lanes with zeros (consumer slices them off).
    w3p = jnp.zeros((HID, NPAD), jnp.float32).at[:, :num_classes].set(w3)
    b3p = jnp.zeros((NPAD,), jnp.float32).at[:num_classes].set(b3)

    # bf16 weights for HBM/MXU; biases stay f32 (added after f32 accumulation).
    # TODO(synk): v7x-only fp8 w1 quantization skipped (accuracy budget unclear).
    return (w1.astype(jnp.bfloat16), b1.reshape(1, HID),
            w2.astype(jnp.bfloat16), b2.reshape(1, HID),
            w3p.astype(jnp.bfloat16), b3p.reshape(1, NPAD))


def _pick_tb(B, cap=512, min_steps=4):
    """Largest batch tile <= cap dividing B that still yields >= min_steps grid
    steps (keeps both v7x TCs busy and hides x prefetch behind the MXU); falls
    back to the divisor maximizing step count otherwise.  Multiple of 8 for
    sublane granularity."""
    tbs = [t for t in (512, 256, 128, 64, 32, 16, 8) if t <= cap and B % t == 0]
    if not tbs:
        raise ValueError("batch size must be a multiple of 8")
    for t in tbs:                       # descending: largest tile first
        if B // t >= min_steps:
            return t
    return tbs[-1]                      # small B: maximize step count instead


def _run(x, params, TB, B, single_buffer_weights):
    if single_buffer_weights:
        # Constant index maps -> fetched once; one buffer is enough.
        wspec = lambda shape: pl.BlockSpec(shape, lambda i: (0, 0),
                                           pipeline_mode=pl.Buffered(1))
    else:
        wspec = lambda shape: pl.BlockSpec(shape, lambda i: (0, 0))

    in_specs = [
        pl.BlockSpec((TB, IN_DIM), lambda i: (i, 0)),   # bf16 x tile, pipelined over batch
        wspec((IN_DIM, HID)), wspec((1, HID)),          # w1 (bn1-folded, bf16), b1
        wspec((HID, HID)), wspec((1, HID)),             # w2 (bn2-folded, bf16), b2
        wspec((HID, NPAD)), wspec((1, NPAD)),           # w3 (padded, bf16), b3
    ]

    return pl.pallas_call(
        mlp_kernel,
        out_shape=jax.ShapeDtypeStruct((B, NPAD), jnp.float32),
        grid=(pl.cdiv(B, TB),),
        in_specs=in_specs,
        out_specs=pl.BlockSpec((TB, NPAD), lambda i: (i, 0)),
        compiler_params=pltpu.CompilerParams(
            dimension_semantics=("parallel",),
            # ~2.2 MiB bf16 weights (single-buffered) + 2x4 MiB bf16 x tiles
            # (TB=512) + out tiles; 32 MiB fits v5e/v6e/v7x scoped VMEM.
            vmem_limit_bytes=32 << 20,
        ),
    )(x, *params)


def cifar_classifier_logits_padded(x, params, tb=None):
    """Hot-path entry point: returns padded (B, NPAD) f32 logits.  Callers
    should supply x already in bf16 (produced/stored bf16 upstream so no extra
    HBM pass is spent on the downcast)."""
    B = x.shape[0]
    TB = _pick_tb(B) if tb is None else tb
    assert B % TB == 0 and TB % 8 == 0

    if x.dtype != jnp.bfloat16:
        # Fallback only; prefer producing x in bf16 upstream (fused into the
        # producer) so this standalone cast pass never materializes.
        x = x.astype(jnp.bfloat16)

    try:
        return _run(x, params, TB, B, single_buffer_weights=True)
    except Exception:
        # TODO(synk): pl.Buffered(1) single-buffering not supported by this JAX
        # build; fall back to default double-buffered weight specs.
        return _run(x, params, TB, B, single_buffer_weights=False)


def cifar_classifier_forward(x, params, num_classes, tb=None):
    """API-parity wrapper matching the PyTorch module's (B, num_classes) output.
    For throughput, consume cifar_classifier_logits_padded directly and fuse
    the trim/argmax into the consumer."""
    return cifar_classifier_logits_padded(x, params, tb=tb)[:, :num_classes]


if __name__ == "__main__":
    num_classes = 10
    B = 16

    key = jax.random.PRNGKey(0)
    kparam, kx = jax.random.split(key)
    params = init_params(kparam, num_classes)
    # x produced directly in bf16 (CIFAR features would be stored bf16 upstream)
    x = jax.random.normal(kx, (B, IN_DIM), jnp.bfloat16)

    # Default _pick_tb gives TB=8 -> grid of 2 tiles, exercising the pipelined
    # multi-tile path.  Hot path returns padded logits; trim in the consumer.
    padded = cifar_classifier_logits_padded(x, params)
    jax.block_until_ready(padded)

    logits = padded[:, :num_classes]          # consumer-side trim (fusable)
    assert padded.shape == (B, NPAD), padded.shape
    assert logits.shape == (B, num_classes), logits.shape
    assert logits.dtype == jnp.float32

    # sanity check vs. plain-JAX reference of the same (bf16-weight/input) math
    def ref(x, p):
        (w1, b1, w2, b2, w3p, b3p) = p
        f32 = jnp.float32
        h = x.astype(f32) @ w1.astype(f32) + b1
        h = jnp.maximum(h, 0.0)
        h = h.astype(jnp.bfloat16).astype(f32) @ w2.astype(f32) + b2
        h = jnp.maximum(h, 0.0)
        h = h.astype(jnp.bfloat16).astype(f32) @ w3p.astype(f32) + b3p
        return h[:, :num_classes]

    expected = ref(x, params)
    assert jnp.allclose(logits, expected, atol=2e-2, rtol=2e-2), (
        jnp.max(jnp.abs(logits - expected)))

    print("KERNEL_OK")
</pallas_src>

<mosaic_0001>
module attributes {stable_mosaic.version = 11 : i64} {
  func.func @mlp_kernel(%arg0: i32, %arg1: memref<8x4096xbf16, #tpu.memory_space<vmem>>, %arg2: memref<4096x256xbf16, #tpu.memory_space<vmem>>, %arg3: memref<1x256xf32, #tpu.memory_space<vmem>>, %arg4: memref<256x256xbf16, #tpu.memory_space<vmem>>, %arg5: memref<1x256xf32, #tpu.memory_space<vmem>>, %arg6: memref<256x128xbf16, #tpu.memory_space<vmem>>, %arg7: memref<1x128xf32, #tpu.memory_space<vmem>>, %arg8: memref<8x128xf32, #tpu.memory_space<vmem>>) attributes {dimension_semantics = [#tpu.dimension_semantics<parallel>], iteration_bounds = array<i64: 2>, scalar_prefetch = 0 : i64, scratch_operands = 0 : i64, tpu.core_type = #tpu.core_type<tc>, window_params = [{transform_indices = @transform_0, window_bounds = array<i64: 8, 4096>}, {pipeline_mode = #tpu.pipeline_mode<synchronous>, transform_indices = @transform_1, window_bounds = array<i64: 4096, 256>}, {pipeline_mode = #tpu.pipeline_mode<synchronous>, transform_indices = @transform_2, window_bounds = array<i64: 1, 256>}, {pipeline_mode = #tpu.pipeline_mode<synchronous>, transform_indices = @transform_3, window_bounds = array<i64: 256, 256>}, {pipeline_mode = #tpu.pipeline_mode<synchronous>, transform_indices = @transform_4, window_bounds = array<i64: 1, 256>}, {pipeline_mode = #tpu.pipeline_mode<synchronous>, transform_indices = @transform_5, window_bounds = array<i64: 256, 128>}, {pipeline_mode = #tpu.pipeline_mode<synchronous>, transform_indices = @transform_6, window_bounds = array<i64: 1, 128>}, {transform_indices = @transform_7, window_bounds = array<i64: 8, 128>}]} {
    %c0 = arith.constant 0 : index
    %c0_0 = arith.constant 0 : index
    %0 = vector.load %arg1[%c0, %c0_0] : memref<8x4096xbf16, #tpu.memory_space<vmem>>, vector<8x4096xbf16>
    %c0_1 = arith.constant 0 : index
    %c0_2 = arith.constant 0 : index
    %1 = vector.load %arg2[%c0_1, %c0_2] : memref<4096x256xbf16, #tpu.memory_space<vmem>>, vector<4096x256xbf16>
    %cst = arith.constant dense<0.000000e+00> : vector<8x256xf32>
    %2 = tpu.matmul %0, %1, %cst {dimension_numbers = #tpu.dot_dimension_numbers<[1], [0], [0], [1], [0, 0, 1, 1], [], []>} : vector<8x4096xbf16>, vector<4096x256xbf16>, vector<8x256xf32> -> vector<8x256xf32>
    %c0_3 = arith.constant 0 : index
    %c0_4 = arith.constant 0 : index
    %3 = vector.load %arg3[%c0_3, %c0_4] : memref<1x256xf32, #tpu.memory_space<vmem>>, vector<1x256xf32>
    %4 = vector.broadcast %3 : vector<1x256xf32> to vector<8x256xf32>
    %5 = arith.addf %2, %4 : vector<8x256xf32>
    %cst_5 = arith.constant 0.000000e+00 : f32
    %6 = vector.broadcast %cst_5 : f32 to vector<8x256xf32>
    %7 = arith.maximumf %5, %6 : vector<8x256xf32>
    %8 = arith.truncf %7 : vector<8x256xf32> to vector<8x256xbf16>
    %c0_6 = arith.constant 0 : index
    %c0_7 = arith.constant 0 : index
    %9 = vector.load %arg4[%c0_6, %c0_7] : memref<256x256xbf16, #tpu.memory_space<vmem>>, vector<256x256xbf16>
    %cst_8 = arith.constant dense<0.000000e+00> : vector<8x256xf32>
    %10 = tpu.matmul %8, %9, %cst_8 {dimension_numbers = #tpu.dot_dimension_numbers<[1], [0], [0], [1], [0, 0, 1, 1], [], []>} : vector<8x256xbf16>, vector<256x256xbf16>, vector<8x256xf32> -> vector<8x256xf32>
    %c0_9 = arith.constant 0 : index
    %c0_10 = arith.constant 0 : index
    %11 = vector.load %arg5[%c0_9, %c0_10] : memref<1x256xf32, #tpu.memory_space<vmem>>, vector<1x256xf32>
    %12 = vector.broadcast %11 : vector<1x256xf32> to vector<8x256xf32>
    %13 = arith.addf %10, %12 : vector<8x256xf32>
    %cst_11 = arith.constant 0.000000e+00 : f32
    %14 = vector.broadcast %cst_11 : f32 to vector<8x256xf32>
    %15 = arith.maximumf %13, %14 : vector<8x256xf32>
    %16 = arith.truncf %15 : vector<8x256xf32> to vector<8x256xbf16>
    %c0_12 = arith.constant 0 : index
    %c0_13 = arith.constant 0 : index
    %17 = vector.load %arg6[%c0_12, %c0_13] : memref<256x128xbf16, #tpu.memory_space<vmem>>, vector<256x128xbf16>
    %cst_14 = arith.constant dense<0.000000e+00> : vector<8x128xf32>
    %18 = tpu.matmul %16, %17, %cst_14 {dimension_numbers = #tpu.dot_dimension_numbers<[1], [0], [0], [1], [0, 0, 1, 1], [], []>} : vector<8x256xbf16>, vector<256x128xbf16>, vector<8x128xf32> -> vector<8x128xf32>
    %c0_15 = arith.constant 0 : index
    %c0_16 = arith.constant 0 : index
    %19 = vector.load %arg7[%c0_15, %c0_16] : memref<1x128xf32, #tpu.memory_space<vmem>>, vector<1x128xf32>
    %20 = vector.broadcast %19 : vector<1x128xf32> to vector<8x128xf32>
    %21 = arith.addf %18, %20 : vector<8x128xf32>
    %c0_17 = arith.constant 0 : index
    %c0_18 = arith.constant 0 : index
    %22 = vector.load %arg8[%c0_17, %c0_18] : memref<8x128xf32, #tpu.memory_space<vmem>>, vector<8x128xf32>
    tpu.vector_store %arg8[%c0_17, %c0_18], %21 {strides = array<i32>} : memref<8x128xf32, #tpu.memory_space<vmem>>, vector<8x128xf32>,
    return
  }
  func.func @transform_0(%arg0: i32) -> (i32, i32) {
    %c0_i32 = arith.constant 0 : i32
    %c0_i32_0 = arith.constant 0 : i32
    return %arg0, %c0_i32 : i32, i32
  }
  func.func @transform_1(%arg0: i32) -> (i32, i32) {
    %c0_i32 = arith.constant 0 : i32
    %c0_i32_0 = arith.constant 0 : i32
    %c0_i32_1 = arith.constant 0 : i32
    return %c0_i32, %c0_i32_0 : i32, i32
  }
  func.func @transform_2(%arg0: i32) -> (i32, i32) {
    %c0_i32 = arith.constant 0 : i32
    %c0_i32_0 = arith.constant 0 : i32
    %c0_i32_1 = arith.constant 0 : i32
    return %c0_i32, %c0_i32_0 : i32, i32
  }
  func.func @transform_3(%arg0: i32) -> (i32, i32) {
    %c0_i32 = arith.constant 0 : i32
    %c0_i32_0 = arith.constant 0 : i32
    %c0_i32_1 = arith.constant 0 : i32
    return %c0_i32, %c0_i32_0 : i32, i32
  }
  func.func @transform_4(%arg0: i32) -> (i32, i32) {
    %c0_i32 = arith.constant 0 : i32
    %c0_i32_0 = arith.constant 0 : i32
    %c0_i32_1 = arith.constant 0 : i32
    return %c0_i32, %c0_i32_0 : i32, i32
  }
  func.func @transform_5(%arg0: i32) -> (i32, i32) {
    %c0_i32 = arith.constant 0 : i32
    %c0_i32_0 = arith.constant 0 : i32
    %c0_i32_1 = arith.constant 0 : i32
    return %c0_i32, %c0_i32_0 : i32, i32
  }
  func.func @transform_6(%arg0: i32) -> (i32, i32) {
    %c0_i32 = arith.constant 0 : i32
    %c0_i32_0 = arith.constant 0 : i32
    %c0_i32_1 = arith.constant 0 : i32
    return %c0_i32, %c0_i32_0 : i32, i32
  }
  func.func @transform_7(%arg0: i32) -> (i32, i32) {
    %c0_i32 = arith.constant 0 : i32
    %c0_i32_0 = arith.constant 0 : i32
    return %arg0, %c0_i32 : i32, i32
  }
}

module attributes {stable_mosaic.version = 11 : i64} {
  func.func @mlp_kernel(%arg0: i32, %arg1: memref<8x4096xbf16, #tpu.memory_space<vmem>>, %arg2: memref<4096x256xbf16, #tpu.memory_space<vmem>>, %arg3: memref<1x256xf32, #tpu.memory_space<vmem>>, %arg4: memref<256x256xbf16, #tpu.memory_space<vmem>>, %arg5: memref<1x256xf32, #tpu.memory_space<vmem>>, %arg6: memref<256x128xbf16, #tpu.memory_space<vmem>>, %arg7: memref<1x128xf32, #tpu.memory_space<vmem>>, %arg8: memref<8x128xf32, #tpu.memory_space<vmem>>) attributes {dimension_semantics = [#tpu.dimension_semantics<parallel>], iteration_bounds = array<i64: 2>, scalar_prefetch = 0 : i64, scratch_operands = 0 : i64, tpu.core_type = #tpu.core_type<tc>, window_params = [{transform_indices = @transform_0, window_bounds = array<i64: 8, 4096>}, {pipeline_mode = #tpu.pipeline_mode<synchronous>, transform_indices = @transform_1, window_bounds = array<i64: 4096, 256>}, {pipeline_mode = #tpu.pipeline_mode<synchronous>, transform_indices = @transform_2, window_bounds = array<i64: 1, 256>}, {pipeline_mode = #tpu.pipeline_mode<synchronous>, transform_indices = @transform_3, window_bounds = array<i64: 256, 256>}, {pipeline_mode = #tpu.pipeline_mode<synchronous>, transform_indices = @transform_4, window_bounds = array<i64: 1, 256>}, {pipeline_mode = #tpu.pipeline_mode<synchronous>, transform_indices = @transform_5, window_bounds = array<i64: 256, 128>}, {pipeline_mode = #tpu.pipeline_mode<synchronous>, transform_indices = @transform_6, window_bounds = array<i64: 1, 128>}, {transform_indices = @transform_7, window_bounds = array<i64: 8, 128>}]} {
    %c0 = arith.constant 0 : index
    %c0_0 = arith.constant 0 : index
    %0 = vector.load %arg1[%c0, %c0_0] : memref<8x4096xbf16, #tpu.memory_space<vmem>>, vector<8x4096xbf16>
    %c0_1 = arith.constant 0 : index
    %c0_2 = arith.constant 0 : index
    %1 = vector.load %arg2[%c0_1, %c0_2] : memref<4096x256xbf16, #tpu.memory_space<vmem>>, vector<4096x256xbf16>
    %cst = arith.constant dense<0.000000e+00> : vector<8x256xf32>
    %2 = tpu.matmul %0, %1, %cst {dimension_numbers = #tpu.dot_dimension_numbers<[1], [0], [0], [1], [0, 0, 1, 1], [], []>} : vector<8x4096xbf16>, vector<4096x256xbf16>, vector<8x256xf32> -> vector<8x256xf32>
    %c0_3 = arith.constant 0 : index
    %c0_4 = arith.constant 0 : index
    %3 = vector.load %arg3[%c0_3, %c0_4] : memref<1x256xf32, #tpu.memory_space<vmem>>, vector<1x256xf32>
    %4 = vector.broadcast %3 : vector<1x256xf32> to vector<8x256xf32>
    %5 = arith.addf %2, %4 : vector<8x256xf32>
    %cst_5 = arith.constant 0.000000e+00 : f32
    %6 = vector.broadcast %cst_5 : f32 to vector<8x256xf32>
    %7 = arith.maximumf %5, %6 : vector<8x256xf32>
    %8 = arith.truncf %7 : vector<8x256xf32> to vector<8x256xbf16>
    %c0_6 = arith.constant 0 : index
    %c0_7 = arith.constant 0 : index
    %9 = vector.load %arg4[%c0_6, %c0_7] : memref<256x256xbf16, #tpu.memory_space<vmem>>, vector<256x256xbf16>
    %cst_8 = arith.constant dense<0.000000e+00> : vector<8x256xf32>
    %10 = tpu.matmul %8, %9, %cst_8 {dimension_numbers = #tpu.dot_dimension_numbers<[1], [0], [0], [1], [0, 0, 1, 1], [], []>} : vector<8x256xbf16>, vector<256x256xbf16>, vector<8x256xf32> -> vector<8x256xf32>
    %c0_9 = arith.constant 0 : index
    %c0_10 = arith.constant 0 : index
    %11 = vector.load %arg5[%c0_9, %c0_10] : memref<1x256xf32, #tpu.memory_space<vmem>>, vector<1x256xf32>
    %12 = vector.broadcast %11 : vector<1x256xf32> to vector<8x256xf32>
    %13 = arith.addf %10, %12 : vector<8x256xf32>
    %cst_11 = arith.constant 0.000000e+00 : f32
    %14 = vector.broadcast %cst_11 : f32 to vector<8x256xf32>
    %15 = arith.maximumf %13, %14 : vector<8x256xf32>
    %16 = arith.truncf %15 : vector<8x256xf32> to vector<8x256xbf16>
    %c0_12 = arith.constant 0 : index
    %c0_13 = arith.constant 0 : index
    %17 = vector.load %arg6[%c0_12, %c0_13] : memref<256x128xbf16, #tpu.memory_space<vmem>>, vector<256x128xbf16>
    %cst_14 = arith.constant dense<0.000000e+00> : vector<8x128xf32>
    %18 = tpu.matmul %16, %17, %cst_14 {dimension_numbers = #tpu.dot_dimension_numbers<[1], [0], [0], [1], [0, 0, 1, 1], [], []>} : vector<8x256xbf16>, vector<256x128xbf16>, vector<8x128xf32> -> vector<8x128xf32>
    %c0_15 = arith.constant 0 : index
    %c0_16 = arith.constant 0 : index
    %19 = vector.load %arg7[%c0_15, %c0_16] : memref<1x128xf32, #tpu.memory_space<vmem>>, vector<1x128xf32>
    %20 = vector.broadcast %19 : vector<1x128xf32> to vector<8x128xf32>
    %21 = arith.addf %18, %20 : vector<8x128xf32>
    %c0_17 = arith.constant 0 : index
    %c0_18 = arith.constant 0 : index
    %22 = vector.load %arg8[%c0_17, %c0_18] : memref<8x128xf32, #tpu.memory_space<vmem>>, vector<8x128xf32>
    tpu.vector_store %arg8[%c0_17, %c0_18], %21 {strides = array<i32>} : memref<8x128xf32, #tpu.memory_space<vmem>>, vector<8x128xf32>,
    return
  }
  func.func @transform_0(%arg0: i32) -> (i32, i32) {
    %c0_i32 = arith.constant 0 : i32
    %c0_i32_0 = arith.constant 0 : i32
    return %arg0, %c0_i32 : i32, i32
  }
  func.func @transform_1(%arg0: i32) -> (i32, i32) {
    %c0_i32 = arith.constant 0 : i32
    %c0_i32_0 = arith.constant 0 : i32
    %c0_i32_1 = arith.constant 0 : i32
    return %c0_i32, %c0_i32_0 : i32, i32
  }
  func.func @transform_2(%arg0: i32) -> (i32, i32) {
    %c0_i32 = arith.constant 0 : i32
    %c0_i32_0 = arith.constant 0 : i32
    %c0_i32_1 = arith.constant 0 : i32
    return %c0_i32, %c0_i32_0 : i32, i32
  }
  func.func @transform_3(%arg0: i32) -> (i32, i32) {
    %c0_i32 = arith.constant 0 : i32
    %c0_i32_0 = arith.constant 0 : i32
    %c0_i32_1 = arith.constant 0 : i32
    return %c0_i32, %c0_i32_0 : i32, i32
  }
  func.func @transform_4(%arg0: i32) -> (i32, i32) {
    %c0_i32 = arith.constant 0 : i32
    %c0_i32_0 = arith.constant 0 : i32
    %c0_i32_1 = arith.constant 0 : i32
    return %c0_i32, %c0_i32_0 : i32, i32
  }
  func.func @transform_5(%arg0: i32) -> (i32, i32) {
    %c0_i32 = arith.constant 0 : i32
    %c0_i32_0 = arith.constant 0 : i32
    %c0_i32_1 = arith.constant 0 : i32
    return %c0_i32, %c0_i32_0 : i32, i32
  }
  func.func @transform_6(%arg0: i32) -> (i32, i32) {
    %c0_i32 = arith.constant 0 : i32
    %c0_i32_0 = arith.constant 0 : i32
    %c0_i32_1 = arith.constant 0 : i32
    return %c0_i32, %c0_i32_0 : i32, i32
  }
  func.func @transform_7(%arg0: i32) -> (i32, i32) {
    %c0_i32 = arith.constant 0 : i32
    %c0_i32_0 = arith.constant 0 : i32
    return %arg0, %c0_i32 : i32, i32
  }
}

</mosaic_0001>

<llo_original>
// kernel: tpu_custom_call.1
$region0: #{tpu_custom_call.1}
  #allocation0 [shape = 'u32[]', space=smem, size = 0x4, offset = 0x4, fixed_abs, tag = 'smem constant byte address 0x4 - core index']
  #allocation1 [shape = 'u32[144,128]{1,0:T(1,128)}', space=vmem, size = 0x12000, scoped, tag = 'internal scratch']
  %s0 = inlined_call_operand.hbm [shape: bf16[16,4096], index: 0, kind: input, shape index: {}]
  %s1 = inlined_call_operand.hbm [shape: bf16[4096,256], index: 1, kind: input, shape index: {}]
  %s2 = inlined_call_operand.hbm [shape: f32[1,256], index: 2, kind: input, shape index: {}]
  %s3 = inlined_call_operand.hbm [shape: bf16[256,256], index: 3, kind: input, shape index: {}]
  %s4 = inlined_call_operand.hbm [shape: f32[1,256], index: 4, kind: input, shape index: {}]
  %s5 = inlined_call_operand.hbm [shape: bf16[256,128], index: 5, kind: input, shape index: {}]
  %s6 = inlined_call_operand.hbm [shape: f32[1,128], index: 6, kind: input, shape index: {}]
  %s7 = inlined_call_operand.hbm [shape: f32[16,128], index: 7, kind: output, shape index: {}]
  %s8 = sld [smem:[#allocation0]]
  $region89: #{tpu_custom_call.1} parent=0
    _
  %s10 = ssub.s32 1, %s8
  %s11 = scalar_select 0, %s10, %s8
  $region1: #{tpu_custom_call.1} parent=0
    #allocation2 [shape = 'u8[131072]{0}', space=vmem, size = 0x20000, scoped, tag = 'input window, operand 0']
    #allocation3 [shape = 's32[2]{0}', space=sflag, size = 0x8, scoped, tag = 'scoped memory for tpu_custom_call.1']
    #allocation4 [shape = 's32[2]{0}', space=sflag, size = 0x8, scoped, tag = 'scoped memory for tpu_custom_call.1']
    #allocation5 [shape = 'u8[2097152]{0}', space=vmem, size = 0x200000, scoped, tag = 'input window, operand 1, single buffered']
    #allocation6 [shape = 's32[1]{0}', space=sflag, size = 0x4, scoped, tag = 'scoped memory for tpu_custom_call.1']
    #allocation7 [shape = 'u8[1024]{0}', space=vmem, size = 0x400, scoped, tag = 'input window, operand 2, single buffered']
    #allocation8 [shape = 'u8[131072]{0}', space=vmem, size = 0x20000, scoped, tag = 'input window, operand 3, single buffered']
    #allocation9 [shape = 's32[1]{0}', space=sflag, size = 0x4, scoped, tag = 'scoped memory for tpu_custom_call.1']
    #allocation10 [shape = 'u8[1024]{0}', space=vmem, size = 0x400, scoped, tag = 'input window, operand 4, single buffered']
    #allocation11 [shape = 'u8[65536]{0}', space=vmem, size = 0x10000, scoped, tag = 'input window, operand 5, single buffered']
    #allocation12 [shape = 's32[1]{0}', space=sflag, size = 0x4, scoped, tag = 'scoped memory for tpu_custom_call.1']
    #allocation13 [shape = 'u8[512]{0}', space=vmem, size = 0x400, scoped, tag = 'input window, operand 6, single buffered']
    #allocation14 [shape = 'u8[8192]{0}', space=vmem, size = 0x2000, scoped, tag = 'output window, operand 0']
    %12 = vsyncpa [#allocation3], 0
    %s13 = scalar_lea.sflag [#allocation3], 1
    %14 = vsyncpa %s13, 0
    %15 = vsyncpa [#allocation6], 0
    %16 = vsyncpa [#allocation9], 0
    %17 = vsyncpa [#allocation12], 0
    %18 = vsyncpa [#allocation4], 0
    %s19 = scalar_lea.sflag [#allocation4], 1
    %20 = vsyncpa %s19, 0
    loop: start=0, step=1, limit=4
    $region2: #{tpu_custom_call.1} parent=1 // loop_pre_header
      _
    $region3: #{tpu_custom_call.1} parent=1 // loop_header
      %s22 = sphi 0, %s26
      %p23 = scmp.ge.s32.totalorder %s22, 4
      %s32 = sphi 0, %s34
      %s35 = sphi 0, %s32
      %s36 = sphi 0, %s35
      %s52 = sphi 0, %s36
      %s56 = sphi 0, %s56
      %s58 = sphi 0, %s56
      %s59 = sphi 0, %s58
      %s73 = sphi 0, %s59
      %s77 = sphi 0, %s77
      %s79 = sphi 0, %s77
      %s80 = sphi 0, %s79
      %s94 = sphi 0, %s80
      %s98 = sphi 0, %s98
      %s100 = sphi 0, %s98
      %s101 = sphi 0, %s100
      %s115 = sphi 0, %s101
      %s119 = sphi 0, %s119
      %s121 = sphi 0, %s119
      %s122 = sphi 0, %s121
      %s136 = sphi 0, %s122
      %s140 = sphi 0, %s140
      %s142 = sphi 0, %s140
      %s143 = sphi 0, %s142
      %s157 = sphi 0, %s143
      %s161 = sphi 0, %s161
      %s163 = sphi 0, %s161
      %s164 = sphi 0, %s163
      %s178 = sphi 0, %s164
      %s184 = sphi 0, %s186
      %s187 = sphi 0, %s184
      %s188 = sphi 0, %s187
      %s204 = sphi 0, %s188
    $region4: #{tpu_custom_call.1} parent=1 // loop_header_branch
      %25 = sbr.rel (%p23) target = $region8
    $region5: #{tpu_custom_call.1} parent=1 // loop_body
      %s27 = ssub.s32 %s22, 1
      %s28 = ssub.s32 %s22, 2
      %s29 = sadd.s32 %s22, 1
      %s30 = ssub.s32 %s22, %s29
      %p31 = scmp.eq.s32.totalorder %s30, 0
      %s33 = sadd.s32 %s32, 1
      %s34 = scalar_select %p31, %s32, %s33
      %p37 = pneg %p31
      %p38 = scmp.eq.s32.totalorder %s22, 1
      %p39 = por %p37, %p38
      %p40 = scmp.ne.s32.totalorder %s32, %s35
      %p41 = scmp.eq.s32.totalorder %s22, 0
      %p42 = por %p40, %p41
      %p43 = scmp.ne.s32.totalorder %s32, %s35
      %p44 = scmp.eq.s32.totalorder %s27, 1
      %p45 = por %p43, %p44
      %p46 = scmp.ne.s32.totalorder %s35, %s36
      %p47 = scmp.eq.s32.totalorder %s27, 0
      %p48 = por %p46, %p47
      %p49 = scmp.ne.s32.totalorder %s35, %s36
      %p50 = scmp.eq.s32.totalorder %s28, 1
      %p51 = por %p49, %p50
      %p53 = scmp.ne.s32.totalorder %s36, %s52
      %p54 = scmp.eq.s32.totalorder %s28, 0
      %p55 = por %p53, %p54
      %s57 = sadd.s32 %s56, 1
      %p60 = scmp.eq.s32.totalorder %s22, 1
      %p61 = scmp.ne.s32.totalorder %s56, %s58
      %p62 = scmp.eq.s32.totalorder %s22, 0
      %p63 = por %p61, %p62
      %p64 = scmp.ne.s32.totalorder %s56, %s58
      %p65 = scmp.eq.s32.totalorder %s27, 1
      %p66 = por %p64, %p65
      %p67 = scmp.ne.s32.totalorder %s58, %s59
      %p68 = scmp.eq.s32.totalorder %s27, 0
      %p69 = por %p67, %p68
      %p70 = scmp.ne.s32.totalorder %s58, %s59
      %p71 = scmp.eq.s32.totalorder %s28, 1
      %p72 = por %p70, %p71
      %p74 = scmp.ne.s32.totalorder %s59, %s73
      %p75 = scmp.eq.s32.totalorder %s28, 0
      %p76 = por %p74, %p75
      %s78 = sadd.s32 %s77, 1
      %p81 = scmp.eq.s32.totalorder %s22, 1
      %p82 = scmp.ne.s32.totalorder %s77, %s79
      %p83 = scmp.eq.s32.totalorder %s22, 0
      %p84 = por %p82, %p83
      %p85 = scmp.ne.s32.totalorder %s77, %s79
      %p86 = scmp.eq.s32.totalorder %s27, 1
      %p87 = por %p85, %p86
      %p88 = scmp.ne.s32.totalorder %s79, %s80
      %p89 = scmp.eq.s32.totalorder %s27, 0
      %p90 = por %p88, %p89
      %p91 = scmp.ne.s32.totalorder %s79, %s80
      %p92 = scmp.eq.s32.totalorder %s28, 1
      %p93 = por %p91, %p92
      %p95 = scmp.ne.s32.totalorder %s80, %s94
      %p96 = scmp.eq.s32.totalorder %s28, 0
      %p97 = por %p95, %p96
      %s99 = sadd.s32 %s98, 1
      %p102 = scmp.eq.s32.totalorder %s22, 1
      %p103 = scmp.ne.s32.totalorder %s98, %s100
      %p104 = scmp.eq.s32.totalorder %s22, 0
      %p105 = por %p103, %p104
      %p106 = scmp.ne.s32.totalorder %s98, %s100
      %p107 = scmp.eq.s32.totalorder %s27, 1
      %p108 = por %p106, %p107
      %p109 = scmp.ne.s32.totalorder %s100, %s101
      %p110 = scmp.eq.s32.totalorder %s27, 0
      %p111 = por %p109, %p110
      %p112 = scmp.ne.s32.totalorder %s100, %s101
      %p113 = scmp.eq.s32.totalorder %s28, 1
      %p114 = por %p112, %p113
      %p116 = scmp.ne.s32.totalorder %s101, %s115
      %p117 = scmp.eq.s32.totalorder %s28, 0
      %p118 = por %p116, %p117
      %s120 = sadd.s32 %s119, 1
      %p123 = scmp.eq.s32.totalorder %s22, 1
      %p124 = scmp.ne.s32.totalorder %s119, %s121
      %p125 = scmp.eq.s32.totalorder %s22, 0
      %p126 = por %p124, %p125
      %p127 = scmp.ne.s32.totalorder %s119, %s121
      %p128 = scmp.eq.s32.totalorder %s27, 1
      %p129 = por %p127, %p128
      %p130 = scmp.ne.s32.totalorder %s121, %s122
      %p131 = scmp.eq.s32.totalorder %s27, 0
      %p132 = por %p130, %p131
      %p133 = scmp.ne.s32.totalorder %s121, %s122
      %p134 = scmp.eq.s32.totalorder %s28, 1
      %p135 = por %p133, %p134
      %p137 = scmp.ne.s32.totalorder %s122, %s136
      %p138 = scmp.eq.s32.totalorder %s28, 0
      %p139 = por %p137, %p138
      %s141 = sadd.s32 %s140, 1
      %p144 = scmp.eq.s32.totalorder %s22, 1
      %p145 = scmp.ne.s32.totalorder %s140, %s142
      %p146 = scmp.eq.s32.totalorder %s22, 0
      %p147 = por %p145, %p146
      %p148 = scmp.ne.s32.totalorder %s140, %s142
      %p149 = scmp.eq.s32.totalorder %s27, 1
      %p150 = por %p148, %p149
      %p151 = scmp.ne.s32.totalorder %s142, %s143
      %p152 = scmp.eq.s32.totalorder %s27, 0
      %p153 = por %p151, %p152
      %p154 = scmp.ne.s32.totalorder %s142, %s143
      %p155 = scmp.eq.s32.totalorder %s28, 1
      %p156 = por %p154, %p155
      %p158 = scmp.ne.s32.totalorder %s143, %s157
      %p159 = scmp.eq.s32.totalorder %s28, 0
      %p160 = por %p158, %p159
      %s162 = sadd.s32 %s161, 1
      %p165 = scmp.eq.s32.totalorder %s22, 1
      %p166 = scmp.ne.s32.totalorder %s161, %s163
      %p167 = scmp.eq.s32.totalorder %s22, 0
      %p168 = por %p166, %p167
      %p169 = scmp.ne.s32.totalorder %s161, %s163
      %p170 = scmp.eq.s32.totalorder %s27, 1
      %p171 = por %p169, %p170
      %p172 = scmp.ne.s32.totalorder %s163, %s164
      %p173 = scmp.eq.s32.totalorder %s27, 0
      %p174 = por %p172, %p173
      %p175 = scmp.ne.s32.totalorder %s163, %s164
      %p176 = scmp.eq.s32.totalorder %s28, 1
      %p177 = por %p175, %p176
      %p179 = scmp.ne.s32.totalorder %s164, %s178
      %p180 = scmp.eq.s32.totalorder %s28, 0
      %p181 = por %p179, %p180
      %s182 = ssub.s32 %s22, %s29
      %p183 = scmp.eq.s32.totalorder %s182, 0
      %s185 = sadd.s32 %s184, 1
      %s186 = scalar_select %p183, %s184, %s185
      %p189 = pneg %p183
      %p190 = scmp.eq.s32.totalorder %s22, 1
      %p191 = por %p189, %p190
      %p192 = scmp.ne.s32.totalorder %s184, %s187
      %p193 = scmp.eq.s32.totalorder %s22, 0
      %p194 = por %p192, %p193
      %p195 = scmp.ne.s32.totalorder %s184, %s187
      %p196 = scmp.eq.s32.totalorder %s27, 1
      %p197 = por %p195, %p196
      %p198 = scmp.ne.s32.totalorder %s187, %s188
      %p199 = scmp.eq.s32.totalorder %s27, 0
      %p200 = por %p198, %p199
      %p201 = scmp.ne.s32.totalorder %s187, %s188
      %p202 = scmp.eq.s32.totalorder %s28, 1
      %p203 = por %p201, %p202
      %p205 = scmp.ne.s32.totalorder %s188, %s204
      %p206 = scmp.eq.s32.totalorder %s28, 0
      %p207 = por %p205, %p206
      %p208 = scmp.le.s32.totalorder 1, %s22
      %p209 = scmp.lt.s32.totalorder %s22, 3
      %p210 = pnand %p208, %p209
      %p211 = pneg %p210
      // Predicated region
      $region9: #{tpu_custom_call.1} parent=5 // pred_check
        _
      $region10: #{tpu_custom_call.1} parent=5 // pred_check_branch
        %213 = sbr.rel (%p210) target = $region12
      $region11: #{tpu_custom_call.1} parent=5 // pred_region
        %s214 = ssub.s32 %s22, 1
        // Predicated region
        $region13: #{tpu_custom_call.1} parent=11 // pred_check
          %p215 = pneg %p69
        $region14: #{tpu_custom_call.1} parent=11 // pred_check_branch
          %217 = sbr.rel (%p215) target = $region16
        $region15: #{tpu_custom_call.1} parent=11 // pred_region
          %s219 = ssub.s32 65536, 65536
          %220 = vsyncadd [#allocation6], %s219
          %s221 = sshll.u32 [#allocation5], 4
          %s222 = int_to_ptr.vmem [resolvable:$true] %s221
          %227 = dma.hbm_to_vmem [thread:$0]  %s1, 65536, %s222, [#allocation6], 128, 128, 8
        $region16: #{tpu_custom_call.1} parent=11 // pred_fallthru
          _
        // Predicated region
        $region17: #{tpu_custom_call.1} parent=11 // pred_check
          %p228 = pneg %p90
        $region18: #{tpu_custom_call.1} parent=11 // pred_check_branch
          %230 = sbr.rel (%p228) target = $region20
        $region19: #{tpu_custom_call.1} parent=11 // pred_region
          %s232 = ssub.s32 32, 32
          %233 = vsyncadd [#allocation6], %s232
          %s235 = sshll.u32 [#allocation7], 4
          %s236 = int_to_ptr.vmem [resolvable:$true] %s235
          %238 = dma.hbm_to_vmem [thread:$0]  %s2, 32, %s236, [#allocation6]
        $region20: #{tpu_custom_call.1} parent=11 // pred_fallthru
          _
        // Predicated region
        $region21: #{tpu_custom_call.1} parent=11 // pred_check
          %p239 = pneg %p111
        $region22: #{tpu_custom_call.1} parent=11 // pred_check_branch
          %241 = sbr.rel (%p239) target = $region24
        $region23: #{tpu_custom_call.1} parent=11 // pred_region
          %s243 = ssub.s32 4096, 4096
          %244 = vsyncadd [#allocation9], %s243
          %s245 = sshll.u32 [#allocation8], 4
          %s246 = int_to_ptr.vmem [resolvable:$true] %s245
          %251 = dma.hbm_to_vmem [thread:$0]  %s3, 4096, %s246, [#allocation9], 128, 128, 8
        $region24: #{tpu_custom_call.1} parent=11 // pred_fallthru
          _
        // Predicated region
        $region25: #{tpu_custom_call.1} parent=11 // pred_check
          %p252 = pneg %p132
        $region26: #{tpu_custom_call.1} parent=11 // pred_check_branch
          %254 = sbr.rel (%p252) target = $region28
        $region27: #{tpu_custom_call.1} parent=11 // pred_region
          %s256 = ssub.s32 32, 32
          %257 = vsyncadd [#allocation9], %s256
          %s259 = sshll.u32 [#allocation10], 4
          %s260 = int_to_ptr.vmem [resolvable:$true] %s259
          %262 = dma.hbm_to_vmem [thread:$0]  %s4, 32, %s260, [#allocation9]
        $region28: #{tpu_custom_call.1} parent=11 // pred_fallthru
          _
        // Predicated region
        $region29: #{tpu_custom_call.1} parent=11 // pred_check
          %p263 = pneg %p153
        $region30: #{tpu_custom_call.1} parent=11 // pred_check_branch
          %265 = sbr.rel (%p263) target = $region32
        $region31: #{tpu_custom_call.1} parent=11 // pred_region
          %s267 = ssub.s32 2048, 2048
          %268 = vsyncadd [#allocation12], %s267
          %s269 = sshll.u32 [#allocation11], 4
          %s270 = int_to_ptr.vmem [resolvable:$true] %s269
          %275 = dma.hbm_to_vmem [thread:$0]  %s5, 2048, %s270, [#allocation12], 64, 64, 4
        $region32: #{tpu_custom_call.1} parent=11 // pred_fallthru
          _
        // Predicated region
        $region33: #{tpu_custom_call.1} parent=11 // pred_check
          %p276 = pneg %p174
        $region34: #{tpu_custom_call.1} parent=11 // pred_check_branch
          %278 = sbr.rel (%p276) target = $region36
        $region35: #{tpu_custom_call.1} parent=11 // pred_region
          %s280 = ssub.s32 16, 16
          %281 = vsyncadd [#allocation12], %s280
          %s283 = sshll.u32 [#allocation13], 4
          %s284 = int_to_ptr.vmem [resolvable:$true] %s283
          %286 = dma.hbm_to_vmem [thread:$0]  %s6, 16, %s284, [#allocation12]
        $region36: #{tpu_custom_call.1} parent=11 // pred_fallthru
          _
      $region12: #{tpu_custom_call.1} parent=5 // pred_fallthru
        _
      %p287 = scmp.lt.s32.totalorder %s22, 2
      // Predicated region
      $region37: #{tpu_custom_call.1} parent=5 // pred_check
        %p288 = pneg %p287
      $region38: #{tpu_custom_call.1} parent=5 // pred_check_branch
        %290 = sbr.rel (%p288) target = $region40
      $region39: #{tpu_custom_call.1} parent=5 // pred_region
        // Predicated region
        $region41: #{tpu_custom_call.1} parent=39 // pred_check
          %p291 = pneg %p42
        $region42: #{tpu_custom_call.1} parent=39 // pred_check_branch
          %293 = sbr.rel (%p291) target = $region44
        $region43: #{tpu_custom_call.1} parent=39 // pred_region
          %s294 = sand.u32 %s32, 1
          %s295 = scalar_lea.sflag [#allocation3], %s294
          %s296 = sand.u32 %s32, 1
          %s297 = smul.addr %s296, 128
          %s298 = scalar_lea.vmem [#allocation2], %s297
          %s300 = ssub.s32 2048, 2048
          %301 = vsyncadd %s295, %s300
          %s302 = smul.addr %s22, 32
          %s303 = smul.addr %s302, 64
          %s304 = scalar_lea.hbm %s0, %s303
          %s306 = sshll.u32 %s298, 4
          %s307 = int_to_ptr.vmem [resolvable:$true] %s306
          %309 = dma.hbm_to_vmem [thread:$0]  %s304, 2048, %s307, %s295
        $region44: #{tpu_custom_call.1} parent=39 // pred_fallthru
          _
      $region40: #{tpu_custom_call.1} parent=5 // pred_fallthru
        _
      %p310 = scmp.le.s32.totalorder 1, %s22
      %p311 = scmp.lt.s32.totalorder %s22, 3
      %p312 = pnand %p310, %p311
      %p313 = pneg %p312
      // Predicated region
      $region45: #{tpu_custom_call.1} parent=5 // pred_check
        _
      $region46: #{tpu_custom_call.1} parent=5 // pred_check_branch
        %315 = sbr.rel (%p312) target = $region48
      $region47: #{tpu_custom_call.1} parent=5 // pred_region
        %s316 = ssub.s32 %s22, 1
        %s317 = sand.u32 %s35, 1
        %s318 = scalar_lea.sflag [#allocation3], %s317
        %s319 = sand.u32 %s35, 1
        %s320 = smul.addr %s319, 128
        %s321 = scalar_lea.vmem [#allocation2], %s320
        // Predicated region
        $region49: #{tpu_custom_call.1} parent=47 // pred_check
          %p322 = pneg %p48
        $region50: #{tpu_custom_call.1} parent=47 // pred_check_branch
          %324 = sbr.rel (%p322) target = $region52
        $region51: #{tpu_custom_call.1} parent=47 // pred_region
          %325 = dma.done %s318, 2048
        $region52: #{tpu_custom_call.1} parent=47 // pred_fallthru
          _
        // Predicated region
        $region53: #{tpu_custom_call.1} parent=47 // pred_check
          %p326 = pneg %p69
        $region54: #{tpu_custom_call.1} parent=47 // pred_check_branch
          %328 = sbr.rel (%p326) target = $region56
        $region55: #{tpu_custom_call.1} parent=47 // pred_region
          %329 = dma.done [#allocation6], 65536
        $region56: #{tpu_custom_call.1} parent=47 // pred_fallthru
          _
        // Predicated region
        $region57: #{tpu_custom_call.1} parent=47 // pred_check
          %p330 = pneg %p90
        $region58: #{tpu_custom_call.1} parent=47 // pred_check_branch
          %332 = sbr.rel (%p330) target = $region60
        $region59: #{tpu_custom_call.1} parent=47 // pred_region
          %333 = dma.done [#allocation6], 32
        $region60: #{tpu_custom_call.1} parent=47 // pred_fallthru
          _
        // Predicated region
        $region61: #{tpu_custom_call.1} parent=47 // pred_check
          %p334 = pneg %p111
        $region62: #{tpu_custom_call.1} parent=47 // pred_check_branch
          %336 = sbr.rel (%p334) target = $region64
        $region63: #{tpu_custom_call.1} parent=47 // pred_region
          %337 = dma.done [#allocation9], 4096
        $region64: #{tpu_custom_call.1} parent=47 // pred_fallthru
          _
        // Predicated region
        $region65: #{tpu_custom_call.1} parent=47 // pred_check
          %p338 = pneg %p132
        $region66: #{tpu_custom_call.1} parent=47 // pred_check_branch
          %340 = sbr.rel (%p338) target = $region68
        $region67: #{tpu_custom_call.1} parent=47 // pred_region
          %341 = dma.done [#allocation9], 32
        $region68: #{tpu_custom_call.1} parent=47 // pred_fallthru
          _
        // Predicated region
        $region69: #{tpu_custom_call.1} parent=47 // pred_check
          %p342 = pneg %p153
        $region70: #{tpu_custom_call.1} parent=47 // pred_check_branch
          %344 = sbr.rel (%p342) target = $region72
        $region71: #{tpu_custom_call.1} parent=47 // pred_region
          %345 = dma.done [#allocation12], 2048
        $region72: #{tpu_custom_call.1} parent=47 // pred_fallthru
          _
        // Predicated region
        $region73: #{tpu_custom_call.1} parent=47 // pred_check
          %p346 = pneg %p174
        $region74: #{tpu_custom_call.1} parent=47 // pred_check_branch
          %348 = sbr.rel (%p346) target = $region76
        $region75: #{tpu_custom_call.1} parent=47 // pred_region
          %349 = dma.done [#allocation12], 16
        $region76: #{tpu_custom_call.1} parent=47 // pred_fallthru
          _
        %s350 = sand.u32 %s35, 1
        %s351 = scalar_lea.sflag [#allocation3], %s350
        %s352 = sand.u32 %s35, 1
        %s353 = smul.addr %s352, 128
        %s354 = scalar_lea.vmem [#allocation2], %s353
        %p355 = pneg %p48
        %p356 = pneg %p45
        %p357 = pneg %p69
        %p358 = pneg %p66
        %p359 = pneg %p90
        %p360 = pneg %p87
        %p361 = pneg %p111
        %p362 = pneg %p108
        %p363 = pneg %p132
        %p364 = pneg %p129
        %p365 = pneg %p153
        %p366 = pneg %p150
        %p367 = pneg %p174
        %p368 = pneg %p171
        %p369 = pneg %p200
        %p370 = pneg %p197
        %s371 = sand.u32 %s187, 1
        %s372 = scalar_lea.sflag [#allocation4], %s371
        %s373 = sand.u32 %s187, 1
        %s374 = smul.addr %s373, 8
        %s375 = scalar_lea.vmem [#allocation14], %s374
        %v377 = vld [vmem:[%s321] sm:$0xff]
        %v378 = vld [vmem:[%s321 + $0x8] sm:$0xff]
        %v379 = vld [vmem:[%s321 + $0x10] sm:$0xff]
        %v380 = vld [vmem:[%s321 + $0x18] sm:$0xff]
        %v381 = vld [vmem:[%s321 + $0x20] sm:$0xff]
        %v382 = vld [vmem:[%s321 + $0x28] sm:$0xff]
        %v383 = vld [vmem:[%s321 + $0x30] sm:$0xff]
        %v384 = vld [vmem:[%s321 + $0x38] sm:$0xff]
        %v385 = vld [vmem:[%s321 + $0x40] sm:$0xff]
        %v386 = vld [vmem:[%s321 + $0x48] sm:$0xff]
        %v387 = vld [vmem:[%s321 + $0x50] sm:$0xff]
        %v388 = vld [vmem:[%s321 + $0x58] sm:$0xff]
        %v389 = vld [vmem:[%s321 + $0x60] sm:$0xff]
        %v390 = vld [vmem:[%s321 + $0x68] sm:$0xff]
        %v391 = vld [vmem:[%s321 + $0x70] sm:$0xff]
        %v392 = vld [vmem:[%s321 + $0x78] sm:$0xff]
        %v393 = vld [vmem:[#allocation5] sm:$0xff]
        %v394 = vld [vmem:[#allocation5 + $0x8] sm:$0xff]
        %v395 = vld [vmem:[#allocation5 + $0x10] sm:$0xff]
        %v396 = vld [vmem:[#allocation5 + $0x18] sm:$0xff]
        %v397 = vld [vmem:[#allocation5 + $0x20] sm:$0xff]
        %v398 = vld [vmem:[#allocation5 + $0x28] sm:$0xff]
        %v399 = vld [vmem:[#allocation5 + $0x30] sm:$0xff]
        %v400 = vld [vmem:[#allocation5 + $0x38] sm:$0xff]
        %v401 = vld [vmem:[#allocation5 + $0x40] sm:$0xff]
        %v402 = vld [vmem:[#allocation5 + $0x48] sm:$0xff]
        %v403 = vld [vmem:[#allocation5 + $0x50] sm:$0xff]
        %v404 = vld [vmem:[#allocation5 + $0x58] sm:$0xff]
        %v405 = vld [vmem:[#allocation5 + $0x60] sm:$0xff]
        %v406 = vld [vmem:[#allocation5 + $0x68] sm:$0xff]
        %v407 = vld [vmem:[#allocation5 + $0x70] sm:$0xff]
        %v408 = vld [vmem:[#allocation5 + $0x78] sm:$0xff]
        %v409 = vld [vmem:[#allocation5 + $0x80] sm:$0xff]
        %v410 = vld [vmem:[#allocation5 + $0x88] sm:$0xff]
        %v411 = vld [vmem:[#allocation5 + $0x90] sm:$0xff]
        %v412 = vld [vmem:[#allocation5 + $0x98] sm:$0xff]
        %v413 = vld [vmem:[#allocation5 + $0xa0] sm:$0xff]
        %v414 = vld [vmem:[#allocation5 + $0xa8] sm:$0xff]
        %v415 = vld [vmem:[#allocation5 + $0xb0] sm:$0xff]
        %v416 = vld [vmem:[#allocation5 + $0xb8] sm:$0xff]
        %v417 = vld [vmem:[#allocation5 + $0xc0] sm:$0xff]
        %v418 = vld [vmem:[#allocation5 + $0xc8] sm:$0xff]
        %v419 = vld [vmem:[#allocation5 + $0xd0] sm:$0xff]
        %v420 = vld [vmem:[#allocation5 + $0xd8] sm:$0xff]
        %v421 = vld [vmem:[#allocation5 + $0xe0] sm:$0xff]
        %v422 = vld [vmem:[#allocation5 + $0xe8] sm:$0xff]
        %v423 = vld [vmem:[#allocation5 + $0xf0] sm:$0xff]
        %v424 = vld [vmem:[#allocation5 + $0xf8] sm:$0xff]
        %v425 = vld [vmem:[#allocation5 + $0x100] sm:$0xff]
        %v426 = vld [vmem:[#allocation5 + $0x108] sm:$0xff]
        %v427 = vld [vmem:[#allocation5 + $0x110] sm:$0xff]
        %v428 = vld [vmem:[#allocation5 + $0x118] sm:$0xff]
        %v429 = vld [vmem:[#allocation5 + $0x120] sm:$0xff]
        %v430 = vld [vmem:[#allocation5 + $0x128] sm:$0xff]
        %v431 = vld [vmem:[#allocation5 + $0x130] sm:$0xff]
        %v432 = vld [vmem:[#allocation5 + $0x138] sm:$0xff]
        %v433 = vld [vmem:[#allocation5 + $0x140] sm:$0xff]
        %v434 = vld [vmem:[#allocation5 + $0x148] sm:$0xff]
        %v435 = vld [vmem:[#allocation5 + $0x150] sm:$0xff]
        %v436 = vld [vmem:[#allocation5 + $0x158] sm:$0xff]
        %v437 = vld [vmem:[#allocation5 + $0x160] sm:$0xff]
        %v438 = vld [vmem:[#allocation5 + $0x168] sm:$0xff]
        %v439 = vld [vmem:[#allocation5 + $0x170] sm:$0xff]
        %v440 = vld [vmem:[#allocation5 + $0x178] sm:$0xff]
        %v441 = vld [vmem:[#allocation5 + $0x180] sm:$0xff]
        %v442 = vld [vmem:[#allocation5 + $0x188] sm:$0xff]
        %v443 = vld [vmem:[#allocation5 + $0x190] sm:$0xff]
        %v444 = vld [vmem:[#allocation5 + $0x198] sm:$0xff]
        %v445 = vld [vmem:[#allocation5 + $0x1a0] sm:$0xff]
        %v446 = vld [vmem:[#allocation5 + $0x1a8] sm:$0xff]
        %v447 = vld [vmem:[#allocation5 + $0x1b0] sm:$0xff]
        %v448 = vld [vmem:[#allocation5 + $0x1b8] sm:$0xff]
        %v449 = vld [vmem:[#allocation5 + $0x1c0] sm:$0xff]
        %v450 = vld [vmem:[#allocation5 + $0x1c8] sm:$0xff]
        %v451 = vld [vmem:[#allocation5 + $0x1d0] sm:$0xff]
        %v452 = vld [vmem:[#allocation5 + $0x1d8] sm:$0xff]
        %v453 = vld [vmem:[#allocation5 + $0x1e0] sm:$0xff]
        %v454 = vld [vmem:[#allocation5 + $0x1e8] sm:$0xff]
        %v455 = vld [vmem:[#allocation5 + $0x1f0] sm:$0xff]
        %v456 = vld [vmem:[#allocation5 + $0x1f8] sm:$0xff]
        %v457 = vld [vmem:[#allocation5 + $0x200] sm:$0xff]
        %v458 = vld [vmem:[#allocation5 + $0x208] sm:$0xff]
        %v459 = vld [vmem:[#allocation5 + $0x210] sm:$0xff]
        %v460 = vld [vmem:[#allocation5 + $0x218] sm:$0xff]
        %v461 = vld [vmem:[#allocation5 + $0x220] sm:$0xff]
        %v462 = vld [vmem:[#allocation5 + $0x228] sm:$0xff]
        %v463 = vld [vmem:[#allocation5 + $0x230] sm:$0xff]
        %v464 = vld [vmem:[#allocation5 + $0x238] sm:$0xff]
        %v465 = vld [vmem:[#allocation5 + $0x240] sm:$0xff]
        %v466 = vld [vmem:[#allocation5 + $0x248] sm:$0xff]
        %v467 = vld [vmem:[#allocation5 + $0x250] sm:$0xff]
        %v468 = vld [vmem:[#allocation5 + $0x258] sm:$0xff]
        %v469 = vld [vmem:[#allocation5 + $0x260] sm:$0xff]
        %v470 = vld [vmem:[#allocation5 + $0x268] sm:$0xff]
        %v471 = vld [vmem:[#allocation5 + $0x270] sm:$0xff]
        %v472 = vld [vmem:[#allocation5 + $0x278] sm:$0xff]
        %v473 = vld [vmem:[#allocation5 + $0x280] sm:$0xff]
        %v474 = vld [vmem:[#allocation5 + $0x288] sm:$0xff]
        %v475 = vld [vmem:[#allocation5 + $0x290] sm:$0xff]
        %v476 = vld [vmem:[#allocation5 + $0x298] sm:$0xff]
        %v477 = vld [vmem:[#allocation5 + $0x2a0] sm:$0xff]
        %v478 = vld [vmem:[#allocation5 + $0x2a8] sm:$0xff]
        %v479 = vld [vmem:[#allocation5 + $0x2b0] sm:$0xff]
        %v480 = vld [vmem:[#allocation5 + $0x2b8] sm:$0xff]
        %v481 = vld [vmem:[#allocation5 + $0x2c0] sm:$0xff]
        %v482 = vld [vmem:[#allocation5 + $0x2c8] sm:$0xff]
        %v483 = vld [vmem:[#allocation5 + $0x2d0] sm:$0xff]
        %v484 = vld [vmem:[#allocation5 + $0x2d8] sm:$0xff]
        %v485 = vld [vmem:[#allocation5 + $0x2e0] sm:$0xff]
        %v486 = vld [vmem:[#allocation5 + $0x2e8] sm:$0xff]
        %v487 = vld [vmem:[#allocation5 + $0x2f0] sm:$0xff]
        %v488 = vld [vmem:[#allocation5 + $0x2f8] sm:$0xff]
        %v489 = vld [vmem:[#allocation5 + $0x300] sm:$0xff]
        %v490 = vld [vmem:[#allocation5 + $0x308] sm:$0xff]
        %v491 = vld [vmem:[#allocation5 + $0x310] sm:$0xff]
        %v492 = vld [vmem:[#allocation5 + $0x318] sm:$0xff]
        %v493 = vld [vmem:[#allocation5 + $0x320] sm:$0xff]
        %v494 = vld [vmem:[#allocation5 + $0x328] sm:$0xff]
        %v495 = vld [vmem:[#allocation5 + $0x330] sm:$0xff]
        %v496 = vld [vmem:[#allocation5 + $0x338] sm:$0xff]
        %v497 = vld [vmem:[#allocation5 + $0x340] sm:$0xff]
        %v498 = vld [vmem:[#allocation5 + $0x348] sm:$0xff]
        %v499 = vld [vmem:[#allocation5 + $0x350] sm:$0xff]
        %v500 = vld [vmem:[#allocation5 + $0x358] sm:$0xff]
        %v501 = vld [vmem:[#allocation5 + $0x360] sm:$0xff]
        %v502 = vld [vmem:[#allocation5 + $0x368] sm:$0xff]
        %v503 = vld [vmem:[#allocation5 + $0x370] sm:$0xff]
        %v504 = vld [vmem:[#allocation5 + $0x378] sm:$0xff]
        %v505 = vld [vmem:[#allocation5 + $0x380] sm:$0xff]
        %v506 = vld [vmem:[#allocation5 + $0x388] sm:$0xff]
        %v507 = vld [vmem:[#allocation5 + $0x390] sm:$0xff]
        %v508 = vld [vmem:[#allocation5 + $0x398] sm:$0xff]
        %v509 = vld [vmem:[#allocation5 + $0x3a0] sm:$0xff]
        %v510 = vld [vmem:[#allocation5 + $0x3a8] sm:$0xff]
        %v511 = vld [vmem:[#allocation5 + $0x3b0] sm:$0xff]
        %v512 = vld [vmem:[#allocation5 + $0x3b8] sm:$0xff]
        %v513 = vld [vmem:[#allocation5 + $0x3c0] sm:$0xff]
        %v514 = vld [vmem:[#allocation5 + $0x3c8] sm:$0xff]
        %v515 = vld [vmem:[#allocation5 + $0x3d0] sm:$0xff]
        %v516 = vld [vmem:[#allocation5 + $0x3d8] sm:$0xff]
        %v517 = vld [vmem:[#allocation5 + $0x3e0] sm:$0xff]
        %v518 = vld [vmem:[#allocation5 + $0x3e8] sm:$0xff]
        %v519 = vld [vmem:[#allocation5 + $0x3f0] sm:$0xff]
        %v520 = vld [vmem:[#allocation5 + $0x3f8] sm:$0xff]
        %v521 = vld [vmem:[#allocation5 + $0x400] sm:$0xff]
        %v522 = vld [vmem:[#allocation5 + $0x408] sm:$0xff]
        %v523 = vld [vmem:[#allocation5 + $0x410] sm:$0xff]
        %v524 = vld [vmem:[#allocation5 + $0x418] sm:$0xff]
        %v525 = vld [vmem:[#allocation5 + $0x420] sm:$0xff]
        %v526 = vld [vmem:[#allocation5 + $0x428] sm:$0xff]
        %v527 = vld [vmem:[#allocation5 + $0x430] sm:$0xff]
        %v528 = vld [vmem:[#allocation5 + $0x438] sm:$0xff]
        %v529 = vld [vmem:[#allocation5 + $0x440] sm:$0xff]
        %v530 = vld [vmem:[#allocation5 + $0x448] sm:$0xff]
        %v531 = vld [vmem:[#allocation5 + $0x450] sm:$0xff]
        %v532 = vld [vmem:[#allocation5 + $0x458] sm:$0xff]
        %v533 = vld [vmem:[#allocation5 + $0x460] sm:$0xff]
        %v534 = vld [vmem:[#allocation5 + $0x468] sm:$0xff]
        %v535 = vld [vmem:[#allocation5 + $0x470] sm:$0xff]
        %v536 = vld [vmem:[#allocation5 + $0x478] sm:$0xff]
        %v537 = vld [vmem:[#allocation5 + $0x480] sm:$0xff]
        %v538 = vld [vmem:[#allocation5 + $0x488] sm:$0xff]
        %v539 = vld [vmem:[#allocation5 + $0x490] sm:$0xff]
        %v540 = vld [vmem:[#allocation5 + $0x498] sm:$0xff]
        %v541 = vld [vmem:[#allocation5 + $0x4a0] sm:$0xff]
        %v542 = vld [vmem:[#allocation5 + $0x4a8] sm:$0xff]
        %v543 = vld [vmem:[#allocation5 + $0x4b0] sm:$0xff]
        %v544 = vld [vmem:[#allocation5 + $0x4b8] sm:$0xff]
        %v545 = vld [vmem:[#allocation5 + $0x4c0] sm:$0xff]
        %v546 = vld [vmem:[#allocation5 + $0x4c8] sm:$0xff]
        %v547 = vld [vmem:[#allocation5 + $0x4d0] sm:$0xff]
        %v548 = vld [vmem:[#allocation5 + $0x4d8] sm:$0xff]
        %v549 = vld [vmem:[#allocation5 + $0x4e0] sm:$0xff]
        %v550 = vld [vmem:[#allocation5 + $0x4e8] sm:$0xff]
        %v551 = vld [vmem:[#allocation5 + $0x4f0] sm:$0xff]
        %v552 = vld [vmem:[#allocation5 + $0x4f8] sm:$0xff]
        %v553 = vld [vmem:[#allocation5 + $0x500] sm:$0xff]
        %v554 = vld [vmem:[#allocation5 + $0x508] sm:$0xff]
        %v555 = vld [vmem:[#allocation5 + $0x510] sm:$0xff]
        %v556 = vld [vmem:[#allocation5 + $0x518] sm:$0xff]
        %v557 = vld [vmem:[#allocation5 + $0x520] sm:$0xff]
        %v558 = vld [vmem:[#allocation5 + $0x528] sm:$0xff]
        %v559 = vld [vmem:[#allocation5 + $0x530] sm:$0xff]
        %v560 = vld [vmem:[#allocation5 + $0x538] sm:$0xff]
        %v561 = vld [vmem:[#allocation5 + $0x540] sm:$0xff]
        %v562 = vld [vmem:[#allocation5 + $0x548] sm:$0xff]
        %v563 = vld [vmem:[#allocation5 + $0x550] sm:$0xff]
        %v564 = vld [vmem:[#allocation5 + $0x558] sm:$0xff]
        %v565 = vld [vmem:[#allocation5 + $0x560] sm:$0xff]
        %v566 = vld [vmem:[#allocation5 + $0x568] sm:$0xff]
        %v567 = vld [vmem:[#allocation5 + $0x570] sm:$0xff]
        %v568 = vld [vmem:[#allocation5 + $0x578] sm:$0xff]
        %v569 = vld [vmem:[#allocation5 + $0x580] sm:$0xff]
        %v570 = vld [vmem:[#allocation5 + $0x588] sm:$0xff]
        %v571 = vld [vmem:[#allocation5 + $0x590] sm:$0xff]
        %v572 = vld [vmem:[#allocation5 + $0x598] sm:$0xff]
        %v573 = vld [vmem:[#allocation5 + $0x5a0] sm:$0xff]
        %v574 = vld [vmem:[#allocation5 + $0x5a8] sm:$0xff]
        %v575 = vld [vmem:[#allocation5 + $0x5b0] sm:$0xff]
        %v576 = vld [vmem:[#allocation5 + $0x5b8] sm:$0xff]
        %v577 = vld [vmem:[#allocation5 + $0x5c0] sm:$0xff]
        %v578 = vld [vmem:[#allocation5 + $0x5c8] sm:$0xff]
        %v579 = vld [vmem:[#allocation5 + $0x5d0] sm:$0xff]
        %v580 = vld [vmem:[#allocation5 + $0x5d8] sm:$0xff]
        %v581 = vld [vmem:[#allocation5 + $0x5e0] sm:$0xff]
        %v582 = vld [vmem:[#allocation5 + $0x5e8] sm:$0xff]
        %v583 = vld [vmem:[#allocation5 + $0x5f0] sm:$0xff]
        %v584 = vld [vmem:[#allocation5 + $0x5f8] sm:$0xff]
        %v585 = vld [vmem:[#allocation5 + $0x600] sm:$0xff]
        %v586 = vld [vmem:[#allocation5 + $0x608] sm:$0xff]
        %v587 = vld [vmem:[#allocation5 + $0x610] sm:$0xff]
        %v588 = vld [vmem:[#allocation5 + $0x618] sm:$0xff]
        %v589 = vld [vmem:[#allocation5 + $0x620] sm:$0xff]
        %v590 = vld [vmem:[#allocation5 + $0x628] sm:$0xff]
        %v591 = vld [vmem:[#allocation5 + $0x630] sm:$0xff]
        %v592 = vld [vmem:[#allocation5 + $0x638] sm:$0xff]
        %v593 = vld [vmem:[#allocation5 + $0x640] sm:$0xff]
        %v594 = vld [vmem:[#allocation5 + $0x648] sm:$0xff]
        %v595 = vld [vmem:[#allocation5 + $0x650] sm:$0xff]
        %v596 = vld [vmem:[#allocation5 + $0x658] sm:$0xff]
        %v597 = vld [vmem:[#allocation5 + $0x660] sm:$0xff]
        %v598 = vld [vmem:[#allocation5 + $0x668] sm:$0xff]
        %v599 = vld [vmem:[#allocation5 + $0x670] sm:$0xff]
        %v600 = vld [vmem:[#allocation5 + $0x678] sm:$0xff]
        %v601 = vld [vmem:[#allocation5 + $0x680] sm:$0xff]
        %v602 = vld [vmem:[#allocation5 + $0x688] sm:$0xff]
        %v603 = vld [vmem:[#allocation5 + $0x690] sm:$0xff]
        %v604 = vld [vmem:[#allocation5 + $0x698] sm:$0xff]
        %v605 = vld [vmem:[#allocation5 + $0x6a0] sm:$0xff]
        %v606 = vld [vmem:[#allocation5 + $0x6a8] sm:$0xff]
        %v607 = vld [vmem:[#allocation5 + $0x6b0] sm:$0xff]
        %v608 = vld [vmem:[#allocation5 + $0x6b8] sm:$0xff]
        %v609 = vld [vmem:[#allocation5 + $0x6c0] sm:$0xff]
        %v610 = vld [vmem:[#allocation5 + $0x6c8] sm:$0xff]
        %v611 = vld [vmem:[#allocation5 + $0x6d0] sm:$0xff]
        %v612 = vld [vmem:[#allocation5 + $0x6d8] sm:$0xff]
        %v613 = vld [vmem:[#allocation5 + $0x6e0] sm:$0xff]
        %v614 = vld [vmem:[#allocation5 + $0x6e8] sm:$0xff]
        %v615 = vld [vmem:[#allocation5 + $0x6f0] sm:$0xff]
        %v616 = vld [vmem:[#allocation5 + $0x6f8] sm:$0xff]
        %v617 = vld [vmem:[#allocation5 + $0x700] sm:$0xff]
        %v618 = vld [vmem:[#allocation5 + $0x708] sm:$0xff]
        %v619 = vld [vmem:[#allocation5 + $0x710] sm:$0xff]
        %v620 = vld [vmem:[#allocation5 + $0x718] sm:$0xff]
        %v621 = vld [vmem:[#allocation5 + $0x720] sm:$0xff]
        %v622 = vld [vmem:[#allocation5 + $0x728] sm:$0xff]
        %v623 = vld [vmem:[#allocation5 + $0x730] sm:$0xff]
        %v624 = vld [vmem:[#allocation5 + $0x738] sm:$0xff]
        %v625 = vld [vmem:[#allocation5 + $0x740] sm:$0xff]
        %v626 = vld [vmem:[#allocation5 + $0x748] sm:$0xff]
        %v627 = vld [vmem:[#allocation5 + $0x750] sm:$0xff]
        %v628 = vld [vmem:[#allocation5 + $0x758] sm:$0xff]
        %v629 = vld [vmem:[#allocation5 + $0x760] sm:$0xff]
        %v630 = vld [vmem:[#allocation5 + $0x768] sm:$0xff]
        %v631 = vld [vmem:[#allocation5 + $0x770] sm:$0xff]
        %v632 = vld [vmem:[#allocation5 + $0x778] sm:$0xff]
        %v633 = vld [vmem:[#allocation5 + $0x780] sm:$0xff]
        %v634 = vld [vmem:[#allocation5 + $0x788] sm:$0xff]
        %v635 = vld [vmem:[#allocation5 + $0x790] sm:$0xff]
        %v636 = vld [vmem:[#allocation5 + $0x798] sm:$0xff]
        %v637 = vld [vmem:[#allocation5 + $0x7a0] sm:$0xff]
        %v638 = vld [vmem:[#allocation5 + $0x7a8] sm:$0xff]
        %v639 = vld [vmem:[#allocation5 + $0x7b0] sm:$0xff]
        %v640 = vld [vmem:[#allocation5 + $0x7b8] sm:$0xff]
        %v641 = vld [vmem:[#allocation5 + $0x7c0] sm:$0xff]
        %v642 = vld [vmem:[#allocation5 + $0x7c8] sm:$0xff]
        %v643 = vld [vmem:[#allocation5 + $0x7d0] sm:$0xff]
        %v644 = vld [vmem:[#allocation5 + $0x7d8] sm:$0xff]
        %v645 = vld [vmem:[#allocation5 + $0x7e0] sm:$0xff]
        %v646 = vld [vmem:[#allocation5 + $0x7e8] sm:$0xff]
        %v647 = vld [vmem:[#allocation5 + $0x7f0] sm:$0xff]
        %v648 = vld [vmem:[#allocation5 + $0x7f8] sm:$0xff]
        %v649 = vld [vmem:[#allocation5 + $0x800] sm:$0xff]
        %v650 = vld [vmem:[#allocation5 + $0x808] sm:$0xff]
        %v651 = vld [vmem:[#allocation5 + $0x810] sm:$0xff]
        %v652 = vld [vmem:[#allocation5 + $0x818] sm:$0xff]
        %v653 = vld [vmem:[#allocation5 + $0x820] sm:$0xff]
        %v654 = vld [vmem:[#allocation5 + $0x828] sm:$0xff]
        %v655 = vld [vmem:[#allocation5 + $0x830] sm:$0xff]
        %v656 = vld [vmem:[#allocation5 + $0x838] sm:$0xff]
        %v657 = vld [vmem:[#allocation5 + $0x840] sm:$0xff]
        %v658 = vld [vmem:[#allocation5 + $0x848] sm:$0xff]
        %v659 = vld [vmem:[#allocation5 + $0x850] sm:$0xff]
        %v660 = vld [vmem:[#allocation5 + $0x858] sm:$0xff]
        %v661 = vld [vmem:[#allocation5 + $0x860] sm:$0xff]
        %v662 = vld [vmem:[#allocation5 + $0x868] sm:$0xff]
        %v663 = vld [vmem:[#allocation5 + $0x870] sm:$0xff]
        %v664 = vld [vmem:[#allocation5 + $0x878] sm:$0xff]
        %v665 = vld [vmem:[#allocation5 + $0x880] sm:$0xff]
        %v666 = vld [vmem:[#allocation5 + $0x888] sm:$0xff]
        %v667 = vld [vmem:[#allocation5 + $0x890] sm:$0xff]
        %v668 = vld [vmem:[#allocation5 + $0x898] sm:$0xff]
        %v669 = vld [vmem:[#allocation5 + $0x8a0] sm:$0xff]
        %v670 = vld [vmem:[#allocation5 + $0x8a8] sm:$0xff]
        %v671 = vld [vmem:[#allocation5 + $0x8b0] sm:$0xff]
        %v672 = vld [vmem:[#allocation5 + $0x8b8] sm:$0xff]
        %v673 = vld [vmem:[#allocation5 + $0x8c0] sm:$0xff]
        %v674 = vld [vmem:[#allocation5 + $0x8c8] sm:$0xff]
        %v675 = vld [vmem:[#allocation5 + $0x8d0] sm:$0xff]
        %v676 = vld [vmem:[#allocation5 + $0x8d8] sm:$0xff]
        %v677 = vld [vmem:[#allocation5 + $0x8e0] sm:$0xff]
        %v678 = vld [vmem:[#allocation5 + $0x8e8] sm:$0xff]
        %v679 = vld [vmem:[#allocation5 + $0x8f0] sm:$0xff]
        %v680 = vld [vmem:[#allocation5 + $0x8f8] sm:$0xff]
        %v681 = vld [vmem:[#allocation5 + $0x900] sm:$0xff]
        %v682 = vld [vmem:[#allocation5 + $0x908] sm:$0xff]
        %v683 = vld [vmem:[#allocation5 + $0x910] sm:$0xff]
        %v684 = vld [vmem:[#allocation5 + $0x918] sm:$0xff]
        %v685 = vld [vmem:[#allocation5 + $0x920] sm:$0xff]
        %v686 = vld [vmem:[#allocation5 + $0x928] sm:$0xff]
        %v687 = vld [vmem:[#allocation5 + $0x930] sm:$0xff]
        %v688 = vld [vmem:[#allocation5 + $0x938] sm:$0xff]
        %v689 = vld [vmem:[#allocation5 + $0x940] sm:$0xff]
        %v690 = vld [vmem:[#allocation5 + $0x948] sm:$0xff]
        %v691 = vld [vmem:[#allocation5 + $0x950] sm:$0xff]
        %v692 = vld [vmem:[#allocation5 + $0x958] sm:$0xff]
        %v693 = vld [vmem:[#allocation5 + $0x960] sm:$0xff]
        %v694 = vld [vmem:[#allocation5 + $0x968] sm:$0xff]
        %v695 = vld [vmem:[#allocation5 + $0x970] sm:$0xff]
        %v696 = vld [vmem:[#allocation5 + $0x978] sm:$0xff]
        %v697 = vld [vmem:[#allocation5 + $0x980] sm:$0xff]
        %v698 = vld [vmem:[#allocation5 + $0x988] sm:$0xff]
        %v699 = vld [vmem:[#allocation5 + $0x990] sm:$0xff]
        %v700 = vld [vmem:[#allocation5 + $0x998] sm:$0xff]
        %v701 = vld [vmem:[#allocation5 + $0x9a0] sm:$0xff]
        %v702 = vld [vmem:[#allocation5 + $0x9a8] sm:$0xff]
        %v703 = vld [vmem:[#allocation5 + $0x9b0] sm:$0xff]
        %v704 = vld [vmem:[#allocation5 + $0x9b8] sm:$0xff]
        %v705 = vld [vmem:[#allocation5 + $0x9c0] sm:$0xff]
        %v706 = vld [vmem:[#allocation5 + $0x9c8] sm:$0xff]
        %v707 = vld [vmem:[#allocation5 + $0x9d0] sm:$0xff]
        %v708 = vld [vmem:[#allocation5 + $0x9d8] sm:$0xff]
        %v709 = vld [vmem:[#allocation5 + $0x9e0] sm:$0xff]
        %v710 = vld [vmem:[#allocation5 + $0x9e8] sm:$0xff]
        %v711 = vld [vmem:[#allocation5 + $0x9f0] sm:$0xff]
        %v712 = vld [vmem:[#allocation5 + $0x9f8] sm:$0xff]
        %v713 = vld [vmem:[#allocation5 + $0xa00] sm:$0xff]
        %v714 = vld [vmem:[#allocation5 + $0xa08] sm:$0xff]
        %v715 = vld [vmem:[#allocation5 + $0xa10] sm:$0xff]
        %v716 = vld [vmem:[#allocation5 + $0xa18] sm:$0xff]
        %v717 = vld [vmem:[#allocation5 + $0xa20] sm:$0xff]
        %v718 = vld [vmem:[#allocation5 + $0xa28] sm:$0xff]
        %v719 = vld [vmem:[#allocation5 + $0xa30] sm:$0xff]
        %v720 = vld [vmem:[#allocation5 + $0xa38] sm:$0xff]
        %v721 = vld [vmem:[#allocation5 + $0xa40] sm:$0xff]
        %v722 = vld [vmem:[#allocation5 + $0xa48] sm:$0xff]
        %v723 = vld [vmem:[#allocation5 + $0xa50] sm:$0xff]
        %v724 = vld [vmem:[#allocation5 + $0xa58] sm:$0xff]
        %v725 = vld [vmem:[#allocation5 + $0xa60] sm:$0xff]
        %v726 = vld [vmem:[#allocation5 + $0xa68] sm:$0xff]
        %v727 = vld [vmem:[#allocation5 + $0xa70] sm:$0xff]
        %v728 = vld [vmem:[#allocation5 + $0xa78] sm:$0xff]
        %v729 = vld [vmem:[#allocation5 + $0xa80] sm:$0xff]
        %v730 = vld [vmem:[#allocation5 + $0xa88] sm:$0xff]
        %v731 = vld [vmem:[#allocation5 + $0xa90] sm:$0xff]
        %v732 = vld [vmem:[#allocation5 + $0xa98] sm:$0xff]
        %v733 = vld [vmem:[#allocation5 + $0xaa0] sm:$0xff]
        %v734 = vld [vmem:[#allocation5 + $0xaa8] sm:$0xff]
        %v735 = vld [vmem:[#allocation5 + $0xab0] sm:$0xff]
        %v736 = vld [vmem:[#allocation5 + $0xab8] sm:$0xff]
        %v737 = vld [vmem:[#allocation5 + $0xac0] sm:$0xff]
        %v738 = vld [vmem:[#allocation5 + $0xac8] sm:$0xff]
        %v739 = vld [vmem:[#allocation5 + $0xad0] sm:$0xff]
        %v740 = vld [vmem:[#allocation5 + $0xad8] sm:$0xff]
        %v741 = vld [vmem:[#allocation5 + $0xae0] sm:$0xff]
        %v742 = vld [vmem:[#allocation5 + $0xae8] sm:$0xff]
        %v743 = vld [vmem:[#allocation5 + $0xaf0] sm:$0xff]
        %v744 = vld [vmem:[#allocation5 + $0xaf8] sm:$0xff]
        %v745 = vld [vmem:[#allocation5 + $0xb00] sm:$0xff]
        %v746 = vld [vmem:[#allocation5 + $0xb08] sm:$0xff]
        %v747 = vld [vmem:[#allocation5 + $0xb10] sm:$0xff]
        %v748 = vld [vmem:[#allocation5 + $0xb18] sm:$0xff]
        %v749 = vld [vmem:[#allocation5 + $0xb20] sm:$0xff]
        %v750 = vld [vmem:[#allocation5 + $0xb28] sm:$0xff]
        %v751 = vld [vmem:[#allocation5 + $0xb30] sm:$0xff]
        %v752 = vld [vmem:[#allocation5 + $0xb38] sm:$0xff]
        %v753 = vld [vmem:[#allocation5 + $0xb40] sm:$0xff]
        %v754 = vld [vmem:[#allocation5 + $0xb48] sm:$0xff]
        %v755 = vld [vmem:[#allocation5 + $0xb50] sm:$0xff]
        %v756 = vld [vmem:[#allocation5 + $0xb58] sm:$0xff]
        %v757 = vld [vmem:[#allocation5 + $0xb60] sm:$0xff]
        %v758 = vld [vmem:[#allocation5 + $0xb68] sm:$0xff]
        %v759 = vld [vmem:[#allocation5 + $0xb70] sm:$0xff]
        %v760 = vld [vmem:[#allocation5 + $0xb78] sm:$0xff]
        %v761 = vld [vmem:[#allocation5 + $0xb80] sm:$0xff]
        %v762 = vld [vmem:[#allocation5 + $0xb88] sm:$0xff]
        %v763 = vld [vmem:[#allocation5 + $0xb90] sm:$0xff]
        %v764 = vld [vmem:[#allocation5 + $0xb98] sm:$0xff]
        %v765 = vld [vmem:[#allocation5 + $0xba0] sm:$0xff]
        %v766 = vld [vmem:[#allocation5 + $0xba8] sm:$0xff]
        %v767 = vld [vmem:[#allocation5 + $0xbb0] sm:$0xff]
        %v768 = vld [vmem:[#allocation5 + $0xbb8] sm:$0xff]
        %v769 = vld [vmem:[#allocation5 + $0xbc0] sm:$0xff]
        %v770 = vld [vmem:[#allocation5 + $0xbc8] sm:$0xff]
        %v771 = vld [vmem:[#allocation5 + $0xbd0] sm:$0xff]
        %v772 = vld [vmem:[#allocation5 + $0xbd8] sm:$0xff]
        %v773 = vld [vmem:[#allocation5 + $0xbe0] sm:$0xff]
        %v774 = vld [vmem:[#allocation5 + $0xbe8] sm:$0xff]
        %v775 = vld [vmem:[#allocation5 + $0xbf0] sm:$0xff]
        %v776 = vld [vmem:[#allocation5 + $0xbf8] sm:$0xff]
        %v777 = vld [vmem:[#allocation5 + $0xc00] sm:$0xff]
        %v778 = vld [vmem:[#allocation5 + $0xc08] sm:$0xff]
        %v779 = vld [vmem:[#allocation5 + $0xc10] sm:$0xff]
        %v780 = vld [vmem:[#allocation5 + $0xc18] sm:$0xff]
        %v781 = vld [vmem:[#allocation5 + $0xc20] sm:$0xff]
        %v782 = vld [vmem:[#allocation5 + $0xc28] sm:$0xff]
        %v783 = vld [vmem:[#allocation5 + $0xc30] sm:$0xff]
        %v784 = vld [vmem:[#allocation5 + $0xc38] sm:$0xff]
        %v785 = vld [vmem:[#allocation5 + $0xc40] sm:$0xff]
        %v786 = vld [vmem:[#allocation5 + $0xc48] sm:$0xff]
        %v787 = vld [vmem:[#allocation5 + $0xc50] sm:$0xff]
        %v788 = vld [vmem:[#allocation5 + $0xc58] sm:$0xff]
        %v789 = vld [vmem:[#allocation5 + $0xc60] sm:$0xff]
        %v790 = vld [vmem:[#allocation5 + $0xc68] sm:$0xff]
        %v791 = vld [vmem:[#allocation5 + $0xc70] sm:$0xff]
        %v792 = vld [vmem:[#allocation5 + $0xc78] sm:$0xff]
        %v793 = vld [vmem:[#allocation5 + $0xc80] sm:$0xff]
        %v794 = vld [vmem:[#allocation5 + $0xc88] sm:$0xff]
        %v795 = vld [vmem:[#allocation5 + $0xc90] sm:$0xff]
        %v796 = vld [vmem:[#allocation5 + $0xc98] sm:$0xff]
        %v797 = vld [vmem:[#allocation5 + $0xca0] sm:$0xff]
        %v798 = vld [vmem:[#allocation5 + $0xca8] sm:$0xff]
        %v799 = vld [vmem:[#allocation5 + $0xcb0] sm:$0xff]
        %v800 = vld [vmem:[#allocation5 + $0xcb8] sm:$0xff]
        %v801 = vld [vmem:[#allocation5 + $0xcc0] sm:$0xff]
        %v802 = vld [vmem:[#allocation5 + $0xcc8] sm:$0xff]
        %v803 = vld [vmem:[#allocation5 + $0xcd0] sm:$0xff]
        %v804 = vld [vmem:[#allocation5 + $0xcd8] sm:$0xff]
        %v805 = vld [vmem:[#allocation5 + $0xce0] sm:$0xff]
        %v806 = vld [vmem:[#allocation5 + $0xce8] sm:$0xff]
        %v807 = vld [vmem:[#allocation5 + $0xcf0] sm:$0xff]
        %v808 = vld [vmem:[#allocation5 + $0xcf8] sm:$0xff]
        %v809 = vld [vmem:[#allocation5 + $0xd00] sm:$0xff]
        %v810 = vld [vmem:[#allocation5 + $0xd08] sm:$0xff]
        %v811 = vld [vmem:[#allocation5 + $0xd10] sm:$0xff]
        %v812 = vld [vmem:[#allocation5 + $0xd18] sm:$0xff]
        %v813 = vld [vmem:[#allocation5 + $0xd20] sm:$0xff]
        %v814 = vld [vmem:[#allocation5 + $0xd28] sm:$0xff]
        %v815 = vld [vmem:[#allocation5 + $0xd30] sm:$0xff]
        %v816 = vld [vmem:[#allocation5 + $0xd38] sm:$0xff]
        %v817 = vld [vmem:[#allocation5 + $0xd40] sm:$0xff]
        %v818 = vld [vmem:[#allocation5 + $0xd48] sm:$0xff]
        %v819 = vld [vmem:[#allocation5 + $0xd50] sm:$0xff]
        %v820 = vld [vmem:[#allocation5 + $0xd58] sm:$0xff]
        %v821 = vld [vmem:[#allocation5 + $0xd60] sm:$0xff]
        %v822 = vld [vmem:[#allocation5 + $0xd68] sm:$0xff]
        %v823 = vld [vmem:[#allocation5 + $0xd70] sm:$0xff]
        %v824 = vld [vmem:[#allocation5 + $0xd78] sm:$0xff]
        %v825 = vld [vmem:[#allocation5 + $0xd80] sm:$0xff]
        %v826 = vld [vmem:[#allocation5 + $0xd88] sm:$0xff]
        %v827 = vld [vmem:[#allocation5 + $0xd90] sm:$0xff]
        %v828 = vld [vmem:[#allocation5 + $0xd98] sm:$0xff]
        %v829 = vld [vmem:[#allocation5 + $0xda0] sm:$0xff]
        %v830 = vld [vmem:[#allocation5 + $0xda8] sm:$0xff]
        %v831 = vld [vmem:[#allocation5 + $0xdb0] sm:$0xff]
        %v832 = vld [vmem:[#allocation5 + $0xdb8] sm:$0xff]
        %v833 = vld [vmem:[#allocation5 + $0xdc0] sm:$0xff]
        %v834 = vld [vmem:[#allocation5 + $0xdc8] sm:$0xff]
        %v835 = vld [vmem:[#allocation5 + $0xdd0] sm:$0xff]
        %v836 = vld [vmem:[#allocation5 + $0xdd8] sm:$0xff]
        %v837 = vld [vmem:[#allocation5 + $0xde0] sm:$0xff]
        %v838 = vld [vmem:[#allocation5 + $0xde8] sm:$0xff]
        %v839 = vld [vmem:[#allocation5 + $0xdf0] sm:$0xff]
        %v840 = vld [vmem:[#allocation5 + $0xdf8] sm:$0xff]
        %v841 = vld [vmem:[#allocation5 + $0xe00] sm:$0xff]
        %v842 = vld [vmem:[#allocation5 + $0xe08] sm:$0xff]
        %v843 = vld [vmem:[#allocation5 + $0xe10] sm:$0xff]
        %v844 = vld [vmem:[#allocation5 + $0xe18] sm:$0xff]
        %v845 = vld [vmem:[#allocation5 + $0xe20] sm:$0xff]
        %v846 = vld [vmem:[#allocation5 + $0xe28] sm:$0xff]
        %v847 = vld [vmem:[#allocation5 + $0xe30] sm:$0xff]
        %v848 = vld [vmem:[#allocation5 + $0xe38] sm:$0xff]
        %v849 = vld [vmem:[#allocation5 + $0xe40] sm:$0xff]
        %v850 = vld [vmem:[#allocation5 + $0xe48] sm:$0xff]
        %v851 = vld [vmem:[#allocation5 + $0xe50] sm:$0xff]
        %v852 = vld [vmem:[#allocation5 + $0xe58] sm:$0xff]
        %v853 = vld [vmem:[#allocation5 + $0xe60] sm:$0xff]
        %v854 = vld [vmem:[#allocation5 + $0xe68] sm:$0xff]
        %v855 = vld [vmem:[#allocation5 + $0xe70] sm:$0xff]
        %v856 = vld [vmem:[#allocation5 + $0xe78] sm:$0xff]
        %v857 = vld [vmem:[#allocation5 + $0xe80] sm:$0xff]
        %v858 = vld [vmem:[#allocation5 + $0xe88] sm:$0xff]
        %v859 = vld [vmem:[#allocation5 + $0xe90] sm:$0xff]
        %v860 = vld [vmem:[#allocation5 + $0xe98] sm:$0xff]
        %v861 = vld [vmem:[#allocation5 + $0xea0] sm:$0xff]
        %v862 = vld [vmem:[#allocation5 + $0xea8] sm:$0xff]
        %v863 = vld [vmem:[#allocation5 + $0xeb0] sm:$0xff]
        %v864 = vld [vmem:[#allocation5 + $0xeb8] sm:$0xff]
        %v865 = vld [vmem:[#allocation5 + $0xec0] sm:$0xff]
        %v866 = vld [vmem:[#allocation5 + $0xec8] sm:$0xff]
        %v867 = vld [vmem:[#allocation5 + $0xed0] sm:$0xff]
        %v868 = vld [vmem:[#allocation5 + $0xed8] sm:$0xff]
        %v869 = vld [vmem:[#allocation5 + $0xee0] sm:$0xff]
        %v870 = vld [vmem:[#allocation5 + $0xee8] sm:$0xff]
        %v871 = vld [vmem:[#allocation5 + $0xef0] sm:$0xff]
        %v872 = vld [vmem:[#allocation5 + $0xef8] sm:$0xff]
        %v873 = vld [vmem:[#allocation5 + $0xf00] sm:$0xff]
        %v874 = vld [vmem:[#allocation5 + $0xf08] sm:$0xff]
        %v875 = vld [vmem:[#allocation5 + $0xf10] sm:$0xff]
        %v876 = vld [vmem:[#allocation5 + $0xf18] sm:$0xff]
        %v877 = vld [vmem:[#allocation5 + $0xf20] sm:$0xff]
        %v878 = vld [vmem:[#allocation5 + $0xf28] sm:$0xff]
        %v879 = vld [vmem:[#allocation5 + $0xf30] sm:$0xff]
        %v880 = vld [vmem:[#allocation5 + $0xf38] sm:$0xff]
        %v881 = vld [vmem:[#allocation5 + $0xf40] sm:$0xff]
        %v882 = vld [vmem:[#allocation5 + $0xf48] sm:$0xff]
        %v883 = vld [vmem:[#allocation5 + $0xf50] sm:$0xff]
        %v884 = vld [vmem:[#allocation5 + $0xf58] sm:$0xff]
        %v885 = vld [vmem:[#allocation5 + $0xf60] sm:$0xff]
        %v886 = vld [vmem:[#allocation5 + $0xf68] sm:$0xff]
        %v887 = vld [vmem:[#allocation5 + $0xf70] sm:$0xff]
        %v888 = vld [vmem:[#allocation5 + $0xf78] sm:$0xff]
        %v889 = vld [vmem:[#allocation5 + $0xf80] sm:$0xff]
        %v890 = vld [vmem:[#allocation5 + $0xf88] sm:$0xff]
        %v891 = vld [vmem:[#allocation5 + $0xf90] sm:$0xff]
        %v892 = vld [vmem:[#allocation5 + $0xf98] sm:$0xff]
        %v893 = vld [vmem:[#allocation5 + $0xfa0] sm:$0xff]
        %v894 = vld [vmem:[#allocation5 + $0xfa8] sm:$0xff]
        %v895 = vld [vmem:[#allocation5 + $0xfb0] sm:$0xff]
        %v896 = vld [vmem:[#allocation5 + $0xfb8] sm:$0xff]
        %v897 = vld [vmem:[#allocation5 + $0xfc0] sm:$0xff]
        %v898 = vld [vmem:[#allocation5 + $0xfc8] sm:$0xff]
        %v899 = vld [vmem:[#allocation5 + $0xfd0] sm:$0xff]
        %v900 = vld [vmem:[#allocation5 + $0xfd8] sm:$0xff]
        %v901 = vld [vmem:[#allocation5 + $0xfe0] sm:$0xff]
        %v902 = vld [vmem:[#allocation5 + $0xfe8] sm:$0xff]
        %v903 = vld [vmem:[#allocation5 + $0xff0] sm:$0xff]
        %v904 = vld [vmem:[#allocation5 + $0xff8] sm:$0xff]
        %v905 = vld [vmem:[#allocation7] sm:$0x3]
        %v907 = vlaneseq
        %v908 = vshrl.u32 %v907, 7
        %v909 = vsub.s32 0, %v908
        %v910 = vrot.slane %v905, %v909
        %v911 = vlaneseq
        %v912 = vshrl.u32 %v911, 7
        %v913 = vsub.s32 1, %v912
        %v914 = vrot.slane %v905, %v913
        %v933 = vunpack.c.l.b16 %v377
        %v934 = vunpack.c.h.b16 %v377
        %v935 = vunpack.c.l.b16 %v378
        %v936 = vunpack.c.h.b16 %v378
        %v937 = vunpack.c.l.b16 %v379
        %v938 = vunpack.c.h.b16 %v379
        %v939 = vunpack.c.l.b16 %v380
        %v940 = vunpack.c.h.b16 %v380
        %v941 = vunpack.c.l.b16 %v381
        %v942 = vunpack.c.h.b16 %v381
        %v943 = vunpack.c.l.b16 %v382
        %v944 = vunpack.c.h.b16 %v382
        %v945 = vunpack.c.l.b16 %v383
        %v946 = vunpack.c.h.b16 %v383
        %v947 = vunpack.c.l.b16 %v384
        %v948 = vunpack.c.h.b16 %v384
        %v949 = vunpack.c.l.b16 %v385
        %v950 = vunpack.c.h.b16 %v385
        %v951 = vunpack.c.l.b16 %v386
        %v952 = vunpack.c.h.b16 %v386
        %v953 = vunpack.c.l.b16 %v387
        %v954 = vunpack.c.h.b16 %v387
        %v955 = vunpack.c.l.b16 %v388
        %v956 = vunpack.c.h.b16 %v388
        %v957 = vunpack.c.l.b16 %v389
        %v958 = vunpack.c.h.b16 %v389
        %v959 = vunpack.c.l.b16 %v390
        %v960 = vunpack.c.h.b16 %v390
        %v961 = vunpack.c.l.b16 %v391
        %v962 = vunpack.c.h.b16 %v391
        %v963 = vunpack.c.l.b16 %v392
        %v964 = vunpack.c.h.b16 %v392
        %v965 = vpack.c.b16 %v933, %v933
        %v966 = vpack.c.b16 %v934, %v934
        %v967 = vpack.c.b16 %v935, %v935
        %v968 = vpack.c.b16 %v936, %v936
        %v969 = vpack.c.b16 %v937, %v937
        %v970 = vpack.c.b16 %v938, %v938
        %v971 = vpack.c.b16 %v939, %v939
        %v972 = vpack.c.b16 %v940, %v940
        %v973 = vpack.c.b16 %v941, %v941
        %v974 = vpack.c.b16 %v942, %v942
        %v975 = vpack.c.b16 %v943, %v943
        %v976 = vpack.c.b16 %v944, %v944
        %v977 = vpack.c.b16 %v945, %v945
        %v978 = vpack.c.b16 %v946, %v946
        %v979 = vpack.c.b16 %v947, %v947
        %v980 = vpack.c.b16 %v948, %v948
        %v981 = vpack.c.b16 %v949, %v949
        %v982 = vpack.c.b16 %v950, %v950
        %v983 = vpack.c.b16 %v951, %v951
        %v984 = vpack.c.b16 %v952, %v952
        %v985 = vpack.c.b16 %v953, %v953
        %v986 = vpack.c.b16 %v954, %v954
        %v987 = vpack.c.b16 %v955, %v955
        %v988 = vpack.c.b16 %v956, %v956
        %v989 = vpack.c.b16 %v957, %v957
        %v990 = vpack.c.b16 %v958, %v958
        %v991 = vpack.c.b16 %v959, %v959
        %v992 = vpack.c.b16 %v960, %v960
        %v993 = vpack.c.b16 %v961, %v961
        %v994 = vpack.c.b16 %v962, %v962
        %v995 = vpack.c.b16 %v963, %v963
        %v996 = vpack.c.b16 %v964, %v964
        %v1541 = vunpack.c.l.b16 %v393
        %v1542 = vunpack.c.h.b16 %v393
        %v1543 = vunpack.c.l.b16 %v394
        %v1544 = vunpack.c.h.b16 %v394
        %v1545 = vunpack.c.l.b16 %v395
        %v1546 = vunpack.c.h.b16 %v395
        %v1547 = vunpack.c.l.b16 %v396
        %v1548 = vunpack.c.h.b16 %v396
        %v1549 = vunpack.c.l.b16 %v397
        %v1550 = vunpack.c.h.b16 %v397
        %v1551 = vunpack.c.l.b16 %v398
        %v1552 = vunpack.c.h.b16 %v398
        %v1553 = vunpack.c.l.b16 %v399
        %v1554 = vunpack.c.h.b16 %v399
        %v1555 = vunpack.c.l.b16 %v400
        %v1556 = vunpack.c.h.b16 %v400
        %v1557 = vunpack.c.l.b16 %v401
        %v1558 = vunpack.c.h.b16 %v401
        %v1559 = vunpack.c.l.b16 %v402
        %v1560 = vunpack.c.h.b16 %v402
        %v1561 = vunpack.c.l.b16 %v403
        %v1562 = vunpack.c.h.b16 %v403
        %v1563 = vunpack.c.l.b16 %v404
        %v1564 = vunpack.c.h.b16 %v404
        %v1565 = vunpack.c.l.b16 %v405
        %v1566 = vunpack.c.h.b16 %v405
        %v1567 = vunpack.c.l.b16 %v406
        %v1568 = vunpack.c.h.b16 %v406
        %v1569 = vunpack.c.l.b16 %v407
        %v1570 = vunpack.c.h.b16 %v407
        %v1571 = vunpack.c.l.b16 %v408
        %v1572 = vunpack.c.h.b16 %v408
        %v1573 = vunpack.c.l.b16 %v409
        %v1574 = vunpack.c.h.b16 %v409
        %v1575 = vunpack.c.l.b16 %v410
        %v1576 = vunpack.c.h.b16 %v410
        %v1577 = vunpack.c.l.b16 %v411
        %v1578 = vunpack.c.h.b16 %v411
        %v1579 = vunpack.c.l.b16 %v412
        %v1580 = vunpack.c.h.b16 %v412
        %v1581 = vunpack.c.l.b16 %v413
        %v1582 = vunpack.c.h.b16 %v413
        %v1583 = vunpack.c.l.b16 %v414
        %v1584 = vunpack.c.h.b16 %v414
        %v1585 = vunpack.c.l.b16 %v415
        %v1586 = vunpack.c.h.b16 %v415
        %v1587 = vunpack.c.l.b16 %v416
        %v1588 = vunpack.c.h.b16 %v416
        %v1589 = vunpack.c.l.b16 %v417
        %v1590 = vunpack.c.h.b16 %v417
        %v1591 = vunpack.c.l.b16 %v418
        %v1592 = vunpack.c.h.b16 %v418
        %v1593 = vunpack.c.l.b16 %v419
        %v1594 = vunpack.c.h.b16 %v419
        %v1595 = vunpack.c.l.b16 %v420
        %v1596 = vunpack.c.h.b16 %v420
        %v1597 = vunpack.c.l.b16 %v421
        %v1598 = vunpack.c.h.b16 %v421
        %v1599 = vunpack.c.l.b16 %v422
        %v1600 = vunpack.c.h.b16 %v422
        %v1601 = vunpack.c.l.b16 %v423
        %v1602 = vunpack.c.h.b16 %v423
        %v1603 = vunpack.c.l.b16 %v424
        %v1604 = vunpack.c.h.b16 %v424
        %v1605 = vunpack.c.l.b16 %v425
        %v1606 = vunpack.c.h.b16 %v425
        %v1607 = vunpack.c.l.b16 %v426
        %v1608 = vunpack.c.h.b16 %v426
        %v1609 = vunpack.c.l.b16 %v427
        %v1610 = vunpack.c.h.b16 %v427
        %v1611 = vunpack.c.l.b16 %v428
        %v1612 = vunpack.c.h.b16 %v428
        %v1613 = vunpack.c.l.b16 %v429
        %v1614 = vunpack.c.h.b16 %v429
        %v1615 = vunpack.c.l.b16 %v430
        %v1616 = vunpack.c.h.b16 %v430
        %v1617 = vunpack.c.l.b16 %v431
        %v1618 = vunpack.c.h.b16 %v431
        %v1619 = vunpack.c.l.b16 %v432
        %v1620 = vunpack.c.h.b16 %v432
        %v1621 = vunpack.c.l.b16 %v433
        %v1622 = vunpack.c.h.b16 %v433
        %v1623 = vunpack.c.l.b16 %v434
        %v1624 = vunpack.c.h.b16 %v434
        %v1625 = vunpack.c.l.b16 %v435
        %v1626 = vunpack.c.h.b16 %v435
        %v1627 = vunpack.c.l.b16 %v436
        %v1628 = vunpack.c.h.b16 %v436
        %v1629 = vunpack.c.l.b16 %v437
        %v1630 = vunpack.c.h.b16 %v437
        %v1631 = vunpack.c.l.b16 %v438
        %v1632 = vunpack.c.h.b16 %v438
        %v1633 = vunpack.c.l.b16 %v439
        %v1634 = vunpack.c.h.b16 %v439
        %v1635 = vunpack.c.l.b16 %v440
        %v1636 = vunpack.c.h.b16 %v440
        %v1637 = vunpack.c.l.b16 %v441
        %v1638 = vunpack.c.h.b16 %v441
        %v1639 = vunpack.c.l.b16 %v442
        %v1640 = vunpack.c.h.b16 %v442
        %v1641 = vunpack.c.l.b16 %v443
        %v1642 = vunpack.c.h.b16 %v443
        %v1643 = vunpack.c.l.b16 %v444
        %v1644 = vunpack.c.h.b16 %v444
        %v1645 = vunpack.c.l.b16 %v445
        %v1646 = vunpack.c.h.b16 %v445
        %v1647 = vunpack.c.l.b16 %v446
        %v1648 = vunpack.c.h.b16 %v446
        %v1649 = vunpack.c.l.b16 %v447
        %v1650 = vunpack.c.h.b16 %v447
        %v1651 = vunpack.c.l.b16 %v448
        %v1652 = vunpack.c.h.b16 %v448
        %v1653 = vunpack.c.l.b16 %v449
        %v1654 = vunpack.c.h.b16 %v449
        %v1655 = vunpack.c.l.b16 %v450
        %v1656 = vunpack.c.h.b16 %v450
        %v1657 = vunpack.c.l.b16 %v451
        %v1658 = vunpack.c.h.b16 %v451
        %v1659 = vunpack.c.l.b16 %v452
        %v1660 = vunpack.c.h.b16 %v452
        %v1661 = vunpack.c.l.b16 %v453
        %v1662 = vunpack.c.h.b16 %v453
        %v1663 = vunpack.c.l.b16 %v454
        %v1664 = vunpack.c.h.b16 %v454
        %v1665 = vunpack.c.l.b16 %v455
        %v1666 = vunpack.c.h.b16 %v455
        %v1667 = vunpack.c.l.b16 %v456
        %v1668 = vunpack.c.h.b16 %v456
        %v1669 = vunpack.c.l.b16 %v457
        %v1670 = vunpack.c.h.b16 %v457
        %v1671 = vunpack.c.l.b16 %v458
        %v1672 = vunpack.c.h.b16 %v458
        %v1673 = vunpack.c.l.b16 %v459
        %v1674 = vunpack.c.h.b16 %v459
        %v1675 = vunpack.c.l.b16 %v460
        %v1676 = vunpack.c.h.b16 %v460
        %v1677 = vunpack.c.l.b16 %v461
        %v1678 = vunpack.c.h.b16 %v461
        %v1679 = vunpack.c.l.b16 %v462
        %v1680 = vunpack.c.h.b16 %v462
        %v1681 = vunpack.c.l.b16 %v463
        %v1682 = vunpack.c.h.b16 %v463
        %v1683 = vunpack.c.l.b16 %v464
        %v1684 = vunpack.c.h.b16 %v464
        %v1685 = vunpack.c.l.b16 %v465
        %v1686 = vunpack.c.h.b16 %v465
        %v1687 = vunpack.c.l.b16 %v466
        %v1688 = vunpack.c.h.b16 %v466
        %v1689 = vunpack.c.l.b16 %v467
        %v1690 = vunpack.c.h.b16 %v467
        %v1691 = vunpack.c.l.b16 %v468
        %v1692 = vunpack.c.h.b16 %v468
        %v1693 = vunpack.c.l.b16 %v469
        %v1694 = vunpack.c.h.b16 %v469
        %v1695 = vunpack.c.l.b16 %v470
        %v1696 = vunpack.c.h.b16 %v470
        %v1697 = vunpack.c.l.b16 %v471
        %v1698 = vunpack.c.h.b16 %v471
        %v1699 = vunpack.c.l.b16 %v472
        %v1700 = vunpack.c.h.b16 %v472
        %v1701 = vunpack.c.l.b16 %v473
        %v1702 = vunpack.c.h.b16 %v473
        %v1703 = vunpack.c.l.b16 %v474
        %v1704 = vunpack.c.h.b16 %v474
        %v1705 = vunpack.c.l.b16 %v475
        %v1706 = vunpack.c.h.b16 %v475
        %v1707 = vunpack.c.l.b16 %v476
        %v1708 = vunpack.c.h.b16 %v476
        %v1709 = vunpack.c.l.b16 %v477
        %v1710 = vunpack.c.h.b16 %v477
        %v1711 = vunpack.c.l.b16 %v478
        %v1712 = vunpack.c.h.b16 %v478
        %v1713 = vunpack.c.l.b16 %v479
        %v1714 = vunpack.c.h.b16 %v479
        %v1715 = vunpack.c.l.b16 %v480
        %v1716 = vunpack.c.h.b16 %v480
        %v1717 = vunpack.c.l.b16 %v481
        %v1718 = vunpack.c.h.b16 %v481
        %v1719 = vunpack.c.l.b16 %v482
        %v1720 = vunpack.c.h.b16 %v482
        %v1721 = vunpack.c.l.b16 %v483
        %v1722 = vunpack.c.h.b16 %v483
        %v1723 = vunpack.c.l.b16 %v484
        %v1724 = vunpack.c.h.b16 %v484
        %v1725 = vunpack.c.l.b16 %v485
        %v1726 = vunpack.c.h.b16 %v485
        %v1727 = vunpack.c.l.b16 %v486
        %v1728 = vunpack.c.h.b16 %v486
        %v1729 = vunpack.c.l.b16 %v487
        %v1730 = vunpack.c.h.b16 %v487
        %v1731 = vunpack.c.l.b16 %v488
        %v1732 = vunpack.c.h.b16 %v488
        %v1733 = vunpack.c.l.b16 %v489
        %v1734 = vunpack.c.h.b16 %v489
        %v1735 = vunpack.c.l.b16 %v490
        %v1736 = vunpack.c.h.b16 %v490
        %v1737 = vunpack.c.l.b16 %v491
        %v1738 = vunpack.c.h.b16 %v491
        %v1739 = vunpack.c.l.b16 %v492
        %v1740 = vunpack.c.h.b16 %v492
        %v1741 = vunpack.c.l.b16 %v493
        %v1742 = vunpack.c.h.b16 %v493
        %v1743 = vunpack.c.l.b16 %v494
        %v1744 = vunpack.c.h.b16 %v494
        %v1745 = vunpack.c.l.b16 %v495
        %v1746 = vunpack.c.h.b16 %v495
        %v1747 = vunpack.c.l.b16 %v496
        %v1748 = vunpack.c.h.b16 %v496
        %v1749 = vunpack.c.l.b16 %v497
        %v1750 = vunpack.c.h.b16 %v497
        %v1751 = vunpack.c.l.b16 %v498
        %v1752 = vunpack.c.h.b16 %v498
        %v1753 = vunpack.c.l.b16 %v499
        %v1754 = vunpack.c.h.b16 %v499
        %v1755 = vunpack.c.l.b16 %v500
        %v1756 = vunpack.c.h.b16 %v500
        %v1757 = vunpack.c.l.b16 %v501
        %v1758 = vunpack.c.h.b16 %v501
        %v1759 = vunpack.c.l.b16 %v502
        %v1760 = vunpack.c.h.b16 %v502
        %v1761 = vunpack.c.l.b16 %v503
        %v1762 = vunpack.c.h.b16 %v503
        %v1763 = vunpack.c.l.b16 %v504
        %v1764 = vunpack.c.h.b16 %v504
        %v1765 = vunpack.c.l.b16 %v505
        %v1766 = vunpack.c.h.b16 %v505
        %v1767 = vunpack.c.l.b16 %v506
        %v1768 = vunpack.c.h.b16 %v506
        %v1769 = vunpack.c.l.b16 %v507
        %v1770 = vunpack.c.h.b16 %v507
        %v1771 = vunpack.c.l.b16 %v508
        %v1772 = vunpack.c.h.b16 %v508
        %v1773 = vunpack.c.l.b16 %v509
        %v1774 = vunpack.c.h.b16 %v509
        %v1775 = vunpack.c.l.b16 %v510
        %v1776 = vunpack.c.h.b16 %v510
        %v1777 = vunpack.c.l.b16 %v511
        %v1778 = vunpack.c.h.b16 %v511
        %v1779 = vunpack.c.l.b16 %v512
        %v1780 = vunpack.c.h.b16 %v512
        %v1781 = vunpack.c.l.b16 %v513
        %v1782 = vunpack.c.h.b16 %v513
        %v1783 = vunpack.c.l.b16 %v514
        %v1784 = vunpack.c.h.b16 %v514
        %v1785 = vunpack.c.l.b16 %v515
        %v1786 = vunpack.c.h.b16 %v515
        %v1787 = vunpack.c.l.b16 %v516
        %v1788 = vunpack.c.h.b16 %v516
        %v1789 = vunpack.c.l.b16 %v517
        %v1790 = vunpack.c.h.b16 %v517
        %v1791 = vunpack.c.l.b16 %v518
        %v1792 = vunpack.c.h.b16 %v518
        %v1793 = vunpack.c.l.b16 %v519
        %v1794 = vunpack.c.h.b16 %v519
        %v1795 = vunpack.c.l.b16 %v520
        %v1796 = vunpack.c.h.b16 %v520
        %v1797 = vunpack.c.l.b16 %v521
        %v1798 = vunpack.c.h.b16 %v521
        %v1799 = vunpack.c.l.b16 %v522
        %v1800 = vunpack.c.h.b16 %v522
        %v1801 = vunpack.c.l.b16 %v523
        %v1802 = vunpack.c.h.b16 %v523
        %v1803 = vunpack.c.l.b16 %v524
        %v1804 = vunpack.c.h.b16 %v524
        %v1805 = vunpack.c.l.b16 %v525
        %v1806 = vunpack.c.h.b16 %v525
        %v1807 = vunpack.c.l.b16 %v526
        %v1808 = vunpack.c.h.b16 %v526
        %v1809 = vunpack.c.l.b16 %v527
        %v1810 = vunpack.c.h.b16 %v527
        %v1811 = vunpack.c.l.b16 %v528
        %v1812 = vunpack.c.h.b16 %v528
        %v1813 = vunpack.c.l.b16 %v529
        %v1814 = vunpack.c.h.b16 %v529
        %v1815 = vunpack.c.l.b16 %v530
        %v1816 = vunpack.c.h.b16 %v530
        %v1817 = vunpack.c.l.b16 %v531
        %v1818 = vunpack.c.h.b16 %v531
        %v1819 = vunpack.c.l.b16 %v532
        %v1820 = vunpack.c.h.b16 %v532
        %v1821 = vunpack.c.l.b16 %v533
        %v1822 = vunpack.c.h.b16 %v533
        %v1823 = vunpack.c.l.b16 %v534
        %v1824 = vunpack.c.h.b16 %v534
        %v1825 = vunpack.c.l.b16 %v535
        %v1826 = vunpack.c.h.b16 %v535
        %v1827 = vunpack.c.l.b16 %v536
        %v1828 = vunpack.c.h.b16 %v536
        %v1829 = vunpack.c.l.b16 %v537
        %v1830 = vunpack.c.h.b16 %v537
        %v1831 = vunpack.c.l.b16 %v538
        %v1832 = vunpack.c.h.b16 %v538
        %v1833 = vunpack.c.l.b16 %v539
        %v1834 = vunpack.c.h.b16 %v539
        %v1835 = vunpack.c.l.b16 %v540
        %v1836 = vunpack.c.h.b16 %v540
        %v1837 = vunpack.c.l.b16 %v541
        %v1838 = vunpack.c.h.b16 %v541
        %v1839 = vunpack.c.l.b16 %v542
        %v1840 = vunpack.c.h.b16 %v542
        %v1841 = vunpack.c.l.b16 %v543
        %v1842 = vunpack.c.h.b16 %v543
        %v1843 = vunpack.c.l.b16 %v544
        %v1844 = vunpack.c.h.b16 %v544
        %v1845 = vunpack.c.l.b16 %v545
        %v1846 = vunpack.c.h.b16 %v545
        %v1847 = vunpack.c.l.b16 %v546
        %v1848 = vunpack.c.h.b16 %v546
        %v1849 = vunpack.c.l.b16 %v547
        %v1850 = vunpack.c.h.b16 %v547
        %v1851 = vunpack.c.l.b16 %v548
        %v1852 = vunpack.c.h.b16 %v548
        %v1853 = vunpack.c.l.b16 %v549
        %v1854 = vunpack.c.h.b16 %v549
        %v1855 = vunpack.c.l.b16 %v550
        %v1856 = vunpack.c.h.b16 %v550
        %v1857 = vunpack.c.l.b16 %v551
        %v1858 = vunpack.c.h.b16 %v551
        %v1859 = vunpack.c.l.b16 %v552
        %v1860 = vunpack.c.h.b16 %v552
        %v1861 = vunpack.c.l.b16 %v553
        %v1862 = vunpack.c.h.b16 %v553
        %v1863 = vunpack.c.l.b16 %v554
        %v1864 = vunpack.c.h.b16 %v554
        %v1865 = vunpack.c.l.b16 %v555
        %v1866 = vunpack.c.h.b16 %v555
        %v1867 = vunpack.c.l.b16 %v556
        %v1868 = vunpack.c.h.b16 %v556
        %v1869 = vunpack.c.l.b16 %v557
        %v1870 = vunpack.c.h.b16 %v557
        %v1871 = vunpack.c.l.b16 %v558
        %v1872 = vunpack.c.h.b16 %v558
        %v1873 = vunpack.c.l.b16 %v559
        %v1874 = vunpack.c.h.b16 %v559
        %v1875 = vunpack.c.l.b16 %v560
        %v1876 = vunpack.c.h.b16 %v560
        %v1877 = vunpack.c.l.b16 %v561
        %v1878 = vunpack.c.h.b16 %v561
        %v1879 = vunpack.c.l.b16 %v562
        %v1880 = vunpack.c.h.b16 %v562
        %v1881 = vunpack.c.l.b16 %v563
        %v1882 = vunpack.c.h.b16 %v563
        %v1883 = vunpack.c.l.b16 %v564
        %v1884 = vunpack.c.h.b16 %v564
        %v1885 = vunpack.c.l.b16 %v565
        %v1886 = vunpack.c.h.b16 %v565
        %v1887 = vunpack.c.l.b16 %v566
        %v1888 = vunpack.c.h.b16 %v566
        %v1889 = vunpack.c.l.b16 %v567
        %v1890 = vunpack.c.h.b16 %v567
        %v1891 = vunpack.c.l.b16 %v568
        %v1892 = vunpack.c.h.b16 %v568
        %v1893 = vunpack.c.l.b16 %v569
        %v1894 = vunpack.c.h.b16 %v569
        %v1895 = vunpack.c.l.b16 %v570
        %v1896 = vunpack.c.h.b16 %v570
        %v1897 = vunpack.c.l.b16 %v571
        %v1898 = vunpack.c.h.b16 %v571
        %v1899 = vunpack.c.l.b16 %v572
        %v1900 = vunpack.c.h.b16 %v572
        %v1901 = vunpack.c.l.b16 %v573
        %v1902 = vunpack.c.h.b16 %v573
        %v1903 = vunpack.c.l.b16 %v574
        %v1904 = vunpack.c.h.b16 %v574
        %v1905 = vunpack.c.l.b16 %v575
        %v1906 = vunpack.c.h.b16 %v575
        %v1907 = vunpack.c.l.b16 %v576
        %v1908 = vunpack.c.h.b16 %v576
        %v1909 = vunpack.c.l.b16 %v577
        %v1910 = vunpack.c.h.b16 %v577
        %v1911 = vunpack.c.l.b16 %v578
        %v1912 = vunpack.c.h.b16 %v578
        %v1913 = vunpack.c.l.b16 %v579
        %v1914 = vunpack.c.h.b16 %v579
        %v1915 = vunpack.c.l.b16 %v580
        %v1916 = vunpack.c.h.b16 %v580
        %v1917 = vunpack.c.l.b16 %v581
        %v1918 = vunpack.c.h.b16 %v581
        %v1919 = vunpack.c.l.b16 %v582
        %v1920 = vunpack.c.h.b16 %v582
        %v1921 = vunpack.c.l.b16 %v583
        %v1922 = vunpack.c.h.b16 %v583
        %v1923 = vunpack.c.l.b16 %v584
        %v1924 = vunpack.c.h.b16 %v584
        %v1925 = vunpack.c.l.b16 %v585
        %v1926 = vunpack.c.h.b16 %v585
        %v1927 = vunpack.c.l.b16 %v586
        %v1928 = vunpack.c.h.b16 %v586
        %v1929 = vunpack.c.l.b16 %v587
        %v1930 = vunpack.c.h.b16 %v587
        %v1931 = vunpack.c.l.b16 %v588
        %v1932 = vunpack.c.h.b16 %v588
        %v1933 = vunpack.c.l.b16 %v589
        %v1934 = vunpack.c.h.b16 %v589
        %v1935 = vunpack.c.l.b16 %v590
        %v1936 = vunpack.c.h.b16 %v590
        %v1937 = vunpack.c.l.b16 %v591
        %v1938 = vunpack.c.h.b16 %v591
        %v1939 = vunpack.c.l.b16 %v592
        %v1940 = vunpack.c.h.b16 %v592
        %v1941 = vunpack.c.l.b16 %v593
        %v1942 = vunpack.c.h.b16 %v593
        %v1943 = vunpack.c.l.b16 %v594
        %v1944 = vunpack.c.h.b16 %v594
        %v1945 = vunpack.c.l.b16 %v595
        %v1946 = vunpack.c.h.b16 %v595
        %v1947 = vunpack.c.l.b16 %v596
        %v1948 = vunpack.c.h.b16 %v596
        %v1949 = vunpack.c.l.b16 %v597
        %v1950 = vunpack.c.h.b16 %v597
        %v1951 = vunpack.c.l.b16 %v598
        %v1952 = vunpack.c.h.b16 %v598
        %v1953 = vunpack.c.l.b16 %v599
        %v1954 = vunpack.c.h.b16 %v599
        %v1955 = vunpack.c.l.b16 %v600
        %v1956 = vunpack.c.h.b16 %v600
        %v1957 = vunpack.c.l.b16 %v601
        %v1958 = vunpack.c.h.b16 %v601
        %v1959 = vunpack.c.l.b16 %v602
        %v1960 = vunpack.c.h.b16 %v602
        %v1961 = vunpack.c.l.b16 %v603
        %v1962 = vunpack.c.h.b16 %v603
        %v1963 = vunpack.c.l.b16 %v604
        %v1964 = vunpack.c.h.b16 %v604
        %v1965 = vunpack.c.l.b16 %v605
        %v1966 = vunpack.c.h.b16 %v605
        %v1967 = vunpack.c.l.b16 %v606
        %v1968 = vunpack.c.h.b16 %v606
        %v1969 = vunpack.c.l.b16 %v607
        %v1970 = vunpack.c.h.b16 %v607
        %v1971 = vunpack.c.l.b16 %v608
        %v1972 = vunpack.c.h.b16 %v608
        %v1973 = vunpack.c.l.b16 %v609
        %v1974 = vunpack.c.h.b16 %v609
        %v1975 = vunpack.c.l.b16 %v610
        %v1976 = vunpack.c.h.b16 %v610
        %v1977 = vunpack.c.l.b16 %v611
        %v1978 = vunpack.c.h.b16 %v611
        %v1979 = vunpack.c.l.b16 %v612
        %v1980 = vunpack.c.h.b16 %v612
        %v1981 = vunpack.c.l.b16 %v613
        %v1982 = vunpack.c.h.b16 %v613
        %v1983 = vunpack.c.l.b16 %v614
        %v1984 = vunpack.c.h.b16 %v614
        %v1985 = vunpack.c.l.b16 %v615
        %v1986 = vunpack.c.h.b16 %v615
        %v1987 = vunpack.c.l.b16 %v616
        %v1988 = vunpack.c.h.b16 %v616
        %v1989 = vunpack.c.l.b16 %v617
        %v1990 = vunpack.c.h.b16 %v617
        %v1991 = vunpack.c.l.b16 %v618
        %v1992 = vunpack.c.h.b16 %v618
        %v1993 = vunpack.c.l.b16 %v619
        %v1994 = vunpack.c.h.b16 %v619
        %v1995 = vunpack.c.l.b16 %v620
        %v1996 = vunpack.c.h.b16 %v620
        %v1997 = vunpack.c.l.b16 %v621
        %v1998 = vunpack.c.h.b16 %v621
        %v1999 = vunpack.c.l.b16 %v622
        %v2000 = vunpack.c.h.b16 %v622
        %v2001 = vunpack.c.l.b16 %v623
        %v2002 = vunpack.c.h.b16 %v623
        %v2003 = vunpack.c.l.b16 %v624
        %v2004 = vunpack.c.h.b16 %v624
        %v2005 = vunpack.c.l.b16 %v625
        %v2006 = vunpack.c.h.b16 %v625
        %v2007 = vunpack.c.l.b16 %v626
        %v2008 = vunpack.c.h.b16 %v626
        %v2009 = vunpack.c.l.b16 %v627
        %v2010 = vunpack.c.h.b16 %v627
        %v2011 = vunpack.c.l.b16 %v628
        %v2012 = vunpack.c.h.b16 %v628
        %v2013 = vunpack.c.l.b16 %v629
        %v2014 = vunpack.c.h.b16 %v629
        %v2015 = vunpack.c.l.b16 %v630
        %v2016 = vunpack.c.h.b16 %v630
        %v2017 = vunpack.c.l.b16 %v631
        %v2018 = vunpack.c.h.b16 %v631
        %v2019 = vunpack.c.l.b16 %v632
        %v2020 = vunpack.c.h.b16 %v632
        %v2021 = vunpack.c.l.b16 %v633
        %v2022 = vunpack.c.h.b16 %v633
        %v2023 = vunpack.c.l.b16 %v634
        %v2024 = vunpack.c.h.b16 %v634
        %v2025 = vunpack.c.l.b16 %v635
        %v2026 = vunpack.c.h.b16 %v635
        %v2027 = vunpack.c.l.b16 %v636
        %v2028 = vunpack.c.h.b16 %v636
        %v2029 = vunpack.c.l.b16 %v637
        %v2030 = vunpack.c.h.b16 %v637
        %v2031 = vunpack.c.l.b16 %v638
        %v2032 = vunpack.c.h.b16 %v638
        %v2033 = vunpack.c.l.b16 %v639
        %v2034 = vunpack.c.h.b16 %v639
        %v2035 = vunpack.c.l.b16 %v640
        %v2036 = vunpack.c.h.b16 %v640
        %v2037 = vunpack.c.l.b16 %v641
        %v2038 = vunpack.c.h.b16 %v641
        %v2039 = vunpack.c.l.b16 %v642
        %v2040 = vunpack.c.h.b16 %v642
        %v2041 = vunpack.c.l.b16 %v643
        %v2042 = vunpack.c.h.b16 %v643
        %v2043 = vunpack.c.l.b16 %v644
        %v2044 = vunpack.c.h.b16 %v644
        %v2045 = vunpack.c.l.b16 %v645
        %v2046 = vunpack.c.h.b16 %v645
        %v2047 = vunpack.c.l.b16 %v646
        %v2048 = vunpack.c.h.b16 %v646
        %v2049 = vunpack.c.l.b16 %v647
        %v2050 = vunpack.c.h.b16 %v647
        %v2051 = vunpack.c.l.b16 %v648
        %v2052 = vunpack.c.h.b16 %v648
        %v2053 = vunpack.c.l.b16 %v649
        %v2054 = vunpack.c.h.b16 %v649
        %v2055 = vunpack.c.l.b16 %v650
        %v2056 = vunpack.c.h.b16 %v650
        %v2057 = vunpack.c.l.b16 %v651
        %v2058 = vunpack.c.h.b16 %v651
        %v2059 = vunpack.c.l.b16 %v652
        %v2060 = vunpack.c.h.b16 %v652
        %v2061 = vunpack.c.l.b16 %v653
        %v2062 = vunpack.c.h.b16 %v653
        %v2063 = vunpack.c.l.b16 %v654
        %v2064 = vunpack.c.h.b16 %v654
        %v2065 = vunpack.c.l.b16 %v655
        %v2066 = vunpack.c.h.b16 %v655
        %v2067 = vunpack.c.l.b16 %v656
        %v2068 = vunpack.c.h.b16 %v656
        %v2069 = vunpack.c.l.b16 %v657
        %v2070 = vunpack.c.h.b16 %v657
        %v2071 = vunpack.c.l.b16 %v658
        %v2072 = vunpack.c.h.b16 %v658
        %v2073 = vunpack.c.l.b16 %v659
        %v2074 = vunpack.c.h.b16 %v659
        %v2075 = vunpack.c.l.b16 %v660
        %v2076 = vunpack.c.h.b16 %v660
        %v2077 = vunpack.c.l.b16 %v661
        %v2078 = vunpack.c.h.b16 %v661
        %v2079 = vunpack.c.l.b16 %v662
        %v2080 = vunpack.c.h.b16 %v662
        %v2081 = vunpack.c.l.b16 %v663
        %v2082 = vunpack.c.h.b16 %v663
        %v2083 = vunpack.c.l.b16 %v664
        %v2084 = vunpack.c.h.b16 %v664
        %v2085 = vunpack.c.l.b16 %v665
        %v2086 = vunpack.c.h.b16 %v665
        %v2087 = vunpack.c.l.b16 %v666
        %v2088 = vunpack.c.h.b16 %v666
        %v2089 = vunpack.c.l.b16 %v667
        %v2090 = vunpack.c.h.b16 %v667
        %v2091 = vunpack.c.l.b16 %v668
        %v2092 = vunpack.c.h.b16 %v668
        %v2093 = vunpack.c.l.b16 %v669
        %v2094 = vunpack.c.h.b16 %v669
        %v2095 = vunpack.c.l.b16 %v670
        %v2096 = vunpack.c.h.b16 %v670
        %v2097 = vunpack.c.l.b16 %v671
        %v2098 = vunpack.c.h.b16 %v671
        %v2099 = vunpack.c.l.b16 %v672
        %v2100 = vunpack.c.h.b16 %v672
        %v2101 = vunpack.c.l.b16 %v673
        %v2102 = vunpack.c.h.b16 %v673
        %v2103 = vunpack.c.l.b16 %v674
        %v2104 = vunpack.c.h.b16 %v674
        %v2105 = vunpack.c.l.b16 %v675
        %v2106 = vunpack.c.h.b16 %v675
        %v2107 = vunpack.c.l.b16 %v676
        %v2108 = vunpack.c.h.b16 %v676
        %v2109 = vunpack.c.l.b16 %v677
        %v2110 = vunpack.c.h.b16 %v677
        %v2111 = vunpack.c.l.b16 %v678
        %v2112 = vunpack.c.h.b16 %v678
        %v2113 = vunpack.c.l.b16 %v679
        %v2114 = vunpack.c.h.b16 %v679
        %v2115 = vunpack.c.l.b16 %v680
        %v2116 = vunpack.c.h.b16 %v680
        %v2117 = vunpack.c.l.b16 %v681
        %v2118 = vunpack.c.h.b16 %v681
        %v2119 = vunpack.c.l.b16 %v682
        %v2120 = vunpack.c.h.b16 %v682
        %v2121 = vunpack.c.l.b16 %v683
        %v2122 = vunpack.c.h.b16 %v683
        %v2123 = vunpack.c.l.b16 %v684
        %v2124 = vunpack.c.h.b16 %v684
        %v2125 = vunpack.c.l.b16 %v685
        %v2126 = vunpack.c.h.b16 %v685
        %v2127 = vunpack.c.l.b16 %v686
        %v2128 = vunpack.c.h.b16 %v686
        %v2129 = vunpack.c.l.b16 %v687
        %v2130 = vunpack.c.h.b16 %v687
        %v2131 = vunpack.c.l.b16 %v688
        %v2132 = vunpack.c.h.b16 %v688
        %v2133 = vunpack.c.l.b16 %v689
        %v2134 = vunpack.c.h.b16 %v689
        %v2135 = vunpack.c.l.b16 %v690
        %v2136 = vunpack.c.h.b16 %v690
        %v2137 = vunpack.c.l.b16 %v691
        %v2138 = vunpack.c.h.b16 %v691
        %v2139 = vunpack.c.l.b16 %v692
        %v2140 = vunpack.c.h.b16 %v692
        %v2141 = vunpack.c.l.b16 %v693
        %v2142 = vunpack.c.h.b16 %v693
        %v2143 = vunpack.c.l.b16 %v694
        %v2144 = vunpack.c.h.b16 %v694
        %v2145 = vunpack.c.l.b16 %v695
        %v2146 = vunpack.c.h.b16 %v695
        %v2147 = vunpack.c.l.b16 %v696
        %v2148 = vunpack.c.h.b16 %v696
        %v2149 = vunpack.c.l.b16 %v697
        %v2150 = vunpack.c.h.b16 %v697
        %v2151 = vunpack.c.l.b16 %v698
        %v2152 = vunpack.c.h.b16 %v698
        %v2153 = vunpack.c.l.b16 %v699
        %v2154 = vunpack.c.h.b16 %v699
        %v2155 = vunpack.c.l.b16 %v700
        %v2156 = vunpack.c.h.b16 %v700
        %v2157 = vunpack.c.l.b16 %v701
        %v2158 = vunpack.c.h.b16 %v701
        %v2159 = vunpack.c.l.b16 %v702
        %v2160 = vunpack.c.h.b16 %v702
        %v2161 = vunpack.c.l.b16 %v703
        %v2162 = vunpack.c.h.b16 %v703
        %v2163 = vunpack.c.l.b16 %v704
        %v2164 = vunpack.c.h.b16 %v704
        %v2165 = vunpack.c.l.b16 %v705
        %v2166 = vunpack.c.h.b16 %v705
        %v2167 = vunpack.c.l.b16 %v706
        %v2168 = vunpack.c.h.b16 %v706
        %v2169 = vunpack.c.l.b16 %v707
        %v2170 = vunpack.c.h.b16 %v707
        %v2171 = vunpack.c.l.b16 %v708
        %v2172 = vunpack.c.h.b16 %v708
        %v2173 = vunpack.c.l.b16 %v709
        %v2174 = vunpack.c.h.b16 %v709
        %v2175 = vunpack.c.l.b16 %v710
        %v2176 = vunpack.c.h.b16 %v710
        %v2177 = vunpack.c.l.b16 %v711
        %v2178 = vunpack.c.h.b16 %v711
        %v2179 = vunpack.c.l.b16 %v712
        %v2180 = vunpack.c.h.b16 %v712
        %v2181 = vunpack.c.l.b16 %v713
        %v2182 = vunpack.c.h.b16 %v713
        %v2183 = vunpack.c.l.b16 %v714
        %v2184 = vunpack.c.h.b16 %v714
        %v2185 = vunpack.c.l.b16 %v715
        %v2186 = vunpack.c.h.b16 %v715
        %v2187 = vunpack.c.l.b16 %v716
        %v2188 = vunpack.c.h.b16 %v716
        %v2189 = vunpack.c.l.b16 %v717
        %v2190 = vunpack.c.h.b16 %v717
        %v2191 = vunpack.c.l.b16 %v718
        %v2192 = vunpack.c.h.b16 %v718
        %v2193 = vunpack.c.l.b16 %v719
        %v2194 = vunpack.c.h.b16 %v719
        %v2195 = vunpack.c.l.b16 %v720
        %v2196 = vunpack.c.h.b16 %v720
        %v2197 = vunpack.c.l.b16 %v721
        %v2198 = vunpack.c.h.b16 %v721
        %v2199 = vunpack.c.l.b16 %v722
        %v2200 = vunpack.c.h.b16 %v722
        %v2201 = vunpack.c.l.b16 %v723
        %v2202 = vunpack.c.h.b16 %v723
        %v2203 = vunpack.c.l.b16 %v724
        %v2204 = vunpack.c.h.b16 %v724
        %v2205 = vunpack.c.l.b16 %v725
        %v2206 = vunpack.c.h.b16 %v725
        %v2207 = vunpack.c.l.b16 %v726
        %v2208 = vunpack.c.h.b16 %v726
        %v2209 = vunpack.c.l.b16 %v727
        %v2210 = vunpack.c.h.b16 %v727
        %v2211 = vunpack.c.l.b16 %v728
        %v2212 = vunpack.c.h.b16 %v728
        %v2213 = vunpack.c.l.b16 %v729
        %v2214 = vunpack.c.h.b16 %v729
        %v2215 = vunpack.c.l.b16 %v730
        %v2216 = vunpack.c.h.b16 %v730
        %v2217 = vunpack.c.l.b16 %v731
        %v2218 = vunpack.c.h.b16 %v731
        %v2219 = vunpack.c.l.b16 %v732
        %v2220 = vunpack.c.h.b16 %v732
        %v2221 = vunpack.c.l.b16 %v733
        %v2222 = vunpack.c.h.b16 %v733
        %v2223 = vunpack.c.l.b16 %v734
        %v2224 = vunpack.c.h.b16 %v734
        %v2225 = vunpack.c.l.b16 %v735
        %v2226 = vunpack.c.h.b16 %v735
        %v2227 = vunpack.c.l.b16 %v736
        %v2228 = vunpack.c.h.b16 %v736
        %v2229 = vunpack.c.l.b16 %v737
        %v2230 = vunpack.c.h.b16 %v737
        %v2231 = vunpack.c.l.b16 %v738
        %v2232 = vunpack.c.h.b16 %v738
        %v2233 = vunpack.c.l.b16 %v739
        %v2234 = vunpack.c.h.b16 %v739
        %v2235 = vunpack.c.l.b16 %v740
        %v2236 = vunpack.c.h.b16 %v740
        %v2237 = vunpack.c.l.b16 %v741
        %v2238 = vunpack.c.h.b16 %v741
        %v2239 = vunpack.c.l.b16 %v742
        %v2240 = vunpack.c.h.b16 %v742
        %v2241 = vunpack.c.l.b16 %v743
        %v2242 = vunpack.c.h.b16 %v743
        %v2243 = vunpack.c.l.b16 %v744
        %v2244 = vunpack.c.h.b16 %v744
        %v2245 = vunpack.c.l.b16 %v745
        %v2246 = vunpack.c.h.b16 %v745
        %v2247 = vunpack.c.l.b16 %v746
        %v2248 = vunpack.c.h.b16 %v746
        %v2249 = vunpack.c.l.b16 %v747
        %v2250 = vunpack.c.h.b16 %v747
        %v2251 = vunpack.c.l.b16 %v748
        %v2252 = vunpack.c.h.b16 %v748
        %v2253 = vunpack.c.l.b16 %v749
        %v2254 = vunpack.c.h.b16 %v749
        %v2255 = vunpack.c.l.b16 %v750
        %v2256 = vunpack.c.h.b16 %v750
        %v2257 = vunpack.c.l.b16 %v751
        %v2258 = vunpack.c.h.b16 %v751
        %v2259 = vunpack.c.l.b16 %v752
        %v2260 = vunpack.c.h.b16 %v752
        %v2261 = vunpack.c.l.b16 %v753
        %v2262 = vunpack.c.h.b16 %v753
        %v2263 = vunpack.c.l.b16 %v754
        %v2264 = vunpack.c.h.b16 %v754
        %v2265 = vunpack.c.l.b16 %v755
        %v2266 = vunpack.c.h.b16 %v755
        %v2267 = vunpack.c.l.b16 %v756
        %v2268 = vunpack.c.h.b16 %v756
        %v2269 = vunpack.c.l.b16 %v757
        %v2270 = vunpack.c.h.b16 %v757
        %v2271 = vunpack.c.l.b16 %v758
        %v2272 = vunpack.c.h.b16 %v758
        %v2273 = vunpack.c.l.b16 %v759
        %v2274 = vunpack.c.h.b16 %v759
        %v2275 = vunpack.c.l.b16 %v760
        %v2276 = vunpack.c.h.b16 %v760
        %v2277 = vunpack.c.l.b16 %v761
        %v2278 = vunpack.c.h.b16 %v761
        %v2279 = vunpack.c.l.b16 %v762
        %v2280 = vunpack.c.h.b16 %v762
        %v2281 = vunpack.c.l.b16 %v763
        %v2282 = vunpack.c.h.b16 %v763
        %v2283 = vunpack.c.l.b16 %v764
        %v2284 = vunpack.c.h.b16 %v764
        %v2285 = vunpack.c.l.b16 %v765
        %v2286 = vunpack.c.h.b16 %v765
        %v2287 = vunpack.c.l.b16 %v766
        %v2288 = vunpack.c.h.b16 %v766
        %v2289 = vunpack.c.l.b16 %v767
        %v2290 = vunpack.c.h.b16 %v767
        %v2291 = vunpack.c.l.b16 %v768
        %v2292 = vunpack.c.h.b16 %v768
        %v2293 = vunpack.c.l.b16 %v769
        %v2294 = vunpack.c.h.b16 %v769
        %v2295 = vunpack.c.l.b16 %v770
        %v2296 = vunpack.c.h.b16 %v770
        %v2297 = vunpack.c.l.b16 %v771
        %v2298 = vunpack.c.h.b16 %v771
        %v2299 = vunpack.c.l.b16 %v772
        %v2300 = vunpack.c.h.b16 %v772
        %v2301 = vunpack.c.l.b16 %v773
        %v2302 = vunpack.c.h.b16 %v773
        %v2303 = vunpack.c.l.b16 %v774
        %v2304 = vunpack.c.h.b16 %v774
        %v2305 = vunpack.c.l.b16 %v775
        %v2306 = vunpack.c.h.b16 %v775
        %v2307 = vunpack.c.l.b16 %v776
        %v2308 = vunpack.c.h.b16 %v776
        %v2309 = vunpack.c.l.b16 %v777
        %v2310 = vunpack.c.h.b16 %v777
        %v2311 = vunpack.c.l.b16 %v778
        %v2312 = vunpack.c.h.b16 %v778
        %v2313 = vunpack.c.l.b16 %v779
        %v2314 = vunpack.c.h.b16 %v779
        %v2315 = vunpack.c.l.b16 %v780
        %v2316 = vunpack.c.h.b16 %v780
        %v2317 = vunpack.c.l.b16 %v781
        %v2318 = vunpack.c.h.b16 %v781
        %v2319 = vunpack.c.l.b16 %v782
        %v2320 = vunpack.c.h.b16 %v782
        %v2321 = vunpack.c.l.b16 %v783
        %v2322 = vunpack.c.h.b16 %v783
        %v2323 = vunpack.c.l.b16 %v784
        %v2324 = vunpack.c.h.b16 %v784
        %v2325 = vunpack.c.l.b16 %v785
        %v2326 = vunpack.c.h.b16 %v785
        %v2327 = vunpack.c.l.b16 %v786
        %v2328 = vunpack.c.h.b16 %v786
        %v2329 = vunpack.c.l.b16 %v787
        %v2330 = vunpack.c.h.b16 %v787
        %v2331 = vunpack.c.l.b16 %v788
        %v2332 = vunpack.c.h.b16 %v788
        %v2333 = vunpack.c.l.b16 %v789
        %v2334 = vunpack.c.h.b16 %v789
        %v2335 = vunpack.c.l.b16 %v790
        %v2336 = vunpack.c.h.b16 %v790
        %v2337 = vunpack.c.l.b16 %v791
        %v2338 = vunpack.c.h.b16 %v791
        %v2339 = vunpack.c.l.b16 %v792
        %v2340 = vunpack.c.h.b16 %v792
        %v2341 = vunpack.c.l.b16 %v793
        %v2342 = vunpack.c.h.b16 %v793
        %v2343 = vunpack.c.l.b16 %v794
        %v2344 = vunpack.c.h.b16 %v794
        %v2345 = vunpack.c.l.b16 %v795
        %v2346 = vunpack.c.h.b16 %v795
        %v2347 = vunpack.c.l.b16 %v796
        %v2348 = vunpack.c.h.b16 %v796
        %v2349 = vunpack.c.l.b16 %v797
        %v2350 = vunpack.c.h.b16 %v797
        %v2351 = vunpack.c.l.b16 %v798
        %v2352 = vunpack.c.h.b16 %v798
        %v2353 = vunpack.c.l.b16 %v799
        %v2354 = vunpack.c.h.b16 %v799
        %v2355 = vunpack.c.l.b16 %v800
        %v2356 = vunpack.c.h.b16 %v800
        %v2357 = vunpack.c.l.b16 %v801
        %v2358 = vunpack.c.h.b16 %v801
        %v2359 = vunpack.c.l.b16 %v802
        %v2360 = vunpack.c.h.b16 %v802
        %v2361 = vunpack.c.l.b16 %v803
        %v2362 = vunpack.c.h.b16 %v803
        %v2363 = vunpack.c.l.b16 %v804
        %v2364 = vunpack.c.h.b16 %v804
        %v2365 = vunpack.c.l.b16 %v805
        %v2366 = vunpack.c.h.b16 %v805
        %v2367 = vunpack.c.l.b16 %v806
        %v2368 = vunpack.c.h.b16 %v806
        %v2369 = vunpack.c.l.b16 %v807
        %v2370 = vunpack.c.h.b16 %v807
        %v2371 = vunpack.c.l.b16 %v808
        %v2372 = vunpack.c.h.b16 %v808
        %v2373 = vunpack.c.l.b16 %v809
        %v2374 = vunpack.c.h.b16 %v809
        %v2375 = vunpack.c.l.b16 %v810
        %v2376 = vunpack.c.h.b16 %v810
        %v2377 = vunpack.c.l.b16 %v811
        %v2378 = vunpack.c.h.b16 %v811
        %v2379 = vunpack.c.l.b16 %v812
        %v2380 = vunpack.c.h.b16 %v812
        %v2381 = vunpack.c.l.b16 %v813
        %v2382 = vunpack.c.h.b16 %v813
        %v2383 = vunpack.c.l.b16 %v814
        %v2384 = vunpack.c.h.b16 %v814
        %v2385 = vunpack.c.l.b16 %v815
        %v2386 = vunpack.c.h.b16 %v815
        %v2387 = vunpack.c.l.b16 %v816
        %v2388 = vunpack.c.h.b16 %v816
        %v2389 = vunpack.c.l.b16 %v817
        %v2390 = vunpack.c.h.b16 %v817
        %v2391 = vunpack.c.l.b16 %v818
        %v2392 = vunpack.c.h.b16 %v818
        %v2393 = vunpack.c.l.b16 %v819
        %v2394 = vunpack.c.h.b16 %v819
        %v2395 = vunpack.c.l.b16 %v820
        %v2396 = vunpack.c.h.b16 %v820
        %v2397 = vunpack.c.l.b16 %v821
        %v2398 = vunpack.c.h.b16 %v821
        %v2399 = vunpack.c.l.b16 %v822
        %v2400 = vunpack.c.h.b16 %v822
        %v2401 = vunpack.c.l.b16 %v823
        %v2402 = vunpack.c.h.b16 %v823
        %v2403 = vunpack.c.l.b16 %v824
        %v2404 = vunpack.c.h.b16 %v824
        %v2405 = vunpack.c.l.b16 %v825
        %v2406 = vunpack.c.h.b16 %v825
        %v2407 = vunpack.c.l.b16 %v826
        %v2408 = vunpack.c.h.b16 %v826
        %v2409 = vunpack.c.l.b16 %v827
        %v2410 = vunpack.c.h.b16 %v827
        %v2411 = vunpack.c.l.b16 %v828
        %v2412 = vunpack.c.h.b16 %v828
        %v2413 = vunpack.c.l.b16 %v829
        %v2414 = vunpack.c.h.b16 %v829
        %v2415 = vunpack.c.l.b16 %v830
        %v2416 = vunpack.c.h.b16 %v830
        %v2417 = vunpack.c.l.b16 %v831
        %v2418 = vunpack.c.h.b16 %v831
        %v2419 = vunpack.c.l.b16 %v832
        %v2420 = vunpack.c.h.b16 %v832
        %v2421 = vunpack.c.l.b16 %v833
        %v2422 = vunpack.c.h.b16 %v833
        %v2423 = vunpack.c.l.b16 %v834
        %v2424 = vunpack.c.h.b16 %v834
        %v2425 = vunpack.c.l.b16 %v835
        %v2426 = vunpack.c.h.b16 %v835
        %v2427 = vunpack.c.l.b16 %v836
        %v2428 = vunpack.c.h.b16 %v836
        %v2429 = vunpack.c.l.b16 %v837
        %v2430 = vunpack.c.h.b16 %v837
        %v2431 = vunpack.c.l.b16 %v838
        %v2432 = vunpack.c.h.b16 %v838
        %v2433 = vunpack.c.l.b16 %v839
        %v2434 = vunpack.c.h.b16 %v839
        %v2435 = vunpack.c.l.b16 %v840
        %v2436 = vunpack.c.h.b16 %v840
        %v2437 = vunpack.c.l.b16 %v841
        %v2438 = vunpack.c.h.b16 %v841
        %v2439 = vunpack.c.l.b16 %v842
        %v2440 = vunpack.c.h.b16 %v842
        %v2441 = vunpack.c.l.b16 %v843
        %v2442 = vunpack.c.h.b16 %v843
        %v2443 = vunpack.c.l.b16 %v844
        %v2444 = vunpack.c.h.b16 %v844
        %v2445 = vunpack.c.l.b16 %v845
        %v2446 = vunpack.c.h.b16 %v845
        %v2447 = vunpack.c.l.b16 %v846
        %v2448 = vunpack.c.h.b16 %v846
        %v2449 = vunpack.c.l.b16 %v847
        %v2450 = vunpack.c.h.b16 %v847
        %v2451 = vunpack.c.l.b16 %v848
        %v2452 = vunpack.c.h.b16 %v848
        %v2453 = vunpack.c.l.b16 %v849
        %v2454 = vunpack.c.h.b16 %v849
        %v2455 = vunpack.c.l.b16 %v850
        %v2456 = vunpack.c.h.b16 %v850
        %v2457 = vunpack.c.l.b16 %v851
        %v2458 = vunpack.c.h.b16 %v851
        %v2459 = vunpack.c.l.b16 %v852
        %v2460 = vunpack.c.h.b16 %v852
        %v2461 = vunpack.c.l.b16 %v853
        %v2462 = vunpack.c.h.b16 %v853
        %v2463 = vunpack.c.l.b16 %v854
        %v2464 = vunpack.c.h.b16 %v854
        %v2465 = vunpack.c.l.b16 %v855
        %v2466 = vunpack.c.h.b16 %v855
        %v2467 = vunpack.c.l.b16 %v856
        %v2468 = vunpack.c.h.b16 %v856
        %v2469 = vunpack.c.l.b16 %v857
        %v2470 = vunpack.c.h.b16 %v857
        %v2471 = vunpack.c.l.b16 %v858
        %v2472 = vunpack.c.h.b16 %v858
        %v2473 = vunpack.c.l.b16 %v859
        %v2474 = vunpack.c.h.b16 %v859
        %v2475 = vunpack.c.l.b16 %v860
        %v2476 = vunpack.c.h.b16 %v860
        %v2477 = vunpack.c.l.b16 %v861
        %v2478 = vunpack.c.h.b16 %v861
        %v2479 = vunpack.c.l.b16 %v862
        %v2480 = vunpack.c.h.b16 %v862
        %v2481 = vunpack.c.l.b16 %v863
        %v2482 = vunpack.c.h.b16 %v863
        %v2483 = vunpack.c.l.b16 %v864
        %v2484 = vunpack.c.h.b16 %v864
        %v2485 = vunpack.c.l.b16 %v865
        %v2486 = vunpack.c.h.b16 %v865
        %v2487 = vunpack.c.l.b16 %v866
        %v2488 = vunpack.c.h.b16 %v866
        %v2489 = vunpack.c.l.b16 %v867
        %v2490 = vunpack.c.h.b16 %v867
        %v2491 = vunpack.c.l.b16 %v868
        %v2492 = vunpack.c.h.b16 %v868
        %v2493 = vunpack.c.l.b16 %v869
        %v2494 = vunpack.c.h.b16 %v869
        %v2495 = vunpack.c.l.b16 %v870
        %v2496 = vunpack.c.h.b16 %v870
        %v2497 = vunpack.c.l.b16 %v871
        %v2498 = vunpack.c.h.b16 %v871
        %v2499 = vunpack.c.l.b16 %v872
        %v2500 = vunpack.c.h.b16 %v872
        %v2501 = vunpack.c.l.b16 %v873
        %v2502 = vunpack.c.h.b16 %v873
        %v2503 = vunpack.c.l.b16 %v874
        %v2504 = vunpack.c.h.b16 %v874
        %v2505 = vunpack.c.l.b16 %v875
        %v2506 = vunpack.c.h.b16 %v875
        %v2507 = vunpack.c.l.b16 %v876
        %v2508 = vunpack.c.h.b16 %v876
        %v2509 = vunpack.c.l.b16 %v877
        %v2510 = vunpack.c.h.b16 %v877
        %v2511 = vunpack.c.l.b16 %v878
        %v2512 = vunpack.c.h.b16 %v878
        %v2513 = vunpack.c.l.b16 %v879
        %v2514 = vunpack.c.h.b16 %v879
        %v2515 = vunpack.c.l.b16 %v880
        %v2516 = vunpack.c.h.b16 %v880
        %v2517 = vunpack.c.l.b16 %v881
        %v2518 = vunpack.c.h.b16 %v881
        %v2519 = vunpack.c.l.b16 %v882
        %v2520 = vunpack.c.h.b16 %v882
        %v2521 = vunpack.c.l.b16 %v883
        %v2522 = vunpack.c.h.b16 %v883
        %v2523 = vunpack.c.l.b16 %v884
        %v2524 = vunpack.c.h.b16 %v884
        %v2525 = vunpack.c.l.b16 %v885
        %v2526 = vunpack.c.h.b16 %v885
        %v2527 = vunpack.c.l.b16 %v886
        %v2528 = vunpack.c.h.b16 %v886
        %v2529 = vunpack.c.l.b16 %v887
        %v2530 = vunpack.c.h.b16 %v887
        %v2531 = vunpack.c.l.b16 %v888
        %v2532 = vunpack.c.h.b16 %v888
        %v2533 = vunpack.c.l.b16 %v889
        %v2534 = vunpack.c.h.b16 %v889
        %v2535 = vunpack.c.l.b16 %v890
        %v2536 = vunpack.c.h.b16 %v890
        %v2537 = vunpack.c.l.b16 %v891
        %v2538 = vunpack.c.h.b16 %v891
        %v2539 = vunpack.c.l.b16 %v892
        %v2540 = vunpack.c.h.b16 %v892
        %v2541 = vunpack.c.l.b16 %v893
        %v2542 = vunpack.c.h.b16 %v893
        %v2543 = vunpack.c.l.b16 %v894
        %v2544 = vunpack.c.h.b16 %v894
        %v2545 = vunpack.c.l.b16 %v895
        %v2546 = vunpack.c.h.b16 %v895
        %v2547 = vunpack.c.l.b16 %v896
        %v2548 = vunpack.c.h.b16 %v896
        %v2549 = vunpack.c.l.b16 %v897
        %v2550 = vunpack.c.h.b16 %v897
        %v2551 = vunpack.c.l.b16 %v898
        %v2552 = vunpack.c.h.b16 %v898
        %v2553 = vunpack.c.l.b16 %v899
        %v2554 = vunpack.c.h.b16 %v899
        %v2555 = vunpack.c.l.b16 %v900
        %v2556 = vunpack.c.h.b16 %v900
        %v2557 = vunpack.c.l.b16 %v901
        %v2558 = vunpack.c.h.b16 %v901
        %v2559 = vunpack.c.l.b16 %v902
        %v2560 = vunpack.c.h.b16 %v902
        %v2561 = vunpack.c.l.b16 %v903
        %v2562 = vunpack.c.h.b16 %v903
        %v2563 = vunpack.c.l.b16 %v904
        %v2564 = vunpack.c.h.b16 %v904
        %v2565 = vpack.c.b16 %v1543, %v1541
        %v2566 = vpack.c.b16 %v1544, %v1542
        %v2567 = vpack.c.b16 %v1547, %v1545
        %v2568 = vpack.c.b16 %v1548, %v1546
        %v2569 = vpack.c.b16 %v1551, %v1549
        %v2570 = vpack.c.b16 %v1552, %v1550
        %v2571 = vpack.c.b16 %v1555, %v1553
        %v2572 = vpack.c.b16 %v1556, %v1554
        %v2573 = vpack.c.b16 %v1559, %v1557
        %v2574 = vpack.c.b16 %v1560, %v1558
        %v2575 = vpack.c.b16 %v1563, %v1561
        %v2576 = vpack.c.b16 %v1564, %v1562
        %v2577 = vpack.c.b16 %v1567, %v1565
        %v2578 = vpack.c.b16 %v1568, %v1566
        %v2579 = vpack.c.b16 %v1571, %v1569
        %v2580 = vpack.c.b16 %v1572, %v1570
        %v2581 = vpack.c.b16 %v1575, %v1573
        %v2582 = vpack.c.b16 %v1576, %v1574
        %v2583 = vpack.c.b16 %v1579, %v1577
        %v2584 = vpack.c.b16 %v1580, %v1578
        %v2585 = vpack.c.b16 %v1583, %v1581
        %v2586 = vpack.c.b16 %v1584, %v1582
        %v2587 = vpack.c.b16 %v1587, %v1585
        %v2588 = vpack.c.b16 %v1588, %v1586
        %v2589 = vpack.c.b16 %v1591, %v1589
        %v2590 = vpack.c.b16 %v1592, %v1590
        %v2591 = vpack.c.b16 %v1595, %v1593
        %v2592 = vpack.c.b16 %v1596, %v1594
        %v2593 = vpack.c.b16 %v1599, %v1597
        %v2594 = vpack.c.b16 %v1600, %v1598
        %v2595 = vpack.c.b16 %v1603, %v1601
        %v2596 = vpack.c.b16 %v1604, %v1602
        %v2597 = vpack.c.b16 %v1607, %v1605
        %v2598 = vpack.c.b16 %v1608, %v1606
        %v2599 = vpack.c.b16 %v1611, %v1609
        %v2600 = vpack.c.b16 %v1612, %v1610
        %v2601 = vpack.c.b16 %v1615, %v1613
        %v2602 = vpack.c.b16 %v1616, %v1614
        %v2603 = vpack.c.b16 %v1619, %v1617
        %v2604 = vpack.c.b16 %v1620, %v1618
        %v2605 = vpack.c.b16 %v1623, %v1621
        %v2606 = vpack.c.b16 %v1624, %v1622
        %v2607 = vpack.c.b16 %v1627, %v1625
        %v2608 = vpack.c.b16 %v1628, %v1626
        %v2609 = vpack.c.b16 %v1631, %v1629
        %v2610 = vpack.c.b16 %v1632, %v1630
        %v2611 = vpack.c.b16 %v1635, %v1633
        %v2612 = vpack.c.b16 %v1636, %v1634
        %v2613 = vpack.c.b16 %v1639, %v1637
        %v2614 = vpack.c.b16 %v1640, %v1638
        %v2615 = vpack.c.b16 %v1643, %v1641
        %v2616 = vpack.c.b16 %v1644, %v1642
        %v2617 = vpack.c.b16 %v1647, %v1645
        %v2618 = vpack.c.b16 %v1648, %v1646
        %v2619 = vpack.c.b16 %v1651, %v1649
        %v2620 = vpack.c.b16 %v1652, %v1650
        %v2621 = vpack.c.b16 %v1655, %v1653
        %v2622 = vpack.c.b16 %v1656, %v1654
        %v2623 = vpack.c.b16 %v1659, %v1657
        %v2624 = vpack.c.b16 %v1660, %v1658
        %v2625 = vpack.c.b16 %v1663, %v1661
        %v2626 = vpack.c.b16 %v1664, %v1662
        %v2627 = vpack.c.b16 %v1667, %v1665
        %v2628 = vpack.c.b16 %v1668, %v1666
        %v2629 = vpack.c.b16 %v1671, %v1669
        %v2630 = vpack.c.b16 %v1672, %v1670
        %v2631 = vpack.c.b16 %v1675, %v1673
        %v2632 = vpack.c.b16 %v1676, %v1674
        %v2633 = vpack.c.b16 %v1679, %v1677
        %v2634 = vpack.c.b16 %v1680, %v1678
        %v2635 = vpack.c.b16 %v1683, %v1681
        %v2636 = vpack.c.b16 %v1684, %v1682
        %v2637 = vpack.c.b16 %v1687, %v1685
        %v2638 = vpack.c.b16 %v1688, %v1686
        %v2639 = vpack.c.b16 %v1691, %v1689
        %v2640 = vpack.c.b16 %v1692, %v1690
        %v2641 = vpack.c.b16 %v1695, %v1693
        %v2642 = vpack.c.b16 %v1696, %v1694
        %v2643 = vpack.c.b16 %v1699, %v1697
        %v2644 = vpack.c.b16 %v1700, %v1698
        %v2645 = vpack.c.b16 %v1703, %v1701
        %v2646 = vpack.c.b16 %v1704, %v1702
        %v2647 = vpack.c.b16 %v1707, %v1705
        %v2648 = vpack.c.b16 %v1708, %v1706
        %v2649 = vpack.c.b16 %v1711, %v1709
        %v2650 = vpack.c.b16 %v1712, %v1710
        %v2651 = vpack.c.b16 %v1715, %v1713
        %v2652 = vpack.c.b16 %v1716, %v1714
        %v2653 = vpack.c.b16 %v1719, %v1717
        %v2654 = vpack.c.b16 %v1720, %v1718
        %v2655 = vpack.c.b16 %v1723, %v1721
        %v2656 = vpack.c.b16 %v1724, %v1722
        %v2657 = vpack.c.b16 %v1727, %v1725
        %v2658 = vpack.c.b16 %v1728, %v1726
        %v2659 = vpack.c.b16 %v1731, %v1729
        %v2660 = vpack.c.b16 %v1732, %v1730
        %v2661 = vpack.c.b16 %v1735, %v1733
        %v2662 = vpack.c.b16 %v1736, %v1734
        %v2663 = vpack.c.b16 %v1739, %v1737
        %v2664 = vpack.c.b16 %v1740, %v1738
        %v2665 = vpack.c.b16 %v1743, %v1741
        %v2666 = vpack.c.b16 %v1744, %v1742
        %v2667 = vpack.c.b16 %v1747, %v1745
        %v2668 = vpack.c.b16 %v1748, %v1746
        %v2669 = vpack.c.b16 %v1751, %v1749
        %v2670 = vpack.c.b16 %v1752, %v1750
        %v2671 = vpack.c.b16 %v1755, %v1753
        %v2672 = vpack.c.b16 %v1756, %v1754
        %v2673 = vpack.c.b16 %v1759, %v1757
        %v2674 = vpack.c.b16 %v1760, %v1758
        %v2675 = vpack.c.b16 %v1763, %v1761
        %v2676 = vpack.c.b16 %v1764, %v1762
        %v2677 = vpack.c.b16 %v1767, %v1765
        %v2678 = vpack.c.b16 %v1768, %v1766
        %v2679 = vpack.c.b16 %v1771, %v1769
        %v2680 = vpack.c.b16 %v1772, %v1770
        %v2681 = vpack.c.b16 %v1775, %v1773
        %v2682 = vpack.c.b16 %v1776, %v1774
        %v2683 = vpack.c.b16 %v1779, %v1777
        %v2684 = vpack.c.b16 %v1780, %v1778
        %v2685 = vpack.c.b16 %v1783, %v1781
        %v2686 = vpack.c.b16 %v1784, %v1782
        %v2687 = vpack.c.b16 %v1787, %v1785
        %v2688 = vpack.c.b16 %v1788, %v1786
        %v2689 = vpack.c.b16 %v1791, %v1789
        %v2690 = vpack.c.b16 %v1792, %v1790
        %v2691 = vpack.c.b16 %v1795, %v1793
        %v2692 = vpack.c.b16 %v1796, %v1794
        %v2693 = vpack.c.b16 %v1799, %v1797
        %v2694 = vpack.c.b16 %v1800, %v1798
        %v2695 = vpack.c.b16 %v1803, %v1801
        %v2696 = vpack.c.b16 %v1804, %v1802
        %v2697 = vpack.c.b16 %v1807, %v1805
        %v2698 = vpack.c.b16 %v1808, %v1806
        %v2699 = vpack.c.b16 %v1811, %v1809
        %v2700 = vpack.c.b16 %v1812, %v1810
        %v2701 = vpack.c.b16 %v1815, %v1813
        %v2702 = vpack.c.b16 %v1816, %v1814
        %v2703 = vpack.c.b16 %v1819, %v1817
        %v2704 = vpack.c.b16 %v1820, %v1818
        %v2705 = vpack.c.b16 %v1823, %v1821
        %v2706 = vpack.c.b16 %v1824, %v1822
        %v2707 = vpack.c.b16 %v1827, %v1825
        %v2708 = vpack.c.b16 %v1828, %v1826
        %v2709 = vpack.c.b16 %v1831, %v1829
        %v2710 = vpack.c.b16 %v1832, %v1830
        %v2711 = vpack.c.b16 %v1835, %v1833
        %v2712 = vpack.c.b16 %v1836, %v1834
        %v2713 = vpack.c.b16 %v1839, %v1837
        %v2714 = vpack.c.b16 %v1840, %v1838
        %v2715 = vpack.c.b16 %v1843, %v1841
        %v2716 = vpack.c.b16 %v1844, %v1842
        %v2717 = vpack.c.b16 %v1847, %v1845
        %v2718 = vpack.c.b16 %v1848, %v1846
        %v2719 = vpack.c.b16 %v1851, %v1849
        %v2720 = vpack.c.b16 %v1852, %v1850
        %v2721 = vpack.c.b16 %v1855, %v1853
        %v2722 = vpack.c.b16 %v1856, %v1854
        %v2723 = vpack.c.b16 %v1859, %v1857
        %v2724 = vpack.c.b16 %v1860, %v1858
        %v2725 = vpack.c.b16 %v1863, %v1861
        %v2726 = vpack.c.b16 %v1864, %v1862
        %v2727 = vpack.c.b16 %v1867, %v1865
        %v2728 = vpack.c.b16 %v1868, %v1866
        %v2729 = vpack.c.b16 %v1871, %v1869
        %v2730 = vpack.c.b16 %v1872, %v1870
        %v2731 = vpack.c.b16 %v1875, %v1873
        %v2732 = vpack.c.b16 %v1876, %v1874
        %v2733 = vpack.c.b16 %v1879, %v1877
        %v2734 = vpack.c.b16 %v1880, %v1878
        %v2735 = vpack.c.b16 %v1883, %v1881
        %v2736 = vpack.c.b16 %v1884, %v1882
        %v2737 = vpack.c.b16 %v1887, %v1885
        %v2738 = vpack.c.b16 %v1888, %v1886
        %v2739 = vpack.c.b16 %v1891, %v1889
        %v2740 = vpack.c.b16 %v1892, %v1890
        %v2741 = vpack.c.b16 %v1895, %v1893
        %v2742 = vpack.c.b16 %v1896, %v1894
        %v2743 = vpack.c.b16 %v1899, %v1897
        %v2744 = vpack.c.b16 %v1900, %v1898
        %v2745 = vpack.c.b16 %v1903, %v1901
        %v2746 = vpack.c.b16 %v1904, %v1902
        %v2747 = vpack.c.b16 %v1907, %v1905
        %v2748 = vpack.c.b16 %v1908, %v1906
        %v2749 = vpack.c.b16 %v1911, %v1909
        %v2750 = vpack.c.b16 %v1912, %v1910
        %v2751 = vpack.c.b16 %v1915, %v1913
        %v2752 = vpack.c.b16 %v1916, %v1914
        %v2753 = vpack.c.b16 %v1919, %v1917
        %v2754 = vpack.c.b16 %v1920, %v1918
        %v2755 = vpack.c.b16 %v1923, %v1921
        %v2756 = vpack.c.b16 %v1924, %v1922
        %v2757 = vpack.c.b16 %v1927, %v1925
        %v2758 = vpack.c.b16 %v1928, %v1926
        %v2759 = vpack.c.b16 %v1931, %v1929
        %v2760 = vpack.c.b16 %v1932, %v1930
        %v2761 = vpack.c.b16 %v1935, %v1933
        %v2762 = vpack.c.b16 %v1936, %v1934
        %v2763 = vpack.c.b16 %v1939, %v1937
        %v2764 = vpack.c.b16 %v1940, %v1938
        %v2765 = vpack.c.b16 %v1943, %v1941
        %v2766 = vpack.c.b16 %v1944, %v1942
        %v2767 = vpack.c.b16 %v1947, %v1945
        %v2768 = vpack.c.b16 %v1948, %v1946
        %v2769 = vpack.c.b16 %v1951, %v1949
        %v2770 = vpack.c.b16 %v1952, %v1950
        %v2771 = vpack.c.b16 %v1955, %v1953
        %v2772 = vpack.c.b16 %v1956, %v1954
        %v2773 = vpack.c.b16 %v1959, %v1957
        %v2774 = vpack.c.b16 %v1960, %v1958
        %v2775 = vpack.c.b16 %v1963, %v1961
        %v2776 = vpack.c.b16 %v1964, %v1962
        %v2777 = vpack.c.b16 %v1967, %v1965
        %v2778 = vpack.c.b16 %v1968, %v1966
        %v2779 = vpack.c.b16 %v1971, %v1969
        %v2780 = vpack.c.b16 %v1972, %v1970
        %v2781 = vpack.c.b16 %v1975, %v1973
        %v2782 = vpack.c.b16 %v1976, %v1974
        %v2783 = vpack.c.b16 %v1979, %v1977
        %v2784 = vpack.c.b16 %v1980, %v1978
        %v2785 = vpack.c.b16 %v1983, %v1981
        %v2786 = vpack.c.b16 %v1984, %v1982
        %v2787 = vpack.c.b16 %v1987, %v1985
        %v2788 = vpack.c.b16 %v1988, %v1986
        %v2789 = vpack.c.b16 %v1991, %v1989
        %v2790 = vpack.c.b16 %v1992, %v1990
        %v2791 = vpack.c.b16 %v1995, %v1993
        %v2792 = vpack.c.b16 %v1996, %v1994
        %v2793 = vpack.c.b16 %v1999, %v1997
        %v2794 = vpack.c.b16 %v2000, %v1998
        %v2795 = vpack.c.b16 %v2003, %v2001
        %v2796 = vpack.c.b16 %v2004, %v2002
        %v2797 = vpack.c.b16 %v2007, %v2005
        %v2798 = vpack.c.b16 %v2008, %v2006
        %v2799 = vpack.c.b16 %v2011, %v2009
        %v2800 = vpack.c.b16 %v2012, %v2010
        %v2801 = vpack.c.b16 %v2015, %v2013
        %v2802 = vpack.c.b16 %v2016, %v2014
        %v2803 = vpack.c.b16 %v2019, %v2017
        %v2804 = vpack.c.b16 %v2020, %v2018
        %v2805 = vpack.c.b16 %v2023, %v2021
        %v2806 = vpack.c.b16 %v2024, %v2022
        %v2807 = vpack.c.b16 %v2027, %v2025
        %v2808 = vpack.c.b16 %v2028, %v2026
        %v2809 = vpack.c.b16 %v2031, %v2029
        %v2810 = vpack.c.b16 %v2032, %v2030
        %v2811 = vpack.c.b16 %v2035, %v2033
        %v2812 = vpack.c.b16 %v2036, %v2034
        %v2813 = vpack.c.b16 %v2039, %v2037
        %v2814 = vpack.c.b16 %v2040, %v2038
        %v2815 = vpack.c.b16 %v2043, %v2041
        %v2816 = vpack.c.b16 %v2044, %v2042
        %v2817 = vpack.c.b16 %v2047, %v2045
        %v2818 = vpack.c.b16 %v2048, %v2046
        %v2819 = vpack.c.b16 %v2051, %v2049
        %v2820 = vpack.c.b16 %v2052, %v2050
        %v2821 = vpack.c.b16 %v2055, %v2053
        %v2822 = vpack.c.b16 %v2056, %v2054
        %v2823 = vpack.c.b16 %v2059, %v2057
        %v2824 = vpack.c.b16 %v2060, %v2058
        %v2825 = vpack.c.b16 %v2063, %v2061
        %v2826 = vpack.c.b16 %v2064, %v2062
        %v2827 = vpack.c.b16 %v2067, %v2065
        %v2828 = vpack.c.b16 %v2068, %v2066
        %v2829 = vpack.c.b16 %v2071, %v2069
        %v2830 = vpack.c.b16 %v2072, %v2070
        %v2831 = vpack.c.b16 %v2075, %v2073
        %v2832 = vpack.c.b16 %v2076, %v2074
        %v2833 = vpack.c.b16 %v2079, %v2077
        %v2834 = vpack.c.b16 %v2080, %v2078
        %v2835 = vpack.c.b16 %v2083, %v2081
        %v2836 = vpack.c.b16 %v2084, %v2082
        %v2837 = vpack.c.b16 %v2087, %v2085
        %v2838 = vpack.c.b16 %v2088, %v2086
        %v2839 = vpack.c.b16 %v2091, %v2089
        %v2840 = vpack.c.b16 %v2092, %v2090
        %v2841 = vpack.c.b16 %v2095, %v2093
        %v2842 = vpack.c.b16 %v2096, %v2094
        %v2843 = vpack.c.b16 %v2099, %v2097
        %v2844 = vpack.c.b16 %v2100, %v2098
        %v2845 = vpack.c.b16 %v2103, %v2101
        %v2846 = vpack.c.b16 %v2104, %v2102
        %v2847 = vpack.c.b16 %v2107, %v2105
        %v2848 = vpack.c.b16 %v2108, %v2106
        %v2849 = vpack.c.b16 %v2111, %v2109
        %v2850 = vpack.c.b16 %v2112, %v2110
        %v2851 = vpack.c.b16 %v2115, %v2113
        %v2852 = vpack.c.b16 %v2116, %v2114
        %v2853 = vpack.c.b16 %v2119, %v2117
        %v2854 = vpack.c.b16 %v2120, %v2118
        %v2855 = vpack.c.b16 %v2123, %v2121
        %v2856 = vpack.c.b16 %v2124, %v2122
        %v2857 = vpack.c.b16 %v2127, %v2125
        %v2858 = vpack.c.b16 %v2128, %v2126
        %v2859 = vpack.c.b16 %v2131, %v2129
        %v2860 = vpack.c.b16 %v2132, %v2130
        %v2861 = vpack.c.b16 %v2135, %v2133
        %v2862 = vpack.c.b16 %v2136, %v2134
        %v2863 = vpack.c.b16 %v2139, %v2137
        %v2864 = vpack.c.b16 %v2140, %v2138
        %v2865 = vpack.c.b16 %v2143, %v2141
        %v2866 = vpack.c.b16 %v2144, %v2142
        %v2867 = vpack.c.b16 %v2147, %v2145
        %v2868 = vpack.c.b16 %v2148, %v2146
        %v2869 = vpack.c.b16 %v2151, %v2149
        %v2870 = vpack.c.b16 %v2152, %v2150
        %v2871 = vpack.c.b16 %v2155, %v2153
        %v2872 = vpack.c.b16 %v2156, %v2154
        %v2873 = vpack.c.b16 %v2159, %v2157
        %v2874 = vpack.c.b16 %v2160, %v2158
        %v2875 = vpack.c.b16 %v2163, %v2161
        %v2876 = vpack.c.b16 %v2164, %v2162
        %v2877 = vpack.c.b16 %v2167, %v2165
        %v2878 = vpack.c.b16 %v2168, %v2166
        %v2879 = vpack.c.b16 %v2171, %v2169
        %v2880 = vpack.c.b16 %v2172, %v2170
        %v2881 = vpack.c.b16 %v2175, %v2173
        %v2882 = vpack.c.b16 %v2176, %v2174
        %v2883 = vpack.c.b16 %v2179, %v2177
        %v2884 = vpack.c.b16 %v2180, %v2178
        %v2885 = vpack.c.b16 %v2183, %v2181
        %v2886 = vpack.c.b16 %v2184, %v2182
        %v2887 = vpack.c.b16 %v2187, %v2185
        %v2888 = vpack.c.b16 %v2188, %v2186
        %v2889 = vpack.c.b16 %v2191, %v2189
        %v2890 = vpack.c.b16 %v2192, %v2190
        %v2891 = vpack.c.b16 %v2195, %v2193
        %v2892 = vpack.c.b16 %v2196, %v2194
        %v2893 = vpack.c.b16 %v2199, %v2197
        %v2894 = vpack.c.b16 %v2200, %v2198
        %v2895 = vpack.c.b16 %v2203, %v2201
        %v2896 = vpack.c.b16 %v2204, %v2202
        %v2897 = vpack.c.b16 %v2207, %v2205
        %v2898 = vpack.c.b16 %v2208, %v2206
        %v2899 = vpack.c.b16 %v2211, %v2209
        %v2900 = vpack.c.b16 %v2212, %v2210
        %v2901 = vpack.c.b16 %v2215, %v2213
        %v2902 = vpack.c.b16 %v2216, %v2214
        %v2903 = vpack.c.b16 %v2219, %v2217
        %v2904 = vpack.c.b16 %v2220, %v2218
        %v2905 = vpack.c.b16 %v2223, %v2221
        %v2906 = vpack.c.b16 %v2224, %v2222
        %v2907 = vpack.c.b16 %v2227, %v2225
        %v2908 = vpack.c.b16 %v2228, %v2226
        %v2909 = vpack.c.b16 %v2231, %v2229
        %v2910 = vpack.c.b16 %v2232, %v2230
        %v2911 = vpack.c.b16 %v2235, %v2233
        %v2912 = vpack.c.b16 %v2236, %v2234
        %v2913 = vpack.c.b16 %v2239, %v2237
        %v2914 = vpack.c.b16 %v2240, %v2238
        %v2915 = vpack.c.b16 %v2243, %v2241
        %v2916 = vpack.c.b16 %v2244, %v2242
        %v2917 = vpack.c.b16 %v2247, %v2245
        %v2918 = vpack.c.b16 %v2248, %v2246
        %v2919 = vpack.c.b16 %v2251, %v2249
        %v2920 = vpack.c.b16 %v2252, %v2250
        %v2921 = vpack.c.b16 %v2255, %v2253
        %v2922 = vpack.c.b16 %v2256, %v2254
        %v2923 = vpack.c.b16 %v2259, %v2257
        %v2924 = vpack.c.b16 %v2260, %v2258
        %v2925 = vpack.c.b16 %v2263, %v2261
        %v2926 = vpack.c.b16 %v2264, %v2262
        %v2927 = vpack.c.b16 %v2267, %v2265
        %v2928 = vpack.c.b16 %v2268, %v2266
        %v2929 = vpack.c.b16 %v2271, %v2269
        %v2930 = vpack.c.b16 %v2272, %v2270
        %v2931 = vpack.c.b16 %v2275, %v2273
        %v2932 = vpack.c.b16 %v2276, %v2274
        %v2933 = vpack.c.b16 %v2279, %v2277
        %v2934 = vpack.c.b16 %v2280, %v2278
        %v2935 = vpack.c.b16 %v2283, %v2281
        %v2936 = vpack.c.b16 %v2284, %v2282
        %v2937 = vpack.c.b16 %v2287, %v2285
        %v2938 = vpack.c.b16 %v2288, %v2286
        %v2939 = vpack.c.b16 %v2291, %v2289
        %v2940 = vpack.c.b16 %v2292, %v2290
        %v2941 = vpack.c.b16 %v2295, %v2293
        %v2942 = vpack.c.b16 %v2296, %v2294
        %v2943 = vpack.c.b16 %v2299, %v2297
        %v2944 = vpack.c.b16 %v2300, %v2298
        %v2945 = vpack.c.b16 %v2303, %v2301
        %v2946 = vpack.c.b16 %v2304, %v2302
        %v2947 = vpack.c.b16 %v2307, %v2305
        %v2948 = vpack.c.b16 %v2308, %v2306
        %v2949 = vpack.c.b16 %v2311, %v2309
        %v2950 = vpack.c.b16 %v2312, %v2310
        %v2951 = vpack.c.b16 %v2315, %v2313
        %v2952 = vpack.c.b16 %v2316, %v2314
        %v2953 = vpack.c.b16 %v2319, %v2317
        %v2954 = vpack.c.b16 %v2320, %v2318
        %v2955 = vpack.c.b16 %v2323, %v2321
        %v2956 = vpack.c.b16 %v2324, %v2322
        %v2957 = vpack.c.b16 %v2327, %v2325
        %v2958 = vpack.c.b16 %v2328, %v2326
        %v2959 = vpack.c.b16 %v2331, %v2329
        %v2960 = vpack.c.b16 %v2332, %v2330
        %v2961 = vpack.c.b16 %v2335, %v2333
        %v2962 = vpack.c.b16 %v2336, %v2334
        %v2963 = vpack.c.b16 %v2339, %v2337
        %v2964 = vpack.c.b16 %v2340, %v2338
        %v2965 = vpack.c.b16 %v2343, %v2341
        %v2966 = vpack.c.b16 %v2344, %v2342
        %v2967 = vpack.c.b16 %v2347, %v2345
        %v2968 = vpack.c.b16 %v2348, %v2346
        %v2969 = vpack.c.b16 %v2351, %v2349
        %v2970 = vpack.c.b16 %v2352, %v2350
        %v2971 = vpack.c.b16 %v2355, %v2353
        %v2972 = vpack.c.b16 %v2356, %v2354
        %v2973 = vpack.c.b16 %v2359, %v2357
        %v2974 = vpack.c.b16 %v2360, %v2358
        %v2975 = vpack.c.b16 %v2363, %v2361
        %v2976 = vpack.c.b16 %v2364, %v2362
        %v2977 = vpack.c.b16 %v2367, %v2365
        %v2978 = vpack.c.b16 %v2368, %v2366
        %v2979 = vpack.c.b16 %v2371, %v2369
        %v2980 = vpack.c.b16 %v2372, %v2370
        %v2981 = vpack.c.b16 %v2375, %v2373
        %v2982 = vpack.c.b16 %v2376, %v2374
        %v2983 = vpack.c.b16 %v2379, %v2377
        %v2984 = vpack.c.b16 %v2380, %v2378
        %v2985 = vpack.c.b16 %v2383, %v2381
        %v2986 = vpack.c.b16 %v2384, %v2382
        %v2987 = vpack.c.b16 %v2387, %v2385
        %v2988 = vpack.c.b16 %v2388, %v2386
        %v2989 = vpack.c.b16 %v2391, %v2389
        %v2990 = vpack.c.b16 %v2392, %v2390
        %v2991 = vpack.c.b16 %v2395, %v2393
        %v2992 = vpack.c.b16 %v2396, %v2394
        %v2993 = vpack.c.b16 %v2399, %v2397
        %v2994 = vpack.c.b16 %v2400, %v2398
        %v2995 = vpack.c.b16 %v2403, %v2401
        %v2996 = vpack.c.b16 %v2404, %v2402
        %v2997 = vpack.c.b16 %v2407, %v2405
        %v2998 = vpack.c.b16 %v2408, %v2406
        %v2999 = vpack.c.b16 %v2411, %v2409
        %v3000 = vpack.c.b16 %v2412, %v2410
        %v3001 = vpack.c.b16 %v2415, %v2413
        %v3002 = vpack.c.b16 %v2416, %v2414
        %v3003 = vpack.c.b16 %v2419, %v2417
        %v3004 = vpack.c.b16 %v2420, %v2418
        %v3005 = vpack.c.b16 %v2423, %v2421
        %v3006 = vpack.c.b16 %v2424, %v2422
        %v3007 = vpack.c.b16 %v2427, %v2425
        %v3008 = vpack.c.b16 %v2428, %v2426
        %v3009 = vpack.c.b16 %v2431, %v2429
        %v3010 = vpack.c.b16 %v2432, %v2430
        %v3011 = vpack.c.b16 %v2435, %v2433
        %v3012 = vpack.c.b16 %v2436, %v2434
        %v3013 = vpack.c.b16 %v2439, %v2437
        %v3014 = vpack.c.b16 %v2440, %v2438
        %v3015 = vpack.c.b16 %v2443, %v2441
        %v3016 = vpack.c.b16 %v2444, %v2442
        %v3017 = vpack.c.b16 %v2447, %v2445
        %v3018 = vpack.c.b16 %v2448, %v2446
        %v3019 = vpack.c.b16 %v2451, %v2449
        %v3020 = vpack.c.b16 %v2452, %v2450
        %v3021 = vpack.c.b16 %v2455, %v2453
        %v3022 = vpack.c.b16 %v2456, %v2454
        %v3023 = vpack.c.b16 %v2459, %v2457
        %v3024 = vpack.c.b16 %v2460, %v2458
        %v3025 = vpack.c.b16 %v2463, %v2461
        %v3026 = vpack.c.b16 %v2464, %v2462
        %v3027 = vpack.c.b16 %v2467, %v2465
        %v3028 = vpack.c.b16 %v2468, %v2466
        %v3029 = vpack.c.b16 %v2471, %v2469
        %v3030 = vpack.c.b16 %v2472, %v2470
        %v3031 = vpack.c.b16 %v2475, %v2473
        %v3032 = vpack.c.b16 %v2476, %v2474
        %v3033 = vpack.c.b16 %v2479, %v2477
        %v3034 = vpack.c.b16 %v2480, %v2478
        %v3035 = vpack.c.b16 %v2483, %v2481
        %v3036 = vpack.c.b16 %v2484, %v2482
        %v3037 = vpack.c.b16 %v2487, %v2485
        %v3038 = vpack.c.b16 %v2488, %v2486
        %v3039 = vpack.c.b16 %v2491, %v2489
        %v3040 = vpack.c.b16 %v2492, %v2490
        %v3041 = vpack.c.b16 %v2495, %v2493
        %v3042 = vpack.c.b16 %v2496, %v2494
        %v3043 = vpack.c.b16 %v2499, %v2497
        %v3044 = vpack.c.b16 %v2500, %v2498
        %v3045 = vpack.c.b16 %v2503, %v2501
        %v3046 = vpack.c.b16 %v2504, %v2502
        %v3047 = vpack.c.b16 %v2507, %v2505
        %v3048 = vpack.c.b16 %v2508, %v2506
        %v3049 = vpack.c.b16 %v2511, %v2509
        %v3050 = vpack.c.b16 %v2512, %v2510
        %v3051 = vpack.c.b16 %v2515, %v2513
        %v3052 = vpack.c.b16 %v2516, %v2514
        %v3053 = vpack.c.b16 %v2519, %v2517
        %v3054 = vpack.c.b16 %v2520, %v2518
        %v3055 = vpack.c.b16 %v2523, %v2521
        %v3056 = vpack.c.b16 %v2524, %v2522
        %v3057 = vpack.c.b16 %v2527, %v2525
        %v3058 = vpack.c.b16 %v2528, %v2526
        %v3059 = vpack.c.b16 %v2531, %v2529
        %v3060 = vpack.c.b16 %v2532, %v2530
        %v3061 = vpack.c.b16 %v2535, %v2533
        %v3062 = vpack.c.b16 %v2536, %v2534
        %v3063 = vpack.c.b16 %v2539, %v2537
        %v3064 = vpack.c.b16 %v2540, %v2538
        %v3065 = vpack.c.b16 %v2543, %v2541
        %v3066 = vpack.c.b16 %v2544, %v2542
        %v3067 = vpack.c.b16 %v2547, %v2545
        %v3068 = vpack.c.b16 %v2548, %v2546
        %v3069 = vpack.c.b16 %v2551, %v2549
        %v3070 = vpack.c.b16 %v2552, %v2550
        %v3071 = vpack.c.b16 %v2555, %v2553
        %v3072 = vpack.c.b16 %v2556, %v2554
        %v3073 = vpack.c.b16 %v2559, %v2557
        %v3074 = vpack.c.b16 %v2560, %v2558
        %v3075 = vpack.c.b16 %v2563, %v2561
        %v3076 = vpack.c.b16 %v2564, %v2562
        %3589 = vmatprep.subr.bf16.mxu0 %v2566
        %3590 = vmatpush1.bf16.msra.mxu0 %v2565
        %3591 = vmatprep.subr.bf16.mxu0 %v2568
        %3592 = vmatpush1.bf16.msra.mxu0 %v2567
        %3593 = vmatprep.subr.bf16.mxu0 %v2570
        %3594 = vmatpush1.bf16.msra.mxu0 %v2569
        %3595 = vmatprep.subr.bf16.mxu0 %v2572
        %3596 = vmatpush1.bf16.msra.mxu0 %v2571
        %3597 = vmatprep.subr.bf16.mxu0 %v2574
        %3598 = vmatpush1.bf16.msra.mxu0 %v2573
        %3599 = vmatprep.subr.bf16.mxu0 %v2576
        %3600 = vmatpush1.bf16.msra.mxu0 %v2575
        %3601 = vmatprep.subr.bf16.mxu0 %v2578
        %3602 = vmatpush1.bf16.msra.mxu0 %v2577
        %3603 = vmatprep.subr.bf16.mxu0 %v2580
        %3604 = vmatpush1.bf16.msra.mxu0 %v2579
        %3605 = vmatprep.subr.bf16.mxu0 %v2582
        %3606 = vmatpush1.bf16.msra.mxu0 %v2581
        %3607 = vmatprep.subr.bf16.mxu0 %v2584
        %3608 = vmatpush1.bf16.msra.mxu0 %v2583
        %3609 = vmatprep.subr.bf16.mxu0 %v2586
        %3610 = vmatpush1.bf16.msra.mxu0 %v2585
        %3611 = vmatprep.subr.bf16.mxu0 %v2588
        %3612 = vmatpush1.bf16.msra.mxu0 %v2587
        %3613 = vmatprep.subr.bf16.mxu0 %v2590
        %3614 = vmatpush1.bf16.msra.mxu0 %v2589
        %3615 = vmatprep.subr.bf16.mxu0 %v2592
        %3616 = vmatpush1.bf16.msra.mxu0 %v2591
        %3617 = vmatprep.subr.bf16.mxu0 %v2594
        %3618 = vmatpush1.bf16.msra.mxu0 %v2593
        %3619 = vmatprep.subr.bf16.mxu0 %v2596
        %3620 = vmatpush1.bf16.msra.mxu0 %v2595
        %3621 = vmatprep.mubr.bf16.mxu0 %v966
        %3622 = vmatmul.mubr.bf16.gmra.mrb[0].mxu0 %v965
        %v3623 = vpop.f32.mrb[0].mxu0
        %v3624 = vadd.f32 %v910, %v3623
        %v3625 = vpop.f32.mrb[0].mxu0
        %v3626 = vadd.f32 %v914, %v3625
        %v3627 = vpop.f32.mrb[0].mxu0
        %v3628 = vpop.f32.mrb[0].mxu0
        %3629 = vdwg.mxu0
        %3630 = vmatprep.subr.bf16.mxu0 %v2598
        %3631 = vmatpush1.bf16.msra.mxu0 %v2597
        %3632 = vmatprep.subr.bf16.mxu0 %v2600
        %3633 = vmatpush1.bf16.msra.mxu0 %v2599
        %3634 = vmatprep.subr.bf16.mxu0 %v2602
        %3635 = vmatpush1.bf16.msra.mxu0 %v2601
        %3636 = vmatprep.subr.bf16.mxu0 %v2604
        %3637 = vmatpush1.bf16.msra.mxu0 %v2603
        %3638 = vmatprep.subr.bf16.mxu0 %v2606
        %3639 = vmatpush1.bf16.msra.mxu0 %v2605
        %3640 = vmatprep.subr.bf16.mxu0 %v2608
        %3641 = vmatpush1.bf16.msra.mxu0 %v2607
        %3642 = vmatprep.subr.bf16.mxu0 %v2610
        %3643 = vmatpush1.bf16.msra.mxu0 %v2609
        %3644 = vmatprep.subr.bf16.mxu0 %v2612
        %3645 = vmatpush1.bf16.msra.mxu0 %v2611
        %3646 = vmatprep.subr.bf16.mxu0 %v2614
        %3647 = vmatpush1.bf16.msra.mxu0 %v2613
        %3648 = vmatprep.subr.bf16.mxu0 %v2616
        %3649 = vmatpush1.bf16.msra.mxu0 %v2615
        %3650 = vmatprep.subr.bf16.mxu0 %v2618
        %3651 = vmatpush1.bf16.msra.mxu0 %v2617
        %3652 = vmatprep.subr.bf16.mxu0 %v2620
        %3653 = vmatpush1.bf16.msra.mxu0 %v2619
        %3654 = vmatprep.subr.bf16.mxu0 %v2622
        %3655 = vmatpush1.bf16.msra.mxu0 %v2621
        %3656 = vmatprep.subr.bf16.mxu0 %v2624
        %3657 = vmatpush1.bf16.msra.mxu0 %v2623
        %3658 = vmatprep.subr.bf16.mxu0 %v2626
        %3659 = vmatpush1.bf16.msra.mxu0 %v2625
        %3660 = vmatprep.subr.bf16.mxu0 %v2628
        %3661 = vmatpush1.bf16.msra.mxu0 %v2627
        %3662 = vmatprep.mubr.bf16.mxu0 %v968
        %3663 = vmatmul.mubr.bf16.gmra.mrb[0].mxu0 %v967
        %v3664 = vpop.f32.mrb[0].mxu0
        %v3665 = vadd.f32 %v3624, %v3664
        %v3666 = vpop.f32.mrb[0].mxu0
        %v3667 = vadd.f32 %v3626, %v3666
        %v3668 = vpop.f32.mrb[0].mxu0
        %v3669 = vpop.f32.mrb[0].mxu0
        %3670 = vdwg.mxu0
        %3671 = vmatprep.subr.bf16.mxu0 %v2630
        %3672 = vmatpush1.bf16.msra.mxu0 %v2629
        %3673 = vmatprep.subr.bf16.mxu0 %v2632
        %3674 = vmatpush1.bf16.msra.mxu0 %v2631
        %3675 = vmatprep.subr.bf16.mxu0 %v2634
        %3676 = vmatpush1.bf16.msra.mxu0 %v2633
        %3677 = vmatprep.subr.bf16.mxu0 %v2636
        %3678 = vmatpush1.bf16.msra.mxu0 %v2635
        %3679 = vmatprep.subr.bf16.mxu0 %v2638
        %3680 = vmatpush1.bf16.msra.mxu0 %v2637
        %3681 = vmatprep.subr.bf16.mxu0 %v2640
        %3682 = vmatpush1.bf16.msra.mxu0 %v2639
        %3683 = vmatprep.subr.bf16.mxu0 %v2642
        %3684 = vmatpush1.bf16.msra.mxu0 %v2641
        %3685 = vmatprep.subr.bf16.mxu0 %v2644
        %3686 = vmatpush1.bf16.msra.mxu0 %v2643
        %3687 = vmatprep.subr.bf16.mxu0 %v2646
        %3688 = vmatpush1.bf16.msra.mxu0 %v2645
        %3689 = vmatprep.subr.bf16.mxu0 %v2648
        %3690 = vmatpush1.bf16.msra.mxu0 %v2647
        %3691 = vmatprep.subr.bf16.mxu0 %v2650
        %3692 = vmatpush1.bf16.msra.mxu0 %v2649
        %3693 = vmatprep.subr.bf16.mxu0 %v2652
        %3694 = vmatpush1.bf16.msra.mxu0 %v2651
        %3695 = vmatprep.subr.bf16.mxu0 %v2654
        %3696 = vmatpush1.bf16.msra.mxu0 %v2653
        %3697 = vmatprep.subr.bf16.mxu0 %v2656
        %3698 = vmatpush1.bf16.msra.mxu0 %v2655
        %3699 = vmatprep.subr.bf16.mxu0 %v2658
        %3700 = vmatpush1.bf16.msra.mxu0 %v2657
        %3701 = vmatprep.subr.bf16.mxu0 %v2660
        %3702 = vmatpush1.bf16.msra.mxu0 %v2659
        %3703 = vmatprep.mubr.bf16.mxu0 %v970
        %3704 = vmatmul.mubr.bf16.gmra.mrb[0].mxu0 %v969
        %v3705 = vpop.f32.mrb[0].mxu0
        %v3706 = vadd.f32 %v3665, %v3705
        %v3707 = vpop.f32.mrb[0].mxu0
        %v3708 = vadd.f32 %v3667, %v3707
        %v3709 = vpop.f32.mrb[0].mxu0
        %v3710 = vpop.f32.mrb[0].mxu0
        %3711 = vdwg.mxu0
        %3712 = vmatprep.subr.bf16.mxu0 %v2662
        %3713 = vmatpush1.bf16.msra.mxu0 %v2661
        %3714 = vmatprep.subr.bf16.mxu0 %v2664
        %3715 = vmatpush1.bf16.msra.mxu0 %v2663
        %3716 = vmatprep.subr.bf16.mxu0 %v2666
        %3717 = vmatpush1.bf16.msra.mxu0 %v2665
        %3718 = vmatprep.subr.bf16.mxu0 %v2668
        %3719 = vmatpush1.bf16.msra.mxu0 %v2667
        %3720 = vmatprep.subr.bf16.mxu0 %v2670
        %3721 = vmatpush1.bf16.msra.mxu0 %v2669
        %3722 = vmatprep.subr.bf16.mxu0 %v2672
        %3723 = vmatpush1.bf16.msra.mxu0 %v2671
        %3724 = vmatprep.subr.bf16.mxu0 %v2674
        %3725 = vmatpush1.bf16.msra.mxu0 %v2673
        %3726 = vmatprep.subr.bf16.mxu0 %v2676
        %3727 = vmatpush1.bf16.msra.mxu0 %v2675
        %3728 = vmatprep.subr.bf16.mxu0 %v2678
        %3729 = vmatpush1.bf16.msra.mxu0 %v2677
        %3730 = vmatprep.subr.bf16.mxu0 %v2680
        %3731 = vmatpush1.bf16.msra.mxu0 %v2679
        %3732 = vmatprep.subr.bf16.mxu0 %v2682
        %3733 = vmatpush1.bf16.msra.mxu0 %v2681
        %3734 = vmatprep.subr.bf16.mxu0 %v2684
        %3735 = vmatpush1.bf16.msra.mxu0 %v2683
        %3736 = vmatprep.subr.bf16.mxu0 %v2686
        %3737 = vmatpush1.bf16.msra.mxu0 %v2685
        %3738 = vmatprep.subr.bf16.mxu0 %v2688
        %3739 = vmatpush1.bf16.msra.mxu0 %v2687
        %3740 = vmatprep.subr.bf16.mxu0 %v2690
        %3741 = vmatpush1.bf16.msra.mxu0 %v2689
        %3742 = vmatprep.subr.bf16.mxu0 %v2692
        %3743 = vmatpush1.bf16.msra.mxu0 %v2691
        %3744 = vmatprep.mubr.bf16.mxu0 %v972
        %3745 = vmatmul.mubr.bf16.gmra.mrb[0].mxu0 %v971
        %v3746 = vpop.f32.mrb[0].mxu0
        %v3747 = vadd.f32 %v3706, %v3746
        %v3748 = vpop.f32.mrb[0].mxu0
        %v3749 = vadd.f32 %v3708, %v3748
        %v3750 = vpop.f32.mrb[0].mxu0
        %v3751 = vpop.f32.mrb[0].mxu0
        %3752 = vdwg.mxu0
        %3753 = vmatprep.subr.bf16.mxu0 %v2694
        %3754 = vmatpush1.bf16.msra.mxu0 %v2693
        %3755 = vmatprep.subr.bf16.mxu0 %v2696
        %3756 = vmatpush1.bf16.msra.mxu0 %v2695
        %3757 = vmatprep.subr.bf16.mxu0 %v2698
        %3758 = vmatpush1.bf16.msra.mxu0 %v2697
        %3759 = vmatprep.subr.bf16.mxu0 %v2700
        %3760 = vmatpush1.bf16.msra.mxu0 %v2699
        %3761 = vmatprep.subr.bf16.mxu0 %v2702
        %3762 = vmatpush1.bf16.msra.mxu0 %v2701
        %3763 = vmatprep.subr.bf16.mxu0 %v2704
        %3764 = vmatpush1.bf16.msra.mxu0 %v2703
        %3765 = vmatprep.subr.bf16.mxu0 %v2706
        %3766 = vmatpush1.bf16.msra.mxu0 %v2705
        %3767 = vmatprep.subr.bf16.mxu0 %v2708
        %3768 = vmatpush1.bf16.msra.mxu0 %v2707
        %3769 = vmatprep.subr.bf16.mxu0 %v2710
        %3770 = vmatpush1.bf16.msra.mxu0 %v2709
        %3771 = vmatprep.subr.bf16.mxu0 %v2712
        %3772 = vmatpush1.bf16.msra.mxu0 %v2711
        %3773 = vmatprep.subr.bf16.mxu0 %v2714
        %3774 = vmatpush1.bf16.msra.mxu0 %v2713
        %3775 = vmatprep.subr.bf16.mxu0 %v2716
        %3776 = vmatpush1.bf16.msra.mxu0 %v2715
        %3777 = vmatprep.subr.bf16.mxu0 %v2718
        %3778 = vmatpush1.bf16.msra.mxu0 %v2717
        %3779 = vmatprep.subr.bf16.mxu0 %v2720
        %3780 = vmatpush1.bf16.msra.mxu0 %v2719
        %3781 = vmatprep.subr.bf16.mxu0 %v2722
        %3782 = vmatpush1.bf16.msra.mxu0 %v2721
        %3783 = vmatprep.subr.bf16.mxu0 %v2724
        %3784 = vmatpush1.bf16.msra.mxu0 %v2723
        %3785 = vmatprep.mubr.bf16.mxu0 %v974
        %3786 = vmatmul.mubr.bf16.gmra.mrb[0].mxu0 %v973
        %v3787 = vpop.f32.mrb[0].mxu0
        %v3788 = vadd.f32 %v3747, %v3787
        %v3789 = vpop.f32.mrb[0].mxu0
        %v3790 = vadd.f32 %v3749, %v3789
        %v3791 = vpop.f32.mrb[0].mxu0
        %v3792 = vpop.f32.mrb[0].mxu0
        %3793 = vdwg.mxu0
        %3794 = vmatprep.subr.bf16.mxu0 %v2726
        %3795 = vmatpush1.bf16.msra.mxu0 %v2725
        %3796 = vmatprep.subr.bf16.mxu0 %v2728
        %3797 = vmatpush1.bf16.msra.mxu0 %v2727
        %3798 = vmatprep.subr.bf16.mxu0 %v2730
        %3799 = vmatpush1.bf16.msra.mxu0 %v2729
        %3800 = vmatprep.subr.bf16.mxu0 %v2732
        %3801 = vmatpush1.bf16.msra.mxu0 %v2731
        %3802 = vmatprep.subr.bf16.mxu0 %v2734
        %3803 = vmatpush1.bf16.msra.mxu0 %v2733
        %3804 = vmatprep.subr.bf16.mxu0 %v2736
        %3805 = vmatpush1.bf16.msra.mxu0 %v2735
        %3806 = vmatprep.subr.bf16.mxu0 %v2738
        %3807 = vmatpush1.bf16.msra.mxu0 %v2737
        %3808 = vmatprep.subr.bf16.mxu0 %v2740
        %3809 = vmatpush1.bf16.msra.mxu0 %v2739
        %3810 = vmatprep.subr.bf16.mxu0 %v2742
        %3811 = vmatpush1.bf16.msra.mxu0 %v2741
        %3812 = vmatprep.subr.bf16.mxu0 %v2744
        %3813 = vmatpush1.bf16.msra.mxu0 %v2743
        %3814 = vmatprep.subr.bf16.mxu0 %v2746
        %3815 = vmatpush1.bf16.msra.mxu0 %v2745
        %3816 = vmatprep.subr.bf16.mxu0 %v2748
        %3817 = vmatpush1.bf16.msra.mxu0 %v2747
        %3818 = vmatprep.subr.bf16.mxu0 %v2750
        %3819 = vmatpush1.bf16.msra.mxu0 %v2749
        %3820 = vmatprep.subr.bf16.mxu0 %v2752
        %3821 = vmatpush1.bf16.msra.mxu0 %v2751
        %3822 = vmatprep.subr.bf16.mxu0 %v2754
        %3823 = vmatpush1.bf16.msra.mxu0 %v2753
        %3824 = vmatprep.subr.bf16.mxu0 %v2756
        %3825 = vmatpush1.bf16.msra.mxu0 %v2755
        %3826 = vmatprep.mubr.bf16.mxu0 %v976
        %3827 = vmatmul.mubr.bf16.gmra.mrb[0].mxu0 %v975
        %v3828 = vpop.f32.mrb[0].mxu0
        %v3829 = vadd.f32 %v3788, %v3828
        %v3830 = vpop.f32.mrb[0].mxu0
        %v3831 = vadd.f32 %v3790, %v3830
        %v3832 = vpop.f32.mrb[0].mxu0
        %v3833 = vpop.f32.mrb[0].mxu0
        %3834 = vdwg.mxu0
        %3835 = vmatprep.subr.bf16.mxu0 %v2758
        %3836 = vmatpush1.bf16.msra.mxu0 %v2757
        %3837 = vmatprep.subr.bf16.mxu0 %v2760
        %3838 = vmatpush1.bf16.msra.mxu0 %v2759
        %3839 = vmatprep.subr.bf16.mxu0 %v2762
        %3840 = vmatpush1.bf16.msra.mxu0 %v2761
        %3841 = vmatprep.subr.bf16.mxu0 %v2764
        %3842 = vmatpush1.bf16.msra.mxu0 %v2763
        %3843 = vmatprep.subr.bf16.mxu0 %v2766
        %3844 = vmatpush1.bf16.msra.mxu0 %v2765
        %3845 = vmatprep.subr.bf16.mxu0 %v2768
        %3846 = vmatpush1.bf16.msra.mxu0 %v2767
        %3847 = vmatprep.subr.bf16.mxu0 %v2770
        %3848 = vmatpush1.bf16.msra.mxu0 %v2769
        %3849 = vmatprep.subr.bf16.mxu0 %v2772
        %3850 = vmatpush1.bf16.msra.mxu0 %v2771
        %3851 = vmatprep.subr.bf16.mxu0 %v2774
        %3852 = vmatpush1.bf16.msra.mxu0 %v2773
        %3853 = vmatprep.subr.bf16.mxu0 %v2776
        %3854 = vmatpush1.bf16.msra.mxu0 %v2775
        %3855 = vmatprep.subr.bf16.mxu0 %v2778
        %3856 = vmatpush1.bf16.msra.mxu0 %v2777
        %3857 = vmatprep.subr.bf16.mxu0 %v2780
        %3858 = vmatpush1.bf16.msra.mxu0 %v2779
        %3859 = vmatprep.subr.bf16.mxu0 %v2782
        %3860 = vmatpush1.bf16.msra.mxu0 %v2781
        %3861 = vmatprep.subr.bf16.mxu0 %v2784
        %3862 = vmatpush1.bf16.msra.mxu0 %v2783
        %3863 = vmatprep.subr.bf16.mxu0 %v2786
        %3864 = vmatpush1.bf16.msra.mxu0 %v2785
        %3865 = vmatprep.subr.bf16.mxu0 %v2788
        %3866 = vmatpush1.bf16.msra.mxu0 %v2787
        %3867 = vmatprep.mubr.bf16.mxu0 %v978
        %3868 = vmatmul.mubr.bf16.gmra.mrb[0].mxu0 %v977
        %v3869 = vpop.f32.mrb[0].mxu0
        %v3870 = vadd.f32 %v3829, %v3869
        %v3871 = vpop.f32.mrb[0].mxu0
        %v3872 = vadd.f32 %v3831, %v3871
        %v3873 = vpop.f32.mrb[0].mxu0
        %v3874 = vpop.f32.mrb[0].mxu0
        %3875 = vdwg.mxu0
        %3876 = vmatprep.subr.bf16.mxu0 %v2790
        %3877 = vmatpush1.bf16.msra.mxu0 %v2789
        %3878 = vmatprep.subr.bf16.mxu0 %v2792
        %3879 = vmatpush1.bf16.msra.mxu0 %v2791
        %3880 = vmatprep.subr.bf16.mxu0 %v2794
        %3881 = vmatpush1.bf16.msra.mxu0 %v2793
        %3882 = vmatprep.subr.bf16.mxu0 %v2796
        %3883 = vmatpush1.bf16.msra.mxu0 %v2795
        %3884 = vmatprep.subr.bf16.mxu0 %v2798
        %3885 = vmatpush1.bf16.msra.mxu0 %v2797
        %3886 = vmatprep.subr.bf16.mxu0 %v2800
        %3887 = vmatpush1.bf16.msra.mxu0 %v2799
        %3888 = vmatprep.subr.bf16.mxu0 %v2802
        %3889 = vmatpush1.bf16.msra.mxu0 %v2801
        %3890 = vmatprep.subr.bf16.mxu0 %v2804
        %3891 = vmatpush1.bf16.msra.mxu0 %v2803
        %3892 = vmatprep.subr.bf16.mxu0 %v2806
        %3893 = vmatpush1.bf16.msra.mxu0 %v2805
        %3894 = vmatprep.subr.bf16.mxu0 %v2808
        %3895 = vmatpush1.bf16.msra.mxu0 %v2807
        %3896 = vmatprep.subr.bf16.mxu0 %v2810
        %3897 = vmatpush1.bf16.msra.mxu0 %v2809
        %3898 = vmatprep.subr.bf16.mxu0 %v2812
        %3899 = vmatpush1.bf16.msra.mxu0 %v2811
        %3900 = vmatprep.subr.bf16.mxu0 %v2814
        %3901 = vmatpush1.bf16.msra.mxu0 %v2813
        %3902 = vmatprep.subr.bf16.mxu0 %v2816
        %3903 = vmatpush1.bf16.msra.mxu0 %v2815
        %3904 = vmatprep.subr.bf16.mxu0 %v2818
        %3905 = vmatpush1.bf16.msra.mxu0 %v2817
        %3906 = vmatprep.subr.bf16.mxu0 %v2820
        %3907 = vmatpush1.bf16.msra.mxu0 %v2819
        %3908 = vmatprep.mubr.bf16.mxu0 %v980
        %3909 = vmatmul.mubr.bf16.gmra.mrb[0].mxu0 %v979
        %v3910 = vpop.f32.mrb[0].mxu0
        %v3911 = vadd.f32 %v3870, %v3910
        %v3912 = vpop.f32.mrb[0].mxu0
        %v3913 = vadd.f32 %v3872, %v3912
        %v3914 = vpop.f32.mrb[0].mxu0
        %v3915 = vpop.f32.mrb[0].mxu0
        %3916 = vdwg.mxu0
        %3917 = vmatprep.subr.bf16.mxu0 %v2822
        %3918 = vmatpush1.bf16.msra.mxu0 %v2821
        %3919 = vmatprep.subr.bf16.mxu0 %v2824
        %3920 = vmatpush1.bf16.msra.mxu0 %v2823
        %3921 = vmatprep.subr.bf16.mxu0 %v2826
        %3922 = vmatpush1.bf16.msra.mxu0 %v2825
        %3923 = vmatprep.subr.bf16.mxu0 %v2828
        %3924 = vmatpush1.bf16.msra.mxu0 %v2827
        %3925 = vmatprep.subr.bf16.mxu0 %v2830
        %3926 = vmatpush1.bf16.msra.mxu0 %v2829
        %3927 = vmatprep.subr.bf16.mxu0 %v2832
        %3928 = vmatpush1.bf16.msra.mxu0 %v2831
        %3929 = vmatprep.subr.bf16.mxu0 %v2834
        %3930 = vmatpush1.bf16.msra.mxu0 %v2833
        %3931 = vmatprep.subr.bf16.mxu0 %v2836
        %3932 = vmatpush1.bf16.msra.mxu0 %v2835
        %3933 = vmatprep.subr.bf16.mxu0 %v2838
        %3934 = vmatpush1.bf16.msra.mxu0 %v2837
        %3935 = vmatprep.subr.bf16.mxu0 %v2840
        %3936 = vmatpush1.bf16.msra.mxu0 %v2839
        %3937 = vmatprep.subr.bf16.mxu0 %v2842
        %3938 = vmatpush1.bf16.msra.mxu0 %v2841
        %3939 = vmatprep.subr.bf16.mxu0 %v2844
        %3940 = vmatpush1.bf16.msra.mxu0 %v2843
        %3941 = vmatprep.subr.bf16.mxu0 %v2846
        %3942 = vmatpush1.bf16.msra.mxu0 %v2845
        %3943 = vmatprep.subr.bf16.mxu0 %v2848
        %3944 = vmatpush1.bf16.msra.mxu0 %v2847
        %3945 = vmatprep.subr.bf16.mxu0 %v2850
        %3946 = vmatpush1.bf16.msra.mxu0 %v2849
        %3947 = vmatprep.subr.bf16.mxu0 %v2852
        %3948 = vmatpush1.bf16.msra.mxu0 %v2851
        %3949 = vmatprep.mubr.bf16.mxu0 %v982
        %3950 = vmatmul.mubr.bf16.gmra.mrb[0].mxu0 %v981
        %v3951 = vpop.f32.mrb[0].mxu0
        %v3952 = vadd.f32 %v3911, %v3951
        %v3953 = vpop.f32.mrb[0].mxu0
        %v3954 = vadd.f32 %v3913, %v3953
        %v3955 = vpop.f32.mrb[0].mxu0
        %v3956 = vpop.f32.mrb[0].mxu0
        %3957 = vdwg.mxu0
        %3958 = vmatprep.subr.bf16.mxu0 %v2854
        %3959 = vmatpush1.bf16.msra.mxu0 %v2853
        %3960 = vmatprep.subr.bf16.mxu0 %v2856
        %3961 = vmatpush1.bf16.msra.mxu0 %v2855
        %3962 = vmatprep.subr.bf16.mxu0 %v2858
        %3963 = vmatpush1.bf16.msra.mxu0 %v2857
        %3964 = vmatprep.subr.bf16.mxu0 %v2860
        %3965 = vmatpush1.bf16.msra.mxu0 %v2859
        %3966 = vmatprep.subr.bf16.mxu0 %v2862
        %3967 = vmatpush1.bf16.msra.mxu0 %v2861
        %3968 = vmatprep.subr.bf16.mxu0 %v2864
        %3969 = vmatpush1.bf16.msra.mxu0 %v2863
        %3970 = vmatprep.subr.bf16.mxu0 %v2866
        %3971 = vmatpush1.bf16.msra.mxu0 %v2865
        %3972 = vmatprep.subr.bf16.mxu0 %v2868
        %3973 = vmatpush1.bf16.msra.mxu0 %v2867
        %3974 = vmatprep.subr.bf16.mxu0 %v2870
        %3975 = vmatpush1.bf16.msra.mxu0 %v2869
        %3976 = vmatprep.subr.bf16.mxu0 %v2872
        %3977 = vmatpush1.bf16.msra.mxu0 %v2871
        %3978 = vmatprep.subr.bf16.mxu0 %v2874
        %3979 = vmatpush1.bf16.msra.mxu0 %v2873
        %3980 = vmatprep.subr.bf16.mxu0 %v2876
        %3981 = vmatpush1.bf16.msra.mxu0 %v2875
        %3982 = vmatprep.subr.bf16.mxu0 %v2878
        %3983 = vmatpush1.bf16.msra.mxu0 %v2877
        %3984 = vmatprep.subr.bf16.mxu0 %v2880
        %3985 = vmatpush1.bf16.msra.mxu0 %v2879
        %3986 = vmatprep.subr.bf16.mxu0 %v2882
        %3987 = vmatpush1.bf16.msra.mxu0 %v2881
        %3988 = vmatprep.subr.bf16.mxu0 %v2884
        %3989 = vmatpush1.bf16.msra.mxu0 %v2883
        %3990 = vmatprep.mubr.bf16.mxu0 %v984
        %3991 = vmatmul.mubr.bf16.gmra.mrb[0].mxu0 %v983
        %v3992 = vpop.f32.mrb[0].mxu0
        %v3993 = vadd.f32 %v3952, %v3992
        %v3994 = vpop.f32.mrb[0].mxu0
        %v3995 = vadd.f32 %v3954, %v3994
        %v3996 = vpop.f32.mrb[0].mxu0
        %v3997 = vpop.f32.mrb[0].mxu0
        %3998 = vdwg.mxu0
        %3999 = vmatprep.subr.bf16.mxu0 %v2886
        %4000 = vmatpush1.bf16.msra.mxu0 %v2885
        %4001 = vmatprep.subr.bf16.mxu0 %v2888
        %4002 = vmatpush1.bf16.msra.mxu0 %v2887
        %4003 = vmatprep.subr.bf16.mxu0 %v2890
        %4004 = vmatpush1.bf16.msra.mxu0 %v2889
        %4005 = vmatprep.subr.bf16.mxu0 %v2892
        %4006 = vmatpush1.bf16.msra.mxu0 %v2891
        %4007 = vmatprep.subr.bf16.mxu0 %v2894
        %4008 = vmatpush1.bf16.msra.mxu0 %v2893
        %4009 = vmatprep.subr.bf16.mxu0 %v2896
        %4010 = vmatpush1.bf16.msra.mxu0 %v2895
        %4011 = vmatprep.subr.bf16.mxu0 %v2898
        %4012 = vmatpush1.bf16.msra.mxu0 %v2897
        %4013 = vmatprep.subr.bf16.mxu0 %v2900
        %4014 = vmatpush1.bf16.msra.mxu0 %v2899
        %4015 = vmatprep.subr.bf16.mxu0 %v2902
        %4016 = vmatpush1.bf16.msra.mxu0 %v2901
        %4017 = vmatprep.subr.bf16.mxu0 %v2904
        %4018 = vmatpush1.bf16.msra.mxu0 %v2903
        %4019 = vmatprep.subr.bf16.mxu0 %v2906
        %4020 = vmatpush1.bf16.msra.mxu0 %v2905
        %4021 = vmatprep.subr.bf16.mxu0 %v2908
        %4022 = vmatpush1.bf16.msra.mxu0 %v2907
        %4023 = vmatprep.subr.bf16.mxu0 %v2910
        %4024 = vmatpush1.bf16.msra.mxu0 %v2909
        %4025 = vmatprep.subr.bf16.mxu0 %v2912
        %4026 = vmatpush1.bf16.msra.mxu0 %v2911
        %4027 = vmatprep.subr.bf16.mxu0 %v2914
        %4028 = vmatpush1.bf16.msra.mxu0 %v2913
        %4029 = vmatprep.subr.bf16.mxu0 %v2916
        %4030 = vmatpush1.bf16.msra.mxu0 %v2915
        %4031 = vmatprep.mubr.bf16.mxu0 %v986
        %4032 = vmatmul.mubr.bf16.gmra.mrb[0].mxu0 %v985
        %v4033 = vpop.f32.mrb[0].mxu0
        %v4034 = vadd.f32 %v3993, %v4033
        %v4035 = vpop.f32.mrb[0].mxu0
        %v4036 = vadd.f32 %v3995, %v4035
        %v4037 = vpop.f32.mrb[0].mxu0
        %v4038 = vpop.f32.mrb[0].mxu0
        %4039 = vdwg.mxu0
        %4040 = vmatprep.subr.bf16.mxu0 %v2918
        %4041 = vmatpush1.bf16.msra.mxu0 %v2917
        %4042 = vmatprep.subr.bf16.mxu0 %v2920
        %4043 = vmatpush1.bf16.msra.mxu0 %v2919
        %4044 = vmatprep.subr.bf16.mxu0 %v2922
        %4045 = vmatpush1.bf16.msra.mxu0 %v2921
        %4046 = vmatprep.subr.bf16.mxu0 %v2924
        %4047 = vmatpush1.bf16.msra.mxu0 %v2923
        %4048 = vmatprep.subr.bf16.mxu0 %v2926
        %4049 = vmatpush1.bf16.msra.mxu0 %v2925
        %4050 = vmatprep.subr.bf16.mxu0 %v2928
        %4051 = vmatpush1.bf16.msra.mxu0 %v2927
        %4052 = vmatprep.subr.bf16.mxu0 %v2930
        %4053 = vmatpush1.bf16.msra.mxu0 %v2929
        %4054 = vmatprep.subr.bf16.mxu0 %v2932
        %4055 = vmatpush1.bf16.msra.mxu0 %v2931
        %4056 = vmatprep.subr.bf16.mxu0 %v2934
        %4057 = vmatpush1.bf16.msra.mxu0 %v2933
        %4058 = vmatprep.subr.bf16.mxu0 %v2936
        %4059 = vmatpush1.bf16.msra.mxu0 %v2935
        %4060 = vmatprep.subr.bf16.mxu0 %v2938
        %4061 = vmatpush1.bf16.msra.mxu0 %v2937
        %4062 = vmatprep.subr.bf16.mxu0 %v2940
        %4063 = vmatpush1.bf16.msra.mxu0 %v2939
        %4064 = vmatprep.subr.bf16.mxu0 %v2942
        %4065 = vmatpush1.bf16.msra.mxu0 %v2941
        %4066 = vmatprep.subr.bf16.mxu0 %v2944
        %4067 = vmatpush1.bf16.msra.mxu0 %v2943
        %4068 = vmatprep.subr.bf16.mxu0 %v2946
        %4069 = vmatpush1.bf16.msra.mxu0 %v2945
        %4070 = vmatprep.subr.bf16.mxu0 %v2948
        %4071 = vmatpush1.bf16.msra.mxu0 %v2947
        %4072 = vmatprep.mubr.bf16.mxu0 %v988
        %4073 = vmatmul.mubr.bf16.gmra.mrb[0].mxu0 %v987
        %v4074 = vpop.f32.mrb[0].mxu0
        %v4075 = vadd.f32 %v4034, %v4074
        %v4076 = vpop.f32.mrb[0].mxu0
        %v4077 = vadd.f32 %v4036, %v4076
        %v4078 = vpop.f32.mrb[0].mxu0
        %v4079 = vpop.f32.mrb[0].mxu0
        %4080 = vdwg.mxu0
        %4081 = vmatprep.subr.bf16.mxu0 %v2950
        %4082 = vmatpush1.bf16.msra.mxu0 %v2949
        %4083 = vmatprep.subr.bf16.mxu0 %v2952
        %4084 = vmatpush1.bf16.msra.mxu0 %v2951
        %4085 = vmatprep.subr.bf16.mxu0 %v2954
        %4086 = vmatpush1.bf16.msra.mxu0 %v2953
        %4087 = vmatprep.subr.bf16.mxu0 %v2956
        %4088 = vmatpush1.bf16.msra.mxu0 %v2955
        %4089 = vmatprep.subr.bf16.mxu0 %v2958
        %4090 = vmatpush1.bf16.msra.mxu0 %v2957
        %4091 = vmatprep.subr.bf16.mxu0 %v2960
        %4092 = vmatpush1.bf16.msra.mxu0 %v2959
        %4093 = vmatprep.subr.bf16.mxu0 %v2962
        %4094 = vmatpush1.bf16.msra.mxu0 %v2961
        %4095 = vmatprep.subr.bf16.mxu0 %v2964
        %4096 = vmatpush1.bf16.msra.mxu0 %v2963
        %4097 = vmatprep.subr.bf16.mxu0 %v2966
        %4098 = vmatpush1.bf16.msra.mxu0 %v2965
        %4099 = vmatprep.subr.bf16.mxu0 %v2968
        %4100 = vmatpush1.bf16.msra.mxu0 %v2967
        %4101 = vmatprep.subr.bf16.mxu0 %v2970
        %4102 = vmatpush1.bf16.msra.mxu0 %v2969
        %4103 = vmatprep.subr.bf16.mxu0 %v2972
        %4104 = vmatpush1.bf16.msra.mxu0 %v2971
        %4105 = vmatprep.subr.bf16.mxu0 %v2974
        %4106 = vmatpush1.bf16.msra.mxu0 %v2973
        %4107 = vmatprep.subr.bf16.mxu0 %v2976
        %4108 = vmatpush1.bf16.msra.mxu0 %v2975
        %4109 = vmatprep.subr.bf16.mxu0 %v2978
        %4110 = vmatpush1.bf16.msra.mxu0 %v2977
        %4111 = vmatprep.subr.bf16.mxu0 %v2980
        %4112 = vmatpush1.bf16.msra.mxu0 %v2979
        %4113 = vmatprep.mubr.bf16.mxu0 %v990
        %4114 = vmatmul.mubr.bf16.gmra.mrb[0].mxu0 %v989
        %v4115 = vpop.f32.mrb[0].mxu0
        %v4116 = vadd.f32 %v4075, %v4115
        %v4117 = vpop.f32.mrb[0].mxu0
        %v4118 = vadd.f32 %v4077, %v4117
        %v4119 = vpop.f32.mrb[0].mxu0
        %v4120 = vpop.f32.mrb[0].mxu0
        %4121 = vdwg.mxu0
        %4122 = vmatprep.subr.bf16.mxu0 %v2982
        %4123 = vmatpush1.bf16.msra.mxu0 %v2981
        %4124 = vmatprep.subr.bf16.mxu0 %v2984
        %4125 = vmatpush1.bf16.msra.mxu0 %v2983
        %4126 = vmatprep.subr.bf16.mxu0 %v2986
        %4127 = vmatpush1.bf16.msra.mxu0 %v2985
        %4128 = vmatprep.subr.bf16.mxu0 %v2988
        %4129 = vmatpush1.bf16.msra.mxu0 %v2987
        %4130 = vmatprep.subr.bf16.mxu0 %v2990
        %4131 = vmatpush1.bf16.msra.mxu0 %v2989
        %4132 = vmatprep.subr.bf16.mxu0 %v2992
        %4133 = vmatpush1.bf16.msra.mxu0 %v2991
        %4134 = vmatprep.subr.bf16.mxu0 %v2994
        %4135 = vmatpush1.bf16.msra.mxu0 %v2993
        %4136 = vmatprep.subr.bf16.mxu0 %v2996
        %4137 = vmatpush1.bf16.msra.mxu0 %v2995
        %4138 = vmatprep.subr.bf16.mxu0 %v2998
        %4139 = vmatpush1.bf16.msra.mxu0 %v2997
        %4140 = vmatprep.subr.bf16.mxu0 %v3000
        %4141 = vmatpush1.bf16.msra.mxu0 %v2999
        %4142 = vmatprep.subr.bf16.mxu0 %v3002
        %4143 = vmatpush1.bf16.msra.mxu0 %v3001
        %4144 = vmatprep.subr.bf16.mxu0 %v3004
        %4145 = vmatpush1.bf16.msra.mxu0 %v3003
        %4146 = vmatprep.subr.bf16.mxu0 %v3006
        %4147 = vmatpush1.bf16.msra.mxu0 %v3005
        %4148 = vmatprep.subr.bf16.mxu0 %v3008
        %4149 = vmatpush1.bf16.msra.mxu0 %v3007
        %4150 = vmatprep.subr.bf16.mxu0 %v3010
        %4151 = vmatpush1.bf16.msra.mxu0 %v3009
        %4152 = vmatprep.subr.bf16.mxu0 %v3012
        %4153 = vmatpush1.bf16.msra.mxu0 %v3011
        %4154 = vmatprep.mubr.bf16.mxu0 %v992
        %4155 = vmatmul.mubr.bf16.gmra.mrb[0].mxu0 %v991
        %v4156 = vpop.f32.mrb[0].mxu0
        %v4157 = vadd.f32 %v4116, %v4156
        %v4158 = vpop.f32.mrb[0].mxu0
        %v4159 = vadd.f32 %v4118, %v4158
        %v4160 = vpop.f32.mrb[0].mxu0
        %v4161 = vpop.f32.mrb[0].mxu0
        %4162 = vdwg.mxu0
        %4163 = vmatprep.subr.bf16.mxu0 %v3014
        %4164 = vmatpush1.bf16.msra.mxu0 %v3013
        %4165 = vmatprep.subr.bf16.mxu0 %v3016
        %4166 = vmatpush1.bf16.msra.mxu0 %v3015
        %4167 = vmatprep.subr.bf16.mxu0 %v3018
        %4168 = vmatpush1.bf16.msra.mxu0 %v3017
        %4169 = vmatprep.subr.bf16.mxu0 %v3020
        %4170 = vmatpush1.bf16.msra.mxu0 %v3019
        %4171 = vmatprep.subr.bf16.mxu0 %v3022
        %4172 = vmatpush1.bf16.msra.mxu0 %v3021
        %4173 = vmatprep.subr.bf16.mxu0 %v3024
        %4174 = vmatpush1.bf16.msra.mxu0 %v3023
        %4175 = vmatprep.subr.bf16.mxu0 %v3026
        %4176 = vmatpush1.bf16.msra.mxu0 %v3025
        %4177 = vmatprep.subr.bf16.mxu0 %v3028
        %4178 = vmatpush1.bf16.msra.mxu0 %v3027
        %4179 = vmatprep.subr.bf16.mxu0 %v3030
        %4180 = vmatpush1.bf16.msra.mxu0 %v3029
        %4181 = vmatprep.subr.bf16.mxu0 %v3032
        %4182 = vmatpush1.bf16.msra.mxu0 %v3031
        %4183 = vmatprep.subr.bf16.mxu0 %v3034
        %4184 = vmatpush1.bf16.msra.mxu0 %v3033
        %4185 = vmatprep.subr.bf16.mxu0 %v3036
        %4186 = vmatpush1.bf16.msra.mxu0 %v3035
        %4187 = vmatprep.subr.bf16.mxu0 %v3038
        %4188 = vmatpush1.bf16.msra.mxu0 %v3037
        %4189 = vmatprep.subr.bf16.mxu0 %v3040
        %4190 = vmatpush1.bf16.msra.mxu0 %v3039
        %4191 = vmatprep.subr.bf16.mxu0 %v3042
        %4192 = vmatpush1.bf16.msra.mxu0 %v3041
        %4193 = vmatprep.subr.bf16.mxu0 %v3044
        %4194 = vmatpush1.bf16.msra.mxu0 %v3043
        %4195 = vmatprep.mubr.bf16.mxu0 %v994
        %4196 = vmatmul.mubr.bf16.gmra.mrb[0].mxu0 %v993
        %v4197 = vpop.f32.mrb[0].mxu0
        %v4198 = vadd.f32 %v4157, %v4197
        %v4199 = vpop.f32.mrb[0].mxu0
        %v4200 = vadd.f32 %v4159, %v4199
        %v4201 = vpop.f32.mrb[0].mxu0
        %v4202 = vpop.f32.mrb[0].mxu0
        %4203 = vdwg.mxu0
        %4204 = vmatprep.subr.bf16.mxu0 %v3046
        %4205 = vmatpush1.bf16.msra.mxu0 %v3045
        %4206 = vmatprep.subr.bf16.mxu0 %v3048
        %4207 = vmatpush1.bf16.msra.mxu0 %v3047
        %4208 = vmatprep.subr.bf16.mxu0 %v3050
        %4209 = vmatpush1.bf16.msra.mxu0 %v3049
        %4210 = vmatprep.subr.bf16.mxu0 %v3052
        %4211 = vmatpush1.bf16.msra.mxu0 %v3051
        %4212 = vmatprep.subr.bf16.mxu0 %v3054
        %4213 = vmatpush1.bf16.msra.mxu0 %v3053
        %4214 = vmatprep.subr.bf16.mxu0 %v3056
        %4215 = vmatpush1.bf16.msra.mxu0 %v3055
        %4216 = vmatprep.subr.bf16.mxu0 %v3058
        %4217 = vmatpush1.bf16.msra.mxu0 %v3057
        %4218 = vmatprep.subr.bf16.mxu0 %v3060
        %4219 = vmatpush1.bf16.msra.mxu0 %v3059
        %4220 = vmatprep.subr.bf16.mxu0 %v3062
        %4221 = vmatpush1.bf16.msra.mxu0 %v3061
        %4222 = vmatprep.subr.bf16.mxu0 %v3064
        %4223 = vmatpush1.bf16.msra.mxu0 %v3063
        %4224 = vmatprep.subr.bf16.mxu0 %v3066
        %4225 = vmatpush1.bf16.msra.mxu0 %v3065
        %4226 = vmatprep.subr.bf16.mxu0 %v3068
        %4227 = vmatpush1.bf16.msra.mxu0 %v3067
        %4228 = vmatprep.subr.bf16.mxu0 %v3070
        %4229 = vmatpush1.bf16.msra.mxu0 %v3069
        %4230 = vmatprep.subr.bf16.mxu0 %v3072
        %4231 = vmatpush1.bf16.msra.mxu0 %v3071
        %4232 = vmatprep.subr.bf16.mxu0 %v3074
        %4233 = vmatpush1.bf16.msra.mxu0 %v3073
        %4234 = vmatprep.subr.bf16.mxu0 %v3076
        %4235 = vmatpush1.bf16.msra.mxu0 %v3075
        %4236 = vmatprep.mubr.bf16.mxu0 %v996
        %4237 = vmatmul.mubr.bf16.gmra.mrb[0].mxu0 %v995
        %v4238 = vpop.f32.mrb[0].mxu0
        %v4239 = vadd.f32 %v4198, %v4238
        %v4240 = vpop.f32.mrb[0].mxu0
        %v4241 = vadd.f32 %v4200, %v4240
        %v4242 = vpop.f32.mrb[0].mxu0
        %v4243 = vpop.f32.mrb[0].mxu0
        %4244 = vdwg.mxu0
        %v4245 = vmax.f32 %v4239, 0.0
        %v4246 = vmax.f32 %v4241, 0.0
        %v4247 = vpack.c.bf16 %v4245, %v4245
        %v4248 = vpack.c.bf16 %v4246, %v4246
        %v4249 = vld [vmem:[#allocation8] sm:$0xff]
        %v4250 = vld [vmem:[#allocation8 + $0x8] sm:$0xff]
        %v4251 = vld [vmem:[#allocation8 + $0x10] sm:$0xff]
        %v4252 = vld [vmem:[#allocation8 + $0x18] sm:$0xff]
        %v4253 = vld [vmem:[#allocation8 + $0x20] sm:$0xff]
        %v4254 = vld [vmem:[#allocation8 + $0x28] sm:$0xff]
        %v4255 = vld [vmem:[#allocation8 + $0x30] sm:$0xff]
        %v4256 = vld [vmem:[#allocation8 + $0x38] sm:$0xff]
        %v4257 = vld [vmem:[#allocation8 + $0x40] sm:$0xff]
        %v4258 = vld [vmem:[#allocation8 + $0x48] sm:$0xff]
        %v4259 = vld [vmem:[#allocation8 + $0x50] sm:$0xff]
        %v4260 = vld [vmem:[#allocation8 + $0x58] sm:$0xff]
        %v4261 = vld [vmem:[#allocation8 + $0x60] sm:$0xff]
        %v4262 = vld [vmem:[#allocation8 + $0x68] sm:$0xff]
        %v4263 = vld [vmem:[#allocation8 + $0x70] sm:$0xff]
        %v4264 = vld [vmem:[#allocation8 + $0x78] sm:$0xff]
        %v4265 = vld [vmem:[#allocation8 + $0x80] sm:$0xff]
        %v4266 = vld [vmem:[#allocation8 + $0x88] sm:$0xff]
        %v4267 = vld [vmem:[#allocation8 + $0x90] sm:$0xff]
        %v4268 = vld [vmem:[#allocation8 + $0x98] sm:$0xff]
        %v4269 = vld [vmem:[#allocation8 + $0xa0] sm:$0xff]
        %v4270 = vld [vmem:[#allocation8 + $0xa8] sm:$0xff]
        %v4271 = vld [vmem:[#allocation8 + $0xb0] sm:$0xff]
        %v4272 = vld [vmem:[#allocation8 + $0xb8] sm:$0xff]
        %v4273 = vld [vmem:[#allocation8 + $0xc0] sm:$0xff]
        %v4274 = vld [vmem:[#allocation8 + $0xc8] sm:$0xff]
        %v4275 = vld [vmem:[#allocation8 + $0xd0] sm:$0xff]
        %v4276 = vld [vmem:[#allocation8 + $0xd8] sm:$0xff]
        %v4277 = vld [vmem:[#allocation8 + $0xe0] sm:$0xff]
        %v4278 = vld [vmem:[#allocation8 + $0xe8] sm:$0xff]
        %v4279 = vld [vmem:[#allocation8 + $0xf0] sm:$0xff]
        %v4280 = vld [vmem:[#allocation8 + $0xf8] sm:$0xff]
        %v4281 = vld [vmem:[#allocation10] sm:$0x3]
        %v4283 = vlaneseq
        %v4284 = vshrl.u32 %v4283, 7
        %v4285 = vsub.s32 0, %v4284
        %v4286 = vrot.slane %v4281, %v4285
        %v4287 = vlaneseq
        %v4288 = vshrl.u32 %v4287, 7
        %v4289 = vsub.s32 1, %v4288
        %v4290 = vrot.slane %v4281, %v4289
        %v4325 = vunpack.c.l.b16 %v4249
        %v4326 = vunpack.c.h.b16 %v4249
        %v4327 = vunpack.c.l.b16 %v4250
        %v4328 = vunpack.c.h.b16 %v4250
        %v4329 = vunpack.c.l.b16 %v4251
        %v4330 = vunpack.c.h.b16 %v4251
        %v4331 = vunpack.c.l.b16 %v4252
        %v4332 = vunpack.c.h.b16 %v4252
        %v4333 = vunpack.c.l.b16 %v4253
        %v4334 = vunpack.c.h.b16 %v4253
        %v4335 = vunpack.c.l.b16 %v4254
        %v4336 = vunpack.c.h.b16 %v4254
        %v4337 = vunpack.c.l.b16 %v4255
        %v4338 = vunpack.c.h.b16 %v4255
        %v4339 = vunpack.c.l.b16 %v4256
        %v4340 = vunpack.c.h.b16 %v4256
        %v4341 = vunpack.c.l.b16 %v4257
        %v4342 = vunpack.c.h.b16 %v4257
        %v4343 = vunpack.c.l.b16 %v4258
        %v4344 = vunpack.c.h.b16 %v4258
        %v4345 = vunpack.c.l.b16 %v4259
        %v4346 = vunpack.c.h.b16 %v4259
        %v4347 = vunpack.c.l.b16 %v4260
        %v4348 = vunpack.c.h.b16 %v4260
        %v4349 = vunpack.c.l.b16 %v4261
        %v4350 = vunpack.c.h.b16 %v4261
        %v4351 = vunpack.c.l.b16 %v4262
        %v4352 = vunpack.c.h.b16 %v4262
        %v4353 = vunpack.c.l.b16 %v4263
        %v4354 = vunpack.c.h.b16 %v4263
        %v4355 = vunpack.c.l.b16 %v4264
        %v4356 = vunpack.c.h.b16 %v4264
        %v4357 = vunpack.c.l.b16 %v4265
        %v4358 = vunpack.c.h.b16 %v4265
        %v4359 = vunpack.c.l.b16 %v4266
        %v4360 = vunpack.c.h.b16 %v4266
        %v4361 = vunpack.c.l.b16 %v4267
        %v4362 = vunpack.c.h.b16 %v4267
        %v4363 = vunpack.c.l.b16 %v4268
        %v4364 = vunpack.c.h.b16 %v4268
        %v4365 = vunpack.c.l.b16 %v4269
        %v4366 = vunpack.c.h.b16 %v4269
        %v4367 = vunpack.c.l.b16 %v4270
        %v4368 = vunpack.c.h.b16 %v4270
        %v4369 = vunpack.c.l.b16 %v4271
        %v4370 = vunpack.c.h.b16 %v4271
        %v4371 = vunpack.c.l.b16 %v4272
        %v4372 = vunpack.c.h.b16 %v4272
        %v4373 = vunpack.c.l.b16 %v4273
        %v4374 = vunpack.c.h.b16 %v4273
        %v4375 = vunpack.c.l.b16 %v4274
        %v4376 = vunpack.c.h.b16 %v4274
        %v4377 = vunpack.c.l.b16 %v4275
        %v4378 = vunpack.c.h.b16 %v4275
        %v4379 = vunpack.c.l.b16 %v4276
        %v4380 = vunpack.c.h.b16 %v4276
        %v4381 = vunpack.c.l.b16 %v4277
        %v4382 = vunpack.c.h.b16 %v4277
        %v4383 = vunpack.c.l.b16 %v4278
        %v4384 = vunpack.c.h.b16 %v4278
        %v4385 = vunpack.c.l.b16 %v4279
        %v4386 = vunpack.c.h.b16 %v4279
        %v4387 = vunpack.c.l.b16 %v4280
        %v4388 = vunpack.c.h.b16 %v4280
        %v4389 = vpack.c.b16 %v4327, %v4325
        %v4390 = vpack.c.b16 %v4328, %v4326
        %v4391 = vpack.c.b16 %v4331, %v4329
        %v4392 = vpack.c.b16 %v4332, %v4330
        %v4393 = vpack.c.b16 %v4335, %v4333
        %v4394 = vpack.c.b16 %v4336, %v4334
        %v4395 = vpack.c.b16 %v4339, %v4337
        %v4396 = vpack.c.b16 %v4340, %v4338
        %v4397 = vpack.c.b16 %v4343, %v4341
        %v4398 = vpack.c.b16 %v4344, %v4342
        %v4399 = vpack.c.b16 %v4347, %v4345
        %v4400 = vpack.c.b16 %v4348, %v4346
        %v4401 = vpack.c.b16 %v4351, %v4349
        %v4402 = vpack.c.b16 %v4352, %v4350
        %v4403 = vpack.c.b16 %v4355, %v4353
        %v4404 = vpack.c.b16 %v4356, %v4354
        %v4405 = vpack.c.b16 %v4359, %v4357
        %v4406 = vpack.c.b16 %v4360, %v4358
        %v4407 = vpack.c.b16 %v4363, %v4361
        %v4408 = vpack.c.b16 %v4364, %v4362
        %v4409 = vpack.c.b16 %v4367, %v4365
        %v4410 = vpack.c.b16 %v4368, %v4366
        %v4411 = vpack.c.b16 %v4371, %v4369
        %v4412 = vpack.c.b16 %v4372, %v4370
        %v4413 = vpack.c.b16 %v4375, %v4373
        %v4414 = vpack.c.b16 %v4376, %v4374
        %v4415 = vpack.c.b16 %v4379, %v4377
        %v4416 = vpack.c.b16 %v4380, %v4378
        %v4417 = vpack.c.b16 %v4383, %v4381
        %v4418 = vpack.c.b16 %v4384, %v4382
        %v4419 = vpack.c.b16 %v4387, %v4385
        %v4420 = vpack.c.b16 %v4388, %v4386
        %4453 = vmatprep.subr.bf16.mxu0 %v4390
        %4454 = vmatpush1.bf16.msra.mxu0 %v4389
        %4455 = vmatprep.subr.bf16.mxu0 %v4392
        %4456 = vmatpush1.bf16.msra.mxu0 %v4391
        %4457 = vmatprep.subr.bf16.mxu0 %v4394
        %4458 = vmatpush1.bf16.msra.mxu0 %v4393
        %4459 = vmatprep.subr.bf16.mxu0 %v4396
        %4460 = vmatpush1.bf16.msra.mxu0 %v4395
        %4461 = vmatprep.subr.bf16.mxu0 %v4398
        %4462 = vmatpush1.bf16.msra.mxu0 %v4397
        %4463 = vmatprep.subr.bf16.mxu0 %v4400
        %4464 = vmatpush1.bf16.msra.mxu0 %v4399
        %4465 = vmatprep.subr.bf16.mxu0 %v4402
        %4466 = vmatpush1.bf16.msra.mxu0 %v4401
        %4467 = vmatprep.subr.bf16.mxu0 %v4404
        %4468 = vmatpush1.bf16.msra.mxu0 %v4403
        %4469 = vmatprep.subr.bf16.mxu0 %v4406
        %4470 = vmatpush1.bf16.msra.mxu0 %v4405
        %4471 = vmatprep.subr.bf16.mxu0 %v4408
        %4472 = vmatpush1.bf16.msra.mxu0 %v4407
        %4473 = vmatprep.subr.bf16.mxu0 %v4410
        %4474 = vmatpush1.bf16.msra.mxu0 %v4409
        %4475 = vmatprep.subr.bf16.mxu0 %v4412
        %4476 = vmatpush1.bf16.msra.mxu0 %v4411
        %4477 = vmatprep.subr.bf16.mxu0 %v4414
        %4478 = vmatpush1.bf16.msra.mxu0 %v4413
        %4479 = vmatprep.subr.bf16.mxu0 %v4416
        %4480 = vmatpush1.bf16.msra.mxu0 %v4415
        %4481 = vmatprep.subr.bf16.mxu0 %v4418
        %4482 = vmatpush1.bf16.msra.mxu0 %v4417
        %4483 = vmatprep.subr.bf16.mxu0 %v4420
        %4484 = vmatpush1.bf16.msra.mxu0 %v4419
        %4485 = vmatprep.mubr.bf16.mxu0 %v4248
        %4486 = vmatmul.mubr.bf16.gmra.mrb[0].mxu0 %v4247
        %v4487 = vpop.f32.mrb[0].mxu0
        %v4488 = vadd.f32 %v4286, %v4487
        %v4489 = vpop.f32.mrb[0].mxu0
        %v4490 = vadd.f32 %v4290, %v4489
        %v4491 = vpop.f32.mrb[0].mxu0
        %v4492 = vpop.f32.mrb[0].mxu0
        %4493 = vdwg.mxu0
        %v4494 = vmax.f32 %v4488, 0.0
        %v4495 = vmax.f32 %v4490, 0.0
        %v4496 = vpack.c.bf16 %v4494, %v4494
        %v4497 = vpack.c.bf16 %v4495, %v4495
        %v4498 = vld [vmem:[#allocation11] sm:$0xf]
        %v4499 = vld [vmem:[#allocation11 + $0x4] sm:$0xf]
        %v4500 = vld [vmem:[#allocation11 + $0x8] sm:$0xf]
        %v4501 = vld [vmem:[#allocation11 + $0xc] sm:$0xf]
        %v4502 = vld [vmem:[#allocation11 + $0x10] sm:$0xf]
        %v4503 = vld [vmem:[#allocation11 + $0x14] sm:$0xf]
        %v4504 = vld [vmem:[#allocation11 + $0x18] sm:$0xf]
        %v4505 = vld [vmem:[#allocation11 + $0x1c] sm:$0xf]
        %v4506 = vld [vmem:[#allocation11 + $0x20] sm:$0xf]
        %v4507 = vld [vmem:[#allocation11 + $0x24] sm:$0xf]
        %v4508 = vld [vmem:[#allocation11 + $0x28] sm:$0xf]
        %v4509 = vld [vmem:[#allocation11 + $0x2c] sm:$0xf]
        %v4510 = vld [vmem:[#allocation11 + $0x30] sm:$0xf]
        %v4511 = vld [vmem:[#allocation11 + $0x34] sm:$0xf]
        %v4512 = vld [vmem:[#allocation11 + $0x38] sm:$0xf]
        %v4513 = vld [vmem:[#allocation11 + $0x3c] sm:$0xf]
        %v4514 = vld [vmem:[#allocation11 + $0x40] sm:$0xf]
        %v4515 = vld [vmem:[#allocation11 + $0x44] sm:$0xf]
        %v4516 = vld [vmem:[#allocation11 + $0x48] sm:$0xf]
        %v4517 = vld [vmem:[#allocation11 + $0x4c] sm:$0xf]
        %v4518 = vld [vmem:[#allocation11 + $0x50] sm:$0xf]
        %v4519 = vld [vmem:[#allocation11 + $0x54] sm:$0xf]
        %v4520 = vld [vmem:[#allocation11 + $0x58] sm:$0xf]
        %v4521 = vld [vmem:[#allocation11 + $0x5c] sm:$0xf]
        %v4522 = vld [vmem:[#allocation11 + $0x60] sm:$0xf]
        %v4523 = vld [vmem:[#allocation11 + $0x64] sm:$0xf]
        %v4524 = vld [vmem:[#allocation11 + $0x68] sm:$0xf]
        %v4525 = vld [vmem:[#allocation11 + $0x6c] sm:$0xf]
        %v4526 = vld [vmem:[#allocation11 + $0x70] sm:$0xf]
        %v4527 = vld [vmem:[#allocation11 + $0x74] sm:$0xf]
        %v4528 = vld [vmem:[#allocation11 + $0x78] sm:$0xf]
        %v4529 = vld [vmem:[#allocation11 + $0x7c] sm:$0xf]
        %v4530 = vld [vmem:[#allocation13] sm:$0x1]
        %v4532 = vlaneseq
        %v4533 = vshrl.u32 %v4532, 7
        %v4534 = vsub.s32 0, %v4533
        %v4535 = vrot.slane %v4530, %v4534
        %v4569 = vunpack.c.l.b16 %v4498
        %v4570 = vunpack.c.l.b16 %v4499
        %v4571 = vunpack.c.l.b16 %v4500
        %v4572 = vunpack.c.l.b16 %v4501
        %v4573 = vunpack.c.l.b16 %v4502
        %v4574 = vunpack.c.l.b16 %v4503
        %v4575 = vunpack.c.l.b16 %v4504
        %v4576 = vunpack.c.l.b16 %v4505
        %v4577 = vunpack.c.l.b16 %v4506
        %v4578 = vunpack.c.l.b16 %v4507
        %v4579 = vunpack.c.l.b16 %v4508
        %v4580 = vunpack.c.l.b16 %v4509
        %v4581 = vunpack.c.l.b16 %v4510
        %v4582 = vunpack.c.l.b16 %v4511
        %v4583 = vunpack.c.l.b16 %v4512
        %v4584 = vunpack.c.l.b16 %v4513
        %v4585 = vunpack.c.l.b16 %v4514
        %v4586 = vunpack.c.l.b16 %v4515
        %v4587 = vunpack.c.l.b16 %v4516
        %v4588 = vunpack.c.l.b16 %v4517
        %v4589 = vunpack.c.l.b16 %v4518
        %v4590 = vunpack.c.l.b16 %v4519
        %v4591 = vunpack.c.l.b16 %v4520
        %v4592 = vunpack.c.l.b16 %v4521
        %v4593 = vunpack.c.l.b16 %v4522
        %v4594 = vunpack.c.l.b16 %v4523
        %v4595 = vunpack.c.l.b16 %v4524
        %v4596 = vunpack.c.l.b16 %v4525
        %v4597 = vunpack.c.l.b16 %v4526
        %v4598 = vunpack.c.l.b16 %v4527
        %v4599 = vunpack.c.l.b16 %v4528
        %v4600 = vunpack.c.l.b16 %v4529
        %v4601 = vpack.c.b16 %v4570, %v4569
        %v4602 = vpack.c.b16 %v4572, %v4571
        %v4603 = vpack.c.b16 %v4574, %v4573
        %v4604 = vpack.c.b16 %v4576, %v4575
        %v4605 = vpack.c.b16 %v4578, %v4577
        %v4606 = vpack.c.b16 %v4580, %v4579
        %v4607 = vpack.c.b16 %v4582, %v4581
        %v4608 = vpack.c.b16 %v4584, %v4583
        %v4609 = vpack.c.b16 %v4586, %v4585
        %v4610 = vpack.c.b16 %v4588, %v4587
        %v4611 = vpack.c.b16 %v4590, %v4589
        %v4612 = vpack.c.b16 %v4592, %v4591
        %v4613 = vpack.c.b16 %v4594, %v4593
        %v4614 = vpack.c.b16 %v4596, %v4595
        %v4615 = vpack.c.b16 %v4598, %v4597
        %v4616 = vpack.c.b16 %v4600, %v4599
        %4633 = vmatprep.subr.bf16.mxu0 0
        %4634 = vmatpush1.bf16.msra.mxu0 %v4601
        %4635 = vmatprep.subr.bf16.mxu0 0
        %4636 = vmatpush1.bf16.msra.mxu0 %v4602
        %4637 = vmatprep.subr.bf16.mxu0 0
        %4638 = vmatpush1.bf16.msra.mxu0 %v4603
        %4639 = vmatprep.subr.bf16.mxu0 0
        %4640 = vmatpush1.bf16.msra.mxu0 %v4604
        %4641 = vmatprep.subr.bf16.mxu0 0
        %4642 = vmatpush1.bf16.msra.mxu0 %v4605
        %4643 = vmatprep.subr.bf16.mxu0 0
        %4644 = vmatpush1.bf16.msra.mxu0 %v4606
        %4645 = vmatprep.subr.bf16.mxu0 0
        %4646 = vmatpush1.bf16.msra.mxu0 %v4607
        %4647 = vmatprep.subr.bf16.mxu0 0
        %4648 = vmatpush1.bf16.msra.mxu0 %v4608
        %4649 = vmatprep.subr.bf16.mxu0 0
        %4650 = vmatpush1.bf16.msra.mxu0 %v4609
        %4651 = vmatprep.subr.bf16.mxu0 0
        %4652 = vmatpush1.bf16.msra.mxu0 %v4610
        %4653 = vmatprep.subr.bf16.mxu0 0
        %4654 = vmatpush1.bf16.msra.mxu0 %v4611
        %4655 = vmatprep.subr.bf16.mxu0 0
        %4656 = vmatpush1.bf16.msra.mxu0 %v4612
        %4657 = vmatprep.subr.bf16.mxu0 0
        %4658 = vmatpush1.bf16.msra.mxu0 %v4613
        %4659 = vmatprep.subr.bf16.mxu0 0
        %4660 = vmatpush1.bf16.msra.mxu0 %v4614
        %4661 = vmatprep.subr.bf16.mxu0 0
        %4662 = vmatpush1.bf16.msra.mxu0 %v4615
        %4663 = vmatprep.subr.bf16.mxu0 0
        %4664 = vmatpush1.bf16.msra.mxu0 %v4616
        %4665 = vmatprep.mubr.bf16.mxu0 %v4497
        %4666 = vmatmul.mubr.bf16.gmra.mrb[0].mxu0 %v4496
        %v4667 = vpop.f32.mrb[0].mxu0
        %v4668 = vadd.f32 %v4535, %v4667
        %v4669 = vpop.f32.mrb[0].mxu0
        %v4670 = vpop.f32.mrb[0].mxu0
        %v4671 = vpop.f32.mrb[0].mxu0
        %4672 = vdwg.mxu0
        %4673 = vst [vmem:[%s375] sm:$0xff] %v4668
        %s4674 = sand.u32 %s187, 1
        %s4675 = scalar_lea.sflag [#allocation4], %s4674
        %s4676 = sand.u32 %s187, 1
        %s4677 = smul.addr %s4676, 8
        %s4678 = scalar_lea.vmem [#allocation14], %s4677
        // Predicated region
        $region77: #{tpu_custom_call.1} parent=47 // pred_check
          %p4679 = pneg %p197
        $region78: #{tpu_custom_call.1} parent=47 // pred_check_branch
          %4681 = sbr.rel (%p4679) target = $region80
        $region79: #{tpu_custom_call.1} parent=47 // pred_region
          %s4683 = ssub.s32 128, 128
          %4684 = vsyncadd %s4675, %s4683
          %s4685 = smul.addr %s27, 128
          %s4686 = scalar_lea.hbm %s7, %s4685
          %s4688 = sshll.u32 %s4678, 4
          %s4689 = int_to_ptr.vmem [resolvable:$true] %s4688
          %4691 = dma.vmem_to_hbm [thread:$0]  %s4689, 128, %s4686, %s4675
        $region80: #{tpu_custom_call.1} parent=47 // pred_fallthru
          _
      $region48: #{tpu_custom_call.1} parent=5 // pred_fallthru
        _
      %p4692 = scmp.le.s32.totalorder 2, %s22
      // Predicated region
      $region81: #{tpu_custom_call.1} parent=5 // pred_check
        %p4693 = pneg %p4692
      $region82: #{tpu_custom_call.1} parent=5 // pred_check_branch
        %4695 = sbr.rel (%p4693) target = $region84
      $region83: #{tpu_custom_call.1} parent=5 // pred_region
        %s4696 = ssub.s32 %s22, 2
        // Predicated region
        $region85: #{tpu_custom_call.1} parent=83 // pred_check
          %p4697 = pneg %p203
        $region86: #{tpu_custom_call.1} parent=83 // pred_check_branch
          %4699 = sbr.rel (%p4697) target = $region88
        $region87: #{tpu_custom_call.1} parent=83 // pred_region
          %s4700 = sand.u32 %s188, 1
          %s4701 = scalar_lea.sflag [#allocation4], %s4700
          %s4702 = sand.u32 %s188, 1
          %s4703 = smul.addr %s4702, 8
          %s4704 = scalar_lea.vmem [#allocation14], %s4703
          %4705 = dma.done %s4701, 128
        $region88: #{tpu_custom_call.1} parent=83 // pred_fallthru
          _
      $region84: #{tpu_custom_call.1} parent=5 // pred_fallthru
        _
    $region6: #{tpu_custom_call.1} parent=1 // loop_footer
      %s26 = sadd.s32 1, %s22
    $region7: #{tpu_custom_call.1} parent=1 // loop_footer_branch
      %21 = sbr.rel target = $region3
    $region8: #{tpu_custom_call.1} parent=1 // loop_exit
      _
    %4706 = vsyncpa [#allocation3], 1
    %s4707 = scalar_lea.sflag [#allocation3], 1
    %4708 = vsyncpa %s4707, 1
    %4709 = vsyncpa [#allocation6], 1
    %4710 = vsyncpa [#allocation9], 1
    %4711 = vsyncpa [#allocation12], 1
    %4712 = vsyncpa [#allocation4], 1
    %s4713 = scalar_lea.sflag [#allocation4], 1
    %4714 = vsyncpa %s4713, 1

// kernel: tpu_custom_call.1
$region0: #{tpu_custom_call.1}
  #allocation0 [shape = 'u32[]', space=smem, size = 0x4, offset = 0x4, fixed_abs, tag = 'smem constant byte address 0x4 - core index']
  #allocation1 [shape = 'u32[144,128]{1,0:T(1,128)}', space=vmem, size = 0x12000, scoped, tag = 'internal scratch']
  %s0 = inlined_call_operand.hbm [shape: bf16[16,4096], index: 0, kind: input, shape index: {}]
  %s1 = inlined_call_operand.hbm [shape: bf16[4096,256], index: 1, kind: input, shape index: {}]
  %s2 = inlined_call_operand.hbm [shape: f32[1,256], index: 2, kind: input, shape index: {}]
  %s3 = inlined_call_operand.hbm [shape: bf16[256,256], index: 3, kind: input, shape index: {}]
  %s4 = inlined_call_operand.hbm [shape: f32[1,256], index: 4, kind: input, shape index: {}]
  %s5 = inlined_call_operand.hbm [shape: bf16[256,128], index: 5, kind: input, shape index: {}]
  %s6 = inlined_call_operand.hbm [shape: f32[1,128], index: 6, kind: input, shape index: {}]
  %s7 = inlined_call_operand.hbm [shape: f32[16,128], index: 7, kind: output, shape index: {}]
  %s8 = sld [smem:[#allocation0]]
  $region89: #{tpu_custom_call.1} parent=0
    _
  %s10 = ssub.s32 1, %s8
  %s11 = scalar_select 0, %s10, %s8
  $region1: #{tpu_custom_call.1} parent=0
    #allocation2 [shape = 'u8[131072]{0}', space=vmem, size = 0x20000, scoped, tag = 'input window, operand 0']
    #allocation3 [shape = 's32[2]{0}', space=sflag, size = 0x8, scoped, tag = 'scoped memory for tpu_custom_call.1']
    #allocation4 [shape = 's32[2]{0}', space=sflag, size = 0x8, scoped, tag = 'scoped memory for tpu_custom_call.1']
    #allocation5 [shape = 'u8[2097152]{0}', space=vmem, size = 0x200000, scoped, tag = 'input window, operand 1, single buffered']
    #allocation6 [shape = 's32[1]{0}', space=sflag, size = 0x4, scoped, tag = 'scoped memory for tpu_custom_call.1']
    #allocation7 [shape = 'u8[1024]{0}', space=vmem, size = 0x400, scoped, tag = 'input window, operand 2, single buffered']
    #allocation8 [shape = 'u8[131072]{0}', space=vmem, size = 0x20000, scoped, tag = 'input window, operand 3, single buffered']
    #allocation9 [shape = 's32[1]{0}', space=sflag, size = 0x4, scoped, tag = 'scoped memory for tpu_custom_call.1']
    #allocation10 [shape = 'u8[1024]{0}', space=vmem, size = 0x400, scoped, tag = 'input window, operand 4, single buffered']
    #allocation11 [shape = 'u8[65536]{0}', space=vmem, size = 0x10000, scoped, tag = 'input window, operand 5, single buffered']
    #allocation12 [shape = 's32[1]{0}', space=sflag, size = 0x4, scoped, tag = 'scoped memory for tpu_custom_call.1']
    #allocation13 [shape = 'u8[512]{0}', space=vmem, size = 0x400, scoped, tag = 'input window, operand 6, single buffered']
    #allocation14 [shape = 'u8[8192]{0}', space=vmem, size = 0x2000, scoped, tag = 'output window, operand 0']
    %12 = vsyncpa [#allocation3], 0
    %s13 = scalar_lea.sflag [#allocation3], 1
    %14 = vsyncpa %s13, 0
    %15 = vsyncpa [#allocation6], 0
    %16 = vsyncpa [#allocation9], 0
    %17 = vsyncpa [#allocation12], 0
    %18 = vsyncpa [#allocation4], 0
    %s19 = scalar_lea.sflag [#allocation4], 1
    %20 = vsyncpa %s19, 0
    loop: start=0, step=1, limit=4
    $region2: #{tpu_custom_call.1} parent=1 // loop_pre_header
      _
    $region3: #{tpu_custom_call.1} parent=1 // loop_header
      %s22 = sphi 0, %s26
      %p23 = scmp.ge.s32.totalorder %s22, 4
      %s32 = sphi 0, %s34
      %s35 = sphi 0, %s32
      %s36 = sphi 0, %s35
      %s52 = sphi 0, %s36
      %s56 = sphi 0, %s56
      %s58 = sphi 0, %s56
      %s59 = sphi 0, %s58
      %s73 = sphi 0, %s59
      %s77 = sphi 0, %s77
      %s79 = sphi 0, %s77
      %s80 = sphi 0, %s79
      %s94 = sphi 0, %s80
      %s98 = sphi 0, %s98
      %s100 = sphi 0, %s98
      %s101 = sphi 0, %s100
      %s115 = sphi 0, %s101
      %s119 = sphi 0, %s119
      %s121 = sphi 0, %s119
      %s122 = sphi 0, %s121
      %s136 = sphi 0, %s122
      %s140 = sphi 0, %s140
      %s142 = sphi 0, %s140
      %s143 = sphi 0, %s142
      %s157 = sphi 0, %s143
      %s161 = sphi 0, %s161
      %s163 = sphi 0, %s161
      %s164 = sphi 0, %s163
      %s178 = sphi 0, %s164
      %s184 = sphi 0, %s186
      %s187 = sphi 0, %s184
      %s188 = sphi 0, %s187
      %s204 = sphi 0, %s188
    $region4: #{tpu_custom_call.1} parent=1 // loop_header_branch
      %25 = sbr.rel (%p23) target = $region8
    $region5: #{tpu_custom_call.1} parent=1 // loop_body
      %s27 = ssub.s32 %s22, 1
      %s28 = ssub.s32 %s22, 2
      %s29 = sadd.s32 %s22, 1
      %s30 = ssub.s32 %s22, %s29
      %p31 = scmp.eq.s32.totalorder %s30, 0
      %s33 = sadd.s32 %s32, 1
      %s34 = scalar_select %p31, %s32, %s33
      %p37 = pneg %p31
      %p38 = scmp.eq.s32.totalorder %s22, 1
      %p39 = por %p37, %p38
      %p40 = scmp.ne.s32.totalorder %s32, %s35
      %p41 = scmp.eq.s32.totalorder %s22, 0
      %p42 = por %p40, %p41
      %p43 = scmp.ne.s32.totalorder %s32, %s35
      %p44 = scmp.eq.s32.totalorder %s27, 1
      %p45 = por %p43, %p44
      %p46 = scmp.ne.s32.totalorder %s35, %s36
      %p47 = scmp.eq.s32.totalorder %s27, 0
      %p48 = por %p46, %p47
      %p49 = scmp.ne.s32.totalorder %s35, %s36
      %p50 = scmp.eq.s32.totalorder %s28, 1
      %p51 = por %p49, %p50
      %p53 = scmp.ne.s32.totalorder %s36, %s52
      %p54 = scmp.eq.s32.totalorder %s28, 0
      %p55 = por %p53, %p54
      %s57 = sadd.s32 %s56, 1
      %p60 = scmp.eq.s32.totalorder %s22, 1
      %p61 = scmp.ne.s32.totalorder %s56, %s58
      %p62 = scmp.eq.s32.totalorder %s22, 0
      %p63 = por %p61, %p62
      %p64 = scmp.ne.s32.totalorder %s56, %s58
      %p65 = scmp.eq.s32.totalorder %s27, 1
      %p66 = por %p64, %p65
      %p67 = scmp.ne.s32.totalorder %s58, %s59
      %p68 = scmp.eq.s32.totalorder %s27, 0
      %p69 = por %p67, %p68
      %p70 = scmp.ne.s32.totalorder %s58, %s59
      %p71 = scmp.eq.s32.totalorder %s28, 1
      %p72 = por %p70, %p71
      %p74 = scmp.ne.s32.totalorder %s59, %s73
      %p75 = scmp.eq.s32.totalorder %s28, 0
      %p76 = por %p74, %p75
      %s78 = sadd.s32 %s77, 1
      %p81 = scmp.eq.s32.totalorder %s22, 1
      %p82 = scmp.ne.s32.totalorder %s77, %s79
      %p83 = scmp.eq.s32.totalorder %s22, 0
      %p84 = por %p82, %p83
      %p85 = scmp.ne.s32.totalorder %s77, %s79
      %p86 = scmp.eq.s32.totalorder %s27, 1
      %p87 = por %p85, %p86
      %p88 = scmp.ne.s32.totalorder %s79, %s80
      %p89 = scmp.eq.s32.totalorder %s27, 0
      %p90 = por %p88, %p89
      %p91 = scmp.ne.s32.totalorder %s79, %s80
      %p92 = scmp.eq.s32.totalorder %s28, 1
      %p93 = por %p91, %p92
      %p95 = scmp.ne.s32.totalorder %s80, %s94
      %p96 = scmp.eq.s32.totalorder %s28, 0
      %p97 = por %p95, %p96
      %s99 = sadd.s32 %s98, 1
      %p102 = scmp.eq.s32.totalorder %s22, 1
      %p103 = scmp.ne.s32.totalorder %s98, %s100
      %p104 = scmp.eq.s32.totalorder %s22, 0
      %p105 = por %p103, %p104
      %p106 = scmp.ne.s32.totalorder %s98, %s100
      %p107 = scmp.eq.s32.totalorder %s27, 1
      %p108 = por %p106, %p107
      %p109 = scmp.ne.s32.totalorder %s100, %s101
      %p110 = scmp.eq.s32.totalorder %s27, 0
      %p111 = por %p109, %p110
      %p112 = scmp.ne.s32.totalorder %s100, %s101
      %p113 = scmp.eq.s32.totalorder %s28, 1
      %p114 = por %p112, %p113
      %p116 = scmp.ne.s32.totalorder %s101, %s115
      %p117 = scmp.eq.s32.totalorder %s28, 0
      %p118 = por %p116, %p117
      %s120 = sadd.s32 %s119, 1
      %p123 = scmp.eq.s32.totalorder %s22, 1
      %p124 = scmp.ne.s32.totalorder %s119, %s121
      %p125 = scmp.eq.s32.totalorder %s22, 0
      %p126 = por %p124, %p125
      %p127 = scmp.ne.s32.totalorder %s119, %s121
      %p128 = scmp.eq.s32.totalorder %s27, 1
      %p129 = por %p127, %p128
      %p130 = scmp.ne.s32.totalorder %s121, %s122
      %p131 = scmp.eq.s32.totalorder %s27, 0
      %p132 = por %p130, %p131
      %p133 = scmp.ne.s32.totalorder %s121, %s122
      %p134 = scmp.eq.s32.totalorder %s28, 1
      %p135 = por %p133, %p134
      %p137 = scmp.ne.s32.totalorder %s122, %s136
      %p138 = scmp.eq.s32.totalorder %s28, 0
      %p139 = por %p137, %p138
      %s141 = sadd.s32 %s140, 1
      %p144 = scmp.eq.s32.totalorder %s22, 1
      %p145 = scmp.ne.s32.totalorder %s140, %s142
      %p146 = scmp.eq.s32.totalorder %s22, 0
      %p147 = por %p145, %p146
      %p148 = scmp.ne.s32.totalorder %s140, %s142
      %p149 = scmp.eq.s32.totalorder %s27, 1
      %p150 = por %p148, %p149
      %p151 = scmp.ne.s32.totalorder %s142, %s143
      %p152 = scmp.eq.s32.totalorder %s27, 0
      %p153 = por %p151, %p152
      %p154 = scmp.ne.s32.totalorder %s142, %s143
      %p155 = scmp.eq.s32.totalorder %s28, 1
      %p156 = por %p154, %p155
      %p158 = scmp.ne.s32.totalorder %s143, %s157
      %p159 = scmp.eq.s32.totalorder %s28, 0
      %p160 = por %p158, %p159
      %s162 = sadd.s32 %s161, 1
      %p165 = scmp.eq.s32.totalorder %s22, 1
      %p166 = scmp.ne.s32.totalorder %s161, %s163
      %p167 = scmp.eq.s32.totalorder %s22, 0
      %p168 = por %p166, %p167
      %p169 = scmp.ne.s32.totalorder %s161, %s163
      %p170 = scmp.eq.s32.totalorder %s27, 1
      %p171 = por %p169, %p170
      %p172 = scmp.ne.s32.totalorder %s163, %s164
      %p173 = scmp.eq.s32.totalorder %s27, 0
      %p174 = por %p172, %p173
      %p175 = scmp.ne.s32.totalorder %s163, %s164
      %p176 = scmp.eq.s32.totalorder %s28, 1
      %p177 = por %p175, %p176
      %p179 = scmp.ne.s32.totalorder %s164, %s178
      %p180 = scmp.eq.s32.totalorder %s28, 0
      %p181 = por %p179, %p180
      %s182 = ssub.s32 %s22, %s29
      %p183 = scmp.eq.s32.totalorder %s182, 0
      %s185 = sadd.s32 %s184, 1
      %s186 = scalar_select %p183, %s184, %s185
      %p189 = pneg %p183
      %p190 = scmp.eq.s32.totalorder %s22, 1
      %p191 = por %p189, %p190
      %p192 = scmp.ne.s32.totalorder %s184, %s187
      %p193 = scmp.eq.s32.totalorder %s22, 0
      %p194 = por %p192, %p193
      %p195 = scmp.ne.s32.totalorder %s184, %s187
      %p196 = scmp.eq.s32.totalorder %s27, 1
      %p197 = por %p195, %p196
      %p198 = scmp.ne.s32.totalorder %s187, %s188
      %p199 = scmp.eq.s32.totalorder %s27, 0
      %p200 = por %p198, %p199
      %p201 = scmp.ne.s32.totalorder %s187, %s188
      %p202 = scmp.eq.s32.totalorder %s28, 1
      %p203 = por %p201, %p202
      %p205 = scmp.ne.s32.totalorder %s188, %s204
      %p206 = scmp.eq.s32.totalorder %s28, 0
      %p207 = por %p205, %p206
      %p208 = scmp.le.s32.totalorder 1, %s22
      %p209 = scmp.lt.s32.totalorder %s22, 3
      %p210 = pnand %p208, %p209
      %p211 = pneg %p210
      // Predicated region
      $region9: #{tpu_custom_call.1} parent=5 // pred_check
        _
      $region10: #{tpu_custom_call.1} parent=5 // pred_check_branch
        %213 = sbr.rel (%p210) target = $region12
      $region11: #{tpu_custom_call.1} parent=5 // pred_region
        %s214 = ssub.s32 %s22, 1
        // Predicated region
        $region13: #{tpu_custom_call.1} parent=11 // pred_check
          %p215 = pneg %p69
        $region14: #{tpu_custom_call.1} parent=11 // pred_check_branch
          %217 = sbr.rel (%p215) target = $region16
        $region15: #{tpu_custom_call.1} parent=11 // pred_region
          %s219 = ssub.s32 65536, 65536
          %220 = vsyncadd [#allocation6], %s219
          %s221 = sshll.u32 [#allocation5], 4
          %s222 = int_to_ptr.vmem [resolvable:$true] %s221
          %227 = dma.hbm_to_vmem [thread:$0]  %s1, 65536, %s222, [#allocation6], 128, 128, 8
        $region16: #{tpu_custom_call.1} parent=11 // pred_fallthru
          _
        // Predicated region
        $region17: #{tpu_custom_call.1} parent=11 // pred_check
          %p228 = pneg %p90
        $region18: #{tpu_custom_call.1} parent=11 // pred_check_branch
          %230 = sbr.rel (%p228) target = $region20
        $region19: #{tpu_custom_call.1} parent=11 // pred_region
          %s232 = ssub.s32 32, 32
          %233 = vsyncadd [#allocation6], %s232
          %s235 = sshll.u32 [#allocation7], 4
          %s236 = int_to_ptr.vmem [resolvable:$true] %s235
          %238 = dma.hbm_to_vmem [thread:$0]  %s2, 32, %s236, [#allocation6]
        $region20: #{tpu_custom_call.1} parent=11 // pred_fallthru
          _
        // Predicated region
        $region21: #{tpu_custom_call.1} parent=11 // pred_check
          %p239 = pneg %p111
        $region22: #{tpu_custom_call.1} parent=11 // pred_check_branch
          %241 = sbr.rel (%p239) target = $region24
        $region23: #{tpu_custom_call.1} parent=11 // pred_region
          %s243 = ssub.s32 4096, 4096
          %244 = vsyncadd [#allocation9], %s243
          %s245 = sshll.u32 [#allocation8], 4
          %s246 = int_to_ptr.vmem [resolvable:$true] %s245
          %251 = dma.hbm_to_vmem [thread:$0]  %s3, 4096, %s246, [#allocation9], 128, 128, 8
        $region24: #{tpu_custom_call.1} parent=11 // pred_fallthru
          _
        // Predicated region
        $region25: #{tpu_custom_call.1} parent=11 // pred_check
          %p252 = pneg %p132
        $region26: #{tpu_custom_call.1} parent=11 // pred_check_branch
          %254 = sbr.rel (%p252) target = $region28
        $region27: #{tpu_custom_call.1} parent=11 // pred_region
          %s256 = ssub.s32 32, 32
          %257 = vsyncadd [#allocation9], %s256
          %s259 = sshll.u32 [#allocation10], 4
          %s260 = int_to_ptr.vmem [resolvable:$true] %s259
          %262 = dma.hbm_to_vmem [thread:$0]  %s4, 32, %s260, [#allocation9]
        $region28: #{tpu_custom_call.1} parent=11 // pred_fallthru
          _
        // Predicated region
        $region29: #{tpu_custom_call.1} parent=11 // pred_check
          %p263 = pneg %p153
        $region30: #{tpu_custom_call.1} parent=11 // pred_check_branch
          %265 = sbr.rel (%p263) target = $region32
        $region31: #{tpu_custom_call.1} parent=11 // pred_region
          %s267 = ssub.s32 2048, 2048
          %268 = vsyncadd [#allocation12], %s267
          %s269 = sshll.u32 [#allocation11], 4
          %s270 = int_to_ptr.vmem [resolvable:$true] %s269
          %275 = dma.hbm_to_vmem [thread:$0]  %s5, 2048, %s270, [#allocation12], 64, 64, 4
        $region32: #{tpu_custom_call.1} parent=11 // pred_fallthru
          _
        // Predicated region
        $region33: #{tpu_custom_call.1} parent=11 // pred_check
          %p276 = pneg %p174
        $region34: #{tpu_custom_call.1} parent=11 // pred_check_branch
          %278 = sbr.rel (%p276) target = $region36
        $region35: #{tpu_custom_call.1} parent=11 // pred_region
          %s280 = ssub.s32 16, 16
          %281 = vsyncadd [#allocation12], %s280
          %s283 = sshll.u32 [#allocation13], 4
          %s284 = int_to_ptr.vmem [resolvable:$true] %s283
          %286 = dma.hbm_to_vmem [thread:$0]  %s6, 16, %s284, [#allocation12]
        $region36: #{tpu_custom_call.1} parent=11 // pred_fallthru
          _
      $region12: #{tpu_custom_call.1} parent=5 // pred_fallthru
        _
      %p287 = scmp.lt.s32.totalorder %s22, 2
      // Predicated region
      $region37: #{tpu_custom_call.1} parent=5 // pred_check
        %p288 = pneg %p287
      $region38: #{tpu_custom_call.1} parent=5 // pred_check_branch
        %290 = sbr.rel (%p288) target = $region40
      $region39: #{tpu_custom_call.1} parent=5 // pred_region
        // Predicated region
        $region41: #{tpu_custom_call.1} parent=39 // pred_check
          %p291 = pneg %p42
        $region42: #{tpu_custom_call.1} parent=39 // pred_check_branch
          %293 = sbr.rel (%p291) target = $region44
        $region43: #{tpu_custom_call.1} parent=39 // pred_region
          %s294 = sand.u32 %s32, 1
          %s295 = scalar_lea.sflag [#allocation3], %s294
          %s296 = sand.u32 %s32, 1
          %s297 = smul.addr %s296, 128
          %s298 = scalar_lea.vmem [#allocation2], %s297
          %s300 = ssub.s32 2048, 2048
          %301 = vsyncadd %s295, %s300
          %s302 = smul.addr %s22, 32
          %s303 = smul.addr %s302, 64
          %s304 = scalar_lea.hbm %s0, %s303
          %s306 = sshll.u32 %s298, 4
          %s307 = int_to_ptr.vmem [resolvable:$true] %s306
          %309 = dma.hbm_to_vmem [thread:$0]  %s304, 2048, %s307, %s295
        $region44: #{tpu_custom_call.1} parent=39 // pred_fallthru
          _
      $region40: #{tpu_custom_call.1} parent=5 // pred_fallthru
        _
      %p310 = scmp.le.s32.totalorder 1, %s22
      %p311 = scmp.lt.s32.totalorder %s22, 3
      %p312 = pnand %p310, %p311
      %p313 = pneg %p312
      // Predicated region
      $region45: #{tpu_custom_call.1} parent=5 // pred_check
        _
      $region46: #{tpu_custom_call.1} parent=5 // pred_check_branch
        %315 = sbr.rel (%p312) target = $region48
      $region47: #{tpu_custom_call.1} parent=5 // pred_region
        %s316 = ssub.s32 %s22, 1
        %s317 = sand.u32 %s35, 1
        %s318 = scalar_lea.sflag [#allocation3], %s317
        %s319 = sand.u32 %s35, 1
        %s320 = smul.addr %s319, 128
        %s321 = scalar_lea.vmem [#allocation2], %s320
        // Predicated region
        $region49: #{tpu_custom_call.1} parent=47 // pred_check
          %p322 = pneg %p48
        $region50: #{tpu_custom_call.1} parent=47 // pred_check_branch
          %324 = sbr.rel (%p322) target = $region52
        $region51: #{tpu_custom_call.1} parent=47 // pred_region
          %325 = dma.done %s318, 2048
        $region52: #{tpu_custom_call.1} parent=47 // pred_fallthru
          _
        // Predicated region
        $region53: #{tpu_custom_call.1} parent=47 // pred_check
          %p326 = pneg %p69
        $region54: #{tpu_custom_call.1} parent=47 // pred_check_branch
          %328 = sbr.rel (%p326) target = $region56
        $region55: #{tpu_custom_call.1} parent=47 // pred_region
          %329 = dma.done [#allocation6], 65536
        $region56: #{tpu_custom_call.1} parent=47 // pred_fallthru
          _
        // Predicated region
        $region57: #{tpu_custom_call.1} parent=47 // pred_check
          %p330 = pneg %p90
        $region58: #{tpu_custom_call.1} parent=47 // pred_check_branch
          %332 = sbr.rel (%p330) target = $region60
        $region59: #{tpu_custom_call.1} parent=47 // pred_region
          %333 = dma.done [#allocation6], 32
        $region60: #{tpu_custom_call.1} parent=47 // pred_fallthru
          _
        // Predicated region
        $region61: #{tpu_custom_call.1} parent=47 // pred_check
          %p334 = pneg %p111
        $region62: #{tpu_custom_call.1} parent=47 // pred_check_branch
          %336 = sbr.rel (%p334) target = $region64
        $region63: #{tpu_custom_call.1} parent=47 // pred_region
          %337 = dma.done [#allocation9], 4096
        $region64: #{tpu_custom_call.1} parent=47 // pred_fallthru
          _
        // Predicated region
        $region65: #{tpu_custom_call.1} parent=47 // pred_check
          %p338 = pneg %p132
        $region66: #{tpu_custom_call.1} parent=47 // pred_check_branch
          %340 = sbr.rel (%p338) target = $region68
        $region67: #{tpu_custom_call.1} parent=47 // pred_region
          %341 = dma.done [#allocation9], 32
        $region68: #{tpu_custom_call.1} parent=47 // pred_fallthru
          _
        // Predicated region
        $region69: #{tpu_custom_call.1} parent=47 // pred_check
          %p342 = pneg %p153
        $region70: #{tpu_custom_call.1} parent=47 // pred_check_branch
          %344 = sbr.rel (%p342) target = $region72
        $region71: #{tpu_custom_call.1} parent=47 // pred_region
          %345 = dma.done [#allocation12], 2048
        $region72: #{tpu_custom_call.1} parent=47 // pred_fallthru
          _
        // Predicated region
        $region73: #{tpu_custom_call.1} parent=47 // pred_check
          %p346 = pneg %p174
        $region74: #{tpu_custom_call.1} parent=47 // pred_check_branch
          %348 = sbr.rel (%p346) target = $region76
        $region75: #{tpu_custom_call.1} parent=47 // pred_region
          %349 = dma.done [#allocation12], 16
        $region76: #{tpu_custom_call.1} parent=47 // pred_fallthru
          _
        %s350 = sand.u32 %s35, 1
        %s351 = scalar_lea.sflag [#allocation3], %s350
        %s352 = sand.u32 %s35, 1
        %s353 = smul.addr %s352, 128
        %s354 = scalar_lea.vmem [#allocation2], %s353
        %p355 = pneg %p48
        %p356 = pneg %p45
        %p357 = pneg %p69
        %p358 = pneg %p66
        %p359 = pneg %p90
        %p360 = pneg %p87
        %p361 = pneg %p111
        %p362 = pneg %p108
        %p363 = pneg %p132
        %p364 = pneg %p129
        %p365 = pneg %p153
        %p366 = pneg %p150
        %p367 = pneg %p174
        %p368 = pneg %p171
        %p369 = pneg %p200
        %p370 = pneg %p197
        %s371 = sand.u32 %s187, 1
        %s372 = scalar_lea.sflag [#allocation4], %s371
        %s373 = sand.u32 %s187, 1
        %s374 = smul.addr %s373, 8
        %s375 = scalar_lea.vmem [#allocation14], %s374
        %v377 = vld [vmem:[%s321] sm:$0xff]
        %v378 = vld [vmem:[%s321 + $0x8] sm:$0xff]
        %v379 = vld [vmem:[%s321 + $0x10] sm:$0xff]
        %v380 = vld [vmem:[%s321 + $0x18] sm:$0xff]
        %v381 = vld [vmem:[%s321 + $0x20] sm:$0xff]
        %v382 = vld [vmem:[%s321 + $0x28] sm:$0xff]
        %v383 = vld [vmem:[%s321 + $0x30] sm:$0xff]
        %v384 = vld [vmem:[%s321 + $0x38] sm:$0xff]
        %v385 = vld [vmem:[%s321 + $0x40] sm:$0xff]
        %v386 = vld [vmem:[%s321 + $0x48] sm:$0xff]
        %v387 = vld [vmem:[%s321 + $0x50] sm:$0xff]
        %v388 = vld [vmem:[%s321 + $0x58] sm:$0xff]
        %v389 = vld [vmem:[%s321 + $0x60] sm:$0xff]
        %v390 = vld [vmem:[%s321 + $0x68] sm:$0xff]
        %v391 = vld [vmem:[%s321 + $0x70] sm:$0xff]
        %v392 = vld [vmem:[%s321 + $0x78] sm:$0xff]
        %v393 = vld [vmem:[#allocation5] sm:$0xff]
        %v394 = vld [vmem:[#allocation5 + $0x8] sm:$0xff]
        %v395 = vld [vmem:[#allocation5 + $0x10] sm:$0xff]
        %v396 = vld [vmem:[#allocation5 + $0x18] sm:$0xff]
        %v397 = vld [vmem:[#allocation5 + $0x20] sm:$0xff]
        %v398 = vld [vmem:[#allocation5 + $0x28] sm:$0xff]
        %v399 = vld [vmem:[#allocation5 + $0x30] sm:$0xff]
        %v400 = vld [vmem:[#allocation5 + $0x38] sm:$0xff]
        %v401 = vld [vmem:[#allocation5 + $0x40] sm:$0xff]
        %v402 = vld [vmem:[#allocation5 + $0x48] sm:$0xff]
        %v403 = vld [vmem:[#allocation5 + $0x50] sm:$0xff]
        %v404 = vld [vmem:[#allocation5 + $0x58] sm:$0xff]
        %v405 = vld [vmem:[#allocation5 + $0x60] sm:$0xff]
        %v406 = vld [vmem:[#allocation5 + $0x68] sm:$0xff]
        %v407 = vld [vmem:[#allocation5 + $0x70] sm:$0xff]
        %v408 = vld [vmem:[#allocation5 + $0x78] sm:$0xff]
        %v409 = vld [vmem:[#allocation5 + $0x80] sm:$0xff]
        %v410 = vld [vmem:[#allocation5 + $0x88] sm:$0xff]
        %v411 = vld [vmem:[#allocation5 + $0x90] sm:$0xff]
        %v412 = vld [vmem:[#allocation5 + $0x98] sm:$0xff]
        %v413 = vld [vmem:[#allocation5 + $0xa0] sm:$0xff]
        %v414 = vld [vmem:[#allocation5 + $0xa8] sm:$0xff]
        %v415 = vld [vmem:[#allocation5 + $0xb0] sm:$0xff]
        %v416 = vld [vmem:[#allocation5 + $0xb8] sm:$0xff]
        %v417 = vld [vmem:[#allocation5 + $0xc0] sm:$0xff]
        %v418 = vld [vmem:[#allocation5 + $0xc8] sm:$0xff]
        %v419 = vld [vmem:[#allocation5 + $0xd0] sm:$0xff]
        %v420 = vld [vmem:[#allocation5 + $0xd8] sm:$0xff]
        %v421 = vld [vmem:[#allocation5 + $0xe0] sm:$0xff]
        %v422 = vld [vmem:[#allocation5 + $0xe8] sm:$0xff]
        %v423 = vld [vmem:[#allocation5 + $0xf0] sm:$0xff]
        %v424 = vld [vmem:[#allocation5 + $0xf8] sm:$0xff]
        %v425 = vld [vmem:[#allocation5 + $0x100] sm:$0xff]
        %v426 = vld [vmem:[#allocation5 + $0x108] sm:$0xff]
        %v427 = vld [vmem:[#allocation5 + $0x110] sm:$0xff]
        %v428 = vld [vmem:[#allocation5 + $0x118] sm:$0xff]
        %v429 = vld [vmem:[#allocation5 + $0x120] sm:$0xff]
        %v430 = vld [vmem:[#allocation5 + $0x128] sm:$0xff]
        %v431 = vld [vmem:[#allocation5 + $0x130] sm:$0xff]
        %v432 = vld [vmem:[#allocation5 + $0x138] sm:$0xff]
        %v433 = vld [vmem:[#allocation5 + $0x140] sm:$0xff]
        %v434 = vld [vmem:[#allocation5 + $0x148] sm:$0xff]
        %v435 = vld [vmem:[#allocation5 + $0x150] sm:$0xff]
        %v436 = vld [vmem:[#allocation5 + $0x158] sm:$0xff]
        %v437 = vld [vmem:[#allocation5 + $0x160] sm:$0xff]
        %v438 = vld [vmem:[#allocation5 + $0x168] sm:$0xff]
        %v439 = vld [vmem:[#allocation5 + $0x170] sm:$0xff]
        %v440 = vld [vmem:[#allocation5 + $0x178] sm:$0xff]
        %v441 = vld [vmem:[#allocation5 + $0x180] sm:$0xff]
        %v442 = vld [vmem:[#allocation5 + $0x188] sm:$0xff]
        %v443 = vld [vmem:[#allocation5 + $0x190] sm:$0xff]
        %v444 = vld [vmem:[#allocation5 + $0x198] sm:$0xff]
        %v445 = vld [vmem:[#allocation5 + $0x1a0] sm:$0xff]
        %v446 = vld [vmem:[#allocation5 + $0x1a8] sm:$0xff]
        %v447 = vld [vmem:[#allocation5 + $0x1b0] sm:$0xff]
        %v448 = vld [vmem:[#allocation5 + $0x1b8] sm:$0xff]
        %v449 = vld [vmem:[#allocation5 + $0x1c0] sm:$0xff]
        %v450 = vld [vmem:[#allocation5 + $0x1c8] sm:$0xff]
        %v451 = vld [vmem:[#allocation5 + $0x1d0] sm:$0xff]
        %v452 = vld [vmem:[#allocation5 + $0x1d8] sm:$0xff]
        %v453 = vld [vmem:[#allocation5 + $0x1e0] sm:$0xff]
        %v454 = vld [vmem:[#allocation5 + $0x1e8] sm:$0xff]
        %v455 = vld [vmem:[#allocation5 + $0x1f0] sm:$0xff]
        %v456 = vld [vmem:[#allocation5 + $0x1f8] sm:$0xff]
        %v457 = vld [vmem:[#allocation5 + $0x200] sm:$0xff]
        %v458 = vld [vmem:[#allocation5 + $0x208] sm:$0xff]
        %v459 = vld [vmem:[#allocation5 + $0x210] sm:$0xff]
        %v460 = vld [vmem:[#allocation5 + $0x218] sm:$0xff]
        %v461 = vld [vmem:[#allocation5 + $0x220] sm:$0xff]
        %v462 = vld [vmem:[#allocation5 + $0x228] sm:$0xff]
        %v463 = vld [vmem:[#allocation5 + $0x230] sm:$0xff]
        %v464 = vld [vmem:[#allocation5 + $0x238] sm:$0xff]
        %v465 = vld [vmem:[#allocation5 + $0x240] sm:$0xff]
        %v466 = vld [vmem:[#allocation5 + $0x248] sm:$0xff]
        %v467 = vld [vmem:[#allocation5 + $0x250] sm:$0xff]
        %v468 = vld [vmem:[#allocation5 + $0x258] sm:$0xff]
        %v469 = vld [vmem:[#allocation5 + $0x260] sm:$0xff]
        %v470 = vld [vmem:[#allocation5 + $0x268] sm:$0xff]
        %v471 = vld [vmem:[#allocation5 + $0x270] sm:$0xff]
        %v472 = vld [vmem:[#allocation5 + $0x278] sm:$0xff]
        %v473 = vld [vmem:[#allocation5 + $0x280] sm:$0xff]
        %v474 = vld [vmem:[#allocation5 + $0x288] sm:$0xff]
        %v475 = vld [vmem:[#allocation5 + $0x290] sm:$0xff]
        %v476 = vld [vmem:[#allocation5 + $0x298] sm:$0xff]
        %v477 = vld [vmem:[#allocation5 + $0x2a0] sm:$0xff]
        %v478 = vld [vmem:[#allocation5 + $0x2a8] sm:$0xff]
        %v479 = vld [vmem:[#allocation5 + $0x2b0] sm:$0xff]
        %v480 = vld [vmem:[#allocation5 + $0x2b8] sm:$0xff]
        %v481 = vld [vmem:[#allocation5 + $0x2c0] sm:$0xff]
        %v482 = vld [vmem:[#allocation5 + $0x2c8] sm:$0xff]
        %v483 = vld [vmem:[#allocation5 + $0x2d0] sm:$0xff]
        %v484 = vld [vmem:[#allocation5 + $0x2d8] sm:$0xff]
        %v485 = vld [vmem:[#allocation5 + $0x2e0] sm:$0xff]
        %v486 = vld [vmem:[#allocation5 + $0x2e8] sm:$0xff]
        %v487 = vld [vmem:[#allocation5 + $0x2f0] sm:$0xff]
        %v488 = vld [vmem:[#allocation5 + $0x2f8] sm:$0xff]
        %v489 = vld [vmem:[#allocation5 + $0x300] sm:$0xff]
        %v490 = vld [vmem:[#allocation5 + $0x308] sm:$0xff]
        %v491 = vld [vmem:[#allocation5 + $0x310] sm:$0xff]
        %v492 = vld [vmem:[#allocation5 + $0x318] sm:$0xff]
        %v493 = vld [vmem:[#allocation5 + $0x320] sm:$0xff]
        %v494 = vld [vmem:[#allocation5 + $0x328] sm:$0xff]
        %v495 = vld [vmem:[#allocation5 + $0x330] sm:$0xff]
        %v496 = vld [vmem:[#allocation5 + $0x338] sm:$0xff]
        %v497 = vld [vmem:[#allocation5 + $0x340] sm:$0xff]
        %v498 = vld [vmem:[#allocation5 + $0x348] sm:$0xff]
        %v499 = vld [vmem:[#allocation5 + $0x350] sm:$0xff]
        %v500 = vld [vmem:[#allocation5 + $0x358] sm:$0xff]
        %v501 = vld [vmem:[#allocation5 + $0x360] sm:$0xff]
        %v502 = vld [vmem:[#allocation5 + $0x368] sm:$0xff]
        %v503 = vld [vmem:[#allocation5 + $0x370] sm:$0xff]
        %v504 = vld [vmem:[#allocation5 + $0x378] sm:$0xff]
        %v505 = vld [vmem:[#allocation5 + $0x380] sm:$0xff]
        %v506 = vld [vmem:[#allocation5 + $0x388] sm:$0xff]
        %v507 = vld [vmem:[#allocation5 + $0x390] sm:$0xff]
        %v508 = vld [vmem:[#allocation5 + $0x398] sm:$0xff]
        %v509 = vld [vmem:[#allocation5 + $0x3a0] sm:$0xff]
        %v510 = vld [vmem:[#allocation5 + $0x3a8] sm:$0xff]
        %v511 = vld [vmem:[#allocation5 + $0x3b0] sm:$0xff]
        %v512 = vld [vmem:[#allocation5 + $0x3b8] sm:$0xff]
        %v513 = vld [vmem:[#allocation5 + $0x3c0] sm:$0xff]
        %v514 = vld [vmem:[#allocation5 + $0x3c8] sm:$0xff]
        %v515 = vld [vmem:[#allocation5 + $0x3d0] sm:$0xff]
        %v516 = vld [vmem:[#allocation5 + $0x3d8] sm:$0xff]
        %v517 = vld [vmem:[#allocation5 + $0x3e0] sm:$0xff]
        %v518 = vld [vmem:[#allocation5 + $0x3e8] sm:$0xff]
        %v519 = vld [vmem:[#allocation5 + $0x3f0] sm:$0xff]
        %v520 = vld [vmem:[#allocation5 + $0x3f8] sm:$0xff]
        %v521 = vld [vmem:[#allocation5 + $0x400] sm:$0xff]
        %v522 = vld [vmem:[#allocation5 + $0x408] sm:$0xff]
        %v523 = vld [vmem:[#allocation5 + $0x410] sm:$0xff]
        %v524 = vld [vmem:[#allocation5 + $0x418] sm:$0xff]
        %v525 = vld [vmem:[#allocation5 + $0x420] sm:$0xff]
        %v526 = vld [vmem:[#allocation5 + $0x428] sm:$0xff]
        %v527 = vld [vmem:[#allocation5 + $0x430] sm:$0xff]
        %v528 = vld [vmem:[#allocation5 + $0x438] sm:$0xff]
        %v529 = vld [vmem:[#allocation5 + $0x440] sm:$0xff]
        %v530 = vld [vmem:[#allocation5 + $0x448] sm:$0xff]
        %v531 = vld [vmem:[#allocation5 + $0x450] sm:$0xff]
        %v532 = vld [vmem:[#allocation5 + $0x458] sm:$0xff]
        %v533 = vld [vmem:[#allocation5 + $0x460] sm:$0xff]
        %v534 = vld [vmem:[#allocation5 + $0x468] sm:$0xff]
        %v535 = vld [vmem:[#allocation5 + $0x470] sm:$0xff]
        %v536 = vld [vmem:[#allocation5 + $0x478] sm:$0xff]
        %v537 = vld [vmem:[#allocation5 + $0x480] sm:$0xff]
        %v538 = vld [vmem:[#allocation5 + $0x488] sm:$0xff]
        %v539 = vld [vmem:[#allocation5 + $0x490] sm:$0xff]
        %v540 = vld [vmem:[#allocation5 + $0x498] sm:$0xff]
        %v541 = vld [vmem:[#allocation5 + $0x4a0] sm:$0xff]
        %v542 = vld [vmem:[#allocation5 + $0x4a8] sm:$0xff]
        %v543 = vld [vmem:[#allocation5 + $0x4b0] sm:$0xff]
        %v544 = vld [vmem:[#allocation5 + $0x4b8] sm:$0xff]
        %v545 = vld [vmem:[#allocation5 + $0x4c0] sm:$0xff]
        %v546 = vld [vmem:[#allocation5 + $0x4c8] sm:$0xff]
        %v547 = vld [vmem:[#allocation5 + $0x4d0] sm:$0xff]
        %v548 = vld [vmem:[#allocation5 + $0x4d8] sm:$0xff]
        %v549 = vld [vmem:[#allocation5 + $0x4e0] sm:$0xff]
        %v550 = vld [vmem:[#allocation5 + $0x4e8] sm:$0xff]
        %v551 = vld [vmem:[#allocation5 + $0x4f0] sm:$0xff]
        %v552 = vld [vmem:[#allocation5 + $0x4f8] sm:$0xff]
        %v553 = vld [vmem:[#allocation5 + $0x500] sm:$0xff]
        %v554 = vld [vmem:[#allocation5 + $0x508] sm:$0xff]
        %v555 = vld [vmem:[#allocation5 + $0x510] sm:$0xff]
        %v556 = vld [vmem:[#allocation5 + $0x518] sm:$0xff]
        %v557 = vld [vmem:[#allocation5 + $0x520] sm:$0xff]
        %v558 = vld [vmem:[#allocation5 + $0x528] sm:$0xff]
        %v559 = vld [vmem:[#allocation5 + $0x530] sm:$0xff]
        %v560 = vld [vmem:[#allocation5 + $0x538] sm:$0xff]
        %v561 = vld [vmem:[#allocation5 + $0x540] sm:$0xff]
        %v562 = vld [vmem:[#allocation5 + $0x548] sm:$0xff]
        %v563 = vld [vmem:[#allocation5 + $0x550] sm:$0xff]
        %v564 = vld [vmem:[#allocation5 + $0x558] sm:$0xff]
        %v565 = vld [vmem:[#allocation5 + $0x560] sm:$0xff]
        %v566 = vld [vmem:[#allocation5 + $0x568] sm:$0xff]
        %v567 = vld [vmem:[#allocation5 + $0x570] sm:$0xff]
        %v568 = vld [vmem:[#allocation5 + $0x578] sm:$0xff]
        %v569 = vld [vmem:[#allocation5 + $0x580] sm:$0xff]
        %v570 = vld [vmem:[#allocation5 + $0x588] sm:$0xff]
        %v571 = vld [vmem:[#allocation5 + $0x590] sm:$0xff]
        %v572 = vld [vmem:[#allocation5 + $0x598] sm:$0xff]
        %v573 = vld [vmem:[#allocation5 + $0x5a0] sm:$0xff]
        %v574 = vld [vmem:[#allocation5 + $0x5a8] sm:$0xff]
        %v575 = vld [vmem:[#allocation5 + $0x5b0] sm:$0xff]
        %v576 = vld [vmem:[#allocation5 + $0x5b8] sm:$0xff]
        %v577 = vld [vmem:[#allocation5 + $0x5c0] sm:$0xff]
        %v578 = vld [vmem:[#allocation5 + $0x5c8] sm:$0xff]
        %v579 = vld [vmem:[#allocation5 + $0x5d0] sm:$0xff]
        %v580 = vld [vmem:[#allocation5 + $0x5d8] sm:$0xff]
        %v581 = vld [vmem:[#allocation5 + $0x5e0] sm:$0xff]
        %v582 = vld [vmem:[#allocation5 + $0x5e8] sm:$0xff]
        %v583 = vld [vmem:[#allocation5 + $0x5f0] sm:$0xff]
        %v584 = vld [vmem:[#allocation5 + $0x5f8] sm:$0xff]
        %v585 = vld [vmem:[#allocation5 + $0x600] sm:$0xff]
        %v586 = vld [vmem:[#allocation5 + $0x608] sm:$0xff]
        %v587 = vld [vmem:[#allocation5 + $0x610] sm:$0xff]
        %v588 = vld [vmem:[#allocation5 + $0x618] sm:$0xff]
        %v589 = vld [vmem:[#allocation5 + $0x620] sm:$0xff]
        %v590 = vld [vmem:[#allocation5 + $0x628] sm:$0xff]
        %v591 = vld [vmem:[#allocation5 + $0x630] sm:$0xff]
        %v592 = vld [vmem:[#allocation5 + $0x638] sm:$0xff]
        %v593 = vld [vmem:[#allocation5 + $0x640] sm:$0xff]
        %v594 = vld [vmem:[#allocation5 + $0x648] sm:$0xff]
        %v595 = vld [vmem:[#allocation5 + $0x650] sm:$0xff]
        %v596 = vld [vmem:[#allocation5 + $0x658] sm:$0xff]
        %v597 = vld [vmem:[#allocation5 + $0x660] sm:$0xff]
        %v598 = vld [vmem:[#allocation5 + $0x668] sm:$0xff]
        %v599 = vld [vmem:[#allocation5 + $0x670] sm:$0xff]
        %v600 = vld [vmem:[#allocation5 + $0x678] sm:$0xff]
        %v601 = vld [vmem:[#allocation5 + $0x680] sm:$0xff]
        %v602 = vld [vmem:[#allocation5 + $0x688] sm:$0xff]
        %v603 = vld [vmem:[#allocation5 + $0x690] sm:$0xff]
        %v604 = vld [vmem:[#allocation5 + $0x698] sm:$0xff]
        %v605 = vld [vmem:[#allocation5 + $0x6a0] sm:$0xff]
        %v606 = vld [vmem:[#allocation5 + $0x6a8] sm:$0xff]
        %v607 = vld [vmem:[#allocation5 + $0x6b0] sm:$0xff]
        %v608 = vld [vmem:[#allocation5 + $0x6b8] sm:$0xff]
        %v609 = vld [vmem:[#allocation5 + $0x6c0] sm:$0xff]
        %v610 = vld [vmem:[#allocation5 + $0x6c8] sm:$0xff]
        %v611 = vld [vmem:[#allocation5 + $0x6d0] sm:$0xff]
        %v612 = vld [vmem:[#allocation5 + $0x6d8] sm:$0xff]
        %v613 = vld [vmem:[#allocation5 + $0x6e0] sm:$0xff]
        %v614 = vld [vmem:[#allocation5 + $0x6e8] sm:$0xff]
        %v615 = vld [vmem:[#allocation5 + $0x6f0] sm:$0xff]
        %v616 = vld [vmem:[#allocation5 + $0x6f8] sm:$0xff]
        %v617 = vld [vmem:[#allocation5 + $0x700] sm:$0xff]
        %v618 = vld [vmem:[#allocation5 + $0x708] sm:$0xff]
        %v619 = vld [vmem:[#allocation5 + $0x710] sm:$0xff]
        %v620 = vld [vmem:[#allocation5 + $0x718] sm:$0xff]
        %v621 = vld [vmem:[#allocation5 + $0x720] sm:$0xff]
        %v622 = vld [vmem:[#allocation5 + $0x728] sm:$0xff]
        %v623 = vld [vmem:[#allocation5 + $0x730] sm:$0xff]
        %v624 = vld [vmem:[#allocation5 + $0x738] sm:$0xff]
        %v625 = vld [vmem:[#allocation5 + $0x740] sm:$0xff]
        %v626 = vld [vmem:[#allocation5 + $0x748] sm:$0xff]
        %v627 = vld [vmem:[#allocation5 + $0x750] sm:$0xff]
        %v628 = vld [vmem:[#allocation5 + $0x758] sm:$0xff]
        %v629 = vld [vmem:[#allocation5 + $0x760] sm:$0xff]
        %v630 = vld [vmem:[#allocation5 + $0x768] sm:$0xff]
        %v631 = vld [vmem:[#allocation5 + $0x770] sm:$0xff]
        %v632 = vld [vmem:[#allocation5 + $0x778] sm:$0xff]
        %v633 = vld [vmem:[#allocation5 + $0x780] sm:$0xff]
        %v634 = vld [vmem:[#allocation5 + $0x788] sm:$0xff]
        %v635 = vld [vmem:[#allocation5 + $0x790] sm:$0xff]
        %v636 = vld [vmem:[#allocation5 + $0x798] sm:$0xff]
        %v637 = vld [vmem:[#allocation5 + $0x7a0] sm:$0xff]
        %v638 = vld [vmem:[#allocation5 + $0x7a8] sm:$0xff]
        %v639 = vld [vmem:[#allocation5 + $0x7b0] sm:$0xff]
        %v640 = vld [vmem:[#allocation5 + $0x7b8] sm:$0xff]
        %v641 = vld [vmem:[#allocation5 + $0x7c0] sm:$0xff]
        %v642 = vld [vmem:[#allocation5 + $0x7c8] sm:$0xff]
        %v643 = vld [vmem:[#allocation5 + $0x7d0] sm:$0xff]
        %v644 = vld [vmem:[#allocation5 + $0x7d8] sm:$0xff]
        %v645 = vld [vmem:[#allocation5 + $0x7e0] sm:$0xff]
        %v646 = vld [vmem:[#allocation5 + $0x7e8] sm:$0xff]
        %v647 = vld [vmem:[#allocation5 + $0x7f0] sm:$0xff]
        %v648 = vld [vmem:[#allocation5 + $0x7f8] sm:$0xff]
        %v649 = vld [vmem:[#allocation5 + $0x800] sm:$0xff]
        %v650 = vld [vmem:[#allocation5 + $0x808] sm:$0xff]
        %v651 = vld [vmem:[#allocation5 + $0x810] sm:$0xff]
        %v652 = vld [vmem:[#allocation5 + $0x818] sm:$0xff]
        %v653 = vld [vmem:[#allocation5 + $0x820] sm:$0xff]
        %v654 = vld [vmem:[#allocation5 + $0x828] sm:$0xff]
        %v655 = vld [vmem:[#allocation5 + $0x830] sm:$0xff]
        %v656 = vld [vmem:[#allocation5 + $0x838] sm:$0xff]
        %v657 = vld [vmem:[#allocation5 + $0x840] sm:$0xff]
        %v658 = vld [vmem:[#allocation5 + $0x848] sm:$0xff]
        %v659 = vld [vmem:[#allocation5 + $0x850] sm:$0xff]
        %v660 = vld [vmem:[#allocation5 + $0x858] sm:$0xff]
        %v661 = vld [vmem:[#allocation5 + $0x860] sm:$0xff]
        %v662 = vld [vmem:[#allocation5 + $0x868] sm:$0xff]
        %v663 = vld [vmem:[#allocation5 + $0x870] sm:$0xff]
        %v664 = vld [vmem:[#allocation5 + $0x878] sm:$0xff]
        %v665 = vld [vmem:[#allocation5 + $0x880] sm:$0xff]
        %v666 = vld [vmem:[#allocation5 + $0x888] sm:$0xff]
        %v667 = vld [vmem:[#allocation5 + $0x890] sm:$0xff]
        %v668 = vld [vmem:[#allocation5 + $0x898] sm:$0xff]
        %v669 = vld [vmem:[#allocation5 + $0x8a0] sm:$0xff]
        %v670 = vld [vmem:[#allocation5 + $0x8a8] sm:$0xff]
        %v671 = vld [vmem:[#allocation5 + $0x8b0] sm:$0xff]
        %v672 = vld [vmem:[#allocation5 + $0x8b8] sm:$0xff]
        %v673 = vld [vmem:[#allocation5 + $0x8c0] sm:$0xff]
        %v674 = vld [vmem:[#allocation5 + $0x8c8] sm:$0xff]
        %v675 = vld [vmem:[#allocation5 + $0x8d0] sm:$0xff]
        %v676 = vld [vmem:[#allocation5 + $0x8d8] sm:$0xff]
        %v677 = vld [vmem:[#allocation5 + $0x8e0] sm:$0xff]
        %v678 = vld [vmem:[#allocation5 + $0x8e8] sm:$0xff]
        %v679 = vld [vmem:[#allocation5 + $0x8f0] sm:$0xff]
        %v680 = vld [vmem:[#allocation5 + $0x8f8] sm:$0xff]
        %v681 = vld [vmem:[#allocation5 + $0x900] sm:$0xff]
        %v682 = vld [vmem:[#allocation5 + $0x908] sm:$0xff]
        %v683 = vld [vmem:[#allocation5 + $0x910] sm:$0xff]
        %v684 = vld [vmem:[#allocation5 + $0x918] sm:$0xff]
        %v685 = vld [vmem:[#allocation5 + $0x920] sm:$0xff]
        %v686 = vld [vmem:[#allocation5 + $0x928] sm:$0xff]
        %v687 = vld [vmem:[#allocation5 + $0x930] sm:$0xff]
        %v688 = vld [vmem:[#allocation5 + $0x938] sm:$0xff]
        %v689 = vld [vmem:[#allocation5 + $0x940] sm:$0xff]
        %v690 = vld [vmem:[#allocation5 + $0x948] sm:$0xff]
        %v691 = vld [vmem:[#allocation5 + $0x950] sm:$0xff]
        %v692 = vld [vmem:[#allocation5 + $0x958] sm:$0xff]
        %v693 = vld [vmem:[#allocation5 + $0x960] sm:$0xff]
        %v694 = vld [vmem:[#allocation5 + $0x968] sm:$0xff]
        %v695 = vld [vmem:[#allocation5 + $0x970] sm:$0xff]
        %v696 = vld [vmem:[#allocation5 + $0x978] sm:$0xff]
        %v697 = vld [vmem:[#allocation5 + $0x980] sm:$0xff]
        %v698 = vld [vmem:[#allocation5 + $0x988] sm:$0xff]
        %v699 = vld [vmem:[#allocation5 + $0x990] sm:$0xff]
        %v700 = vld [vmem:[#allocation5 + $0x998] sm:$0xff]
        %v701 = vld [vmem:[#allocation5 + $0x9a0] sm:$0xff]
        %v702 = vld [vmem:[#allocation5 + $0x9a8] sm:$0xff]
        %v703 = vld [vmem:[#allocation5 + $0x9b0] sm:$0xff]
        %v704 = vld [vmem:[#allocation5 + $0x9b8] sm:$0xff]
        %v705 = vld [vmem:[#allocation5 + $0x9c0] sm:$0xff]
        %v706 = vld [vmem:[#allocation5 + $0x9c8] sm:$0xff]
        %v707 = vld [vmem:[#allocation5 + $0x9d0] sm:$0xff]
        %v708 = vld [vmem:[#allocation5 + $0x9d8] sm:$0xff]
        %v709 = vld [vmem:[#allocation5 + $0x9e0] sm:$0xff]
        %v710 = vld [vmem:[#allocation5 + $0x9e8] sm:$0xff]
        %v711 = vld [vmem:[#allocation5 + $0x9f0] sm:$0xff]
        %v712 = vld [vmem:[#allocation5 + $0x9f8] sm:$0xff]
        %v713 = vld [vmem:[#allocation5 + $0xa00] sm:$0xff]
        %v714 = vld [vmem:[#allocation5 + $0xa08] sm:$0xff]
        %v715 = vld [vmem:[#allocation5 + $0xa10] sm:$0xff]
        %v716 = vld [vmem:[#allocation5 + $0xa18] sm:$0xff]
        %v717 = vld [vmem:[#allocation5 + $0xa20] sm:$0xff]
        %v718 = vld [vmem:[#allocation5 + $0xa28] sm:$0xff]
        %v719 = vld [vmem:[#allocation5 + $0xa30] sm:$0xff]
        %v720 = vld [vmem:[#allocation5 + $0xa38] sm:$0xff]
        %v721 = vld [vmem:[#allocation5 + $0xa40] sm:$0xff]
        %v722 = vld [vmem:[#allocation5 + $0xa48] sm:$0xff]
        %v723 = vld [vmem:[#allocation5 + $0xa50] sm:$0xff]
        %v724 = vld [vmem:[#allocation5 + $0xa58] sm:$0xff]
        %v725 = vld [vmem:[#allocation5 + $0xa60] sm:$0xff]
        %v726 = vld [vmem:[#allocation5 + $0xa68] sm:$0xff]
        %v727 = vld [vmem:[#allocation5 + $0xa70] sm:$0xff]
        %v728 = vld [vmem:[#allocation5 + $0xa78] sm:$0xff]
        %v729 = vld [vmem:[#allocation5 + $0xa80] sm:$0xff]
        %v730 = vld [vmem:[#allocation5 + $0xa88] sm:$0xff]
        %v731 = vld [vmem:[#allocation5 + $0xa90] sm:$0xff]
        %v732 = vld [vmem:[#allocation5 + $0xa98] sm:$0xff]
        %v733 = vld [vmem:[#allocation5 + $0xaa0] sm:$0xff]
        %v734 = vld [vmem:[#allocation5 + $0xaa8] sm:$0xff]
        %v735 = vld [vmem:[#allocation5 + $0xab0] sm:$0xff]
        %v736 = vld [vmem:[#allocation5 + $0xab8] sm:$0xff]
        %v737 = vld [vmem:[#allocation5 + $0xac0] sm:$0xff]
        %v738 = vld [vmem:[#allocation5 + $0xac8] sm:$0xff]
        %v739 = vld [vmem:[#allocation5 + $0xad0] sm:$0xff]
        %v740 = vld [vmem:[#allocation5 + $0xad8] sm:$0xff]
        %v741 = vld [vmem:[#allocation5 + $0xae0] sm:$0xff]
        %v742 = vld [vmem:[#allocation5 + $0xae8] sm:$0xff]
        %v743 = vld [vmem:[#allocation5 + $0xaf0] sm:$0xff]
        %v744 = vld [vmem:[#allocation5 + $0xaf8] sm:$0xff]
        %v745 = vld [vmem:[#allocation5 + $0xb00] sm:$0xff]
        %v746 = vld [vmem:[#allocation5 + $0xb08] sm:$0xff]
        %v747 = vld [vmem:[#allocation5 + $0xb10] sm:$0xff]
        %v748 = vld [vmem:[#allocation5 + $0xb18] sm:$0xff]
        %v749 = vld [vmem:[#allocation5 + $0xb20] sm:$0xff]
        %v750 = vld [vmem:[#allocation5 + $0xb28] sm:$0xff]
        %v751 = vld [vmem:[#allocation5 + $0xb30] sm:$0xff]
        %v752 = vld [vmem:[#allocation5 + $0xb38] sm:$0xff]
        %v753 = vld [vmem:[#allocation5 + $0xb40] sm:$0xff]
        %v754 = vld [vmem:[#allocation5 + $0xb48] sm:$0xff]
        %v755 = vld [vmem:[#allocation5 + $0xb50] sm:$0xff]
        %v756 = vld [vmem:[#allocation5 + $0xb58] sm:$0xff]
        %v757 = vld [vmem:[#allocation5 + $0xb60] sm:$0xff]
        %v758 = vld [vmem:[#allocation5 + $0xb68] sm:$0xff]
        %v759 = vld [vmem:[#allocation5 + $0xb70] sm:$0xff]
        %v760 = vld [vmem:[#allocation5 + $0xb78] sm:$0xff]
        %v761 = vld [vmem:[#allocation5 + $0xb80] sm:$0xff]
        %v762 = vld [vmem:[#allocation5 + $0xb88] sm:$0xff]
        %v763 = vld [vmem:[#allocation5 + $0xb90] sm:$0xff]
        %v764 = vld [vmem:[#allocation5 + $0xb98] sm:$0xff]
        %v765 = vld [vmem:[#allocation5 + $0xba0] sm:$0xff]
        %v766 = vld [vmem:[#allocation5 + $0xba8] sm:$0xff]
        %v767 = vld [vmem:[#allocation5 + $0xbb0] sm:$0xff]
        %v768 = vld [vmem:[#allocation5 + $0xbb8] sm:$0xff]
        %v769 = vld [vmem:[#allocation5 + $0xbc0] sm:$0xff]
        %v770 = vld [vmem:[#allocation5 + $0xbc8] sm:$0xff]
        %v771 = vld [vmem:[#allocation5 + $0xbd0] sm:$0xff]
        %v772 = vld [vmem:[#allocation5 + $0xbd8] sm:$0xff]
        %v773 = vld [vmem:[#allocation5 + $0xbe0] sm:$0xff]
        %v774 = vld [vmem:[#allocation5 + $0xbe8] sm:$0xff]
        %v775 = vld [vmem:[#allocation5 + $0xbf0] sm:$0xff]
        %v776 = vld [vmem:[#allocation5 + $0xbf8] sm:$0xff]
        %v777 = vld [vmem:[#allocation5 + $0xc00] sm:$0xff]
        %v778 = vld [vmem:[#allocation5 + $0xc08] sm:$0xff]
        %v779 = vld [vmem:[#allocation5 + $0xc10] sm:$0xff]
        %v780 = vld [vmem:[#allocation5 + $0xc18] sm:$0xff]
        %v781 = vld [vmem:[#allocation5 + $0xc20] sm:$0xff]
        %v782 = vld [vmem:[#allocation5 + $0xc28] sm:$0xff]
        %v783 = vld [vmem:[#allocation5 + $0xc30] sm:$0xff]
        %v784 = vld [vmem:[#allocation5 + $0xc38] sm:$0xff]
        %v785 = vld [vmem:[#allocation5 + $0xc40] sm:$0xff]
        %v786 = vld [vmem:[#allocation5 + $0xc48] sm:$0xff]
        %v787 = vld [vmem:[#allocation5 + $0xc50] sm:$0xff]
        %v788 = vld [vmem:[#allocation5 + $0xc58] sm:$0xff]
        %v789 = vld [vmem:[#allocation5 + $0xc60] sm:$0xff]
        %v790 = vld [vmem:[#allocation5 + $0xc68] sm:$0xff]
        %v791 = vld [vmem:[#allocation5 + $0xc70] sm:$0xff]
        %v792 = vld [vmem:[#allocation5 + $0xc78] sm:$0xff]
        %v793 = vld [vmem:[#allocation5 + $0xc80] sm:$0xff]
        %v794 = vld [vmem:[#allocation5 + $0xc88] sm:$0xff]
        %v795 = vld [vmem:[#allocation5 + $0xc90] sm:$0xff]
        %v796 = vld [vmem:[#allocation5 + $0xc98] sm:$0xff]
        %v797 = vld [vmem:[#allocation5 + $0xca0] sm:$0xff]
        %v798 = vld [vmem:[#allocation5 + $0xca8] sm:$0xff]
        %v799 = vld [vmem:[#allocation5 + $0xcb0] sm:$0xff]
        %v800 = vld [vmem:[#allocation5 + $0xcb8] sm:$0xff]
        %v801 = vld [vmem:[#allocation5 + $0xcc0] sm:$0xff]
        %v802 = vld [vmem:[#allocation5 + $0xcc8] sm:$0xff]
        %v803 = vld [vmem:[#allocation5 + $0xcd0] sm:$0xff]
        %v804 = vld [vmem:[#allocation5 + $0xcd8] sm:$0xff]
        %v805 = vld [vmem:[#allocation5 + $0xce0] sm:$0xff]
        %v806 = vld [vmem:[#allocation5 + $0xce8] sm:$0xff]
        %v807 = vld [vmem:[#allocation5 + $0xcf0] sm:$0xff]
        %v808 = vld [vmem:[#allocation5 + $0xcf8] sm:$0xff]
        %v809 = vld [vmem:[#allocation5 + $0xd00] sm:$0xff]
        %v810 = vld [vmem:[#allocation5 + $0xd08] sm:$0xff]
        %v811 = vld [vmem:[#allocation5 + $0xd10] sm:$0xff]
        %v812 = vld [vmem:[#allocation5 + $0xd18] sm:$0xff]
        %v813 = vld [vmem:[#allocation5 + $0xd20] sm:$0xff]
        %v814 = vld [vmem:[#allocation5 + $0xd28] sm:$0xff]
        %v815 = vld [vmem:[#allocation5 + $0xd30] sm:$0xff]
        %v816 = vld [vmem:[#allocation5 + $0xd38] sm:$0xff]
        %v817 = vld [vmem:[#allocation5 + $0xd40] sm:$0xff]
        %v818 = vld [vmem:[#allocation5 + $0xd48] sm:$0xff]
        %v819 = vld [vmem:[#allocation5 + $0xd50] sm:$0xff]
        %v820 = vld [vmem:[#allocation5 + $0xd58] sm:$0xff]
        %v821 = vld [vmem:[#allocation5 + $0xd60] sm:$0xff]
        %v822 = vld [vmem:[#allocation5 + $0xd68] sm:$0xff]
        %v823 = vld [vmem:[#allocation5 + $0xd70] sm:$0xff]
        %v824 = vld [vmem:[#allocation5 + $0xd78] sm:$0xff]
        %v825 = vld [vmem:[#allocation5 + $0xd80] sm:$0xff]
        %v826 = vld [vmem:[#allocation5 + $0xd88] sm:$0xff]
        %v827 = vld [vmem:[#allocation5 + $0xd90] sm:$0xff]
        %v828 = vld [vmem:[#allocation5 + $0xd98] sm:$0xff]
        %v829 = vld [vmem:[#allocation5 + $0xda0] sm:$0xff]
        %v830 = vld [vmem:[#allocation5 + $0xda8] sm:$0xff]
        %v831 = vld [vmem:[#allocation5 + $0xdb0] sm:$0xff]
        %v832 = vld [vmem:[#allocation5 + $0xdb8] sm:$0xff]
        %v833 = vld [vmem:[#allocation5 + $0xdc0] sm:$0xff]
        %v834 = vld [vmem:[#allocation5 + $0xdc8] sm:$0xff]
        %v835 = vld [vmem:[#allocation5 + $0xdd0] sm:$0xff]
        %v836 = vld [vmem:[#allocation5 + $0xdd8] sm:$0xff]
        %v837 = vld [vmem:[#allocation5 + $0xde0] sm:$0xff]
        %v838 = vld [vmem:[#allocation5 + $0xde8] sm:$0xff]
        %v839 = vld [vmem:[#allocation5 + $0xdf0] sm:$0xff]
        %v840 = vld [vmem:[#allocation5 + $0xdf8] sm:$0xff]
        %v841 = vld [vmem:[#allocation5 + $0xe00] sm:$0xff]
        %v842 = vld [vmem:[#allocation5 + $0xe08] sm:$0xff]
        %v843 = vld [vmem:[#allocation5 + $0xe10] sm:$0xff]
        %v844 = vld [vmem:[#allocation5 + $0xe18] sm:$0xff]
        %v845 = vld [vmem:[#allocation5 + $0xe20] sm:$0xff]
        %v846 = vld [vmem:[#allocation5 + $0xe28] sm:$0xff]
        %v847 = vld [vmem:[#allocation5 + $0xe30] sm:$0xff]
        %v848 = vld [vmem:[#allocation5 + $0xe38] sm:$0xff]
        %v849 = vld [vmem:[#allocation5 + $0xe40] sm:$0xff]
        %v850 = vld [vmem:[#allocation5 + $0xe48] sm:$0xff]
        %v851 = vld [vmem:[#allocation5 + $0xe50] sm:$0xff]
        %v852 = vld [vmem:[#allocation5 + $0xe58] sm:$0xff]
        %v853 = vld [vmem:[#allocation5 + $0xe60] sm:$0xff]
        %v854 = vld [vmem:[#allocation5 + $0xe68] sm:$0xff]
        %v855 = vld [vmem:[#allocation5 + $0xe70] sm:$0xff]
        %v856 = vld [vmem:[#allocation5 + $0xe78] sm:$0xff]
        %v857 = vld [vmem:[#allocation5 + $0xe80] sm:$0xff]
        %v858 = vld [vmem:[#allocation5 + $0xe88] sm:$0xff]
        %v859 = vld [vmem:[#allocation5 + $0xe90] sm:$0xff]
        %v860 = vld [vmem:[#allocation5 + $0xe98] sm:$0xff]
        %v861 = vld [vmem:[#allocation5 + $0xea0] sm:$0xff]
        %v862 = vld [vmem:[#allocation5 + $0xea8] sm:$0xff]
        %v863 = vld [vmem:[#allocation5 + $0xeb0] sm:$0xff]
        %v864 = vld [vmem:[#allocation5 + $0xeb8] sm:$0xff]
        %v865 = vld [vmem:[#allocation5 + $0xec0] sm:$0xff]
        %v866 = vld [vmem:[#allocation5 + $0xec8] sm:$0xff]
        %v867 = vld [vmem:[#allocation5 + $0xed0] sm:$0xff]
        %v868 = vld [vmem:[#allocation5 + $0xed8] sm:$0xff]
        %v869 = vld [vmem:[#allocation5 + $0xee0] sm:$0xff]
        %v870 = vld [vmem:[#allocation5 + $0xee8] sm:$0xff]
        %v871 = vld [vmem:[#allocation5 + $0xef0] sm:$0xff]
        %v872 = vld [vmem:[#allocation5 + $0xef8] sm:$0xff]
        %v873 = vld [vmem:[#allocation5 + $0xf00] sm:$0xff]
        %v874 = vld [vmem:[#allocation5 + $0xf08] sm:$0xff]
        %v875 = vld [vmem:[#allocation5 + $0xf10] sm:$0xff]
        %v876 = vld [vmem:[#allocation5 + $0xf18] sm:$0xff]
        %v877 = vld [vmem:[#allocation5 + $0xf20] sm:$0xff]
        %v878 = vld [vmem:[#allocation5 + $0xf28] sm:$0xff]
        %v879 = vld [vmem:[#allocation5 + $0xf30] sm:$0xff]
        %v880 = vld [vmem:[#allocation5 + $0xf38] sm:$0xff]
        %v881 = vld [vmem:[#allocation5 + $0xf40] sm:$0xff]
        %v882 = vld [vmem:[#allocation5 + $0xf48] sm:$0xff]
        %v883 = vld [vmem:[#allocation5 + $0xf50] sm:$0xff]
        %v884 = vld [vmem:[#allocation5 + $0xf58] sm:$0xff]
        %v885 = vld [vmem:[#allocation5 + $0xf60] sm:$0xff]
        %v886 = vld [vmem:[#allocation5 + $0xf68] sm:$0xff]
        %v887 = vld [vmem:[#allocation5 + $0xf70] sm:$0xff]
        %v888 = vld [vmem:[#allocation5 + $0xf78] sm:$0xff]
        %v889 = vld [vmem:[#allocation5 + $0xf80] sm:$0xff]
        %v890 = vld [vmem:[#allocation5 + $0xf88] sm:$0xff]
        %v891 = vld [vmem:[#allocation5 + $0xf90] sm:$0xff]
        %v892 = vld [vmem:[#allocation5 + $0xf98] sm:$0xff]
        %v893 = vld [vmem:[#allocation5 + $0xfa0] sm:$0xff]
        %v894 = vld [vmem:[#allocation5 + $0xfa8] sm:$0xff]
        %v895 = vld [vmem:[#allocation5 + $0xfb0] sm:$0xff]
        %v896 = vld [vmem:[#allocation5 + $0xfb8] sm:$0xff]
        %v897 = vld [vmem:[#allocation5 + $0xfc0] sm:$0xff]
        %v898 = vld [vmem:[#allocation5 + $0xfc8] sm:$0xff]
        %v899 = vld [vmem:[#allocation5 + $0xfd0] sm:$0xff]
        %v900 = vld [vmem:[#allocation5 + $0xfd8] sm:$0xff]
        %v901 = vld [vmem:[#allocation5 + $0xfe0] sm:$0xff]
        %v902 = vld [vmem:[#allocation5 + $0xfe8] sm:$0xff]
        %v903 = vld [vmem:[#allocation5 + $0xff0] sm:$0xff]
        %v904 = vld [vmem:[#allocation5 + $0xff8] sm:$0xff]
        %v905 = vld [vmem:[#allocation7] sm:$0x3]
        %v907 = vlaneseq
        %v908 = vshrl.u32 %v907, 7
        %v909 = vsub.s32 0, %v908
        %v910 = vrot.slane %v905, %v909
        %v911 = vlaneseq
        %v912 = vshrl.u32 %v911, 7
        %v913 = vsub.s32 1, %v912
        %v914 = vrot.slane %v905, %v913
        %v933 = vunpack.c.l.b16 %v377
        %v934 = vunpack.c.h.b16 %v377
        %v935 = vunpack.c.l.b16 %v378
        %v936 = vunpack.c.h.b16 %v378
        %v937 = vunpack.c.l.b16 %v379
        %v938 = vunpack.c.h.b16 %v379
        %v939 = vunpack.c.l.b16 %v380
        %v940 = vunpack.c.h.b16 %v380
        %v941 = vunpack.c.l.b16 %v381
        %v942 = vunpack.c.h.b16 %v381
        %v943 = vunpack.c.l.b16 %v382
        %v944 = vunpack.c.h.b16 %v382
        %v945 = vunpack.c.l.b16 %v383
        %v946 = vunpack.c.h.b16 %v383
        %v947 = vunpack.c.l.b16 %v384
        %v948 = vunpack.c.h.b16 %v384
        %v949 = vunpack.c.l.b16 %v385
        %v950 = vunpack.c.h.b16 %v385
        %v951 = vunpack.c.l.b16 %v386
        %v952 = vunpack.c.h.b16 %v386
        %v953 = vunpack.c.l.b16 %v387
        %v954 = vunpack.c.h.b16 %v387
        %v955 = vunpack.c.l.b16 %v388
        %v956 = vunpack.c.h.b16 %v388
        %v957 = vunpack.c.l.b16 %v389
        %v958 = vunpack.c.h.b16 %v389
        %v959 = vunpack.c.l.b16 %v390
        %v960 = vunpack.c.h.b16 %v390
        %v961 = vunpack.c.l.b16 %v391
        %v962 = vunpack.c.h.b16 %v391
        %v963 = vunpack.c.l.b16 %v392
        %v964 = vunpack.c.h.b16 %v392
        %v965 = vpack.c.b16 %v933, %v933
        %v966 = vpack.c.b16 %v934, %v934
        %v967 = vpack.c.b16 %v935, %v935
        %v968 = vpack.c.b16 %v936, %v936
        %v969 = vpack.c.b16 %v937, %v937
        %v970 = vpack.c.b16 %v938, %v938
        %v971 = vpack.c.b16 %v939, %v939
        %v972 = vpack.c.b16 %v940, %v940
        %v973 = vpack.c.b16 %v941, %v941
        %v974 = vpack.c.b16 %v942, %v942
        %v975 = vpack.c.b16 %v943, %v943
        %v976 = vpack.c.b16 %v944, %v944
        %v977 = vpack.c.b16 %v945, %v945
        %v978 = vpack.c.b16 %v946, %v946
        %v979 = vpack.c.b16 %v947, %v947
        %v980 = vpack.c.b16 %v948, %v948
        %v981 = vpack.c.b16 %v949, %v949
        %v982 = vpack.c.b16 %v950, %v950
        %v983 = vpack.c.b16 %v951, %v951
        %v984 = vpack.c.b16 %v952, %v952
        %v985 = vpack.c.b16 %v953, %v953
        %v986 = vpack.c.b16 %v954, %v954
        %v987 = vpack.c.b16 %v955, %v955
        %v988 = vpack.c.b16 %v956, %v956
        %v989 = vpack.c.b16 %v957, %v957
        %v990 = vpack.c.b16 %v958, %v958
        %v991 = vpack.c.b16 %v959, %v959
        %v992 = vpack.c.b16 %v960, %v960
        %v993 = vpack.c.b16 %v961, %v961
        %v994 = vpack.c.b16 %v962, %v962
        %v995 = vpack.c.b16 %v963, %v963
        %v996 = vpack.c.b16 %v964, %v964
        %v1541 = vunpack.c.l.b16 %v393
        %v1542 = vunpack.c.h.b16 %v393
        %v1543 = vunpack.c.l.b16 %v394
        %v1544 = vunpack.c.h.b16 %v394
        %v1545 = vunpack.c.l.b16 %v395
        %v1546 = vunpack.c.h.b16 %v395
        %v1547 = vunpack.c.l.b16 %v396
        %v1548 = vunpack.c.h.b16 %v396
        %v1549 = vunpack.c.l.b16 %v397
        %v1550 = vunpack.c.h.b16 %v397
        %v1551 = vunpack.c.l.b16 %v398
        %v1552 = vunpack.c.h.b16 %v398
        %v1553 = vunpack.c.l.b16 %v399
        %v1554 = vunpack.c.h.b16 %v399
        %v1555 = vunpack.c.l.b16 %v400
        %v1556 = vunpack.c.h.b16 %v400
        %v1557 = vunpack.c.l.b16 %v401
        %v1558 = vunpack.c.h.b16 %v401
        %v1559 = vunpack.c.l.b16 %v402
        %v1560 = vunpack.c.h.b16 %v402
        %v1561 = vunpack.c.l.b16 %v403
        %v1562 = vunpack.c.h.b16 %v403
        %v1563 = vunpack.c.l.b16 %v404
        %v1564 = vunpack.c.h.b16 %v404
        %v1565 = vunpack.c.l.b16 %v405
        %v1566 = vunpack.c.h.b16 %v405
        %v1567 = vunpack.c.l.b16 %v406
        %v1568 = vunpack.c.h.b16 %v406
        %v1569 = vunpack.c.l.b16 %v407
        %v1570 = vunpack.c.h.b16 %v407
        %v1571 = vunpack.c.l.b16 %v408
        %v1572 = vunpack.c.h.b16 %v408
        %v1573 = vunpack.c.l.b16 %v409
        %v1574 = vunpack.c.h.b16 %v409
        %v1575 = vunpack.c.l.b16 %v410
        %v1576 = vunpack.c.h.b16 %v410
        %v1577 = vunpack.c.l.b16 %v411
        %v1578 = vunpack.c.h.b16 %v411
        %v1579 = vunpack.c.l.b16 %v412
        %v1580 = vunpack.c.h.b16 %v412
        %v1581 = vunpack.c.l.b16 %v413
        %v1582 = vunpack.c.h.b16 %v413
        %v1583 = vunpack.c.l.b16 %v414
        %v1584 = vunpack.c.h.b16 %v414
        %v1585 = vunpack.c.l.b16 %v415
        %v1586 = vunpack.c.h.b16 %v415
        %v1587 = vunpack.c.l.b16 %v416
        %v1588 = vunpack.c.h.b16 %v416
        %v1589 = vunpack.c.l.b16 %v417
        %v1590 = vunpack.c.h.b16 %v417
        %v1591 = vunpack.c.l.b16 %v418
        %v1592 = vunpack.c.h.b16 %v418
        %v1593 = vunpack.c.l.b16 %v419
        %v1594 = vunpack.c.h.b16 %v419
        %v1595 = vunpack.c.l.b16 %v420
        %v1596 = vunpack.c.h.b16 %v420
        %v1597 = vunpack.c.l.b16 %v421
        %v1598 = vunpack.c.h.b16 %v421
        %v1599 = vunpack.c.l.b16 %v422
        %v1600 = vunpack.c.h.b16 %v422
        %v1601 = vunpack.c.l.b16 %v423
        %v1602 = vunpack.c.h.b16 %v423
        %v1603 = vunpack.c.l.b16 %v424
        %v1604 = vunpack.c.h.b16 %v424
        %v1605 = vunpack.c.l.b16 %v425
        %v1606 = vunpack.c.h.b16 %v425
        %v1607 = vunpack.c.l.b16 %v426
        %v1608 = vunpack.c.h.b16 %v426
        %v1609 = vunpack.c.l.b16 %v427
        %v1610 = vunpack.c.h.b16 %v427
        %v1611 = vunpack.c.l.b16 %v428
        %v1612 = vunpack.c.h.b16 %v428
        %v1613 = vunpack.c.l.b16 %v429
        %v1614 = vunpack.c.h.b16 %v429
        %v1615 = vunpack.c.l.b16 %v430
        %v1616 = vunpack.c.h.b16 %v430
        %v1617 = vunpack.c.l.b16 %v431
        %v1618 = vunpack.c.h.b16 %v431
        %v1619 = vunpack.c.l.b16 %v432
        %v1620 = vunpack.c.h.b16 %v432
        %v1621 = vunpack.c.l.b16 %v433
        %v1622 = vunpack.c.h.b16 %v433
        %v1623 = vunpack.c.l.b16 %v434
        %v1624 = vunpack.c.h.b16 %v434
        %v1625 = vunpack.c.l.b16 %v435
        %v1626 = vunpack.c.h.b16 %v435
        %v1627 = vunpack.c.l.b16 %v436
        %v1628 = vunpack.c.h.b16 %v436
        %v1629 = vunpack.c.l.b16 %v437
        %v1630 = vunpack.c.h.b16 %v437
        %v1631 = vunpack.c.l.b16 %v438
        %v1632 = vunpack.c.h.b16 %v438
        %v1633 = vunpack.c.l.b16 %v439
        %v1634 = vunpack.c.h.b16 %v439
        %v1635 = vunpack.c.l.b16 %v440
        %v1636 = vunpack.c.h.b16 %v440
        %v1637 = vunpack.c.l.b16 %v441
        %v1638 = vunpack.c.h.b16 %v441
        %v1639 = vunpack.c.l.b16 %v442
        %v1640 = vunpack.c.h.b16 %v442
        %v1641 = vunpack.c.l.b16 %v443
        %v1642 = vunpack.c.h.b16 %v443
        %v1643 = vunpack.c.l.b16 %v444
        %v1644 = vunpack.c.h.b16 %v444
        %v1645 = vunpack.c.l.b16 %v445
        %v1646 = vunpack.c.h.b16 %v445
        %v1647 = vunpack.c.l.b16 %v446
        %v1648 = vunpack.c.h.b16 %v446
        %v1649 = vunpack.c.l.b16 %v447
        %v1650 = vunpack.c.h.b16 %v447
        %v1651 = vunpack.c.l.b16 %v448
        %v1652 = vunpack.c.h.b16 %v448
        %v1653 = vunpack.c.l.b16 %v449
        %v1654 = vunpack.c.h.b16 %v449
        %v1655 = vunpack.c.l.b16 %v450
        %v1656 = vunpack.c.h.b16 %v450
        %v1657 = vunpack.c.l.b16 %v451
        %v1658 = vunpack.c.h.b16 %v451
        %v1659 = vunpack.c.l.b16 %v452
        %v1660 = vunpack.c.h.b16 %v452
        %v1661 = vunpack.c.l.b16 %v453
        %v1662 = vunpack.c.h.b16 %v453
        %v1663 = vunpack.c.l.b16 %v454
        %v1664 = vunpack.c.h.b16 %v454
        %v1665 = vunpack.c.l.b16 %v455
        %v1666 = vunpack.c.h.b16 %v455
        %v1667 = vunpack.c.l.b16 %v456
        %v1668 = vunpack.c.h.b16 %v456
        %v1669 = vunpack.c.l.b16 %v457
        %v1670 = vunpack.c.h.b16 %v457
        %v1671 = vunpack.c.l.b16 %v458
        %v1672 = vunpack.c.h.b16 %v458
        %v1673 = vunpack.c.l.b16 %v459
        %v1674 = vunpack.c.h.b16 %v459
        %v1675 = vunpack.c.l.b16 %v460
        %v1676 = vunpack.c.h.b16 %v460
        %v1677 = vunpack.c.l.b16 %v461
        %v1678 = vunpack.c.h.b16 %v461
        %v1679 = vunpack.c.l.b16 %v462
        %v1680 = vunpack.c.h.b16 %v462
        %v1681 = vunpack.c.l.b16 %v463
        %v1682 = vunpack.c.h.b16 %v463
        %v1683 = vunpack.c.l.b16 %v464
        %v1684 = vunpack.c.h.b16 %v464
        %v1685 = vunpack.c.l.b16 %v465
        %v1686 = vunpack.c.h.b16 %v465
        %v1687 = vunpack.c.l.b16 %v466
        %v1688 = vunpack.c.h.b16 %v466
        %v1689 = vunpack.c.l.b16 %v467
        %v1690 = vunpack.c.h.b16 %v467
        %v1691 = vunpack.c.l.b16 %v468
        %v1692 = vunpack.c.h.b16 %v468
        %v1693 = vunpack.c.l.b16 %v469
        %v1694 = vunpack.c.h.b16 %v469
        %v1695 = vunpack.c.l.b16 %v470
        %v1696 = vunpack.c.h.b16 %v470
        %v1697 = vunpack.c.l.b16 %v471
        %v1698 = vunpack.c.h.b16 %v471
        %v1699 = vunpack.c.l.b16 %v472
        %v1700 = vunpack.c.h.b16 %v472
        %v1701 = vunpack.c.l.b16 %v473
        %v1702 = vunpack.c.h.b16 %v473
        %v1703 = vunpack.c.l.b16 %v474
        %v1704 = vunpack.c.h.b16 %v474
        %v1705 = vunpack.c.l.b16 %v475
        %v1706 = vunpack.c.h.b16 %v475
        %v1707 = vunpack.c.l.b16 %v476
        %v1708 = vunpack.c.h.b16 %v476
        %v1709 = vunpack.c.l.b16 %v477
        %v1710 = vunpack.c.h.b16 %v477
        %v1711 = vunpack.c.l.b16 %v478
        %v1712 = vunpack.c.h.b16 %v478
        %v1713 = vunpack.c.l.b16 %v479
        %v1714 = vunpack.c.h.b16 %v479
        %v1715 = vunpack.c.l.b16 %v480
        %v1716 = vunpack.c.h.b16 %v480
        %v1717 = vunpack.c.l.b16 %v481
        %v1718 = vunpack.c.h.b16 %v481
        %v1719 = vunpack.c.l.b16 %v482
        %v1720 = vunpack.c.h.b16 %v482
        %v1721 = vunpack.c.l.b16 %v483
        %v1722 = vunpack.c.h.b16 %v483
        %v1723 = vunpack.c.l.b16 %v484
        %v1724 = vunpack.c.h.b16 %v484
        %v1725 = vunpack.c.l.b16 %v485
        %v1726 = vunpack.c.h.b16 %v485
        %v1727 = vunpack.c.l.b16 %v486
        %v1728 = vunpack.c.h.b16 %v486
        %v1729 = vunpack.c.l.b16 %v487
        %v1730 = vunpack.c.h.b16 %v487
        %v1731 = vunpack.c.l.b16 %v488
        %v1732 = vunpack.c.h.b16 %v488
        %v1733 = vunpack.c.l.b16 %v489
        %v1734 = vunpack.c.h.b16 %v489
        %v1735 = vunpack.c.l.b16 %v490
        %v1736 = vunpack.c.h.b16 %v490
        %v1737 = vunpack.c.l.b16 %v491
        %v1738 = vunpack.c.h.b16 %v491
        %v1739 = vunpack.c.l.b16 %v492
        %v1740 = vunpack.c.h.b16 %v492
        %v1741 = vunpack.c.l.b16 %v493
        %v1742 = vunpack.c.h.b16 %v493
        %v1743 = vunpack.c.l.b16 %v494
        %v1744 = vunpack.c.h.b16 %v494
        %v1745 = vunpack.c.l.b16 %v495
        %v1746 = vunpack.c.h.b16 %v495
        %v1747 = vunpack.c.l.b16 %v496
        %v1748 = vunpack.c.h.b16 %v496
        %v1749 = vunpack.c.l.b16 %v497
        %v1750 = vunpack.c.h.b16 %v497
        %v1751 = vunpack.c.l.b16 %v498
        %v1752 = vunpack.c.h.b16 %v498
        %v1753 = vunpack.c.l.b16 %v499
        %v1754 = vunpack.c.h.b16 %v499
        %v1755 = vunpack.c.l.b16 %v500
        %v1756 = vunpack.c.h.b16 %v500
        %v1757 = vunpack.c.l.b16 %v501
        %v1758 = vunpack.c.h.b16 %v501
        %v1759 = vunpack.c.l.b16 %v502
        %v1760 = vunpack.c.h.b16 %v502
        %v1761 = vunpack.c.l.b16 %v503
        %v1762 = vunpack.c.h.b16 %v503
        %v1763 = vunpack.c.l.b16 %v504
        %v1764 = vunpack.c.h.b16 %v504
        %v1765 = vunpack.c.l.b16 %v505
        %v1766 = vunpack.c.h.b16 %v505
        %v1767 = vunpack.c.l.b16 %v506
        %v1768 = vunpack.c.h.b16 %v506
        %v1769 = vunpack.c.l.b16 %v507
        %v1770 = vunpack.c.h.b16 %v507
        %v1771 = vunpack.c.l.b16 %v508
        %v1772 = vunpack.c.h.b16 %v508
        %v1773 = vunpack.c.l.b16 %v509
        %v1774 = vunpack.c.h.b16 %v509
        %v1775 = vunpack.c.l.b16 %v510
        %v1776 = vunpack.c.h.b16 %v510
        %v1777 = vunpack.c.l.b16 %v511
        %v1778 = vunpack.c.h.b16 %v511
        %v1779 = vunpack.c.l.b16 %v512
        %v1780 = vunpack.c.h.b16 %v512
        %v1781 = vunpack.c.l.b16 %v513
        %v1782 = vunpack.c.h.b16 %v513
        %v1783 = vunpack.c.l.b16 %v514
        %v1784 = vunpack.c.h.b16 %v514
        %v1785 = vunpack.c.l.b16 %v515
        %v1786 = vunpack.c.h.b16 %v515
        %v1787 = vunpack.c.l.b16 %v516
        %v1788 = vunpack.c.h.b16 %v516
        %v1789 = vunpack.c.l.b16 %v517
        %v1790 = vunpack.c.h.b16 %v517
        %v1791 = vunpack.c.l.b16 %v518
        %v1792 = vunpack.c.h.b16 %v518
        %v1793 = vunpack.c.l.b16 %v519
        %v1794 = vunpack.c.h.b16 %v519
        %v1795 = vunpack.c.l.b16 %v520
        %v1796 = vunpack.c.h.b16 %v520
        %v1797 = vunpack.c.l.b16 %v521
        %v1798 = vunpack.c.h.b16 %v521
        %v1799 = vunpack.c.l.b16 %v522
        %v1800 = vunpack.c.h.b16 %v522
        %v1801 = vunpack.c.l.b16 %v523
        %v1802 = vunpack.c.h.b16 %v523
        %v1803 = vunpack.c.l.b16 %v524
        %v1804 = vunpack.c.h.b16 %v524
        %v1805 = vunpack.c.l.b16 %v525
        %v1806 = vunpack.c.h.b16 %v525
        %v1807 = vunpack.c.l.b16 %v526
        %v1808 = vunpack.c.h.b16 %v526
        %v1809 = vunpack.c.l.b16 %v527
        %v1810 = vunpack.c.h.b16 %v527
        %v1811 = vunpack.c.l.b16 %v528
        %v1812 = vunpack.c.h.b16 %v528
        %v1813 = vunpack.c.l.b16 %v529
        %v1814 = vunpack.c.h.b16 %v529
        %v1815 = vunpack.c.l.b16 %v530
        %v1816 = vunpack.c.h.b16 %v530
        %v1817 = vunpack.c.l.b16 %v531
        %v1818 = vunpack.c.h.b16 %v531
        %v1819 = vunpack.c.l.b16 %v532
        %v1820 = vunpack.c.h.b16 %v532
        %v1821 = vunpack.c.l.b16 %v533
        %v1822 = vunpack.c.h.b16 %v533
        %v1823 = vunpack.c.l.b16 %v534
        %v1824 = vunpack.c.h.b16 %v534
        %v1825 = vunpack.c.l.b16 %v535
        %v1826 = vunpack.c.h.b16 %v535
        %v1827 = vunpack.c.l.b16 %v536
        %v1828 = vunpack.c.h.b16 %v536
        %v1829 = vunpack.c.l.b16 %v537
        %v1830 = vunpack.c.h.b16 %v537
        %v1831 = vunpack.c.l.b16 %v538
        %v1832 = vunpack.c.h.b16 %v538
        %v1833 = vunpack.c.l.b16 %v539
        %v1834 = vunpack.c.h.b16 %v539
        %v1835 = vunpack.c.l.b16 %v540
        %v1836 = vunpack.c.h.b16 %v540
        %v1837 = vunpack.c.l.b16 %v541
        %v1838 = vunpack.c.h.b16 %v541
        %v1839 = vunpack.c.l.b16 %v542
        %v1840 = vunpack.c.h.b16 %v542
        %v1841 = vunpack.c.l.b16 %v543
        %v1842 = vunpack.c.h.b16 %v543
        %v1843 = vunpack.c.l.b16 %v544
        %v1844 = vunpack.c.h.b16 %v544
        %v1845 = vunpack.c.l.b16 %v545
        %v1846 = vunpack.c.h.b16 %v545
        %v1847 = vunpack.c.l.b16 %v546
        %v1848 = vunpack.c.h.b16 %v546
        %v1849 = vunpack.c.l.b16 %v547
        %v1850 = vunpack.c.h.b16 %v547
        %v1851 = vunpack.c.l.b16 %v548
        %v1852 = vunpack.c.h.b16 %v548
        %v1853 = vunpack.c.l.b16 %v549
        %v1854 = vunpack.c.h.b16 %v549
        %v1855 = vunpack.c.l.b16 %v550
        %v1856 = vunpack.c.h.b16 %v550
        %v1857 = vunpack.c.l.b16 %v551
        %v1858 = vunpack.c.h.b16 %v551
        %v1859 = vunpack.c.l.b16 %v552
        %v1860 = vunpack.c.h.b16 %v552
        %v1861 = vunpack.c.l.b16 %v553
        %v1862 = vunpack.c.h.b16 %v553
        %v1863 = vunpack.c.l.b16 %v554
        %v1864 = vunpack.c.h.b16 %v554
        %v1865 = vunpack.c.l.b16 %v555
        %v1866 = vunpack.c.h.b16 %v555
        %v1867 = vunpack.c.l.b16 %v556
        %v1868 = vunpack.c.h.b16 %v556
        %v1869 = vunpack.c.l.b16 %v557
        %v1870 = vunpack.c.h.b16 %v557
        %v1871 = vunpack.c.l.b16 %v558
        %v1872 = vunpack.c.h.b16 %v558
        %v1873 = vunpack.c.l.b16 %v559
        %v1874 = vunpack.c.h.b16 %v559
        %v1875 = vunpack.c.l.b16 %v560
        %v1876 = vunpack.c.h.b16 %v560
        %v1877 = vunpack.c.l.b16 %v561
        %v1878 = vunpack.c.h.b16 %v561
        %v1879 = vunpack.c.l.b16 %v562
        %v1880 = vunpack.c.h.b16 %v562
        %v1881 = vunpack.c.l.b16 %v563
        %v1882 = vunpack.c.h.b16 %v563
        %v1883 = vunpack.c.l.b16 %v564
        %v1884 = vunpack.c.h.b16 %v564
        %v1885 = vunpack.c.l.b16 %v565
        %v1886 = vunpack.c.h.b16 %v565
        %v1887 = vunpack.c.l.b16 %v566
        %v1888 = vunpack.c.h.b16 %v566
        %v1889 = vunpack.c.l.b16 %v567
        %v1890 = vunpack.c.h.b16 %v567
        %v1891 = vunpack.c.l.b16 %v568
        %v1892 = vunpack.c.h.b16 %v568
        %v1893 = vunpack.c.l.b16 %v569
        %v1894 = vunpack.c.h.b16 %v569
        %v1895 = vunpack.c.l.b16 %v570
        %v1896 = vunpack.c.h.b16 %v570
        %v1897 = vunpack.c.l.b16 %v571
        %v1898 = vunpack.c.h.b16 %v571
        %v1899 = vunpack.c.l.b16 %v572
        %v1900 = vunpack.c.h.b16 %v572
        %v1901 = vunpack.c.l.b16 %v573
        %v1902 = vunpack.c.h.b16 %v573
        %v1903 = vunpack.c.l.b16 %v574
        %v1904 = vunpack.c.h.b16 %v574
        %v1905 = vunpack.c.l.b16 %v575
        %v1906 = vunpack.c.h.b16 %v575
        %v1907 = vunpack.c.l.b16 %v576
        %v1908 = vunpack.c.h.b16 %v576
        %v1909 = vunpack.c.l.b16 %v577
        %v1910 = vunpack.c.h.b16 %v577
        %v1911 = vunpack.c.l.b16 %v578
        %v1912 = vunpack.c.h.b16 %v578
        %v1913 = vunpack.c.l.b16 %v579
        %v1914 = vunpack.c.h.b16 %v579
        %v1915 = vunpack.c.l.b16 %v580
        %v1916 = vunpack.c.h.b16 %v580
        %v1917 = vunpack.c.l.b16 %v581
        %v1918 = vunpack.c.h.b16 %v581
        %v1919 = vunpack.c.l.b16 %v582
        %v1920 = vunpack.c.h.b16 %v582
        %v1921 = vunpack.c.l.b16 %v583
        %v1922 = vunpack.c.h.b16 %v583
        %v1923 = vunpack.c.l.b16 %v584
        %v1924 = vunpack.c.h.b16 %v584
        %v1925 = vunpack.c.l.b16 %v585
        %v1926 = vunpack.c.h.b16 %v585
        %v1927 = vunpack.c.l.b16 %v586
        %v1928 = vunpack.c.h.b16 %v586
        %v1929 = vunpack.c.l.b16 %v587
        %v1930 = vunpack.c.h.b16 %v587
        %v1931 = vunpack.c.l.b16 %v588
        %v1932 = vunpack.c.h.b16 %v588
        %v1933 = vunpack.c.l.b16 %v589
        %v1934 = vunpack.c.h.b16 %v589
        %v1935 = vunpack.c.l.b16 %v590
        %v1936 = vunpack.c.h.b16 %v590
        %v1937 = vunpack.c.l.b16 %v591
        %v1938 = vunpack.c.h.b16 %v591
        %v1939 = vunpack.c.l.b16 %v592
        %v1940 = vunpack.c.h.b16 %v592
        %v1941 = vunpack.c.l.b16 %v593
        %v1942 = vunpack.c.h.b16 %v593
        %v1943 = vunpack.c.l.b16 %v594
        %v1944 = vunpack.c.h.b16 %v594
        %v1945 = vunpack.c.l.b16 %v595
        %v1946 = vunpack.c.h.b16 %v595
        %v1947 = vunpack.c.l.b16 %v596
        %v1948 = vunpack.c.h.b16 %v596
        %v1949 = vunpack.c.l.b16 %v597
        %v1950 = vunpack.c.h.b16 %v597
        %v1951 = vunpack.c.l.b16 %v598
        %v1952 = vunpack.c.h.b16 %v598
        %v1953 = vunpack.c.l.b16 %v599
        %v1954 = vunpack.c.h.b16 %v599
        %v1955 = vunpack.c.l.b16 %v600
        %v1956 = vunpack.c.h.b16 %v600
        %v1957 = vunpack.c.l.b16 %v601
        %v1958 = vunpack.c.h.b16 %v601
        %v1959 = vunpack.c.l.b16 %v602
        %v1960 = vunpack.c.h.b16 %v602
        %v1961 = vunpack.c.l.b16 %v603
        %v1962 = vunpack.c.h.b16 %v603
        %v1963 = vunpack.c.l.b16 %v604
        %v1964 = vunpack.c.h.b16 %v604
        %v1965 = vunpack.c.l.b16 %v605
        %v1966 = vunpack.c.h.b16 %v605
        %v1967 = vunpack.c.l.b16 %v606
        %v1968 = vunpack.c.h.b16 %v606
        %v1969 = vunpack.c.l.b16 %v607
        %v1970 = vunpack.c.h.b16 %v607
        %v1971 = vunpack.c.l.b16 %v608
        %v1972 = vunpack.c.h.b16 %v608
        %v1973 = vunpack.c.l.b16 %v609
        %v1974 = vunpack.c.h.b16 %v609
        %v1975 = vunpack.c.l.b16 %v610
        %v1976 = vunpack.c.h.b16 %v610
        %v1977 = vunpack.c.l.b16 %v611
        %v1978 = vunpack.c.h.b16 %v611
        %v1979 = vunpack.c.l.b16 %v612
        %v1980 = vunpack.c.h.b16 %v612
        %v1981 = vunpack.c.l.b16 %v613
        %v1982 = vunpack.c.h.b16 %v613
        %v1983 = vunpack.c.l.b16 %v614
        %v1984 = vunpack.c.h.b16 %v614
        %v1985 = vunpack.c.l.b16 %v615
        %v1986 = vunpack.c.h.b16 %v615
        %v1987 = vunpack.c.l.b16 %v616
        %v1988 = vunpack.c.h.b16 %v616
        %v1989 = vunpack.c.l.b16 %v617
        %v1990 = vunpack.c.h.b16 %v617
        %v1991 = vunpack.c.l.b16 %v618
        %v1992 = vunpack.c.h.b16 %v618
        %v1993 = vunpack.c.l.b16 %v619
        %v1994 = vunpack.c.h.b16 %v619
        %v1995 = vunpack.c.l.b16 %v620
        %v1996 = vunpack.c.h.b16 %v620
        %v1997 = vunpack.c.l.b16 %v621
        %v1998 = vunpack.c.h.b16 %v621
        %v1999 = vunpack.c.l.b16 %v622
        %v2000 = vunpack.c.h.b16 %v622
        %v2001 = vunpack.c.l.b16 %v623
        %v2002 = vunpack.c.h.b16 %v623
        %v2003 = vunpack.c.l.b16 %v624
        %v2004 = vunpack.c.h.b16 %v624
        %v2005 = vunpack.c.l.b16 %v625
        %v2006 = vunpack.c.h.b16 %v625
        %v2007 = vunpack.c.l.b16 %v626
        %v2008 = vunpack.c.h.b16 %v626
        %v2009 = vunpack.c.l.b16 %v627
        %v2010 = vunpack.c.h.b16 %v627
        %v2011 = vunpack.c.l.b16 %v628
        %v2012 = vunpack.c.h.b16 %v628
        %v2013 = vunpack.c.l.b16 %v629
        %v2014 = vunpack.c.h.b16 %v629
        %v2015 = vunpack.c.l.b16 %v630
        %v2016 = vunpack.c.h.b16 %v630
        %v2017 = vunpack.c.l.b16 %v631
        %v2018 = vunpack.c.h.b16 %v631
        %v2019 = vunpack.c.l.b16 %v632
        %v2020 = vunpack.c.h.b16 %v632
        %v2021 = vunpack.c.l.b16 %v633
        %v2022 = vunpack.c.h.b16 %v633
        %v2023 = vunpack.c.l.b16 %v634
        %v2024 = vunpack.c.h.b16 %v634
        %v2025 = vunpack.c.l.b16 %v635
        %v2026 = vunpack.c.h.b16 %v635
        %v2027 = vunpack.c.l.b16 %v636
        %v2028 = vunpack.c.h.b16 %v636
        %v2029 = vunpack.c.l.b16 %v637
        %v2030 = vunpack.c.h.b16 %v637
        %v2031 = vunpack.c.l.b16 %v638
        %v2032 = vunpack.c.h.b16 %v638
        %v2033 = vunpack.c.l.b16 %v639
        %v2034 = vunpack.c.h.b16 %v639
        %v2035 = vunpack.c.l.b16 %v640
        %v2036 = vunpack.c.h.b16 %v640
        %v2037 = vunpack.c.l.b16 %v641
        %v2038 = vunpack.c.h.b16 %v641
        %v2039 = vunpack.c.l.b16 %v642
        %v2040 = vunpack.c.h.b16 %v642
        %v2041 = vunpack.c.l.b16 %v643
        %v2042 = vunpack.c.h.b16 %v643
        %v2043 = vunpack.c.l.b16 %v644
        %v2044 = vunpack.c.h.b16 %v644
        %v2045 = vunpack.c.l.b16 %v645
        %v2046 = vunpack.c.h.b16 %v645
        %v2047 = vunpack.c.l.b16 %v646
        %v2048 = vunpack.c.h.b16 %v646
        %v2049 = vunpack.c.l.b16 %v647
        %v2050 = vunpack.c.h.b16 %v647
        %v2051 = vunpack.c.l.b16 %v648
        %v2052 = vunpack.c.h.b16 %v648
        %v2053 = vunpack.c.l.b16 %v649
        %v2054 = vunpack.c.h.b16 %v649
        %v2055 = vunpack.c.l.b16 %v650
        %v2056 = vunpack.c.h.b16 %v650
        %v2057 = vunpack.c.l.b16 %v651
        %v2058 = vunpack.c.h.b16 %v651
        %v2059 = vunpack.c.l.b16 %v652
        %v2060 = vunpack.c.h.b16 %v652
        %v2061 = vunpack.c.l.b16 %v653
        %v2062 = vunpack.c.h.b16 %v653
        %v2063 = vunpack.c.l.b16 %v654
        %v2064 = vunpack.c.h.b16 %v654
        %v2065 = vunpack.c.l.b16 %v655
        %v2066 = vunpack.c.h.b16 %v655
        %v2067 = vunpack.c.l.b16 %v656
        %v2068 = vunpack.c.h.b16 %v656
        %v2069 = vunpack.c.l.b16 %v657
        %v2070 = vunpack.c.h.b16 %v657
        %v2071 = vunpack.c.l.b16 %v658
        %v2072 = vunpack.c.h.b16 %v658
        %v2073 = vunpack.c.l.b16 %v659
        %v2074 = vunpack.c.h.b16 %v659
        %v2075 = vunpack.c.l.b16 %v660
        %v2076 = vunpack.c.h.b16 %v660
        %v2077 = vunpack.c.l.b16 %v661
        %v2078 = vunpack.c.h.b16 %v661
        %v2079 = vunpack.c.l.b16 %v662
        %v2080 = vunpack.c.h.b16 %v662
        %v2081 = vunpack.c.l.b16 %v663
        %v2082 = vunpack.c.h.b16 %v663
        %v2083 = vunpack.c.l.b16 %v664
        %v2084 = vunpack.c.h.b16 %v664
        %v2085 = vunpack.c.l.b16 %v665
        %v2086 = vunpack.c.h.b16 %v665
        %v2087 = vunpack.c.l.b16 %v666
        %v2088 = vunpack.c.h.b16 %v666
        %v2089 = vunpack.c.l.b16 %v667
        %v2090 = vunpack.c.h.b16 %v667
        %v2091 = vunpack.c.l.b16 %v668
        %v2092 = vunpack.c.h.b16 %v668
        %v2093 = vunpack.c.l.b16 %v669
        %v2094 = vunpack.c.h.b16 %v669
        %v2095 = vunpack.c.l.b16 %v670
        %v2096 = vunpack.c.h.b16 %v670
        %v2097 = vunpack.c.l.b16 %v671
        %v2098 = vunpack.c.h.b16 %v671
        %v2099 = vunpack.c.l.b16 %v672
        %v2100 = vunpack.c.h.b16 %v672
        %v2101 = vunpack.c.l.b16 %v673
        %v2102 = vunpack.c.h.b16 %v673
        %v2103 = vunpack.c.l.b16 %v674
        %v2104 = vunpack.c.h.b16 %v674
        %v2105 = vunpack.c.l.b16 %v675
        %v2106 = vunpack.c.h.b16 %v675
        %v2107 = vunpack.c.l.b16 %v676
        %v2108 = vunpack.c.h.b16 %v676
        %v2109 = vunpack.c.l.b16 %v677
        %v2110 = vunpack.c.h.b16 %v677
        %v2111 = vunpack.c.l.b16 %v678
        %v2112 = vunpack.c.h.b16 %v678
        %v2113 = vunpack.c.l.b16 %v679
        %v2114 = vunpack.c.h.b16 %v679
        %v2115 = vunpack.c.l.b16 %v680
        %v2116 = vunpack.c.h.b16 %v680
        %v2117 = vunpack.c.l.b16 %v681
        %v2118 = vunpack.c.h.b16 %v681
        %v2119 = vunpack.c.l.b16 %v682
        %v2120 = vunpack.c.h.b16 %v682
        %v2121 = vunpack.c.l.b16 %v683
        %v2122 = vunpack.c.h.b16 %v683
        %v2123 = vunpack.c.l.b16 %v684
        %v2124 = vunpack.c.h.b16 %v684
        %v2125 = vunpack.c.l.b16 %v685
        %v2126 = vunpack.c.h.b16 %v685
        %v2127 = vunpack.c.l.b16 %v686
        %v2128 = vunpack.c.h.b16 %v686
        %v2129 = vunpack.c.l.b16 %v687
        %v2130 = vunpack.c.h.b16 %v687
        %v2131 = vunpack.c.l.b16 %v688
        %v2132 = vunpack.c.h.b16 %v688
        %v2133 = vunpack.c.l.b16 %v689
        %v2134 = vunpack.c.h.b16 %v689
        %v2135 = vunpack.c.l.b16 %v690
        %v2136 = vunpack.c.h.b16 %v690
        %v2137 = vunpack.c.l.b16 %v691
        %v2138 = vunpack.c.h.b16 %v691
        %v2139 = vunpack.c.l.b16 %v692
        %v2140 = vunpack.c.h.b16 %v692
        %v2141 = vunpack.c.l.b16 %v693
        %v2142 = vunpack.c.h.b16 %v693
        %v2143 = vunpack.c.l.b16 %v694
        %v2144 = vunpack.c.h.b16 %v694
        %v2145 = vunpack.c.l.b16 %v695
        %v2146 = vunpack.c.h.b16 %v695
        %v2147 = vunpack.c.l.b16 %v696
        %v2148 = vunpack.c.h.b16 %v696
        %v2149 = vunpack.c.l.b16 %v697
        %v2150 = vunpack.c.h.b16 %v697
        %v2151 = vunpack.c.l.b16 %v698
        %v2152 = vunpack.c.h.b16 %v698
        %v2153 = vunpack.c.l.b16 %v699
        %v2154 = vunpack.c.h.b16 %v699
        %v2155 = vunpack.c.l.b16 %v700
        %v2156 = vunpack.c.h.b16 %v700
        %v2157 = vunpack.c.l.b16 %v701
        %v2158 = vunpack.c.h.b16 %v701
        %v2159 = vunpack.c.l.b16 %v702
        %v2160 = vunpack.c.h.b16 %v702
        %v2161 = vunpack.c.l.b16 %v703
        %v2162 = vunpack.c.h.b16 %v703
        %v2163 = vunpack.c.l.b16 %v704
        %v2164 = vunpack.c.h.b16 %v704
        %v2165 = vunpack.c.l.b16 %v705
        %v2166 = vunpack.c.h.b16 %v705
        %v2167 = vunpack.c.l.b16 %v706
        %v2168 = vunpack.c.h.b16 %v706
        %v2169 = vunpack.c.l.b16 %v707
        %v2170 = vunpack.c.h.b16 %v707
        %v2171 = vunpack.c.l.b16 %v708
        %v2172 = vunpack.c.h.b16 %v708
        %v2173 = vunpack.c.l.b16 %v709
        %v2174 = vunpack.c.h.b16 %v709
        %v2175 = vunpack.c.l.b16 %v710
        %v2176 = vunpack.c.h.b16 %v710
        %v2177 = vunpack.c.l.b16 %v711
        %v2178 = vunpack.c.h.b16 %v711
        %v2179 = vunpack.c.l.b16 %v712
        %v2180 = vunpack.c.h.b16 %v712
        %v2181 = vunpack.c.l.b16 %v713
        %v2182 = vunpack.c.h.b16 %v713
        %v2183 = vunpack.c.l.b16 %v714
        %v2184 = vunpack.c.h.b16 %v714
        %v2185 = vunpack.c.l.b16 %v715
        %v2186 = vunpack.c.h.b16 %v715
        %v2187 = vunpack.c.l.b16 %v716
        %v2188 = vunpack.c.h.b16 %v716
        %v2189 = vunpack.c.l.b16 %v717
        %v2190 = vunpack.c.h.b16 %v717
        %v2191 = vunpack.c.l.b16 %v718
        %v2192 = vunpack.c.h.b16 %v718
        %v2193 = vunpack.c.l.b16 %v719
        %v2194 = vunpack.c.h.b16 %v719
        %v2195 = vunpack.c.l.b16 %v720
        %v2196 = vunpack.c.h.b16 %v720
        %v2197 = vunpack.c.l.b16 %v721
        %v2198 = vunpack.c.h.b16 %v721
        %v2199 = vunpack.c.l.b16 %v722
        %v2200 = vunpack.c.h.b16 %v722
        %v2201 = vunpack.c.l.b16 %v723
        %v2202 = vunpack.c.h.b16 %v723
        %v2203 = vunpack.c.l.b16 %v724
        %v2204 = vunpack.c.h.b16 %v724
        %v2205 = vunpack.c.l.b16 %v725
        %v2206 = vunpack.c.h.b16 %v725
        %v2207 = vunpack.c.l.b16 %v726
        %v2208 = vunpack.c.h.b16 %v726
        %v2209 = vunpack.c.l.b16 %v727
        %v2210 = vunpack.c.h.b16 %v727
        %v2211 = vunpack.c.l.b16 %v728
        %v2212 = vunpack.c.h.b16 %v728
        %v2213 = vunpack.c.l.b16 %v729
        %v2214 = vunpack.c.h.b16 %v729
        %v2215 = vunpack.c.l.b16 %v730
        %v2216 = vunpack.c.h.b16 %v730
        %v2217 = vunpack.c.l.b16 %v731
        %v2218 = vunpack.c.h.b16 %v731
        %v2219 = vunpack.c.l.b16 %v732
        %v2220 = vunpack.c.h.b16 %v732
        %v2221 = vunpack.c.l.b16 %v733
        %v2222 = vunpack.c.h.b16 %v733
        %v2223 = vunpack.c.l.b16 %v734
        %v2224 = vunpack.c.h.b16 %v734
        %v2225 = vunpack.c.l.b16 %v735
        %v2226 = vunpack.c.h.b16 %v735
        %v2227 = vunpack.c.l.b16 %v736
        %v2228 = vunpack.c.h.b16 %v736
        %v2229 = vunpack.c.l.b16 %v737
        %v2230 = vunpack.c.h.b16 %v737
        %v2231 = vunpack.c.l.b16 %v738
        %v2232 = vunpack.c.h.b16 %v738
        %v2233 = vunpack.c.l.b16 %v739
        %v2234 = vunpack.c.h.b16 %v739
        %v2235 = vunpack.c.l.b16 %v740
        %v2236 = vunpack.c.h.b16 %v740
        %v2237 = vunpack.c.l.b16 %v741
        %v2238 = vunpack.c.h.b16 %v741
        %v2239 = vunpack.c.l.b16 %v742
        %v2240 = vunpack.c.h.b16 %v742
        %v2241 = vunpack.c.l.b16 %v743
        %v2242 = vunpack.c.h.b16 %v743
        %v2243 = vunpack.c.l.b16 %v744
        %v2244 = vunpack.c.h.b16 %v744
        %v2245 = vunpack.c.l.b16 %v745
        %v2246 = vunpack.c.h.b16 %v745
        %v2247 = vunpack.c.l.b16 %v746
        %v2248 = vunpack.c.h.b16 %v746
        %v2249 = vunpack.c.l.b16 %v747
        %v2250 = vunpack.c.h.b16 %v747
        %v2251 = vunpack.c.l.b16 %v748
        %v2252 = vunpack.c.h.b16 %v748
        %v2253 = vunpack.c.l.b16 %v749
        %v2254 = vunpack.c.h.b16 %v749
        %v2255 = vunpack.c.l.b16 %v750
        %v2256 = vunpack.c.h.b16 %v750
        %v2257 = vunpack.c.l.b16 %v751
        %v2258 = vunpack.c.h.b16 %v751
        %v2259 = vunpack.c.l.b16 %v752
        %v2260 = vunpack.c.h.b16 %v752
        %v2261 = vunpack.c.l.b16 %v753
        %v2262 = vunpack.c.h.b16 %v753
        %v2263 = vunpack.c.l.b16 %v754
        %v2264 = vunpack.c.h.b16 %v754
        %v2265 = vunpack.c.l.b16 %v755
        %v2266 = vunpack.c.h.b16 %v755
        %v2267 = vunpack.c.l.b16 %v756
        %v2268 = vunpack.c.h.b16 %v756
        %v2269 = vunpack.c.l.b16 %v757
        %v2270 = vunpack.c.h.b16 %v757
        %v2271 = vunpack.c.l.b16 %v758
        %v2272 = vunpack.c.h.b16 %v758
        %v2273 = vunpack.c.l.b16 %v759
        %v2274 = vunpack.c.h.b16 %v759
        %v2275 = vunpack.c.l.b16 %v760
        %v2276 = vunpack.c.h.b16 %v760
        %v2277 = vunpack.c.l.b16 %v761
        %v2278 = vunpack.c.h.b16 %v761
        %v2279 = vunpack.c.l.b16 %v762
        %v2280 = vunpack.c.h.b16 %v762
        %v2281 = vunpack.c.l.b16 %v763
        %v2282 = vunpack.c.h.b16 %v763
        %v2283 = vunpack.c.l.b16 %v764
        %v2284 = vunpack.c.h.b16 %v764
        %v2285 = vunpack.c.l.b16 %v765
        %v2286 = vunpack.c.h.b16 %v765
        %v2287 = vunpack.c.l.b16 %v766
        %v2288 = vunpack.c.h.b16 %v766
        %v2289 = vunpack.c.l.b16 %v767
        %v2290 = vunpack.c.h.b16 %v767
        %v2291 = vunpack.c.l.b16 %v768
        %v2292 = vunpack.c.h.b16 %v768
        %v2293 = vunpack.c.l.b16 %v769
        %v2294 = vunpack.c.h.b16 %v769
        %v2295 = vunpack.c.l.b16 %v770
        %v2296 = vunpack.c.h.b16 %v770
        %v2297 = vunpack.c.l.b16 %v771
        %v2298 = vunpack.c.h.b16 %v771
        %v2299 = vunpack.c.l.b16 %v772
        %v2300 = vunpack.c.h.b16 %v772
        %v2301 = vunpack.c.l.b16 %v773
        %v2302 = vunpack.c.h.b16 %v773
        %v2303 = vunpack.c.l.b16 %v774
        %v2304 = vunpack.c.h.b16 %v774
        %v2305 = vunpack.c.l.b16 %v775
        %v2306 = vunpack.c.h.b16 %v775
        %v2307 = vunpack.c.l.b16 %v776
        %v2308 = vunpack.c.h.b16 %v776
        %v2309 = vunpack.c.l.b16 %v777
        %v2310 = vunpack.c.h.b16 %v777
        %v2311 = vunpack.c.l.b16 %v778
        %v2312 = vunpack.c.h.b16 %v778
        %v2313 = vunpack.c.l.b16 %v779
        %v2314 = vunpack.c.h.b16 %v779
        %v2315 = vunpack.c.l.b16 %v780
        %v2316 = vunpack.c.h.b16 %v780
        %v2317 = vunpack.c.l.b16 %v781
        %v2318 = vunpack.c.h.b16 %v781
        %v2319 = vunpack.c.l.b16 %v782
        %v2320 = vunpack.c.h.b16 %v782
        %v2321 = vunpack.c.l.b16 %v783
        %v2322 = vunpack.c.h.b16 %v783
        %v2323 = vunpack.c.l.b16 %v784
        %v2324 = vunpack.c.h.b16 %v784
        %v2325 = vunpack.c.l.b16 %v785
        %v2326 = vunpack.c.h.b16 %v785
        %v2327 = vunpack.c.l.b16 %v786
        %v2328 = vunpack.c.h.b16 %v786
        %v2329 = vunpack.c.l.b16 %v787
        %v2330 = vunpack.c.h.b16 %v787
        %v2331 = vunpack.c.l.b16 %v788
        %v2332 = vunpack.c.h.b16 %v788
        %v2333 = vunpack.c.l.b16 %v789
        %v2334 = vunpack.c.h.b16 %v789
        %v2335 = vunpack.c.l.b16 %v790
        %v2336 = vunpack.c.h.b16 %v790
        %v2337 = vunpack.c.l.b16 %v791
        %v2338 = vunpack.c.h.b16 %v791
        %v2339 = vunpack.c.l.b16 %v792
        %v2340 = vunpack.c.h.b16 %v792
        %v2341 = vunpack.c.l.b16 %v793
        %v2342 = vunpack.c.h.b16 %v793
        %v2343 = vunpack.c.l.b16 %v794
        %v2344 = vunpack.c.h.b16 %v794
        %v2345 = vunpack.c.l.b16 %v795
        %v2346 = vunpack.c.h.b16 %v795
        %v2347 = vunpack.c.l.b16 %v796
        %v2348 = vunpack.c.h.b16 %v796
        %v2349 = vunpack.c.l.b16 %v797
        %v2350 = vunpack.c.h.b16 %v797
        %v2351 = vunpack.c.l.b16 %v798
        %v2352 = vunpack.c.h.b16 %v798
        %v2353 = vunpack.c.l.b16 %v799
        %v2354 = vunpack.c.h.b16 %v799
        %v2355 = vunpack.c.l.b16 %v800
        %v2356 = vunpack.c.h.b16 %v800
        %v2357 = vunpack.c.l.b16 %v801
        %v2358 = vunpack.c.h.b16 %v801
        %v2359 = vunpack.c.l.b16 %v802
        %v2360 = vunpack.c.h.b16 %v802
        %v2361 = vunpack.c.l.b16 %v803
        %v2362 = vunpack.c.h.b16 %v803
        %v2363 = vunpack.c.l.b16 %v804
        %v2364 = vunpack.c.h.b16 %v804
        %v2365 = vunpack.c.l.b16 %v805
        %v2366 = vunpack.c.h.b16 %v805
        %v2367 = vunpack.c.l.b16 %v806
        %v2368 = vunpack.c.h.b16 %v806
        %v2369 = vunpack.c.l.b16 %v807
        %v2370 = vunpack.c.h.b16 %v807
        %v2371 = vunpack.c.l.b16 %v808
        %v2372 = vunpack.c.h.b16 %v808
        %v2373 = vunpack.c.l.b16 %v809
        %v2374 = vunpack.c.h.b16 %v809
        %v2375 = vunpack.c.l.b16 %v810
        %v2376 = vunpack.c.h.b16 %v810
        %v2377 = vunpack.c.l.b16 %v811
        %v2378 = vunpack.c.h.b16 %v811
        %v2379 = vunpack.c.l.b16 %v812
        %v2380 = vunpack.c.h.b16 %v812
        %v2381 = vunpack.c.l.b16 %v813
        %v2382 = vunpack.c.h.b16 %v813
        %v2383 = vunpack.c.l.b16 %v814
        %v2384 = vunpack.c.h.b16 %v814
        %v2385 = vunpack.c.l.b16 %v815
        %v2386 = vunpack.c.h.b16 %v815
        %v2387 = vunpack.c.l.b16 %v816
        %v2388 = vunpack.c.h.b16 %v816
        %v2389 = vunpack.c.l.b16 %v817
        %v2390 = vunpack.c.h.b16 %v817
        %v2391 = vunpack.c.l.b16 %v818
        %v2392 = vunpack.c.h.b16 %v818
        %v2393 = vunpack.c.l.b16 %v819
        %v2394 = vunpack.c.h.b16 %v819
        %v2395 = vunpack.c.l.b16 %v820
        %v2396 = vunpack.c.h.b16 %v820
        %v2397 = vunpack.c.l.b16 %v821
        %v2398 = vunpack.c.h.b16 %v821
        %v2399 = vunpack.c.l.b16 %v822
        %v2400 = vunpack.c.h.b16 %v822
        %v2401 = vunpack.c.l.b16 %v823
        %v2402 = vunpack.c.h.b16 %v823
        %v2403 = vunpack.c.l.b16 %v824
        %v2404 = vunpack.c.h.b16 %v824
        %v2405 = vunpack.c.l.b16 %v825
        %v2406 = vunpack.c.h.b16 %v825
        %v2407 = vunpack.c.l.b16 %v826
        %v2408 = vunpack.c.h.b16 %v826
        %v2409 = vunpack.c.l.b16 %v827
        %v2410 = vunpack.c.h.b16 %v827
        %v2411 = vunpack.c.l.b16 %v828
        %v2412 = vunpack.c.h.b16 %v828
        %v2413 = vunpack.c.l.b16 %v829
        %v2414 = vunpack.c.h.b16 %v829
        %v2415 = vunpack.c.l.b16 %v830
        %v2416 = vunpack.c.h.b16 %v830
        %v2417 = vunpack.c.l.b16 %v831
        %v2418 = vunpack.c.h.b16 %v831
        %v2419 = vunpack.c.l.b16 %v832
        %v2420 = vunpack.c.h.b16 %v832
        %v2421 = vunpack.c.l.b16 %v833
        %v2422 = vunpack.c.h.b16 %v833
        %v2423 = vunpack.c.l.b16 %v834
        %v2424 = vunpack.c.h.b16 %v834
        %v2425 = vunpack.c.l.b16 %v835
        %v2426 = vunpack.c.h.b16 %v835
        %v2427 = vunpack.c.l.b16 %v836
        %v2428 = vunpack.c.h.b16 %v836
        %v2429 = vunpack.c.l.b16 %v837
        %v2430 = vunpack.c.h.b16 %v837
        %v2431 = vunpack.c.l.b16 %v838
        %v2432 = vunpack.c.h.b16 %v838
        %v2433 = vunpack.c.l.b16 %v839
        %v2434 = vunpack.c.h.b16 %v839
        %v2435 = vunpack.c.l.b16 %v840
        %v2436 = vunpack.c.h.b16 %v840
        %v2437 = vunpack.c.l.b16 %v841
        %v2438 = vunpack.c.h.b16 %v841
        %v2439 = vunpack.c.l.b16 %v842
        %v2440 = vunpack.c.h.b16 %v842
        %v2441 = vunpack.c.l.b16 %v843
        %v2442 = vunpack.c.h.b16 %v843
        %v2443 = vunpack.c.l.b16 %v844
        %v2444 = vunpack.c.h.b16 %v844
        %v2445 = vunpack.c.l.b16 %v845
        %v2446 = vunpack.c.h.b16 %v845
        %v2447 = vunpack.c.l.b16 %v846
        %v2448 = vunpack.c.h.b16 %v846
        %v2449 = vunpack.c.l.b16 %v847
        %v2450 = vunpack.c.h.b16 %v847
        %v2451 = vunpack.c.l.b16 %v848
        %v2452 = vunpack.c.h.b16 %v848
        %v2453 = vunpack.c.l.b16 %v849
        %v2454 = vunpack.c.h.b16 %v849
        %v2455 = vunpack.c.l.b16 %v850
        %v2456 = vunpack.c.h.b16 %v850
        %v2457 = vunpack.c.l.b16 %v851
        %v2458 = vunpack.c.h.b16 %v851
        %v2459 = vunpack.c.l.b16 %v852
        %v2460 = vunpack.c.h.b16 %v852
        %v2461 = vunpack.c.l.b16 %v853
        %v2462 = vunpack.c.h.b16 %v853
        %v2463 = vunpack.c.l.b16 %v854
        %v2464 = vunpack.c.h.b16 %v854
        %v2465 = vunpack.c.l.b16 %v855
        %v2466 = vunpack.c.h.b16 %v855
        %v2467 = vunpack.c.l.b16 %v856
        %v2468 = vunpack.c.h.b16 %v856
        %v2469 = vunpack.c.l.b16 %v857
        %v2470 = vunpack.c.h.b16 %v857
        %v2471 = vunpack.c.l.b16 %v858
        %v2472 = vunpack.c.h.b16 %v858
        %v2473 = vunpack.c.l.b16 %v859
        %v2474 = vunpack.c.h.b16 %v859
        %v2475 = vunpack.c.l.b16 %v860
        %v2476 = vunpack.c.h.b16 %v860
        %v2477 = vunpack.c.l.b16 %v861
        %v2478 = vunpack.c.h.b16 %v861
        %v2479 = vunpack.c.l.b16 %v862
        %v2480 = vunpack.c.h.b16 %v862
        %v2481 = vunpack.c.l.b16 %v863
        %v2482 = vunpack.c.h.b16 %v863
        %v2483 = vunpack.c.l.b16 %v864
        %v2484 = vunpack.c.h.b16 %v864
        %v2485 = vunpack.c.l.b16 %v865
        %v2486 = vunpack.c.h.b16 %v865
        %v2487 = vunpack.c.l.b16 %v866
        %v2488 = vunpack.c.h.b16 %v866
        %v2489 = vunpack.c.l.b16 %v867
        %v2490 = vunpack.c.h.b16 %v867
        %v2491 = vunpack.c.l.b16 %v868
        %v2492 = vunpack.c.h.b16 %v868
        %v2493 = vunpack.c.l.b16 %v869
        %v2494 = vunpack.c.h.b16 %v869
        %v2495 = vunpack.c.l.b16 %v870
        %v2496 = vunpack.c.h.b16 %v870
        %v2497 = vunpack.c.l.b16 %v871
        %v2498 = vunpack.c.h.b16 %v871
        %v2499 = vunpack.c.l.b16 %v872
        %v2500 = vunpack.c.h.b16 %v872
        %v2501 = vunpack.c.l.b16 %v873
        %v2502 = vunpack.c.h.b16 %v873
        %v2503 = vunpack.c.l.b16 %v874
        %v2504 = vunpack.c.h.b16 %v874
        %v2505 = vunpack.c.l.b16 %v875
        %v2506 = vunpack.c.h.b16 %v875
        %v2507 = vunpack.c.l.b16 %v876
        %v2508 = vunpack.c.h.b16 %v876
        %v2509 = vunpack.c.l.b16 %v877
        %v2510 = vunpack.c.h.b16 %v877
        %v2511 = vunpack.c.l.b16 %v878
        %v2512 = vunpack.c.h.b16 %v878
        %v2513 = vunpack.c.l.b16 %v879
        %v2514 = vunpack.c.h.b16 %v879
        %v2515 = vunpack.c.l.b16 %v880
        %v2516 = vunpack.c.h.b16 %v880
        %v2517 = vunpack.c.l.b16 %v881
        %v2518 = vunpack.c.h.b16 %v881
        %v2519 = vunpack.c.l.b16 %v882
        %v2520 = vunpack.c.h.b16 %v882
        %v2521 = vunpack.c.l.b16 %v883
        %v2522 = vunpack.c.h.b16 %v883
        %v2523 = vunpack.c.l.b16 %v884
        %v2524 = vunpack.c.h.b16 %v884
        %v2525 = vunpack.c.l.b16 %v885
        %v2526 = vunpack.c.h.b16 %v885
        %v2527 = vunpack.c.l.b16 %v886
        %v2528 = vunpack.c.h.b16 %v886
        %v2529 = vunpack.c.l.b16 %v887
        %v2530 = vunpack.c.h.b16 %v887
        %v2531 = vunpack.c.l.b16 %v888
        %v2532 = vunpack.c.h.b16 %v888
        %v2533 = vunpack.c.l.b16 %v889
        %v2534 = vunpack.c.h.b16 %v889
        %v2535 = vunpack.c.l.b16 %v890
        %v2536 = vunpack.c.h.b16 %v890
        %v2537 = vunpack.c.l.b16 %v891
        %v2538 = vunpack.c.h.b16 %v891
        %v2539 = vunpack.c.l.b16 %v892
        %v2540 = vunpack.c.h.b16 %v892
        %v2541 = vunpack.c.l.b16 %v893
        %v2542 = vunpack.c.h.b16 %v893
        %v2543 = vunpack.c.l.b16 %v894
        %v2544 = vunpack.c.h.b16 %v894
        %v2545 = vunpack.c.l.b16 %v895
        %v2546 = vunpack.c.h.b16 %v895
        %v2547 = vunpack.c.l.b16 %v896
        %v2548 = vunpack.c.h.b16 %v896
        %v2549 = vunpack.c.l.b16 %v897
        %v2550 = vunpack.c.h.b16 %v897
        %v2551 = vunpack.c.l.b16 %v898
        %v2552 = vunpack.c.h.b16 %v898
        %v2553 = vunpack.c.l.b16 %v899
        %v2554 = vunpack.c.h.b16 %v899
        %v2555 = vunpack.c.l.b16 %v900
        %v2556 = vunpack.c.h.b16 %v900
        %v2557 = vunpack.c.l.b16 %v901
        %v2558 = vunpack.c.h.b16 %v901
        %v2559 = vunpack.c.l.b16 %v902
        %v2560 = vunpack.c.h.b16 %v902
        %v2561 = vunpack.c.l.b16 %v903
        %v2562 = vunpack.c.h.b16 %v903
        %v2563 = vunpack.c.l.b16 %v904
        %v2564 = vunpack.c.h.b16 %v904
        %v2565 = vpack.c.b16 %v1543, %v1541
        %v2566 = vpack.c.b16 %v1544, %v1542
        %v2567 = vpack.c.b16 %v1547, %v1545
        %v2568 = vpack.c.b16 %v1548, %v1546
        %v2569 = vpack.c.b16 %v1551, %v1549
        %v2570 = vpack.c.b16 %v1552, %v1550
        %v2571 = vpack.c.b16 %v1555, %v1553
        %v2572 = vpack.c.b16 %v1556, %v1554
        %v2573 = vpack.c.b16 %v1559, %v1557
        %v2574 = vpack.c.b16 %v1560, %v1558
        %v2575 = vpack.c.b16 %v1563, %v1561
        %v2576 = vpack.c.b16 %v1564, %v1562
        %v2577 = vpack.c.b16 %v1567, %v1565
        %v2578 = vpack.c.b16 %v1568, %v1566
        %v2579 = vpack.c.b16 %v1571, %v1569
        %v2580 = vpack.c.b16 %v1572, %v1570
        %v2581 = vpack.c.b16 %v1575, %v1573
        %v2582 = vpack.c.b16 %v1576, %v1574
        %v2583 = vpack.c.b16 %v1579, %v1577
        %v2584 = vpack.c.b16 %v1580, %v1578
        %v2585 = vpack.c.b16 %v1583, %v1581
        %v2586 = vpack.c.b16 %v1584, %v1582
        %v2587 = vpack.c.b16 %v1587, %v1585
        %v2588 = vpack.c.b16 %v1588, %v1586
        %v2589 = vpack.c.b16 %v1591, %v1589
        %v2590 = vpack.c.b16 %v1592, %v1590
        %v2591 = vpack.c.b16 %v1595, %v1593
        %v2592 = vpack.c.b16 %v1596, %v1594
        %v2593 = vpack.c.b16 %v1599, %v1597
        %v2594 = vpack.c.b16 %v1600, %v1598
        %v2595 = vpack.c.b16 %v1603, %v1601
        %v2596 = vpack.c.b16 %v1604, %v1602
        %v2597 = vpack.c.b16 %v1607, %v1605
        %v2598 = vpack.c.b16 %v1608, %v1606
        %v2599 = vpack.c.b16 %v1611, %v1609
        %v2600 = vpack.c.b16 %v1612, %v1610
        %v2601 = vpack.c.b16 %v1615, %v1613
        %v2602 = vpack.c.b16 %v1616, %v1614
        %v2603 = vpack.c.b16 %v1619, %v1617
        %v2604 = vpack.c.b16 %v1620, %v1618
        %v2605 = vpack.c.b16 %v1623, %v1621
        %v2606 = vpack.c.b16 %v1624, %v1622
        %v2607 = vpack.c.b16 %v1627, %v1625
        %v2608 = vpack.c.b16 %v1628, %v1626
        %v2609 = vpack.c.b16 %v1631, %v1629
        %v2610 = vpack.c.b16 %v1632, %v1630
        %v2611 = vpack.c.b16 %v1635, %v1633
        %v2612 = vpack.c.b16 %v1636, %v1634
        %v2613 = vpack.c.b16 %v1639, %v1637
        %v2614 = vpack.c.b16 %v1640, %v1638
        %v2615 = vpack.c.b16 %v1643, %v1641
        %v2616 = vpack.c.b16 %v1644, %v1642
        %v2617 = vpack.c.b16 %v1647, %v1645
        %v2618 = vpack.c.b16 %v1648, %v1646
        %v2619 = vpack.c.b16 %v1651, %v1649
        %v2620 = vpack.c.b16 %v1652, %v1650
        %v2621 = vpack.c.b16 %v1655, %v1653
        %v2622 = vpack.c.b16 %v1656, %v1654
        %v2623 = vpack.c.b16 %v1659, %v1657
        %v2624 = vpack.c.b16 %v1660, %v1658
        %v2625 = vpack.c.b16 %v1663, %v1661
        %v2626 = vpack.c.b16 %v1664, %v1662
        %v2627 = vpack.c.b16 %v1667, %v1665
        %v2628 = vpack.c.b16 %v1668, %v1666
        %v2629 = vpack.c.b16 %v1671, %v1669
        %v2630 = vpack.c.b16 %v1672, %v1670
        %v2631 = vpack.c.b16 %v1675, %v1673
        %v2632 = vpack.c.b16 %v1676, %v1674
        %v2633 = vpack.c.b16 %v1679, %v1677
        %v2634 = vpack.c.b16 %v1680, %v1678
        %v2635 = vpack.c.b16 %v1683, %v1681
        %v2636 = vpack.c.b16 %v1684, %v1682
        %v2637 = vpack.c.b16 %v1687, %v1685
        %v2638 = vpack.c.b16 %v1688, %v1686
        %v2639 = vpack.c.b16 %v1691, %v1689
        %v2640 = vpack.c.b16 %v1692, %v1690
        %v2641 = vpack.c.b16 %v1695, %v1693
        %v2642 = vpack.c.b16 %v1696, %v1694
        %v2643 = vpack.c.b16 %v1699, %v1697
        %v2644 = vpack.c.b16 %v1700, %v1698
        %v2645 = vpack.c.b16 %v1703, %v1701
        %v2646 = vpack.c.b16 %v1704, %v1702
        %v2647 = vpack.c.b16 %v1707, %v1705
        %v2648 = vpack.c.b16 %v1708, %v1706
        %v2649 = vpack.c.b16 %v1711, %v1709
        %v2650 = vpack.c.b16 %v1712, %v1710
        %v2651 = vpack.c.b16 %v1715, %v1713
        %v2652 = vpack.c.b16 %v1716, %v1714
        %v2653 = vpack.c.b16 %v1719, %v1717
        %v2654 = vpack.c.b16 %v1720, %v1718
        %v2655 = vpack.c.b16 %v1723, %v1721
        %v2656 = vpack.c.b16 %v1724, %v1722
        %v2657 = vpack.c.b16 %v1727, %v1725
        %v2658 = vpack.c.b16 %v1728, %v1726
        %v2659 = vpack.c.b16 %v1731, %v1729
        %v2660 = vpack.c.b16 %v1732, %v1730
        %v2661 = vpack.c.b16 %v1735, %v1733
        %v2662 = vpack.c.b16 %v1736, %v1734
        %v2663 = vpack.c.b16 %v1739, %v1737
        %v2664 = vpack.c.b16 %v1740, %v1738
        %v2665 = vpack.c.b16 %v1743, %v1741
        %v2666 = vpack.c.b16 %v1744, %v1742
        %v2667 = vpack.c.b16 %v1747, %v1745
        %v2668 = vpack.c.b16 %v1748, %v1746
        %v2669 = vpack.c.b16 %v1751, %v1749
        %v2670 = vpack.c.b16 %v1752, %v1750
        %v2671 = vpack.c.b16 %v1755, %v1753
        %v2672 = vpack.c.b16 %v1756, %v1754
        %v2673 = vpack.c.b16 %v1759, %v1757
        %v2674 = vpack.c.b16 %v1760, %v1758
        %v2675 = vpack.c.b16 %v1763, %v1761
        %v2676 = vpack.c.b16 %v1764, %v1762
        %v2677 = vpack.c.b16 %v1767, %v1765
        %v2678 = vpack.c.b16 %v1768, %v1766
        %v2679 = vpack.c.b16 %v1771, %v1769
        %v2680 = vpack.c.b16 %v1772, %v1770
        %v2681 = vpack.c.b16 %v1775, %v1773
        %v2682 = vpack.c.b16 %v1776, %v1774
        %v2683 = vpack.c.b16 %v1779, %v1777
        %v2684 = vpack.c.b16 %v1780, %v1778
        %v2685 = vpack.c.b16 %v1783, %v1781
        %v2686 = vpack.c.b16 %v1784, %v1782
        %v2687 = vpack.c.b16 %v1787, %v1785
        %v2688 = vpack.c.b16 %v1788, %v1786
        %v2689 = vpack.c.b16 %v1791, %v1789
        %v2690 = vpack.c.b16 %v1792, %v1790
        %v2691 = vpack.c.b16 %v1795, %v1793
        %v2692 = vpack.c.b16 %v1796, %v1794
        %v2693 = vpack.c.b16 %v1799, %v1797
        %v2694 = vpack.c.b16 %v1800, %v1798
        %v2695 = vpack.c.b16 %v1803, %v1801
        %v2696 = vpack.c.b16 %v1804, %v1802
        %v2697 = vpack.c.b16 %v1807, %v1805
        %v2698 = vpack.c.b16 %v1808, %v1806
        %v2699 = vpack.c.b16 %v1811, %v1809
        %v2700 = vpack.c.b16 %v1812, %v1810
        %v2701 = vpack.c.b16 %v1815, %v1813
        %v2702 = vpack.c.b16 %v1816, %v1814
        %v2703 = vpack.c.b16 %v1819, %v1817
        %v2704 = vpack.c.b16 %v1820, %v1818
        %v2705 = vpack.c.b16 %v1823, %v1821
        %v2706 = vpack.c.b16 %v1824, %v1822
        %v2707 = vpack.c.b16 %v1827, %v1825
        %v2708 = vpack.c.b16 %v1828, %v1826
        %v2709 = vpack.c.b16 %v1831, %v1829
        %v2710 = vpack.c.b16 %v1832, %v1830
        %v2711 = vpack.c.b16 %v1835, %v1833
        %v2712 = vpack.c.b16 %v1836, %v1834
        %v2713 = vpack.c.b16 %v1839, %v1837
        %v2714 = vpack.c.b16 %v1840, %v1838
        %v2715 = vpack.c.b16 %v1843, %v1841
        %v2716 = vpack.c.b16 %v1844, %v1842
        %v2717 = vpack.c.b16 %v1847, %v1845
        %v2718 = vpack.c.b16 %v1848, %v1846
        %v2719 = vpack.c.b16 %v1851, %v1849
        %v2720 = vpack.c.b16 %v1852, %v1850
        %v2721 = vpack.c.b16 %v1855, %v1853
        %v2722 = vpack.c.b16 %v1856, %v1854
        %v2723 = vpack.c.b16 %v1859, %v1857
        %v2724 = vpack.c.b16 %v1860, %v1858
        %v2725 = vpack.c.b16 %v1863, %v1861
        %v2726 = vpack.c.b16 %v1864, %v1862
        %v2727 = vpack.c.b16 %v1867, %v1865
        %v2728 = vpack.c.b16 %v1868, %v1866
        %v2729 = vpack.c.b16 %v1871, %v1869
        %v2730 = vpack.c.b16 %v1872, %v1870
        %v2731 = vpack.c.b16 %v1875, %v1873
        %v2732 = vpack.c.b16 %v1876, %v1874
        %v2733 = vpack.c.b16 %v1879, %v1877
        %v2734 = vpack.c.b16 %v1880, %v1878
        %v2735 = vpack.c.b16 %v1883, %v1881
        %v2736 = vpack.c.b16 %v1884, %v1882
        %v2737 = vpack.c.b16 %v1887, %v1885
        %v2738 = vpack.c.b16 %v1888, %v1886
        %v2739 = vpack.c.b16 %v1891, %v1889
        %v2740 = vpack.c.b16 %v1892, %v1890
        %v2741 = vpack.c.b16 %v1895, %v1893
        %v2742 = vpack.c.b16 %v1896, %v1894
        %v2743 = vpack.c.b16 %v1899, %v1897
        %v2744 = vpack.c.b16 %v1900, %v1898
        %v2745 = vpack.c.b16 %v1903, %v1901
        %v2746 = vpack.c.b16 %v1904, %v1902
        %v2747 = vpack.c.b16 %v1907, %v1905
        %v2748 = vpack.c.b16 %v1908, %v1906
        %v2749 = vpack.c.b16 %v1911, %v1909
        %v2750 = vpack.c.b16 %v1912, %v1910
        %v2751 = vpack.c.b16 %v1915, %v1913
        %v2752 = vpack.c.b16 %v1916, %v1914
        %v2753 = vpack.c.b16 %v1919, %v1917
        %v2754 = vpack.c.b16 %v1920, %v1918
        %v2755 = vpack.c.b16 %v1923, %v1921
        %v2756 = vpack.c.b16 %v1924, %v1922
        %v2757 = vpack.c.b16 %v1927, %v1925
        %v2758 = vpack.c.b16 %v1928, %v1926
        %v2759 = vpack.c.b16 %v1931, %v1929
        %v2760 = vpack.c.b16 %v1932, %v1930
        %v2761 = vpack.c.b16 %v1935, %v1933
        %v2762 = vpack.c.b16 %v1936, %v1934
        %v2763 = vpack.c.b16 %v1939, %v1937
        %v2764 = vpack.c.b16 %v1940, %v1938
        %v2765 = vpack.c.b16 %v1943, %v1941
        %v2766 = vpack.c.b16 %v1944, %v1942
        %v2767 = vpack.c.b16 %v1947, %v1945
        %v2768 = vpack.c.b16 %v1948, %v1946
        %v2769 = vpack.c.b16 %v1951, %v1949
        %v2770 = vpack.c.b16 %v1952, %v1950
        %v2771 = vpack.c.b16 %v1955, %v1953
        %v2772 = vpack.c.b16 %v1956, %v1954
        %v2773 = vpack.c.b16 %v1959, %v1957
        %v2774 = vpack.c.b16 %v1960, %v1958
        %v2775 = vpack.c.b16 %v1963, %v1961
        %v2776 = vpack.c.b16 %v1964, %v1962
        %v2777 = vpack.c.b16 %v1967, %v1965
        %v2778 = vpack.c.b16 %v1968, %v1966
        %v2779 = vpack.c.b16 %v1971, %v1969
        %v2780 = vpack.c.b16 %v1972, %v1970
        %v2781 = vpack.c.b16 %v1975, %v1973
        %v2782 = vpack.c.b16 %v1976, %v1974
        %v2783 = vpack.c.b16 %v1979, %v1977
        %v2784 = vpack.c.b16 %v1980, %v1978
        %v2785 = vpack.c.b16 %v1983, %v1981
        %v2786 = vpack.c.b16 %v1984, %v1982
        %v2787 = vpack.c.b16 %v1987, %v1985
        %v2788 = vpack.c.b16 %v1988, %v1986
        %v2789 = vpack.c.b16 %v1991, %v1989
        %v2790 = vpack.c.b16 %v1992, %v1990
        %v2791 = vpack.c.b16 %v1995, %v1993
        %v2792 = vpack.c.b16 %v1996, %v1994
        %v2793 = vpack.c.b16 %v1999, %v1997
        %v2794 = vpack.c.b16 %v2000, %v1998
        %v2795 = vpack.c.b16 %v2003, %v2001
        %v2796 = vpack.c.b16 %v2004, %v2002
        %v2797 = vpack.c.b16 %v2007, %v2005
        %v2798 = vpack.c.b16 %v2008, %v2006
        %v2799 = vpack.c.b16 %v2011, %v2009
        %v2800 = vpack.c.b16 %v2012, %v2010
        %v2801 = vpack.c.b16 %v2015, %v2013
        %v2802 = vpack.c.b16 %v2016, %v2014
        %v2803 = vpack.c.b16 %v2019, %v2017
        %v2804 = vpack.c.b16 %v2020, %v2018
        %v2805 = vpack.c.b16 %v2023, %v2021
        %v2806 = vpack.c.b16 %v2024, %v2022
        %v2807 = vpack.c.b16 %v2027, %v2025
        %v2808 = vpack.c.b16 %v2028, %v2026
        %v2809 = vpack.c.b16 %v2031, %v2029
        %v2810 = vpack.c.b16 %v2032, %v2030
        %v2811 = vpack.c.b16 %v2035, %v2033
        %v2812 = vpack.c.b16 %v2036, %v2034
        %v2813 = vpack.c.b16 %v2039, %v2037
        %v2814 = vpack.c.b16 %v2040, %v2038
        %v2815 = vpack.c.b16 %v2043, %v2041
        %v2816 = vpack.c.b16 %v2044, %v2042
        %v2817 = vpack.c.b16 %v2047, %v2045
        %v2818 = vpack.c.b16 %v2048, %v2046
        %v2819 = vpack.c.b16 %v2051, %v2049
        %v2820 = vpack.c.b16 %v2052, %v2050
        %v2821 = vpack.c.b16 %v2055, %v2053
        %v2822 = vpack.c.b16 %v2056, %v2054
        %v2823 = vpack.c.b16 %v2059, %v2057
        %v2824 = vpack.c.b16 %v2060, %v2058
        %v2825 = vpack.c.b16 %v2063, %v2061
        %v2826 = vpack.c.b16 %v2064, %v2062
        %v2827 = vpack.c.b16 %v2067, %v2065
        %v2828 = vpack.c.b16 %v2068, %v2066
        %v2829 = vpack.c.b16 %v2071, %v2069
        %v2830 = vpack.c.b16 %v2072, %v2070
        %v2831 = vpack.c.b16 %v2075, %v2073
        %v2832 = vpack.c.b16 %v2076, %v2074
        %v2833 = vpack.c.b16 %v2079, %v2077
        %v2834 = vpack.c.b16 %v2080, %v2078
        %v2835 = vpack.c.b16 %v2083, %v2081
        %v2836 = vpack.c.b16 %v2084, %v2082
        %v2837 = vpack.c.b16 %v2087, %v2085
        %v2838 = vpack.c.b16 %v2088, %v2086
        %v2839 = vpack.c.b16 %v2091, %v2089
        %v2840 = vpack.c.b16 %v2092, %v2090
        %v2841 = vpack.c.b16 %v2095, %v2093
        %v2842 = vpack.c.b16 %v2096, %v2094
        %v2843 = vpack.c.b16 %v2099, %v2097
        %v2844 = vpack.c.b16 %v2100, %v2098
        %v2845 = vpack.c.b16 %v2103, %v2101
        %v2846 = vpack.c.b16 %v2104, %v2102
        %v2847 = vpack.c.b16 %v2107, %v2105
        %v2848 = vpack.c.b16 %v2108, %v2106
        %v2849 = vpack.c.b16 %v2111, %v2109
        %v2850 = vpack.c.b16 %v2112, %v2110
        %v2851 = vpack.c.b16 %v2115, %v2113
        %v2852 = vpack.c.b16 %v2116, %v2114
        %v2853 = vpack.c.b16 %v2119, %v2117
        %v2854 = vpack.c.b16 %v2120, %v2118
        %v2855 = vpack.c.b16 %v2123, %v2121
        %v2856 = vpack.c.b16 %v2124, %v2122
        %v2857 = vpack.c.b16 %v2127, %v2125
        %v2858 = vpack.c.b16 %v2128, %v2126
        %v2859 = vpack.c.b16 %v2131, %v2129
        %v2860 = vpack.c.b16 %v2132, %v2130
        %v2861 = vpack.c.b16 %v2135, %v2133
        %v2862 = vpack.c.b16 %v2136, %v2134
        %v2863 = vpack.c.b16 %v2139, %v2137
        %v2864 = vpack.c.b16 %v2140, %v2138
        %v2865 = vpack.c.b16 %v2143, %v2141
        %v2866 = vpack.c.b16 %v2144, %v2142
        %v2867 = vpack.c.b16 %v2147, %v2145
        %v2868 = vpack.c.b16 %v2148, %v2146
        %v2869 = vpack.c.b16 %v2151, %v2149
        %v2870 = vpack.c.b16 %v2152, %v2150
        %v2871 = vpack.c.b16 %v2155, %v2153
        %v2872 = vpack.c.b16 %v2156, %v2154
        %v2873 = vpack.c.b16 %v2159, %v2157
        %v2874 = vpack.c.b16 %v2160, %v2158
        %v2875 = vpack.c.b16 %v2163, %v2161
        %v2876 = vpack.c.b16 %v2164, %v2162
        %v2877 = vpack.c.b16 %v2167, %v2165
        %v2878 = vpack.c.b16 %v2168, %v2166
        %v2879 = vpack.c.b16 %v2171, %v2169
        %v2880 = vpack.c.b16 %v2172, %v2170
        %v2881 = vpack.c.b16 %v2175, %v2173
        %v2882 = vpack.c.b16 %v2176, %v2174
        %v2883 = vpack.c.b16 %v2179, %v2177
        %v2884 = vpack.c.b16 %v2180, %v2178
        %v2885 = vpack.c.b16 %v2183, %v2181
        %v2886 = vpack.c.b16 %v2184, %v2182
        %v2887 = vpack.c.b16 %v2187, %v2185
        %v2888 = vpack.c.b16 %v2188, %v2186
        %v2889 = vpack.c.b16 %v2191, %v2189
        %v2890 = vpack.c.b16 %v2192, %v2190
        %v2891 = vpack.c.b16 %v2195, %v2193
        %v2892 = vpack.c.b16 %v2196, %v2194
        %v2893 = vpack.c.b16 %v2199, %v2197
        %v2894 = vpack.c.b16 %v2200, %v2198
        %v2895 = vpack.c.b16 %v2203, %v2201
        %v2896 = vpack.c.b16 %v2204, %v2202
        %v2897 = vpack.c.b16 %v2207, %v2205
        %v2898 = vpack.c.b16 %v2208, %v2206
        %v2899 = vpack.c.b16 %v2211, %v2209
        %v2900 = vpack.c.b16 %v2212, %v2210
        %v2901 = vpack.c.b16 %v2215, %v2213
        %v2902 = vpack.c.b16 %v2216, %v2214
        %v2903 = vpack.c.b16 %v2219, %v2217
        %v2904 = vpack.c.b16 %v2220, %v2218
        %v2905 = vpack.c.b16 %v2223, %v2221
        %v2906 = vpack.c.b16 %v2224, %v2222
        %v2907 = vpack.c.b16 %v2227, %v2225
        %v2908 = vpack.c.b16 %v2228, %v2226
        %v2909 = vpack.c.b16 %v2231, %v2229
        %v2910 = vpack.c.b16 %v2232, %v2230
        %v2911 = vpack.c.b16 %v2235, %v2233
        %v2912 = vpack.c.b16 %v2236, %v2234
        %v2913 = vpack.c.b16 %v2239, %v2237
        %v2914 = vpack.c.b16 %v2240, %v2238
        %v2915 = vpack.c.b16 %v2243, %v2241
        %v2916 = vpack.c.b16 %v2244, %v2242
        %v2917 = vpack.c.b16 %v2247, %v2245
        %v2918 = vpack.c.b16 %v2248, %v2246
        %v2919 = vpack.c.b16 %v2251, %v2249
        %v2920 = vpack.c.b16 %v2252, %v2250
        %v2921 = vpack.c.b16 %v2255, %v2253
        %v2922 = vpack.c.b16 %v2256, %v2254
        %v2923 = vpack.c.b16 %v2259, %v2257
        %v2924 = vpack.c.b16 %v2260, %v2258
        %v2925 = vpack.c.b16 %v2263, %v2261
        %v2926 = vpack.c.b16 %v2264, %v2262
        %v2927 = vpack.c.b16 %v2267, %v2265
        %v2928 = vpack.c.b16 %v2268, %v2266
        %v2929 = vpack.c.b16 %v2271, %v2269
        %v2930 = vpack.c.b16 %v2272, %v2270
        %v2931 = vpack.c.b16 %v2275, %v2273
        %v2932 = vpack.c.b16 %v2276, %v2274
        %v2933 = vpack.c.b16 %v2279, %v2277
        %v2934 = vpack.c.b16 %v2280, %v2278
        %v2935 = vpack.c.b16 %v2283, %v2281
        %v2936 = vpack.c.b16 %v2284, %v2282
        %v2937 = vpack.c.b16 %v2287, %v2285
        %v2938 = vpack.c.b16 %v2288, %v2286
        %v2939 = vpack.c.b16 %v2291, %v2289
        %v2940 = vpack.c.b16 %v2292, %v2290
        %v2941 = vpack.c.b16 %v2295, %v2293
        %v2942 = vpack.c.b16 %v2296, %v2294
        %v2943 = vpack.c.b16 %v2299, %v2297
        %v2944 = vpack.c.b16 %v2300, %v2298
        %v2945 = vpack.c.b16 %v2303, %v2301
        %v2946 = vpack.c.b16 %v2304, %v2302
        %v2947 = vpack.c.b16 %v2307, %v2305
        %v2948 = vpack.c.b16 %v2308, %v2306
        %v2949 = vpack.c.b16 %v2311, %v2309
        %v2950 = vpack.c.b16 %v2312, %v2310
        %v2951 = vpack.c.b16 %v2315, %v2313
        %v2952 = vpack.c.b16 %v2316, %v2314
        %v2953 = vpack.c.b16 %v2319, %v2317
        %v2954 = vpack.c.b16 %v2320, %v2318
        %v2955 = vpack.c.b16 %v2323, %v2321
        %v2956 = vpack.c.b16 %v2324, %v2322
        %v2957 = vpack.c.b16 %v2327, %v2325
        %v2958 = vpack.c.b16 %v2328, %v2326
        %v2959 = vpack.c.b16 %v2331, %v2329
        %v2960 = vpack.c.b16 %v2332, %v2330
        %v2961 = vpack.c.b16 %v2335, %v2333
        %v2962 = vpack.c.b16 %v2336, %v2334
        %v2963 = vpack.c.b16 %v2339, %v2337
        %v2964 = vpack.c.b16 %v2340, %v2338
        %v2965 = vpack.c.b16 %v2343, %v2341
        %v2966 = vpack.c.b16 %v2344, %v2342
        %v2967 = vpack.c.b16 %v2347, %v2345
        %v2968 = vpack.c.b16 %v2348, %v2346
        %v2969 = vpack.c.b16 %v2351, %v2349
        %v2970 = vpack.c.b16 %v2352, %v2350
        %v2971 = vpack.c.b16 %v2355, %v2353
        %v2972 = vpack.c.b16 %v2356, %v2354
        %v2973 = vpack.c.b16 %v2359, %v2357
        %v2974 = vpack.c.b16 %v2360, %v2358
        %v2975 = vpack.c.b16 %v2363, %v2361
        %v2976 = vpack.c.b16 %v2364, %v2362
        %v2977 = vpack.c.b16 %v2367, %v2365
        %v2978 = vpack.c.b16 %v2368, %v2366
        %v2979 = vpack.c.b16 %v2371, %v2369
        %v2980 = vpack.c.b16 %v2372, %v2370
        %v2981 = vpack.c.b16 %v2375, %v2373
        %v2982 = vpack.c.b16 %v2376, %v2374
        %v2983 = vpack.c.b16 %v2379, %v2377
        %v2984 = vpack.c.b16 %v2380, %v2378
        %v2985 = vpack.c.b16 %v2383, %v2381
        %v2986 = vpack.c.b16 %v2384, %v2382
        %v2987 = vpack.c.b16 %v2387, %v2385
        %v2988 = vpack.c.b16 %v2388, %v2386
        %v2989 = vpack.c.b16 %v2391, %v2389
        %v2990 = vpack.c.b16 %v2392, %v2390
        %v2991 = vpack.c.b16 %v2395, %v2393
        %v2992 = vpack.c.b16 %v2396, %v2394
        %v2993 = vpack.c.b16 %v2399, %v2397
        %v2994 = vpack.c.b16 %v2400, %v2398
        %v2995 = vpack.c.b16 %v2403, %v2401
        %v2996 = vpack.c.b16 %v2404, %v2402
        %v2997 = vpack.c.b16 %v2407, %v2405
        %v2998 = vpack.c.b16 %v2408, %v2406
        %v2999 = vpack.c.b16 %v2411, %v2409
        %v3000 = vpack.c.b16 %v2412, %v2410
        %v3001 = vpack.c.b16 %v2415, %v2413
        %v3002 = vpack.c.b16 %v2416, %v2414
        %v3003 = vpack.c.b16 %v2419, %v2417
        %v3004 = vpack.c.b16 %v2420, %v2418
        %v3005 = vpack.c.b16 %v2423, %v2421
        %v3006 = vpack.c.b16 %v2424, %v2422
        %v3007 = vpack.c.b16 %v2427, %v2425
        %v3008 = vpack.c.b16 %v2428, %v2426
        %v3009 = vpack.c.b16 %v2431, %v2429
        %v3010 = vpack.c.b16 %v2432, %v2430
        %v3011 = vpack.c.b16 %v2435, %v2433
        %v3012 = vpack.c.b16 %v2436, %v2434
        %v3013 = vpack.c.b16 %v2439, %v2437
        %v3014 = vpack.c.b16 %v2440, %v2438
        %v3015 = vpack.c.b16 %v2443, %v2441
        %v3016 = vpack.c.b16 %v2444, %v2442
        %v3017 = vpack.c.b16 %v2447, %v2445
        %v3018 = vpack.c.b16 %v2448, %v2446
        %v3019 = vpack.c.b16 %v2451, %v2449
        %v3020 = vpack.c.b16 %v2452, %v2450
        %v3021 = vpack.c.b16 %v2455, %v2453
        %v3022 = vpack.c.b16 %v2456, %v2454
        %v3023 = vpack.c.b16 %v2459, %v2457
        %v3024 = vpack.c.b16 %v2460, %v2458
        %v3025 = vpack.c.b16 %v2463, %v2461
        %v3026 = vpack.c.b16 %v2464, %v2462
        %v3027 = vpack.c.b16 %v2467, %v2465
        %v3028 = vpack.c.b16 %v2468, %v2466
        %v3029 = vpack.c.b16 %v2471, %v2469
        %v3030 = vpack.c.b16 %v2472, %v2470
        %v3031 = vpack.c.b16 %v2475, %v2473
        %v3032 = vpack.c.b16 %v2476, %v2474
        %v3033 = vpack.c.b16 %v2479, %v2477
        %v3034 = vpack.c.b16 %v2480, %v2478
        %v3035 = vpack.c.b16 %v2483, %v2481
        %v3036 = vpack.c.b16 %v2484, %v2482
        %v3037 = vpack.c.b16 %v2487, %v2485
        %v3038 = vpack.c.b16 %v2488, %v2486
        %v3039 = vpack.c.b16 %v2491, %v2489
        %v3040 = vpack.c.b16 %v2492, %v2490
        %v3041 = vpack.c.b16 %v2495, %v2493
        %v3042 = vpack.c.b16 %v2496, %v2494
        %v3043 = vpack.c.b16 %v2499, %v2497
        %v3044 = vpack.c.b16 %v2500, %v2498
        %v3045 = vpack.c.b16 %v2503, %v2501
        %v3046 = vpack.c.b16 %v2504, %v2502
        %v3047 = vpack.c.b16 %v2507, %v2505
        %v3048 = vpack.c.b16 %v2508, %v2506
        %v3049 = vpack.c.b16 %v2511, %v2509
        %v3050 = vpack.c.b16 %v2512, %v2510
        %v3051 = vpack.c.b16 %v2515, %v2513
        %v3052 = vpack.c.b16 %v2516, %v2514
        %v3053 = vpack.c.b16 %v2519, %v2517
        %v3054 = vpack.c.b16 %v2520, %v2518
        %v3055 = vpack.c.b16 %v2523, %v2521
        %v3056 = vpack.c.b16 %v2524, %v2522
        %v3057 = vpack.c.b16 %v2527, %v2525
        %v3058 = vpack.c.b16 %v2528, %v2526
        %v3059 = vpack.c.b16 %v2531, %v2529
        %v3060 = vpack.c.b16 %v2532, %v2530
        %v3061 = vpack.c.b16 %v2535, %v2533
        %v3062 = vpack.c.b16 %v2536, %v2534
        %v3063 = vpack.c.b16 %v2539, %v2537
        %v3064 = vpack.c.b16 %v2540, %v2538
        %v3065 = vpack.c.b16 %v2543, %v2541
        %v3066 = vpack.c.b16 %v2544, %v2542
        %v3067 = vpack.c.b16 %v2547, %v2545
        %v3068 = vpack.c.b16 %v2548, %v2546
        %v3069 = vpack.c.b16 %v2551, %v2549
        %v3070 = vpack.c.b16 %v2552, %v2550
        %v3071 = vpack.c.b16 %v2555, %v2553
        %v3072 = vpack.c.b16 %v2556, %v2554
        %v3073 = vpack.c.b16 %v2559, %v2557
        %v3074 = vpack.c.b16 %v2560, %v2558
        %v3075 = vpack.c.b16 %v2563, %v2561
        %v3076 = vpack.c.b16 %v2564, %v2562
        %3589 = vmatprep.subr.bf16.mxu0 %v2566
        %3590 = vmatpush1.bf16.msra.mxu0 %v2565
        %3591 = vmatprep.subr.bf16.mxu0 %v2568
        %3592 = vmatpush1.bf16.msra.mxu0 %v2567
        %3593 = vmatprep.subr.bf16.mxu0 %v2570
        %3594 = vmatpush1.bf16.msra.mxu0 %v2569
        %3595 = vmatprep.subr.bf16.mxu0 %v2572
        %3596 = vmatpush1.bf16.msra.mxu0 %v2571
        %3597 = vmatprep.subr.bf16.mxu0 %v2574
        %3598 = vmatpush1.bf16.msra.mxu0 %v2573
        %3599 = vmatprep.subr.bf16.mxu0 %v2576
        %3600 = vmatpush1.bf16.msra.mxu0 %v2575
        %3601 = vmatprep.subr.bf16.mxu0 %v2578
        %3602 = vmatpush1.bf16.msra.mxu0 %v2577
        %3603 = vmatprep.subr.bf16.mxu0 %v2580
        %3604 = vmatpush1.bf16.msra.mxu0 %v2579
        %3605 = vmatprep.subr.bf16.mxu0 %v2582
        %3606 = vmatpush1.bf16.msra.mxu0 %v2581
        %3607 = vmatprep.subr.bf16.mxu0 %v2584
        %3608 = vmatpush1.bf16.msra.mxu0 %v2583
        %3609 = vmatprep.subr.bf16.mxu0 %v2586
        %3610 = vmatpush1.bf16.msra.mxu0 %v2585
        %3611 = vmatprep.subr.bf16.mxu0 %v2588
        %3612 = vmatpush1.bf16.msra.mxu0 %v2587
        %3613 = vmatprep.subr.bf16.mxu0 %v2590
        %3614 = vmatpush1.bf16.msra.mxu0 %v2589
        %3615 = vmatprep.subr.bf16.mxu0 %v2592
        %3616 = vmatpush1.bf16.msra.mxu0 %v2591
        %3617 = vmatprep.subr.bf16.mxu0 %v2594
        %3618 = vmatpush1.bf16.msra.mxu0 %v2593
        %3619 = vmatprep.subr.bf16.mxu0 %v2596
        %3620 = vmatpush1.bf16.msra.mxu0 %v2595
        %3621 = vmatprep.mubr.bf16.mxu0 %v966
        %3622 = vmatmul.mubr.bf16.gmra.mrb[0].mxu0 %v965
        %v3623 = vpop.f32.mrb[0].mxu0
        %v3624 = vadd.f32 %v910, %v3623
        %v3625 = vpop.f32.mrb[0].mxu0
        %v3626 = vadd.f32 %v914, %v3625
        %v3627 = vpop.f32.mrb[0].mxu0
        %v3628 = vpop.f32.mrb[0].mxu0
        %3629 = vdwg.mxu0
        %3630 = vmatprep.subr.bf16.mxu0 %v2598
        %3631 = vmatpush1.bf16.msra.mxu0 %v2597
        %3632 = vmatprep.subr.bf16.mxu0 %v2600
        %3633 = vmatpush1.bf16.msra.mxu0 %v2599
        %3634 = vmatprep.subr.bf16.mxu0 %v2602
        %3635 = vmatpush1.bf16.msra.mxu0 %v2601
        %3636 = vmatprep.subr.bf16.mxu0 %v2604
        %3637 = vmatpush1.bf16.msra.mxu0 %v2603
        %3638 = vmatprep.subr.bf16.mxu0 %v2606
        %3639 = vmatpush1.bf16.msra.mxu0 %v2605
        %3640 = vmatprep.subr.bf16.mxu0 %v2608
        %3641 = vmatpush1.bf16.msra.mxu0 %v2607
        %3642 = vmatprep.subr.bf16.mxu0 %v2610
        %3643 = vmatpush1.bf16.msra.mxu0 %v2609
        %3644 = vmatprep.subr.bf16.mxu0 %v2612
        %3645 = vmatpush1.bf16.msra.mxu0 %v2611
        %3646 = vmatprep.subr.bf16.mxu0 %v2614
        %3647 = vmatpush1.bf16.msra.mxu0 %v2613
        %3648 = vmatprep.subr.bf16.mxu0 %v2616
        %3649 = vmatpush1.bf16.msra.mxu0 %v2615
        %3650 = vmatprep.subr.bf16.mxu0 %v2618
        %3651 = vmatpush1.bf16.msra.mxu0 %v2617
        %3652 = vmatprep.subr.bf16.mxu0 %v2620
        %3653 = vmatpush1.bf16.msra.mxu0 %v2619
        %3654 = vmatprep.subr.bf16.mxu0 %v2622
        %3655 = vmatpush1.bf16.msra.mxu0 %v2621
        %3656 = vmatprep.subr.bf16.mxu0 %v2624
        %3657 = vmatpush1.bf16.msra.mxu0 %v2623
        %3658 = vmatprep.subr.bf16.mxu0 %v2626
        %3659 = vmatpush1.bf16.msra.mxu0 %v2625
        %3660 = vmatprep.subr.bf16.mxu0 %v2628
        %3661 = vmatpush1.bf16.msra.mxu0 %v2627
        %3662 = vmatprep.mubr.bf16.mxu0 %v968
        %3663 = vmatmul.mubr.bf16.gmra.mrb[0].mxu0 %v967
        %v3664 = vpop.f32.mrb[0].mxu0
        %v3665 = vadd.f32 %v3624, %v3664
        %v3666 = vpop.f32.mrb[0].mxu0
        %v3667 = vadd.f32 %v3626, %v3666
        %v3668 = vpop.f32.mrb[0].mxu0
        %v3669 = vpop.f32.mrb[0].mxu0
        %3670 = vdwg.mxu0
        %3671 = vmatprep.subr.bf16.mxu0 %v2630
        %3672 = vmatpush1.bf16.msra.mxu0 %v2629
        %3673 = vmatprep.subr.bf16.mxu0 %v2632
        %3674 = vmatpush1.bf16.msra.mxu0 %v2631
        %3675 = vmatprep.subr.bf16.mxu0 %v2634
        %3676 = vmatpush1.bf16.msra.mxu0 %v2633
        %3677 = vmatprep.subr.bf16.mxu0 %v2636
        %3678 = vmatpush1.bf16.msra.mxu0 %v2635
        %3679 = vmatprep.subr.bf16.mxu0 %v2638
        %3680 = vmatpush1.bf16.msra.mxu0 %v2637
        %3681 = vmatprep.subr.bf16.mxu0 %v2640
        %3682 = vmatpush1.bf16.msra.mxu0 %v2639
        %3683 = vmatprep.subr.bf16.mxu0 %v2642
        %3684 = vmatpush1.bf16.msra.mxu0 %v2641
        %3685 = vmatprep.subr.bf16.mxu0 %v2644
        %3686 = vmatpush1.bf16.msra.mxu0 %v2643
        %3687 = vmatprep.subr.bf16.mxu0 %v2646
        %3688 = vmatpush1.bf16.msra.mxu0 %v2645
        %3689 = vmatprep.subr.bf16.mxu0 %v2648
        %3690 = vmatpush1.bf16.msra.mxu0 %v2647
        %3691 = vmatprep.subr.bf16.mxu0 %v2650
        %3692 = vmatpush1.bf16.msra.mxu0 %v2649
        %3693 = vmatprep.subr.bf16.mxu0 %v2652
        %3694 = vmatpush1.bf16.msra.mxu0 %v2651
        %3695 = vmatprep.subr.bf16.mxu0 %v2654
        %3696 = vmatpush1.bf16.msra.mxu0 %v2653
        %3697 = vmatprep.subr.bf16.mxu0 %v2656
        %3698 = vmatpush1.bf16.msra.mxu0 %v2655
        %3699 = vmatprep.subr.bf16.mxu0 %v2658
        %3700 = vmatpush1.bf16.msra.mxu0 %v2657
        %3701 = vmatprep.subr.bf16.mxu0 %v2660
        %3702 = vmatpush1.bf16.msra.mxu0 %v2659
        %3703 = vmatprep.mubr.bf16.mxu0 %v970
        %3704 = vmatmul.mubr.bf16.gmra.mrb[0].mxu0 %v969
        %v3705 = vpop.f32.mrb[0].mxu0
        %v3706 = vadd.f32 %v3665, %v3705
        %v3707 = vpop.f32.mrb[0].mxu0
        %v3708 = vadd.f32 %v3667, %v3707
        %v3709 = vpop.f32.mrb[0].mxu0
        %v3710 = vpop.f32.mrb[0].mxu0
        %3711 = vdwg.mxu0
        %3712 = vmatprep.subr.bf16.mxu0 %v2662
        %3713 = vmatpush1.bf16.msra.mxu0 %v2661
        %3714 = vmatprep.subr.bf16.mxu0 %v2664
        %3715 = vmatpush1.bf16.msra.mxu0 %v2663
        %3716 = vmatprep.subr.bf16.mxu0 %v2666
        %3717 = vmatpush1.bf16.msra.mxu0 %v2665
        %3718 = vmatprep.subr.bf16.mxu0 %v2668
        %3719 = vmatpush1.bf16.msra.mxu0 %v2667
        %3720 = vmatprep.subr.bf16.mxu0 %v2670
        %3721 = vmatpush1.bf16.msra.mxu0 %v2669
        %3722 = vmatprep.subr.bf16.mxu0 %v2672
        %3723 = vmatpush1.bf16.msra.mxu0 %v2671
        %3724 = vmatprep.subr.bf16.mxu0 %v2674
        %3725 = vmatpush1.bf16.msra.mxu0 %v2673
        %3726 = vmatprep.subr.bf16.mxu0 %v2676
        %3727 = vmatpush1.bf16.msra.mxu0 %v2675
        %3728 = vmatprep.subr.bf16.mxu0 %v2678
        %3729 = vmatpush1.bf16.msra.mxu0 %v2677
        %3730 = vmatprep.subr.bf16.mxu0 %v2680
        %3731 = vmatpush1.bf16.msra.mxu0 %v2679
        %3732 = vmatprep.subr.bf16.mxu0 %v2682
        %3733 = vmatpush1.bf16.msra.mxu0 %v2681
        %3734 = vmatprep.subr.bf16.mxu0 %v2684
        %3735 = vmatpush1.bf16.msra.mxu0 %v2683
        %3736 = vmatprep.subr.bf16.mxu0 %v2686
        %3737 = vmatpush1.bf16.msra.mxu0 %v2685
        %3738 = vmatprep.subr.bf16.mxu0 %v2688
        %3739 = vmatpush1.bf16.msra.mxu0 %v2687
        %3740 = vmatprep.subr.bf16.mxu0 %v2690
        %3741 = vmatpush1.bf16.msra.mxu0 %v2689
        %3742 = vmatprep.subr.bf16.mxu0 %v2692
        %3743 = vmatpush1.bf16.msra.mxu0 %v2691
        %3744 = vmatprep.mubr.bf16.mxu0 %v972
        %3745 = vmatmul.mubr.bf16.gmra.mrb[0].mxu0 %v971
        %v3746 = vpop.f32.mrb[0].mxu0
        %v3747 = vadd.f32 %v3706, %v3746
        %v3748 = vpop.f32.mrb[0].mxu0
        %v3749 = vadd.f32 %v3708, %v3748
        %v3750 = vpop.f32.mrb[0].mxu0
        %v3751 = vpop.f32.mrb[0].mxu0
        %3752 = vdwg.mxu0
        %3753 = vmatprep.subr.bf16.mxu0 %v2694
        %3754 = vmatpush1.bf16.msra.mxu0 %v2693
        %3755 = vmatprep.subr.bf16.mxu0 %v2696
        %3756 = vmatpush1.bf16.msra.mxu0 %v2695
        %3757 = vmatprep.subr.bf16.mxu0 %v2698
        %3758 = vmatpush1.bf16.msra.mxu0 %v2697
        %3759 = vmatprep.subr.bf16.mxu0 %v2700
        %3760 = vmatpush1.bf16.msra.mxu0 %v2699
        %3761 = vmatprep.subr.bf16.mxu0 %v2702
        %3762 = vmatpush1.bf16.msra.mxu0 %v2701
        %3763 = vmatprep.subr.bf16.mxu0 %v2704
        %3764 = vmatpush1.bf16.msra.mxu0 %v2703
        %3765 = vmatprep.subr.bf16.mxu0 %v2706
        %3766 = vmatpush1.bf16.msra.mxu0 %v2705
        %3767 = vmatprep.subr.bf16.mxu0 %v2708
        %3768 = vmatpush1.bf16.msra.mxu0 %v2707
        %3769 = vmatprep.subr.bf16.mxu0 %v2710
        %3770 = vmatpush1.bf16.msra.mxu0 %v2709
        %3771 = vmatprep.subr.bf16.mxu0 %v2712
        %3772 = vmatpush1.bf16.msra.mxu0 %v2711
        %3773 = vmatprep.subr.bf16.mxu0 %v2714
        %3774 = vmatpush1.bf16.msra.mxu0 %v2713
        %3775 = vmatprep.subr.bf16.mxu0 %v2716
        %3776 = vmatpush1.bf16.msra.mxu0 %v2715
        %3777 = vmatprep.subr.bf16.mxu0 %v2718
        %3778 = vmatpush1.bf16.msra.mxu0 %v2717
        %3779 = vmatprep.subr.bf16.mxu0 %v2720
        %3780 = vmatpush1.bf16.msra.mxu0 %v2719
        %3781 = vmatprep.subr.bf16.mxu0 %v2722
        %3782 = vmatpush1.bf16.msra.mxu0 %v2721
        %3783 = vmatprep.subr.bf16.mxu0 %v2724
        %3784 = vmatpush1.bf16.msra.mxu0 %v2723
        %3785 = vmatprep.mubr.bf16.mxu0 %v974
        %3786 = vmatmul.mubr.bf16.gmra.mrb[0].mxu0 %v973
        %v3787 = vpop.f32.mrb[0].mxu0
        %v3788 = vadd.f32 %v3747, %v3787
        %v3789 = vpop.f32.mrb[0].mxu0
        %v3790 = vadd.f32 %v3749, %v3789
        %v3791 = vpop.f32.mrb[0].mxu0
        %v3792 = vpop.f32.mrb[0].mxu0
        %3793 = vdwg.mxu0
        %3794 = vmatprep.subr.bf16.mxu0 %v2726
        %3795 = vmatpush1.bf16.msra.mxu0 %v2725
        %3796 = vmatprep.subr.bf16.mxu0 %v2728
        %3797 = vmatpush1.bf16.msra.mxu0 %v2727
        %3798 = vmatprep.subr.bf16.mxu0 %v2730
        %3799 = vmatpush1.bf16.msra.mxu0 %v2729
        %3800 = vmatprep.subr.bf16.mxu0 %v2732
        %3801 = vmatpush1.bf16.msra.mxu0 %v2731
        %3802 = vmatprep.subr.bf16.mxu0 %v2734
        %3803 = vmatpush1.bf16.msra.mxu0 %v2733
        %3804 = vmatprep.subr.bf16.mxu0 %v2736
        %3805 = vmatpush1.bf16.msra.mxu0 %v2735
        %3806 = vmatprep.subr.bf16.mxu0 %v2738
        %3807 = vmatpush1.bf16.msra.mxu0 %v2737
        %3808 = vmatprep.subr.bf16.mxu0 %v2740
        %3809 = vmatpush1.bf16.msra.mxu0 %v2739
        %3810 = vmatprep.subr.bf16.mxu0 %v2742
        %3811 = vmatpush1.bf16.msra.mxu0 %v2741
        %3812 = vmatprep.subr.bf16.mxu0 %v2744
        %3813 = vmatpush1.bf16.msra.mxu0 %v2743
        %3814 = vmatprep.subr.bf16.mxu0 %v2746
        %3815 = vmatpush1.bf16.msra.mxu0 %v2745
        %3816 = vmatprep.subr.bf16.mxu0 %v2748
        %3817 = vmatpush1.bf16.msra.mxu0 %v2747
        %3818 = vmatprep.subr.bf16.mxu0 %v2750
        %3819 = vmatpush1.bf16.msra.mxu0 %v2749
        %3820 = vmatprep.subr.bf16.mxu0 %v2752
        %3821 = vmatpush1.bf16.msra.mxu0 %v2751
        %3822 = vmatprep.subr.bf16.mxu0 %v2754
        %3823 = vmatpush1.bf16.msra.mxu0 %v2753
        %3824 = vmatprep.subr.bf16.mxu0 %v2756
        %3825 = vmatpush1.bf16.msra.mxu0 %v2755
        %3826 = vmatprep.mubr.bf16.mxu0 %v976
        %3827 = vmatmul.mubr.bf16.gmra.mrb[0].mxu0 %v975
        %v3828 = vpop.f32.mrb[0].mxu0
        %v3829 = vadd.f32 %v3788, %v3828
        %v3830 = vpop.f32.mrb[0].mxu0
        %v3831 = vadd.f32 %v3790, %v3830
        %v3832 = vpop.f32.mrb[0].mxu0
        %v3833 = vpop.f32.mrb[0].mxu0
        %3834 = vdwg.mxu0
        %3835 = vmatprep.subr.bf16.mxu0 %v2758
        %3836 = vmatpush1.bf16.msra.mxu0 %v2757
        %3837 = vmatprep.subr.bf16.mxu0 %v2760
        %3838 = vmatpush1.bf16.msra.mxu0 %v2759
        %3839 = vmatprep.subr.bf16.mxu0 %v2762
        %3840 = vmatpush1.bf16.msra.mxu0 %v2761
        %3841 = vmatprep.subr.bf16.mxu0 %v2764
        %3842 = vmatpush1.bf16.msra.mxu0 %v2763
        %3843 = vmatprep.subr.bf16.mxu0 %v2766
        %3844 = vmatpush1.bf16.msra.mxu0 %v2765
        %3845 = vmatprep.subr.bf16.mxu0 %v2768
        %3846 = vmatpush1.bf16.msra.mxu0 %v2767
        %3847 = vmatprep.subr.bf16.mxu0 %v2770
        %3848 = vmatpush1.bf16.msra.mxu0 %v2769
        %3849 = vmatprep.subr.bf16.mxu0 %v2772
        %3850 = vmatpush1.bf16.msra.mxu0 %v2771
        %3851 = vmatprep.subr.bf16.mxu0 %v2774
        %3852 = vmatpush1.bf16.msra.mxu0 %v2773
        %3853 = vmatprep.subr.bf16.mxu0 %v2776
        %3854 = vmatpush1.bf16.msra.mxu0 %v2775
        %3855 = vmatprep.subr.bf16.mxu0 %v2778
        %3856 = vmatpush1.bf16.msra.mxu0 %v2777
        %3857 = vmatprep.subr.bf16.mxu0 %v2780
        %3858 = vmatpush1.bf16.msra.mxu0 %v2779
        %3859 = vmatprep.subr.bf16.mxu0 %v2782
        %3860 = vmatpush1.bf16.msra.mxu0 %v2781
        %3861 = vmatprep.subr.bf16.mxu0 %v2784
        %3862 = vmatpush1.bf16.msra.mxu0 %v2783
        %3863 = vmatprep.subr.bf16.mxu0 %v2786
        %3864 = vmatpush1.bf16.msra.mxu0 %v2785
        %3865 = vmatprep.subr.bf16.mxu0 %v2788
        %3866 = vmatpush1.bf16.msra.mxu0 %v2787
        %3867 = vmatprep.mubr.bf16.mxu0 %v978
        %3868 = vmatmul.mubr.bf16.gmra.mrb[0].mxu0 %v977
        %v3869 = vpop.f32.mrb[0].mxu0
        %v3870 = vadd.f32 %v3829, %v3869
        %v3871 = vpop.f32.mrb[0].mxu0
        %v3872 = vadd.f32 %v3831, %v3871
        %v3873 = vpop.f32.mrb[0].mxu0
        %v3874 = vpop.f32.mrb[0].mxu0
        %3875 = vdwg.mxu0
        %3876 = vmatprep.subr.bf16.mxu0 %v2790
        %3877 = vmatpush1.bf16.msra.mxu0 %v2789
        %3878 = vmatprep.subr.bf16.mxu0 %v2792
        %3879 = vmatpush1.bf16.msra.mxu0 %v2791
        %3880 = vmatprep.subr.bf16.mxu0 %v2794
        %3881 = vmatpush1.bf16.msra.mxu0 %v2793
        %3882 = vmatprep.subr.bf16.mxu0 %v2796
        %3883 = vmatpush1.bf16.msra.mxu0 %v2795
        %3884 = vmatprep.subr.bf16.mxu0 %v2798
        %3885 = vmatpush1.bf16.msra.mxu0 %v2797
        %3886 = vmatprep.subr.bf16.mxu0 %v2800
        %3887 = vmatpush1.bf16.msra.mxu0 %v2799
        %3888 = vmatprep.subr.bf16.mxu0 %v2802
        %3889 = vmatpush1.bf16.msra.mxu0 %v2801
        %3890 = vmatprep.subr.bf16.mxu0 %v2804
        %3891 = vmatpush1.bf16.msra.mxu0 %v2803
        %3892 = vmatprep.subr.bf16.mxu0 %v2806
        %3893 = vmatpush1.bf16.msra.mxu0 %v2805
        %3894 = vmatprep.subr.bf16.mxu0 %v2808
        %3895 = vmatpush1.bf16.msra.mxu0 %v2807
        %3896 = vmatprep.subr.bf16.mxu0 %v2810
        %3897 = vmatpush1.bf16.msra.mxu0 %v2809
        %3898 = vmatprep.subr.bf16.mxu0 %v2812
        %3899 = vmatpush1.bf16.msra.mxu0 %v2811
        %3900 = vmatprep.subr.bf16.mxu0 %v2814
        %3901 = vmatpush1.bf16.msra.mxu0 %v2813
        %3902 = vmatprep.subr.bf16.mxu0 %v2816
        %3903 = vmatpush1.bf16.msra.mxu0 %v2815
        %3904 = vmatprep.subr.bf16.mxu0 %v2818
        %3905 = vmatpush1.bf16.msra.mxu0 %v2817
        %3906 = vmatprep.subr.bf16.mxu0 %v2820
        %3907 = vmatpush1.bf16.msra.mxu0 %v2819
        %3908 = vmatprep.mubr.bf16.mxu0 %v980
        %3909 = vmatmul.mubr.bf16.gmra.mrb[0].mxu0 %v979
        %v3910 = vpop.f32.mrb[0].mxu0
        %v3911 = vadd.f32 %v3870, %v3910
        %v3912 = vpop.f32.mrb[0].mxu0
        %v3913 = vadd.f32 %v3872, %v3912
        %v3914 = vpop.f32.mrb[0].mxu0
        %v3915 = vpop.f32.mrb[0].mxu0
        %3916 = vdwg.mxu0
        %3917 = vmatprep.subr.bf16.mxu0 %v2822
        %3918 = vmatpush1.bf16.msra.mxu0 %v2821
        %3919 = vmatprep.subr.bf16.mxu0 %v2824
        %3920 = vmatpush1.bf16.msra.mxu0 %v2823
        %3921 = vmatprep.subr.bf16.mxu0 %v2826
        %3922 = vmatpush1.bf16.msra.mxu0 %v2825
        %3923 = vmatprep.subr.bf16.mxu0 %v2828
        %3924 = vmatpush1.bf16.msra.mxu0 %v2827
        %3925 = vmatprep.subr.bf16.mxu0 %v2830
        %3926 = vmatpush1.bf16.msra.mxu0 %v2829
        %3927 = vmatprep.subr.bf16.mxu0 %v2832
        %3928 = vmatpush1.bf16.msra.mxu0 %v2831
        %3929 = vmatprep.subr.bf16.mxu0 %v2834
        %3930 = vmatpush1.bf16.msra.mxu0 %v2833
        %3931 = vmatprep.subr.bf16.mxu0 %v2836
        %3932 = vmatpush1.bf16.msra.mxu0 %v2835
        %3933 = vmatprep.subr.bf16.mxu0 %v2838
        %3934 = vmatpush1.bf16.msra.mxu0 %v2837
        %3935 = vmatprep.subr.bf16.mxu0 %v2840
        %3936 = vmatpush1.bf16.msra.mxu0 %v2839
        %3937 = vmatprep.subr.bf16.mxu0 %v2842
        %3938 = vmatpush1.bf16.msra.mxu0 %v2841
        %3939 = vmatprep.subr.bf16.mxu0 %v2844
        %3940 = vmatpush1.bf16.msra.mxu0 %v2843
        %3941 = vmatprep.subr.bf16.mxu0 %v2846
        %3942 = vmatpush1.bf16.msra.mxu0 %v2845
        %3943 = vmatprep.subr.bf16.mxu0 %v2848
        %3944 = vmatpush1.bf16.msra.mxu0 %v2847
        %3945 = vmatprep.subr.bf16.mxu0 %v2850
        %3946 = vmatpush1.bf16.msra.mxu0 %v2849
        %3947 = vmatprep.subr.bf16.mxu0 %v2852
        %3948 = vmatpush1.bf16.msra.mxu0 %v2851
        %3949 = vmatprep.mubr.bf16.mxu0 %v982
        %3950 = vmatmul.mubr.bf16.gmra.mrb[0].mxu0 %v981
        %v3951 = vpop.f32.mrb[0].mxu0
        %v3952 = vadd.f32 %v3911, %v3951
        %v3953 = vpop.f32.mrb[0].mxu0
        %v3954 = vadd.f32 %v3913, %v3953
        %v3955 = vpop.f32.mrb[0].mxu0
        %v3956 = vpop.f32.mrb[0].mxu0
        %3957 = vdwg.mxu0
        %3958 = vmatprep.subr.bf16.mxu0 %v2854
        %3959 = vmatpush1.bf16.msra.mxu0 %v2853
        %3960 = vmatprep.subr.bf16.mxu0 %v2856
        %3961 = vmatpush1.bf16.msra.mxu0 %v2855
        %3962 = vmatprep.subr.bf16.mxu0 %v2858
        %3963 = vmatpush1.bf16.msra.mxu0 %v2857
        %3964 = vmatprep.subr.bf16.mxu0 %v2860
        %3965 = vmatpush1.bf16.msra.mxu0 %v2859
        %3966 = vmatprep.subr.bf16.mxu0 %v2862
        %3967 = vmatpush1.bf16.msra.mxu0 %v2861
        %3968 = vmatprep.subr.bf16.mxu0 %v2864
        %3969 = vmatpush1.bf16.msra.mxu0 %v2863
        %3970 = vmatprep.subr.bf16.mxu0 %v2866
        %3971 = vmatpush1.bf16.msra.mxu0 %v2865
        %3972 = vmatprep.subr.bf16.mxu0 %v2868
        %3973 = vmatpush1.bf16.msra.mxu0 %v2867
        %3974 = vmatprep.subr.bf16.mxu0 %v2870
        %3975 = vmatpush1.bf16.msra.mxu0 %v2869
        %3976 = vmatprep.subr.bf16.mxu0 %v2872
        %3977 = vmatpush1.bf16.msra.mxu0 %v2871
        %3978 = vmatprep.subr.bf16.mxu0 %v2874
        %3979 = vmatpush1.bf16.msra.mxu0 %v2873
        %3980 = vmatprep.subr.bf16.mxu0 %v2876
        %3981 = vmatpush1.bf16.msra.mxu0 %v2875
        %3982 = vmatprep.subr.bf16.mxu0 %v2878
        %3983 = vmatpush1.bf16.msra.mxu0 %v2877
        %3984 = vmatprep.subr.bf16.mxu0 %v2880
        %3985 = vmatpush1.bf16.msra.mxu0 %v2879
        %3986 = vmatprep.subr.bf16.mxu0 %v2882
        %3987 = vmatpush1.bf16.msra.mxu0 %v2881
        %3988 = vmatprep.subr.bf16.mxu0 %v2884
        %3989 = vmatpush1.bf16.msra.mxu0 %v2883
        %3990 = vmatprep.mubr.bf16.mxu0 %v984
        %3991 = vmatmul.mubr.bf16.gmra.mrb[0].mxu0 %v983
        %v3992 = vpop.f32.mrb[0].mxu0
        %v3993 = vadd.f32 %v3952, %v3992
        %v3994 = vpop.f32.mrb[0].mxu0
        %v3995 = vadd.f32 %v3954, %v3994
        %v3996 = vpop.f32.mrb[0].mxu0
        %v3997 = vpop.f32.mrb[0].mxu0
        %3998 = vdwg.mxu0
        %3999 = vmatprep.subr.bf16.mxu0 %v2886
        %4000 = vmatpush1.bf16.msra.mxu0 %v2885
        %4001 = vmatprep.subr.bf16.mxu0 %v2888
        %4002 = vmatpush1.bf16.msra.mxu0 %v2887
        %4003 = vmatprep.subr.bf16.mxu0 %v2890
        %4004 = vmatpush1.bf16.msra.mxu0 %v2889
        %4005 = vmatprep.subr.bf16.mxu0 %v2892
        %4006 = vmatpush1.bf16.msra.mxu0 %v2891
        %4007 = vmatprep.subr.bf16.mxu0 %v2894
        %4008 = vmatpush1.bf16.msra.mxu0 %v2893
        %4009 = vmatprep.subr.bf16.mxu0 %v2896
        %4010 = vmatpush1.bf16.msra.mxu0 %v2895
        %4011 = vmatprep.subr.bf16.mxu0 %v2898
        %4012 = vmatpush1.bf16.msra.mxu0 %v2897
        %4013 = vmatprep.subr.bf16.mxu0 %v2900
        %4014 = vmatpush1.bf16.msra.mxu0 %v2899
        %4015 = vmatprep.subr.bf16.mxu0 %v2902
        %4016 = vmatpush1.bf16.msra.mxu0 %v2901
        %4017 = vmatprep.subr.bf16.mxu0 %v2904
        %4018 = vmatpush1.bf16.msra.mxu0 %v2903
        %4019 = vmatprep.subr.bf16.mxu0 %v2906
        %4020 = vmatpush1.bf16.msra.mxu0 %v2905
        %4021 = vmatprep.subr.bf16.mxu0 %v2908
        %4022 = vmatpush1.bf16.msra.mxu0 %v2907
        %4023 = vmatprep.subr.bf16.mxu0 %v2910
        %4024 = vmatpush1.bf16.msra.mxu0 %v2909
        %4025 = vmatprep.subr.bf16.mxu0 %v2912
        %4026 = vmatpush1.bf16.msra.mxu0 %v2911
        %4027 = vmatprep.subr.bf16.mxu0 %v2914
        %4028 = vmatpush1.bf16.msra.mxu0 %v2913
        %4029 = vmatprep.subr.bf16.mxu0 %v2916
        %4030 = vmatpush1.bf16.msra.mxu0 %v2915
        %4031 = vmatprep.mubr.bf16.mxu0 %v986
        %4032 = vmatmul.mubr.bf16.gmra.mrb[0].mxu0 %v985
        %v4033 = vpop.f32.mrb[0].mxu0
        %v4034 = vadd.f32 %v3993, %v4033
        %v4035 = vpop.f32.mrb[0].mxu0
        %v4036 = vadd.f32 %v3995, %v4035
        %v4037 = vpop.f32.mrb[0].mxu0
        %v4038 = vpop.f32.mrb[0].mxu0
        %4039 = vdwg.mxu0
        %4040 = vmatprep.subr.bf16.mxu0 %v2918
        %4041 = vmatpush1.bf16.msra.mxu0 %v2917
        %4042 = vmatprep.subr.bf16.mxu0 %v2920
        %4043 = vmatpush1.bf16.msra.mxu0 %v2919
        %4044 = vmatprep.subr.bf16.mxu0 %v2922
        %4045 = vmatpush1.bf16.msra.mxu0 %v2921
        %4046 = vmatprep.subr.bf16.mxu0 %v2924
        %4047 = vmatpush1.bf16.msra.mxu0 %v2923
        %4048 = vmatprep.subr.bf16.mxu0 %v2926
        %4049 = vmatpush1.bf16.msra.mxu0 %v2925
        %4050 = vmatprep.subr.bf16.mxu0 %v2928
        %4051 = vmatpush1.bf16.msra.mxu0 %v2927
        %4052 = vmatprep.subr.bf16.mxu0 %v2930
        %4053 = vmatpush1.bf16.msra.mxu0 %v2929
        %4054 = vmatprep.subr.bf16.mxu0 %v2932
        %4055 = vmatpush1.bf16.msra.mxu0 %v2931
        %4056 = vmatprep.subr.bf16.mxu0 %v2934
        %4057 = vmatpush1.bf16.msra.mxu0 %v2933
        %4058 = vmatprep.subr.bf16.mxu0 %v2936
        %4059 = vmatpush1.bf16.msra.mxu0 %v2935
        %4060 = vmatprep.subr.bf16.mxu0 %v2938
        %4061 = vmatpush1.bf16.msra.mxu0 %v2937
        %4062 = vmatprep.subr.bf16.mxu0 %v2940
        %4063 = vmatpush1.bf16.msra.mxu0 %v2939
        %4064 = vmatprep.subr.bf16.mxu0 %v2942
        %4065 = vmatpush1.bf16.msra.mxu0 %v2941
        %4066 = vmatprep.subr.bf16.mxu0 %v2944
        %4067 = vmatpush1.bf16.msra.mxu0 %v2943
        %4068 = vmatprep.subr.bf16.mxu0 %v2946
        %4069 = vmatpush1.bf16.msra.mxu0 %v2945
        %4070 = vmatprep.subr.bf16.mxu0 %v2948
        %4071 = vmatpush1.bf16.msra.mxu0 %v2947
        %4072 = vmatprep.mubr.bf16.mxu0 %v988
        %4073 = vmatmul.mubr.bf16.gmra.mrb[0].mxu0 %v987
        %v4074 = vpop.f32.mrb[0].mxu0
        %v4075 = vadd.f32 %v4034, %v4074
        %v4076 = vpop.f32.mrb[0].mxu0
        %v4077 = vadd.f32 %v4036, %v4076
        %v4078 = vpop.f32.mrb[0].mxu0
        %v4079 = vpop.f32.mrb[0].mxu0
        %4080 = vdwg.mxu0
        %4081 = vmatprep.subr.bf16.mxu0 %v2950
        %4082 = vmatpush1.bf16.msra.mxu0 %v2949
        %4083 = vmatprep.subr.bf16.mxu0 %v2952
        %4084 = vmatpush1.bf16.msra.mxu0 %v2951
        %4085 = vmatprep.subr.bf16.mxu0 %v2954
        %4086 = vmatpush1.bf16.msra.mxu0 %v2953
        %4087 = vmatprep.subr.bf16.mxu0 %v2956
        %4088 = vmatpush1.bf16.msra.mxu0 %v2955
        %4089 = vmatprep.subr.bf16.mxu0 %v2958
        %4090 = vmatpush1.bf16.msra.mxu0 %v2957
        %4091 = vmatprep.subr.bf16.mxu0 %v2960
        %4092 = vmatpush1.bf16.msra.mxu0 %v2959
        %4093 = vmatprep.subr.bf16.mxu0 %v2962
        %4094 = vmatpush1.bf16.msra.mxu0 %v2961
        %4095 = vmatprep.subr.bf16.mxu0 %v2964
        %4096 = vmatpush1.bf16.msra.mxu0 %v2963
        %4097 = vmatprep.subr.bf16.mxu0 %v2966
        %4098 = vmatpush1.bf16.msra.mxu0 %v2965
        %4099 = vmatprep.subr.bf16.mxu0 %v2968
        %4100 = vmatpush1.bf16.msra.mxu0 %v2967
        %4101 = vmatprep.subr.bf16.mxu0 %v2970
        %4102 = vmatpush1.bf16.msra.mxu0 %v2969
        %4103 = vmatprep.subr.bf16.mxu0 %v2972
        %4104 = vmatpush1.bf16.msra.mxu0 %v2971
        %4105 = vmatprep.subr.bf16.mxu0 %v2974
        %4106 = vmatpush1.bf16.msra.mxu0 %v2973
        %4107 = vmatprep.subr.bf16.mxu0 %v2976
        %4108 = vmatpush1.bf16.msra.mxu0 %v2975
        %4109 = vmatprep.subr.bf16.mxu0 %v2978
        %4110 = vmatpush1.bf16.msra.mxu0 %v2977
        %4111 = vmatprep.subr.bf16.mxu0 %v2980
        %4112 = vmatpush1.bf16.msra.mxu0 %v2979
        %4113 = vmatprep.mubr.bf16.mxu0 %v990
        %4114 = vmatmul.mubr.bf16.gmra.mrb[0].mxu0 %v989
        %v4115 = vpop.f32.mrb[0].mxu0
        %v4116 = vadd.f32 %v4075, %v4115
        %v4117 = vpop.f32.mrb[0].mxu0
        %v4118 = vadd.f32 %v4077, %v4117
        %v4119 = vpop.f32.mrb[0].mxu0
        %v4120 = vpop.f32.mrb[0].mxu0
        %4121 = vdwg.mxu0
        %4122 = vmatprep.subr.bf16.mxu0 %v2982
        %4123 = vmatpush1.bf16.msra.mxu0 %v2981
        %4124 = vmatprep.subr.bf16.mxu0 %v2984
        %4125 = vmatpush1.bf16.msra.mxu0 %v2983
        %4126 = vmatprep.subr.bf16.mxu0 %v2986
        %4127 = vmatpush1.bf16.msra.mxu0 %v2985
        %4128 = vmatprep.subr.bf16.mxu0 %v2988
        %4129 = vmatpush1.bf16.msra.mxu0 %v2987
        %4130 = vmatprep.subr.bf16.mxu0 %v2990
        %4131 = vmatpush1.bf16.msra.mxu0 %v2989
        %4132 = vmatprep.subr.bf16.mxu0 %v2992
        %4133 = vmatpush1.bf16.msra.mxu0 %v2991
        %4134 = vmatprep.subr.bf16.mxu0 %v2994
        %4135 = vmatpush1.bf16.msra.mxu0 %v2993
        %4136 = vmatprep.subr.bf16.mxu0 %v2996
        %4137 = vmatpush1.bf16.msra.mxu0 %v2995
        %4138 = vmatprep.subr.bf16.mxu0 %v2998
        %4139 = vmatpush1.bf16.msra.mxu0 %v2997
        %4140 = vmatprep.subr.bf16.mxu0 %v3000
        %4141 = vmatpush1.bf16.msra.mxu0 %v2999
        %4142 = vmatprep.subr.bf16.mxu0 %v3002
        %4143 = vmatpush1.bf16.msra.mxu0 %v3001
        %4144 = vmatprep.subr.bf16.mxu0 %v3004
        %4145 = vmatpush1.bf16.msra.mxu0 %v3003
        %4146 = vmatprep.subr.bf16.mxu0 %v3006
        %4147 = vmatpush1.bf16.msra.mxu0 %v3005
        %4148 = vmatprep.subr.bf16.mxu0 %v3008
        %4149 = vmatpush1.bf16.msra.mxu0 %v3007
        %4150 = vmatprep.subr.bf16.mxu0 %v3010
        %4151 = vmatpush1.bf16.msra.mxu0 %v3009
        %4152 = vmatprep.subr.bf16.mxu0 %v3012
        %4153 = vmatpush1.bf16.msra.mxu0 %v3011
        %4154 = vmatprep.mubr.bf16.mxu0 %v992
        %4155 = vmatmul.mubr.bf16.gmra.mrb[0].mxu0 %v991
        %v4156 = vpop.f32.mrb[0].mxu0
        %v4157 = vadd.f32 %v4116, %v4156
        %v4158 = vpop.f32.mrb[0].mxu0
        %v4159 = vadd.f32 %v4118, %v4158
        %v4160 = vpop.f32.mrb[0].mxu0
        %v4161 = vpop.f32.mrb[0].mxu0
        %4162 = vdwg.mxu0
        %4163 = vmatprep.subr.bf16.mxu0 %v3014
        %4164 = vmatpush1.bf16.msra.mxu0 %v3013
        %4165 = vmatprep.subr.bf16.mxu0 %v3016
        %4166 = vmatpush1.bf16.msra.mxu0 %v3015
        %4167 = vmatprep.subr.bf16.mxu0 %v3018
        %4168 = vmatpush1.bf16.msra.mxu0 %v3017
        %4169 = vmatprep.subr.bf16.mxu0 %v3020
        %4170 = vmatpush1.bf16.msra.mxu0 %v3019
        %4171 = vmatprep.subr.bf16.mxu0 %v3022
        %4172 = vmatpush1.bf16.msra.mxu0 %v3021
        %4173 = vmatprep.subr.bf16.mxu0 %v3024
        %4174 = vmatpush1.bf16.msra.mxu0 %v3023
        %4175 = vmatprep.subr.bf16.mxu0 %v3026
        %4176 = vmatpush1.bf16.msra.mxu0 %v3025
        %4177 = vmatprep.subr.bf16.mxu0 %v3028
        %4178 = vmatpush1.bf16.msra.mxu0 %v3027
        %4179 = vmatprep.subr.bf16.mxu0 %v3030
        %4180 = vmatpush1.bf16.msra.mxu0 %v3029
        %4181 = vmatprep.subr.bf16.mxu0 %v3032
        %4182 = vmatpush1.bf16.msra.mxu0 %v3031
        %4183 = vmatprep.subr.bf16.mxu0 %v3034
        %4184 = vmatpush1.bf16.msra.mxu0 %v3033
        %4185 = vmatprep.subr.bf16.mxu0 %v3036
        %4186 = vmatpush1.bf16.msra.mxu0 %v3035
        %4187 = vmatprep.subr.bf16.mxu0 %v3038
        %4188 = vmatpush1.bf16.msra.mxu0 %v3037
        %4189 = vmatprep.subr.bf16.mxu0 %v3040
        %4190 = vmatpush1.bf16.msra.mxu0 %v3039
        %4191 = vmatprep.subr.bf16.mxu0 %v3042
        %4192 = vmatpush1.bf16.msra.mxu0 %v3041
        %4193 = vmatprep.subr.bf16.mxu0 %v3044
        %4194 = vmatpush1.bf16.msra.mxu0 %v3043
        %4195 = vmatprep.mubr.bf16.mxu0 %v994
        %4196 = vmatmul.mubr.bf16.gmra.mrb[0].mxu0 %v993
        %v4197 = vpop.f32.mrb[0].mxu0
        %v4198 = vadd.f32 %v4157, %v4197
        %v4199 = vpop.f32.mrb[0].mxu0
        %v4200 = vadd.f32 %v4159, %v4199
        %v4201 = vpop.f32.mrb[0].mxu0
        %v4202 = vpop.f32.mrb[0].mxu0
        %4203 = vdwg.mxu0
        %4204 = vmatprep.subr.bf16.mxu0 %v3046
        %4205 = vmatpush1.bf16.msra.mxu0 %v3045
        %4206 = vmatprep.subr.bf16.mxu0 %v3048
        %4207 = vmatpush1.bf16.msra.mxu0 %v3047
        %4208 = vmatprep.subr.bf16.mxu0 %v3050
        %4209 = vmatpush1.bf16.msra.mxu0 %v3049
        %4210 = vmatprep.subr.bf16.mxu0 %v3052
        %4211 = vmatpush1.bf16.msra.mxu0 %v3051
        %4212 = vmatprep.subr.bf16.mxu0 %v3054
        %4213 = vmatpush1.bf16.msra.mxu0 %v3053
        %4214 = vmatprep.subr.bf16.mxu0 %v3056
        %4215 = vmatpush1.bf16.msra.mxu0 %v3055
        %4216 = vmatprep.subr.bf16.mxu0 %v3058
        %4217 = vmatpush1.bf16.msra.mxu0 %v3057
        %4218 = vmatprep.subr.bf16.mxu0 %v3060
        %4219 = vmatpush1.bf16.msra.mxu0 %v3059
        %4220 = vmatprep.subr.bf16.mxu0 %v3062
        %4221 = vmatpush1.bf16.msra.mxu0 %v3061
        %4222 = vmatprep.subr.bf16.mxu0 %v3064
        %4223 = vmatpush1.bf16.msra.mxu0 %v3063
        %4224 = vmatprep.subr.bf16.mxu0 %v3066
        %4225 = vmatpush1.bf16.msra.mxu0 %v3065
        %4226 = vmatprep.subr.bf16.mxu0 %v3068
        %4227 = vmatpush1.bf16.msra.mxu0 %v3067
        %4228 = vmatprep.subr.bf16.mxu0 %v3070
        %4229 = vmatpush1.bf16.msra.mxu0 %v3069
        %4230 = vmatprep.subr.bf16.mxu0 %v3072
        %4231 = vmatpush1.bf16.msra.mxu0 %v3071
        %4232 = vmatprep.subr.bf16.mxu0 %v3074
        %4233 = vmatpush1.bf16.msra.mxu0 %v3073
        %4234 = vmatprep.subr.bf16.mxu0 %v3076
        %4235 = vmatpush1.bf16.msra.mxu0 %v3075
        %4236 = vmatprep.mubr.bf16.mxu0 %v996
        %4237 = vmatmul.mubr.bf16.gmra.mrb[0].mxu0 %v995
        %v4238 = vpop.f32.mrb[0].mxu0
        %v4239 = vadd.f32 %v4198, %v4238
        %v4240 = vpop.f32.mrb[0].mxu0
        %v4241 = vadd.f32 %v4200, %v4240
        %v4242 = vpop.f32.mrb[0].mxu0
        %v4243 = vpop.f32.mrb[0].mxu0
        %4244 = vdwg.mxu0
        %v4245 = vmax.f32 %v4239, 0.0
        %v4246 = vmax.f32 %v4241, 0.0
        %v4247 = vpack.c.bf16 %v4245, %v4245
        %v4248 = vpack.c.bf16 %v4246, %v4246
        %v4249 = vld [vmem:[#allocation8] sm:$0xff]
        %v4250 = vld [vmem:[#allocation8 + $0x8] sm:$0xff]
        %v4251 = vld [vmem:[#allocation8 + $0x10] sm:$0xff]
        %v4252 = vld [vmem:[#allocation8 + $0x18] sm:$0xff]
        %v4253 = vld [vmem:[#allocation8 + $0x20] sm:$0xff]
        %v4254 = vld [vmem:[#allocation8 + $0x28] sm:$0xff]
        %v4255 = vld [vmem:[#allocation8 + $0x30] sm:$0xff]
        %v4256 = vld [vmem:[#allocation8 + $0x38] sm:$0xff]
        %v4257 = vld [vmem:[#allocation8 + $0x40] sm:$0xff]
        %v4258 = vld [vmem:[#allocation8 + $0x48] sm:$0xff]
        %v4259 = vld [vmem:[#allocation8 + $0x50] sm:$0xff]
        %v4260 = vld [vmem:[#allocation8 + $0x58] sm:$0xff]
        %v4261 = vld [vmem:[#allocation8 + $0x60] sm:$0xff]
        %v4262 = vld [vmem:[#allocation8 + $0x68] sm:$0xff]
        %v4263 = vld [vmem:[#allocation8 + $0x70] sm:$0xff]
        %v4264 = vld [vmem:[#allocation8 + $0x78] sm:$0xff]
        %v4265 = vld [vmem:[#allocation8 + $0x80] sm:$0xff]
        %v4266 = vld [vmem:[#allocation8 + $0x88] sm:$0xff]
        %v4267 = vld [vmem:[#allocation8 + $0x90] sm:$0xff]
        %v4268 = vld [vmem:[#allocation8 + $0x98] sm:$0xff]
        %v4269 = vld [vmem:[#allocation8 + $0xa0] sm:$0xff]
        %v4270 = vld [vmem:[#allocation8 + $0xa8] sm:$0xff]
        %v4271 = vld [vmem:[#allocation8 + $0xb0] sm:$0xff]
        %v4272 = vld [vmem:[#allocation8 + $0xb8] sm:$0xff]
        %v4273 = vld [vmem:[#allocation8 + $0xc0] sm:$0xff]
        %v4274 = vld [vmem:[#allocation8 + $0xc8] sm:$0xff]
        %v4275 = vld [vmem:[#allocation8 + $0xd0] sm:$0xff]
        %v4276 = vld [vmem:[#allocation8 + $0xd8] sm:$0xff]
        %v4277 = vld [vmem:[#allocation8 + $0xe0] sm:$0xff]
        %v4278 = vld [vmem:[#allocation8 + $0xe8] sm:$0xff]
        %v4279 = vld [vmem:[#allocation8 + $0xf0] sm:$0xff]
        %v4280 = vld [vmem:[#allocation8 + $0xf8] sm:$0xff]
        %v4281 = vld [vmem:[#allocation10] sm:$0x3]
        %v4283 = vlaneseq
        %v4284 = vshrl.u32 %v4283, 7
        %v4285 = vsub.s32 0, %v4284
        %v4286 = vrot.slane %v4281, %v4285
        %v4287 = vlaneseq
        %v4288 = vshrl.u32 %v4287, 7
        %v4289 = vsub.s32 1, %v4288
        %v4290 = vrot.slane %v4281, %v4289
        %v4325 = vunpack.c.l.b16 %v4249
        %v4326 = vunpack.c.h.b16 %v4249
        %v4327 = vunpack.c.l.b16 %v4250
        %v4328 = vunpack.c.h.b16 %v4250
        %v4329 = vunpack.c.l.b16 %v4251
        %v4330 = vunpack.c.h.b16 %v4251
        %v4331 = vunpack.c.l.b16 %v4252
        %v4332 = vunpack.c.h.b16 %v4252
        %v4333 = vunpack.c.l.b16 %v4253
        %v4334 = vunpack.c.h.b16 %v4253
        %v4335 = vunpack.c.l.b16 %v4254
        %v4336 = vunpack.c.h.b16 %v4254
        %v4337 = vunpack.c.l.b16 %v4255
        %v4338 = vunpack.c.h.b16 %v4255
        %v4339 = vunpack.c.l.b16 %v4256
        %v4340 = vunpack.c.h.b16 %v4256
        %v4341 = vunpack.c.l.b16 %v4257
        %v4342 = vunpack.c.h.b16 %v4257
        %v4343 = vunpack.c.l.b16 %v4258
        %v4344 = vunpack.c.h.b16 %v4258
        %v4345 = vunpack.c.l.b16 %v4259
        %v4346 = vunpack.c.h.b16 %v4259
        %v4347 = vunpack.c.l.b16 %v4260
        %v4348 = vunpack.c.h.b16 %v4260
        %v4349 = vunpack.c.l.b16 %v4261
        %v4350 = vunpack.c.h.b16 %v4261
        %v4351 = vunpack.c.l.b16 %v4262
        %v4352 = vunpack.c.h.b16 %v4262
        %v4353 = vunpack.c.l.b16 %v4263
        %v4354 = vunpack.c.h.b16 %v4263
        %v4355 = vunpack.c.l.b16 %v4264
        %v4356 = vunpack.c.h.b16 %v4264
        %v4357 = vunpack.c.l.b16 %v4265
        %v4358 = vunpack.c.h.b16 %v4265
        %v4359 = vunpack.c.l.b16 %v4266
        %v4360 = vunpack.c.h.b16 %v4266
        %v4361 = vunpack.c.l.b16 %v4267
        %v4362 = vunpack.c.h.b16 %v4267
        %v4363 = vunpack.c.l.b16 %v4268
        %v4364 = vunpack.c.h.b16 %v4268
        %v4365 = vunpack.c.l.b16 %v4269
        %v4366 = vunpack.c.h.b16 %v4269
        %v4367 = vunpack.c.l.b16 %v4270
        %v4368 = vunpack.c.h.b16 %v4270
        %v4369 = vunpack.c.l.b16 %v4271
        %v4370 = vunpack.c.h.b16 %v4271
        %v4371 = vunpack.c.l.b16 %v4272
        %v4372 = vunpack.c.h.b16 %v4272
        %v4373 = vunpack.c.l.b16 %v4273
        %v4374 = vunpack.c.h.b16 %v4273
        %v4375 = vunpack.c.l.b16 %v4274
        %v4376 = vunpack.c.h.b16 %v4274
        %v4377 = vunpack.c.l.b16 %v4275
        %v4378 = vunpack.c.h.b16 %v4275
        %v4379 = vunpack.c.l.b16 %v4276
        %v4380 = vunpack.c.h.b16 %v4276
        %v4381 = vunpack.c.l.b16 %v4277
        %v4382 = vunpack.c.h.b16 %v4277
        %v4383 = vunpack.c.l.b16 %v4278
        %v4384 = vunpack.c.h.b16 %v4278
        %v4385 = vunpack.c.l.b16 %v4279
        %v4386 = vunpack.c.h.b16 %v4279
        %v4387 = vunpack.c.l.b16 %v4280
        %v4388 = vunpack.c.h.b16 %v4280
        %v4389 = vpack.c.b16 %v4327, %v4325
        %v4390 = vpack.c.b16 %v4328, %v4326
        %v4391 = vpack.c.b16 %v4331, %v4329
        %v4392 = vpack.c.b16 %v4332, %v4330
        %v4393 = vpack.c.b16 %v4335, %v4333
        %v4394 = vpack.c.b16 %v4336, %v4334
        %v4395 = vpack.c.b16 %v4339, %v4337
        %v4396 = vpack.c.b16 %v4340, %v4338
        %v4397 = vpack.c.b16 %v4343, %v4341
        %v4398 = vpack.c.b16 %v4344, %v4342
        %v4399 = vpack.c.b16 %v4347, %v4345
        %v4400 = vpack.c.b16 %v4348, %v4346
        %v4401 = vpack.c.b16 %v4351, %v4349
        %v4402 = vpack.c.b16 %v4352, %v4350
        %v4403 = vpack.c.b16 %v4355, %v4353
        %v4404 = vpack.c.b16 %v4356, %v4354
        %v4405 = vpack.c.b16 %v4359, %v4357
        %v4406 = vpack.c.b16 %v4360, %v4358
        %v4407 = vpack.c.b16 %v4363, %v4361
        %v4408 = vpack.c.b16 %v4364, %v4362
        %v4409 = vpack.c.b16 %v4367, %v4365
        %v4410 = vpack.c.b16 %v4368, %v4366
        %v4411 = vpack.c.b16 %v4371, %v4369
        %v4412 = vpack.c.b16 %v4372, %v4370
        %v4413 = vpack.c.b16 %v4375, %v4373
        %v4414 = vpack.c.b16 %v4376, %v4374
        %v4415 = vpack.c.b16 %v4379, %v4377
        %v4416 = vpack.c.b16 %v4380, %v4378
        %v4417 = vpack.c.b16 %v4383, %v4381
        %v4418 = vpack.c.b16 %v4384, %v4382
        %v4419 = vpack.c.b16 %v4387, %v4385
        %v4420 = vpack.c.b16 %v4388, %v4386
        %4453 = vmatprep.subr.bf16.mxu0 %v4390
        %4454 = vmatpush1.bf16.msra.mxu0 %v4389
        %4455 = vmatprep.subr.bf16.mxu0 %v4392
        %4456 = vmatpush1.bf16.msra.mxu0 %v4391
        %4457 = vmatprep.subr.bf16.mxu0 %v4394
        %4458 = vmatpush1.bf16.msra.mxu0 %v4393
        %4459 = vmatprep.subr.bf16.mxu0 %v4396
        %4460 = vmatpush1.bf16.msra.mxu0 %v4395
        %4461 = vmatprep.subr.bf16.mxu0 %v4398
        %4462 = vmatpush1.bf16.msra.mxu0 %v4397
        %4463 = vmatprep.subr.bf16.mxu0 %v4400
        %4464 = vmatpush1.bf16.msra.mxu0 %v4399
        %4465 = vmatprep.subr.bf16.mxu0 %v4402
        %4466 = vmatpush1.bf16.msra.mxu0 %v4401
        %4467 = vmatprep.subr.bf16.mxu0 %v4404
        %4468 = vmatpush1.bf16.msra.mxu0 %v4403
        %4469 = vmatprep.subr.bf16.mxu0 %v4406
        %4470 = vmatpush1.bf16.msra.mxu0 %v4405
        %4471 = vmatprep.subr.bf16.mxu0 %v4408
        %4472 = vmatpush1.bf16.msra.mxu0 %v4407
        %4473 = vmatprep.subr.bf16.mxu0 %v4410
        %4474 = vmatpush1.bf16.msra.mxu0 %v4409
        %4475 = vmatprep.subr.bf16.mxu0 %v4412
        %4476 = vmatpush1.bf16.msra.mxu0 %v4411
        %4477 = vmatprep.subr.bf16.mxu0 %v4414
        %4478 = vmatpush1.bf16.msra.mxu0 %v4413
        %4479 = vmatprep.subr.bf16.mxu0 %v4416
        %4480 = vmatpush1.bf16.msra.mxu0 %v4415
        %4481 = vmatprep.subr.bf16.mxu0 %v4418
        %4482 = vmatpush1.bf16.msra.mxu0 %v4417
        %4483 = vmatprep.subr.bf16.mxu0 %v4420
        %4484 = vmatpush1.bf16.msra.mxu0 %v4419
        %4485 = vmatprep.mubr.bf16.mxu0 %v4248
        %4486 = vmatmul.mubr.bf16.gmra.mrb[0].mxu0 %v4247
        %v4487 = vpop.f32.mrb[0].mxu0
        %v4488 = vadd.f32 %v4286, %v4487
        %v4489 = vpop.f32.mrb[0].mxu0
        %v4490 = vadd.f32 %v4290, %v4489
        %v4491 = vpop.f32.mrb[0].mxu0
        %v4492 = vpop.f32.mrb[0].mxu0
        %4493 = vdwg.mxu0
        %v4494 = vmax.f32 %v4488, 0.0
        %v4495 = vmax.f32 %v4490, 0.0
        %v4496 = vpack.c.bf16 %v4494, %v4494
        %v4497 = vpack.c.bf16 %v4495, %v4495
        %v4498 = vld [vmem:[#allocation11] sm:$0xf]
        %v4499 = vld [vmem:[#allocation11 + $0x4] sm:$0xf]
        %v4500 = vld [vmem:[#allocation11 + $0x8] sm:$0xf]
        %v4501 = vld [vmem:[#allocation11 + $0xc] sm:$0xf]
        %v4502 = vld [vmem:[#allocation11 + $0x10] sm:$0xf]
        %v4503 = vld [vmem:[#allocation11 + $0x14] sm:$0xf]
        %v4504 = vld [vmem:[#allocation11 + $0x18] sm:$0xf]
        %v4505 = vld [vmem:[#allocation11 + $0x1c] sm:$0xf]
        %v4506 = vld [vmem:[#allocation11 + $0x20] sm:$0xf]
        %v4507 = vld [vmem:[#allocation11 + $0x24] sm:$0xf]
        %v4508 = vld [vmem:[#allocation11 + $0x28] sm:$0xf]
        %v4509 = vld [vmem:[#allocation11 + $0x2c] sm:$0xf]
        %v4510 = vld [vmem:[#allocation11 + $0x30] sm:$0xf]
        %v4511 = vld [vmem:[#allocation11 + $0x34] sm:$0xf]
        %v4512 = vld [vmem:[#allocation11 + $0x38] sm:$0xf]
        %v4513 = vld [vmem:[#allocation11 + $0x3c] sm:$0xf]
        %v4514 = vld [vmem:[#allocation11 + $0x40] sm:$0xf]
        %v4515 = vld [vmem:[#allocation11 + $0x44] sm:$0xf]
        %v4516 = vld [vmem:[#allocation11 + $0x48] sm:$0xf]
        %v4517 = vld [vmem:[#allocation11 + $0x4c] sm:$0xf]
        %v4518 = vld [vmem:[#allocation11 + $0x50] sm:$0xf]
        %v4519 = vld [vmem:[#allocation11 + $0x54] sm:$0xf]
        %v4520 = vld [vmem:[#allocation11 + $0x58] sm:$0xf]
        %v4521 = vld [vmem:[#allocation11 + $0x5c] sm:$0xf]
        %v4522 = vld [vmem:[#allocation11 + $0x60] sm:$0xf]
        %v4523 = vld [vmem:[#allocation11 + $0x64] sm:$0xf]
        %v4524 = vld [vmem:[#allocation11 + $0x68] sm:$0xf]
        %v4525 = vld [vmem:[#allocation11 + $0x6c] sm:$0xf]
        %v4526 = vld [vmem:[#allocation11 + $0x70] sm:$0xf]
        %v4527 = vld [vmem:[#allocation11 + $0x74] sm:$0xf]
        %v4528 = vld [vmem:[#allocation11 + $0x78] sm:$0xf]
        %v4529 = vld [vmem:[#allocation11 + $0x7c] sm:$0xf]
        %v4530 = vld [vmem:[#allocation13] sm:$0x1]
        %v4532 = vlaneseq
        %v4533 = vshrl.u32 %v4532, 7
        %v4534 = vsub.s32 0, %v4533
        %v4535 = vrot.slane %v4530, %v4534
        %v4569 = vunpack.c.l.b16 %v4498
        %v4570 = vunpack.c.l.b16 %v4499
        %v4571 = vunpack.c.l.b16 %v4500
        %v4572 = vunpack.c.l.b16 %v4501
        %v4573 = vunpack.c.l.b16 %v4502
        %v4574 = vunpack.c.l.b16 %v4503
        %v4575 = vunpack.c.l.b16 %v4504
        %v4576 = vunpack.c.l.b16 %v4505
        %v4577 = vunpack.c.l.b16 %v4506
        %v4578 = vunpack.c.l.b16 %v4507
        %v4579 = vunpack.c.l.b16 %v4508
        %v4580 = vunpack.c.l.b16 %v4509
        %v4581 = vunpack.c.l.b16 %v4510
        %v4582 = vunpack.c.l.b16 %v4511
        %v4583 = vunpack.c.l.b16 %v4512
        %v4584 = vunpack.c.l.b16 %v4513
        %v4585 = vunpack.c.l.b16 %v4514
        %v4586 = vunpack.c.l.b16 %v4515
        %v4587 = vunpack.c.l.b16 %v4516
        %v4588 = vunpack.c.l.b16 %v4517
        %v4589 = vunpack.c.l.b16 %v4518
        %v4590 = vunpack.c.l.b16 %v4519
        %v4591 = vunpack.c.l.b16 %v4520
        %v4592 = vunpack.c.l.b16 %v4521
        %v4593 = vunpack.c.l.b16 %v4522
        %v4594 = vunpack.c.l.b16 %v4523
        %v4595 = vunpack.c.l.b16 %v4524
        %v4596 = vunpack.c.l.b16 %v4525
        %v4597 = vunpack.c.l.b16 %v4526
        %v4598 = vunpack.c.l.b16 %v4527
        %v4599 = vunpack.c.l.b16 %v4528
        %v4600 = vunpack.c.l.b16 %v4529
        %v4601 = vpack.c.b16 %v4570, %v4569
        %v4602 = vpack.c.b16 %v4572, %v4571
        %v4603 = vpack.c.b16 %v4574, %v4573
        %v4604 = vpack.c.b16 %v4576, %v4575
        %v4605 = vpack.c.b16 %v4578, %v4577
        %v4606 = vpack.c.b16 %v4580, %v4579
        %v4607 = vpack.c.b16 %v4582, %v4581
        %v4608 = vpack.c.b16 %v4584, %v4583
        %v4609 = vpack.c.b16 %v4586, %v4585
        %v4610 = vpack.c.b16 %v4588, %v4587
        %v4611 = vpack.c.b16 %v4590, %v4589
        %v4612 = vpack.c.b16 %v4592, %v4591
        %v4613 = vpack.c.b16 %v4594, %v4593
        %v4614 = vpack.c.b16 %v4596, %v4595
        %v4615 = vpack.c.b16 %v4598, %v4597
        %v4616 = vpack.c.b16 %v4600, %v4599
        %4633 = vmatprep.subr.bf16.mxu0 0
        %4634 = vmatpush1.bf16.msra.mxu0 %v4601
        %4635 = vmatprep.subr.bf16.mxu0 0
        %4636 = vmatpush1.bf16.msra.mxu0 %v4602
        %4637 = vmatprep.subr.bf16.mxu0 0
        %4638 = vmatpush1.bf16.msra.mxu0 %v4603
        %4639 = vmatprep.subr.bf16.mxu0 0
        %4640 = vmatpush1.bf16.msra.mxu0 %v4604
        %4641 = vmatprep.subr.bf16.mxu0 0
        %4642 = vmatpush1.bf16.msra.mxu0 %v4605
        %4643 = vmatprep.subr.bf16.mxu0 0
        %4644 = vmatpush1.bf16.msra.mxu0 %v4606
        %4645 = vmatprep.subr.bf16.mxu0 0
        %4646 = vmatpush1.bf16.msra.mxu0 %v4607
        %4647 = vmatprep.subr.bf16.mxu0 0
        %4648 = vmatpush1.bf16.msra.mxu0 %v4608
        %4649 = vmatprep.subr.bf16.mxu0 0
        %4650 = vmatpush1.bf16.msra.mxu0 %v4609
        %4651 = vmatprep.subr.bf16.mxu0 0
        %4652 = vmatpush1.bf16.msra.mxu0 %v4610
        %4653 = vmatprep.subr.bf16.mxu0 0
        %4654 = vmatpush1.bf16.msra.mxu0 %v4611
        %4655 = vmatprep.subr.bf16.mxu0 0
        %4656 = vmatpush1.bf16.msra.mxu0 %v4612
        %4657 = vmatprep.subr.bf16.mxu0 0
        %4658 = vmatpush1.bf16.msra.mxu0 %v4613
        %4659 = vmatprep.subr.bf16.mxu0 0
        %4660 = vmatpush1.bf16.msra.mxu0 %v4614
        %4661 = vmatprep.subr.bf16.mxu0 0
        %4662 = vmatpush1.bf16.msra.mxu0 %v4615
        %4663 = vmatprep.subr.bf16.mxu0 0
        %4664 = vmatpush1.bf16.msra.mxu0 %v4616
        %4665 = vmatprep.mubr.bf16.mxu0 %v4497
        %4666 = vmatmul.mubr.bf16.gmra.mrb[0].mxu0 %v4496
        %v4667 = vpop.f32.mrb[0].mxu0
        %v4668 = vadd.f32 %v4535, %v4667
        %v4669 = vpop.f32.mrb[0].mxu0
        %v4670 = vpop.f32.mrb[0].mxu0
        %v4671 = vpop.f32.mrb[0].mxu0
        %4672 = vdwg.mxu0
        %4673 = vst [vmem:[%s375] sm:$0xff] %v4668
        %s4674 = sand.u32 %s187, 1
        %s4675 = scalar_lea.sflag [#allocation4], %s4674
        %s4676 = sand.u32 %s187, 1
        %s4677 = smul.addr %s4676, 8
        %s4678 = scalar_lea.vmem [#allocation14], %s4677
        // Predicated region
        $region77: #{tpu_custom_call.1} parent=47 // pred_check
          %p4679 = pneg %p197
        $region78: #{tpu_custom_call.1} parent=47 // pred_check_branch
          %4681 = sbr.rel (%p4679) target = $region80
        $region79: #{tpu_custom_call.1} parent=47 // pred_region
          %s4683 = ssub.s32 128, 128
          %4684 = vsyncadd %s4675, %s4683
          %s4685 = smul.addr %s27, 128
          %s4686 = scalar_lea.hbm %s7, %s4685
          %s4688 = sshll.u32 %s4678, 4
          %s4689 = int_to_ptr.vmem [resolvable:$true] %s4688
          %4691 = dma.vmem_to_hbm [thread:$0]  %s4689, 128, %s4686, %s4675
        $region80: #{tpu_custom_call.1} parent=47 // pred_fallthru
          _
      $region48: #{tpu_custom_call.1} parent=5 // pred_fallthru
        _
      %p4692 = scmp.le.s32.totalorder 2, %s22
      // Predicated region
      $region81: #{tpu_custom_call.1} parent=5 // pred_check
        %p4693 = pneg %p4692
      $region82: #{tpu_custom_call.1} parent=5 // pred_check_branch
        %4695 = sbr.rel (%p4693) target = $region84
      $region83: #{tpu_custom_call.1} parent=5 // pred_region
        %s4696 = ssub.s32 %s22, 2
        // Predicated region
        $region85: #{tpu_custom_call.1} parent=83 // pred_check
          %p4697 = pneg %p203
        $region86: #{tpu_custom_call.1} parent=83 // pred_check_branch
          %4699 = sbr.rel (%p4697) target = $region88
        $region87: #{tpu_custom_call.1} parent=83 // pred_region
          %s4700 = sand.u32 %s188, 1
          %s4701 = scalar_lea.sflag [#allocation4], %s4700
          %s4702 = sand.u32 %s188, 1
          %s4703 = smul.addr %s4702, 8
          %s4704 = scalar_lea.vmem [#allocation14], %s4703
          %4705 = dma.done %s4701, 128
        $region88: #{tpu_custom_call.1} parent=83 // pred_fallthru
          _
      $region84: #{tpu_custom_call.1} parent=5 // pred_fallthru
        _
    $region6: #{tpu_custom_call.1} parent=1 // loop_footer
      %s26 = sadd.s32 1, %s22
    $region7: #{tpu_custom_call.1} parent=1 // loop_footer_branch
      %21 = sbr.rel target = $region3
    $region8: #{tpu_custom_call.1} parent=1 // loop_exit
      _
    %4706 = vsyncpa [#allocation3], 1
    %s4707 = scalar_lea.sflag [#allocation3], 1
    %4708 = vsyncpa %s4707, 1
    %4709 = vsyncpa [#allocation6], 1
    %4710 = vsyncpa [#allocation9], 1
    %4711 = vsyncpa [#allocation12], 1
    %4712 = vsyncpa [#allocation4], 1
    %s4713 = scalar_lea.sflag [#allocation4], 1
    %4714 = vsyncpa %s4713, 1

</llo_original>
